<compile_context>
chip_gen: v7x
topology: tpu7x:2x2x1
jax: 0.10.0
libtpu: 0.0.40
codegen_flags: <defaults>
</compile_context>

<pallas_src>
import functools

import jax
import jax.numpy as jnp
from jax import lax
from jax.experimental import pallas as pl
from jax.experimental.pallas import tpu as pltpu

EPS = 1e-5
LANE = 128


def _round_up(v, m):
    return ((v + m - 1) // m) * m


def _pad2d(a, rows, cols):
    r, c = a.shape
    return jnp.pad(a, ((0, rows - r), (0, cols - c)))


def _vmem_limit_bytes():
    # Raise the scoped-VMEM limit (defaults: 16 MiB v5e, 32 MiB v6e/v7x) while
    # leaving headroom for compiler temporaries.  Falls back to 48 MiB, which is
    # safe on every generation (v7x physical VMEM is 64 MiB).
    try:
        cap = pltpu.get_tpu_info().vmem_capacity_bytes
        return int(cap) * 3 // 4
    except Exception:
        return 48 * 1024 * 1024


# ---------------------------------------------------------------------------
# Fused Pallas kernel: [BN -> GCNConv -> ReLU] x L  (A streamed from HBM)
#                      -> global_add_pool -> [BN -> Linear -> ReLU] x Lf -> BN
# ---------------------------------------------------------------------------
def resgcn_pallas(x_p, a16, rowsum_a, row_mask, pool16,
                  wc, bc, gc, bec, wf, bff, gf, bef, gh, bh,
                  *, n_real, g_real, num_conv_total, num_fc, tm):
    n_pad, hp = x_p.shape
    g_rows = pool16.shape[0]
    num_tiles = n_pad // tm
    inv_n = 1.0 / float(n_real)
    inv_g = 1.0 / float(g_real)

    def kernel(x_ref, a_ref, rs_ref, mask_ref, pool_ref,
               wc_ref, bc_ref, gc_ref, bec_ref,
               wf_ref, bf_ref, gf_ref, bef_ref,
               gh_ref, bh_ref,
               x_out_ref, g_out_ref,
               xa, xb, x16, abuf, sem):

        def col_stats(v, inv_count):
            # One-pass BN statistics: mean and biased var = E[x^2] - E[x]^2.
            s1 = jnp.sum(v, axis=0, keepdims=True)
            s2 = jnp.sum(v * v, axis=0, keepdims=True)
            mean = s1 * inv_count
            var = jnp.maximum(s2 * inv_count - mean * mean, 0.0)
            return mean, var

        def start_fetch(tile_idx, slot):
            pltpu.make_async_copy(
                a_ref.at[pl.ds(tile_idx * tm, tm), :],
                abuf.at[slot],
                sem.at[slot]).start()

        def conv_layer(l, src_ref, dst_ref):
            # Prefetch the first adjacency row-tile; the DMA overlaps with the
            # BN statistics / affine folding below.
            start_fetch(0, 0)

            x = src_ref[...]                                   # [n_pad, hp] f32
            x16[...] = x.astype(jnp.bfloat16)                  # matmul operand
            mean, var = col_stats(x, inv_n)
            s = gc_ref[l] * lax.rsqrt(var + EPS)               # [1, hp]
            t = bec_ref[l] - mean * s                          # [1, hp]
            # BN affine folded into the conv:
            #   (A @ BN(X)) @ W + b = ((A@X)*s) @ W + rowsum(A)*(t@W) + b
            tw = jnp.dot(t, wc_ref[l], preferred_element_type=jnp.float32)
            bias = bc_ref[l]
            w16 = wc_ref[l].astype(jnp.bfloat16)

            def tile_body(tile_idx, carry):
                slot = lax.rem(tile_idx, 2)
                # Wait for the current tile (shapes/sem are what matter).
                pltpu.make_async_copy(a_ref.at[pl.ds(0, tm), :],
                                      abuf.at[slot], sem.at[slot]).wait()

                @pl.when(tile_idx + 1 < num_tiles)
                def _():
                    start_fetch(tile_idx + 1, 1 - slot)

                ax = jnp.dot(abuf[slot], x16[...],
                             preferred_element_type=jnp.float32)  # [tm, hp]
                y = jnp.dot((ax * s).astype(jnp.bfloat16), w16,
                            preferred_element_type=jnp.float32)
                r0 = pl.multiple_of(tile_idx * tm, tm)
                y = y + rs_ref[pl.ds(r0, tm), :] * tw + bias
                # Mask keeps padded rows exactly 0 (protects next layer's
                # batch statistics from the broadcast bias).
                y = jnp.maximum(y, 0.0) * mask_ref[pl.ds(r0, tm), :]
                dst_ref[pl.ds(r0, tm), :] = y
                return carry

            lax.fori_loop(0, num_tiles, tile_body, 0, unroll=False)

        # ---- conv stack: Python loop (static layer params, src/dst scratch
        #      ping-pong by parity).  TODO(synk): fold into lax.fori_loop over a
        #      [2, n_pad, hp] scratch if the layer count grows beyond ~8. ----
        src = x_ref
        bufs = (xa, xb)
        for l in range(num_conv_total):
            dst = bufs[l % 2]
            conv_layer(l, src, dst)
            src = dst
        x_out_ref[...] = src[...]

        # ---- global_add_pool fused on the VMEM-resident activations ----
        g = jnp.dot(pool_ref[...], src[...].astype(jnp.bfloat16),
                    preferred_element_type=jnp.float32)          # [g_rows, hp]

        # ---- fc stack: BN -> Linear -> ReLU ----
        for l in range(num_fc):
            mean, var = col_stats(g, inv_g)
            gb = (g - mean) * lax.rsqrt(var + EPS) * gf_ref[l] + bef_ref[l]
            g = jnp.dot(gb.astype(jnp.bfloat16), wf_ref[l].astype(jnp.bfloat16),
                        preferred_element_type=jnp.float32) + bf_ref[l]
            g = jnp.maximum(g, 0.0)

        # ---- final bn_hidden (dropout = 0) ----
        mean, var = col_stats(g, inv_g)
        g_out_ref[...] = (g - mean) * lax.rsqrt(var + EPS) * gh_ref[...] + bh_ref[...]

    vmem_spec = pl.BlockSpec(memory_space=pltpu.MemorySpace.VMEM)
    hbm_spec = pl.BlockSpec(memory_space=pl.ANY)   # A stays in HBM, streamed

    return pl.pallas_call(
        kernel,
        in_specs=[vmem_spec, hbm_spec] + [vmem_spec] * 13,
        out_specs=(vmem_spec, vmem_spec),
        out_shape=(jax.ShapeDtypeStruct((n_pad, hp), jnp.float32),
                   jax.ShapeDtypeStruct((g_rows, hp), jnp.float32)),
        scratch_shapes=[
            pltpu.VMEM((n_pad, hp), jnp.float32),        # activation ping
            pltpu.VMEM((n_pad, hp), jnp.float32),        # activation pong
            pltpu.VMEM((n_pad, hp), jnp.bfloat16),       # bf16 matmul operand
            pltpu.VMEM((2, tm, n_pad), jnp.bfloat16),    # A row-tile dbl-buffer
            pltpu.SemaphoreType.DMA((2,)),
        ],
        compiler_params=pltpu.CompilerParams(
            vmem_limit_bytes=_vmem_limit_bytes()),
    )(x_p, a16, rowsum_a, row_mask, pool16,
      wc, bc, gc, bec, wf, bff, gf, bef, gh, bh)


# ---------------------------------------------------------------------------
# Glue: normalized adjacency, pooling matrix, params, packing, forward
# ---------------------------------------------------------------------------
def build_norm_adj(edge_index, num_nodes):
    # GCNConv (edge_norm=True, edge_weight=None): D^{-1/2} (A + I) D^{-1/2}
    src, dst = edge_index[0], edge_index[1]
    a = jnp.zeros((num_nodes, num_nodes), jnp.float32).at[dst, src].add(1.0)
    a = a + jnp.eye(num_nodes, dtype=jnp.float32)
    deg = jnp.sum(a, axis=1)
    dinv = jax.lax.rsqrt(jnp.maximum(deg, 1e-12))
    return dinv[:, None] * a * dinv[None, :]


def build_pool_matrix(batch, num_graphs):
    return (batch[None, :] == jnp.arange(num_graphs)[:, None]).astype(jnp.float32)


def init_params(key, num_features, hidden, num_conv_layers, num_fc_layers):
    def lin_init(k, fan_in, fan_out):
        bound = 1.0 / jnp.sqrt(fan_in)
        kw, kb = jax.random.split(k)
        w = jax.random.uniform(kw, (fan_in, fan_out), jnp.float32, -bound, bound)
        b = jax.random.uniform(kb, (1, fan_out), jnp.float32, -bound, bound)
        return w, b

    def bn_init(dim):
        # torch init in ResGCN.__init__: weight = 1, bias = 1e-4
        return jnp.ones((1, dim), jnp.float32), jnp.full((1, dim), 1e-4, jnp.float32)

    keys = jax.random.split(key, 2 + num_conv_layers + (num_fc_layers - 1))
    p = {}
    p["bn_feat"] = bn_init(num_features)
    p["conv_feat"] = lin_init(keys[0], num_features, hidden)
    p["bns_conv"] = [bn_init(hidden) for _ in range(num_conv_layers)]
    p["convs"] = [lin_init(keys[1 + i], hidden, hidden) for i in range(num_conv_layers)]
    p["bns_fc"] = [bn_init(hidden) for _ in range(num_fc_layers - 1)]
    p["lins"] = [lin_init(keys[1 + num_conv_layers + i], hidden, hidden)
                 for i in range(num_fc_layers - 1)]
    p["bn_hidden"] = bn_init(hidden)
    return p


def pack_params(params, hp):
    """Zero-pad every feature/hidden axis to hp (= ceil(dim/128)*128) lanes and
    stack the per-layer params.  Padded gamma/beta/bias columns and padded W
    rows/cols are zero, so padded lanes stay exactly zero end-to-end."""
    cw, cb, cg, cbeta = [], [], [], []
    g0, b0 = params["bn_feat"]
    w0, bb0 = params["conv_feat"]
    cg.append(_pad2d(g0, 1, hp)); cbeta.append(_pad2d(b0, 1, hp))
    cw.append(_pad2d(w0, hp, hp)); cb.append(_pad2d(bb0, 1, hp))
    for (gm, bt), (w, b) in zip(params["bns_conv"], params["convs"]):
        cg.append(_pad2d(gm, 1, hp)); cbeta.append(_pad2d(bt, 1, hp))
        cw.append(_pad2d(w, hp, hp)); cb.append(_pad2d(b, 1, hp))

    fw, fb, fg, fbeta = [], [], [], []
    for (gm, bt), (w, b) in zip(params["bns_fc"], params["lins"]):
        fg.append(_pad2d(gm, 1, hp)); fbeta.append(_pad2d(bt, 1, hp))
        fw.append(_pad2d(w, hp, hp)); fb.append(_pad2d(b, 1, hp))

    gh, bh = params["bn_hidden"]
    return (jnp.stack(cw), jnp.stack(cb), jnp.stack(cg), jnp.stack(cbeta),
            jnp.stack(fw), jnp.stack(fb), jnp.stack(fg), jnp.stack(fbeta),
            _pad2d(gh, 1, hp), _pad2d(bh, 1, hp))


def _prepare_inputs(x, a_norm, pool_mat, params, hidden, tm):
    n, f = x.shape
    g_real = pool_mat.shape[0]
    hp = _round_up(max(f, hidden), LANE)
    n_pad = _round_up(n, tm)
    packed = pack_params(params, hp)
    x_p = _pad2d(x, n_pad, hp)
    a_pad = _pad2d(a_norm, n_pad, n_pad)
    rowsum_a = jnp.sum(a_pad, axis=1, keepdims=True)          # [n_pad, 1] f32
    row_mask = (jnp.arange(n_pad) < n).astype(jnp.float32)[:, None]
    pool16 = _pad2d(pool_mat, g_real, n_pad).astype(jnp.bfloat16)
    a16 = a_pad.astype(jnp.bfloat16)
    return x_p, a16, rowsum_a, row_mask, pool16, packed, n, g_real


@functools.partial(jax.jit, static_argnames=("hidden", "tm"))
def resgcn_forward(x, a_norm, pool_mat, params, *, hidden, tm=256):
    x_p, a16, rowsum_a, row_mask, pool16, packed, n, g_real = _prepare_inputs(
        x, a_norm, pool_mat, params, hidden, tm)
    num_conv_total = 1 + len(params["convs"])
    num_fc = len(params["lins"])
    x_out_p, g_out_p = resgcn_pallas(
        x_p, a16, rowsum_a, row_mask, pool16, *packed,
        n_real=n, g_real=g_real, num_conv_total=num_conv_total,
        num_fc=num_fc, tm=tm)
    return x_out_p[:n, :hidden], g_out_p[:, :hidden]


# ---------------------------------------------------------------------------
# References
# ---------------------------------------------------------------------------
def resgcn_mirror_reference(x, a_norm, pool_mat, params, *, hidden, tm=256):
    """Plain-JAX mirror of the kernel arithmetic (same padding, bf16 matmul
    operands, folded BN affine, one-pass variance). Tight structural check."""
    x_p, a16, rowsum, mask, pool16, packed, n, g_real = _prepare_inputs(
        x, a_norm, pool_mat, params, hidden, tm)
    (wc, bc, gc, bec, wf, bff, gf, bef, gh, bh) = packed
    inv_n, inv_g = 1.0 / float(n), 1.0 / float(g_real)

    def stats(v, inv_count):
        s1 = jnp.sum(v, axis=0, keepdims=True)
        s2 = jnp.sum(v * v, axis=0, keepdims=True)
        mean = s1 * inv_count
        var = jnp.maximum(s2 * inv_count - mean * mean, 0.0)
        return mean, var

    xx = x_p
    for l in range(wc.shape[0]):
        mean, var = stats(xx, inv_n)
        s = gc[l] * jax.lax.rsqrt(var + EPS)
        t = bec[l] - mean * s
        tw = jnp.dot(t, wc[l], preferred_element_type=jnp.float32)
        ax = jnp.dot(a16, xx.astype(jnp.bfloat16),
                     preferred_element_type=jnp.float32)
        y = jnp.dot((ax * s).astype(jnp.bfloat16), wc[l].astype(jnp.bfloat16),
                    preferred_element_type=jnp.float32) + rowsum * tw + bc[l]
        xx = jnp.maximum(y, 0.0) * mask
    g = jnp.dot(pool16, xx.astype(jnp.bfloat16),
                preferred_element_type=jnp.float32)
    for l in range(wf.shape[0]):
        mean, var = stats(g, inv_g)
        gb = (g - mean) * jax.lax.rsqrt(var + EPS) * gf[l] + bef[l]
        g = jnp.maximum(
            jnp.dot(gb.astype(jnp.bfloat16), wf[l].astype(jnp.bfloat16),
                    preferred_element_type=jnp.float32) + bff[l], 0.0)
    mean, var = stats(g, inv_g)
    g = (g - mean) * jax.lax.rsqrt(var + EPS) * gh + bh
    return xx[:n, :hidden], g[:, :hidden]


def resgcn_reference(x, a_norm, pool_mat, params):
    """Faithful f32 reference of the torch module semantics (unfused)."""
    def bn(v, gamma, beta):
        mean = jnp.mean(v, axis=0, keepdims=True)
        var = jnp.mean(jnp.square(v - mean), axis=0, keepdims=True)
        return (v - mean) * jax.lax.rsqrt(var + EPS) * gamma + beta

    gamma, beta = params["bn_feat"]
    w, b = params["conv_feat"]
    x = jnp.maximum(a_norm @ (bn(x, gamma, beta) @ w) + b, 0.0)
    for (gamma, beta), (w, b) in zip(params["bns_conv"], params["convs"]):
        x = jnp.maximum(a_norm @ (bn(x, gamma, beta) @ w) + b, 0.0)
    g = pool_mat @ x
    for (gamma, beta), (w, b) in zip(params["bns_fc"], params["lins"]):
        g = jnp.maximum(bn(g, gamma, beta) @ w + b, 0.0)
    gamma, beta = params["bn_hidden"]
    return x, bn(g, gamma, beta)


if __name__ == "__main__":
    num_features = 16
    hidden = 32
    num_conv_layers = 3
    num_fc_layers = 2
    num_nodes = 16
    num_graphs = 2

    key = jax.random.PRNGKey(0)
    k_x, k_p = jax.random.split(key)

    # Node features
    x = jax.random.normal(k_x, (num_nodes, num_features), jnp.float32)

    # Two graphs of 8 nodes each; bidirectional ring edges inside each graph.
    batch = jnp.concatenate([jnp.zeros(8, jnp.int32), jnp.ones(8, jnp.int32)])
    src_list, dst_list = [], []
    for g0 in (0, 8):
        for i in range(8):
            a, bnode = g0 + i, g0 + (i + 1) % 8
            src_list += [a, bnode]
            dst_list += [bnode, a]
    edge_index = jnp.array([src_list, dst_list], dtype=jnp.int32)

    a_norm = build_norm_adj(edge_index, num_nodes)
    pool_mat = build_pool_matrix(batch, num_graphs)
    params = init_params(k_p, num_features, hidden, num_conv_layers, num_fc_layers)

    x_out, g_out = resgcn_forward(x, a_norm, pool_mat, params, hidden=hidden)
    jax.block_until_ready((x_out, g_out))

    assert x_out.shape == (num_nodes, hidden)
    assert g_out.shape == (num_graphs, hidden)
    assert bool(jnp.all(jnp.isfinite(x_out))) and bool(jnp.all(jnp.isfinite(g_out)))

    # (1) Tight check against a plain-JAX mirror of the kernel arithmetic
    #     (same bf16 operands / BN folding): validates the Pallas plumbing
    #     (DMA streaming, tiling, masking, padding, scratch ping-pong).
    x_m, g_m = resgcn_mirror_reference(x, a_norm, pool_mat, params, hidden=hidden)
    assert jnp.allclose(x_out, x_m, atol=1e-2, rtol=1e-2)
    assert jnp.allclose(g_out, g_m, atol=1e-2, rtol=1e-2)

    # (2) Check node embeddings against the faithful f32 module semantics
    #     (looser: bf16 MXU operands drift slightly).  g_out is not checked vs
    #     the f32 reference because bn_hidden over only 2 graph rows can
    #     amplify bf16-level differences arbitrarily when a column's two graph
    #     values happen to be nearly equal.
    x_r, _ = resgcn_reference(x, a_norm, pool_mat, params)
    assert jnp.allclose(x_out, x_r, atol=5e-2, rtol=5e-2)

    print("KERNEL_OK")
</pallas_src>

<mosaic_0001>
module attributes {stable_mosaic.version = 11 : i64} {
  func.func @kernel(%arg0: memref<256x128xf32, #tpu.memory_space<vmem>>, %arg1: memref<256x256xbf16, #tpu.memory_space<any>>, %arg2: memref<256x1xf32, #tpu.memory_space<vmem>>, %arg3: memref<256x1xf32, #tpu.memory_space<vmem>>, %arg4: memref<2x256xbf16, #tpu.memory_space<vmem>>, %arg5: memref<4x128x128xf32, #tpu.memory_space<vmem>>, %arg6: memref<4x1x128xf32, #tpu.memory_space<vmem>>, %arg7: memref<4x1x128xf32, #tpu.memory_space<vmem>>, %arg8: memref<4x1x128xf32, #tpu.memory_space<vmem>>, %arg9: memref<1x128x128xf32, #tpu.memory_space<vmem>>, %arg10: memref<1x1x128xf32, #tpu.memory_space<vmem>>, %arg11: memref<1x1x128xf32, #tpu.memory_space<vmem>>, %arg12: memref<1x1x128xf32, #tpu.memory_space<vmem>>, %arg13: memref<1x128xf32, #tpu.memory_space<vmem>>, %arg14: memref<1x128xf32, #tpu.memory_space<vmem>>, %arg15: memref<256x128xf32, #tpu.memory_space<vmem>>, %arg16: memref<2x128xf32, #tpu.memory_space<vmem>>, %arg17: memref<256x128xf32, #tpu.memory_space<vmem>>, %arg18: memref<256x128xf32, #tpu.memory_space<vmem>>, %arg19: memref<256x128xbf16, #tpu.memory_space<vmem>>, %arg20: memref<2x256x256xbf16, #tpu.memory_space<vmem>>, %arg21: memref<2x!tpu.dma_semaphore, #tpu.memory_space<semaphore_mem>>) attributes {dimension_semantics = [], scalar_prefetch = 0 : i64, scratch_operands = 5 : i64, tpu.core_type = #tpu.core_type<tc>} {
    %c0_i32 = arith.constant 0 : i32
    %c0_i32_0 = arith.constant 0 : i32
    %c0_i32_1 = arith.constant 0 : i32
    %c0_i32_2 = arith.constant 0 : i32
    %0 = tpu.memref_slice %arg1[%c0_i32_1, %c0_i32_2] : memref<256x256xbf16, #tpu.memory_space<any>> -> memref<256x256xbf16, #tpu.memory_space<any>>
    %c0_i32_3 = arith.constant 0 : i32
    %c0_i32_4 = arith.constant 0 : i32
    %1 = tpu.memref_slice %arg20[%c0_i32, %c0_i32_3, %c0_i32_4] : memref<2x256x256xbf16, #tpu.memory_space<vmem>> -> memref<1x256x256xbf16, #tpu.memory_space<vmem>>
    %2 = tpu.memref_squeeze %1 : memref<1x256x256xbf16, #tpu.memory_space<vmem>> -> memref<256x256xbf16, #tpu.memory_space<vmem>>
    %3 = tpu.memref_slice %arg21[%c0_i32_0] : memref<2x!tpu.dma_semaphore, #tpu.memory_space<semaphore_mem>> -> memref<1x!tpu.dma_semaphore, #tpu.memory_space<semaphore_mem>>
    %4 = tpu.memref_squeeze %3 : memref<1x!tpu.dma_semaphore, #tpu.memory_space<semaphore_mem>> -> memref<!tpu.dma_semaphore, #tpu.memory_space<semaphore_mem>>
    tpu.enqueue_dma source(%0 : memref<256x256xbf16, #tpu.memory_space<any>>) target(%2 : memref<256x256xbf16, #tpu.memory_space<vmem>>) target_semaphore(%4 : memref<!tpu.dma_semaphore, #tpu.memory_space<semaphore_mem>>)
    %c0 = arith.constant 0 : index
    %c0_5 = arith.constant 0 : index
    %5 = vector.load %arg0[%c0, %c0_5] : memref<256x128xf32, #tpu.memory_space<vmem>>, vector<256x128xf32>
    %6 = arith.truncf %5 : vector<256x128xf32> to vector<256x128xbf16>
    %c0_6 = arith.constant 0 : index
    %c0_7 = arith.constant 0 : index
    %7 = vector.load %arg19[%c0_6, %c0_7] : memref<256x128xbf16, #tpu.memory_space<vmem>>, vector<256x128xbf16>
    tpu.vector_store %arg19[%c0_6, %c0_7], %6 {strides = array<i32>} : memref<256x128xbf16, #tpu.memory_space<vmem>>, vector<256x128xbf16>,
    %cst = arith.constant dense<0.000000e+00> : vector<128xf32>
    %8 = vector.multi_reduction <add>, %5, %cst [0] : vector<256x128xf32> to vector<128xf32>
    %9 = vector.shape_cast %8 : vector<128xf32> to vector<1x128xf32>
    %10 = arith.mulf %5, %5 : vector<256x128xf32>
    %cst_8 = arith.constant dense<0.000000e+00> : vector<128xf32>
    %11 = vector.multi_reduction <add>, %10, %cst_8 [0] : vector<256x128xf32> to vector<128xf32>
    %12 = vector.shape_cast %11 : vector<128xf32> to vector<1x128xf32>
    %cst_9 = arith.constant 6.250000e-02 : f32
    %13 = vector.broadcast %cst_9 : f32 to vector<1x128xf32>
    %14 = arith.mulf %9, %13 : vector<1x128xf32>
    %cst_10 = arith.constant 6.250000e-02 : f32
    %15 = vector.broadcast %cst_10 : f32 to vector<1x128xf32>
    %16 = arith.mulf %12, %15 : vector<1x128xf32>
    %17 = arith.mulf %14, %14 : vector<1x128xf32>
    %18 = arith.subf %16, %17 : vector<1x128xf32>
    %cst_11 = arith.constant 0.000000e+00 : f32
    %19 = vector.broadcast %cst_11 : f32 to vector<1x128xf32>
    %20 = arith.maximumf %18, %19 : vector<1x128xf32>
    %c0_12 = arith.constant 0 : index
    %c0_13 = arith.constant 0 : index
    %c0_14 = arith.constant 0 : index
    %21 = vector.load %arg7[%c0_12, %c0_13, %c0_14] : memref<4x1x128xf32, #tpu.memory_space<vmem>>, vector<1x1x128xf32>
    %22 = vector.shape_cast %21 : vector<1x1x128xf32> to vector<1x128xf32>
    %cst_15 = arith.constant 9.99999974E-6 : f32
    %23 = vector.broadcast %cst_15 : f32 to vector<1x128xf32>
    %24 = arith.addf %20, %23 : vector<1x128xf32>
    %25 = math.rsqrt %24 : vector<1x128xf32>
    %26 = arith.mulf %22, %25 : vector<1x128xf32>
    %c0_16 = arith.constant 0 : index
    %c0_17 = arith.constant 0 : index
    %c0_18 = arith.constant 0 : index
    %27 = vector.load %arg8[%c0_16, %c0_17, %c0_18] : memref<4x1x128xf32, #tpu.memory_space<vmem>>, vector<1x1x128xf32>
    %28 = vector.shape_cast %27 : vector<1x1x128xf32> to vector<1x128xf32>
    %29 = arith.mulf %14, %26 : vector<1x128xf32>
    %30 = arith.subf %28, %29 : vector<1x128xf32>
    %c0_19 = arith.constant 0 : index
    %c0_20 = arith.constant 0 : index
    %c0_21 = arith.constant 0 : index
    %31 = vector.load %arg5[%c0_19, %c0_20, %c0_21] : memref<4x128x128xf32, #tpu.memory_space<vmem>>, vector<1x128x128xf32>
    %32 = vector.shape_cast %31 : vector<1x128x128xf32> to vector<128x128xf32>
    %cst_22 = arith.constant dense<0.000000e+00> : vector<1x128xf32>
    %33 = tpu.matmul %30, %32, %cst_22 {dimension_numbers = #tpu.dot_dimension_numbers<[1], [0], [0], [1], [0, 0, 1, 1], [], []>} : vector<1x128xf32>, vector<128x128xf32>, vector<1x128xf32> -> vector<1x128xf32>
    %c0_23 = arith.constant 0 : index
    %c0_24 = arith.constant 0 : index
    %c0_25 = arith.constant 0 : index
    %34 = vector.load %arg6[%c0_23, %c0_24, %c0_25] : memref<4x1x128xf32, #tpu.memory_space<vmem>>, vector<1x1x128xf32>
    %35 = vector.shape_cast %34 : vector<1x1x128xf32> to vector<1x128xf32>
    %c0_26 = arith.constant 0 : index
    %c0_27 = arith.constant 0 : index
    %c0_28 = arith.constant 0 : index
    %36 = vector.load %arg5[%c0_26, %c0_27, %c0_28] : memref<4x128x128xf32, #tpu.memory_space<vmem>>, vector<1x128x128xf32>
    %37 = vector.shape_cast %36 : vector<1x128x128xf32> to vector<128x128xf32>
    %38 = arith.truncf %37 : vector<128x128xf32> to vector<128x128xbf16>
    %c0_i32_29 = arith.constant 0 : i32
    %c2_i32 = arith.constant 2 : i32
    %39 = arith.remsi %c0_i32_29, %c2_i32 : i32
    %c0_i32_30 = arith.constant 0 : i32
    %c0_i32_31 = arith.constant 0 : i32
    %40 = tpu.memref_slice %arg1[%c0_i32_30, %c0_i32_31] : memref<256x256xbf16, #tpu.memory_space<any>> -> memref<256x256xbf16, #tpu.memory_space<any>>
    %c0_i32_32 = arith.constant 0 : i32
    %c0_i32_33 = arith.constant 0 : i32
    %41 = tpu.memref_slice %arg20[%39, %c0_i32_32, %c0_i32_33] : memref<2x256x256xbf16, #tpu.memory_space<vmem>> -> memref<1x256x256xbf16, #tpu.memory_space<vmem>>
    %42 = tpu.memref_squeeze %41 : memref<1x256x256xbf16, #tpu.memory_space<vmem>> -> memref<256x256xbf16, #tpu.memory_space<vmem>>
    %43 = tpu.memref_slice %arg21[%39] : memref<2x!tpu.dma_semaphore, #tpu.memory_space<semaphore_mem>> -> memref<1x!tpu.dma_semaphore, #tpu.memory_space<semaphore_mem>>
    %44 = tpu.memref_squeeze %43 : memref<1x!tpu.dma_semaphore, #tpu.memory_space<semaphore_mem>> -> memref<!tpu.dma_semaphore, #tpu.memory_space<semaphore_mem>>
    tpu.wait_dma2 semaphore(%44 : memref<!tpu.dma_semaphore, #tpu.memory_space<semaphore_mem>>) src(%40 : memref<256x256xbf16, #tpu.memory_space<any>>) dst(%42 : memref<256x256xbf16, #tpu.memory_space<vmem>>)
    %c1_i32 = arith.constant 1 : i32
    %45 = arith.addi %c0_i32_29, %c1_i32 : i32
    %c1_i32_34 = arith.constant 1 : i32
    %46 = arith.cmpi slt, %45, %c1_i32_34 : i32
    %47 = arith.extui %46 : i1 to i32
    %c0_i32_35 = arith.constant 0 : i32
    %48 = arith.cmpi ne, %47, %c0_i32_35 : i32
    scf.if %48 {
      %c1_i32_244 = arith.constant 1 : i32
      %376 = arith.addi %c0_i32_29, %c1_i32_244 : i32
      %c1_i32_245 = arith.constant 1 : i32
      %377 = arith.subi %c1_i32_245, %39 : i32
      %c256_i32_246 = arith.constant 256 : i32
      %378 = arith.muli %376, %c256_i32_246 : i32
      %c0_i32_247 = arith.constant 0 : i32
      %379 = tpu.memref_slice %arg1[%378, %c0_i32_247] : memref<256x256xbf16, #tpu.memory_space<any>> -> memref<256x256xbf16, #tpu.memory_space<any>>
      %c0_i32_248 = arith.constant 0 : i32
      %c0_i32_249 = arith.constant 0 : i32
      %380 = tpu.memref_slice %arg20[%377, %c0_i32_248, %c0_i32_249] : memref<2x256x256xbf16, #tpu.memory_space<vmem>> -> memref<1x256x256xbf16, #tpu.memory_space<vmem>>
      %381 = tpu.memref_squeeze %380 : memref<1x256x256xbf16, #tpu.memory_space<vmem>> -> memref<256x256xbf16, #tpu.memory_space<vmem>>
      %382 = tpu.memref_slice %arg21[%377] : memref<2x!tpu.dma_semaphore, #tpu.memory_space<semaphore_mem>> -> memref<1x!tpu.dma_semaphore, #tpu.memory_space<semaphore_mem>>
      %383 = tpu.memref_squeeze %382 : memref<1x!tpu.dma_semaphore, #tpu.memory_space<semaphore_mem>> -> memref<!tpu.dma_semaphore, #tpu.memory_space<semaphore_mem>>
      tpu.enqueue_dma source(%379 : memref<256x256xbf16, #tpu.memory_space<any>>) target(%381 : memref<256x256xbf16, #tpu.memory_space<vmem>>) target_semaphore(%383 : memref<!tpu.dma_semaphore, #tpu.memory_space<semaphore_mem>>)
    } else {
    }
    %49 = arith.index_cast %39 : i32 to index
    %c0_36 = arith.constant 0 : index
    %c0_37 = arith.constant 0 : index
    %50 = vector.load %arg20[%49, %c0_36, %c0_37] : memref<2x256x256xbf16, #tpu.memory_space<vmem>>, vector<1x256x256xbf16>
    %51 = vector.shape_cast %50 : vector<1x256x256xbf16> to vector<256x256xbf16>
    %c0_38 = arith.constant 0 : index
    %c0_39 = arith.constant 0 : index
    %52 = vector.load %arg19[%c0_38, %c0_39] : memref<256x128xbf16, #tpu.memory_space<vmem>>, vector<256x128xbf16>
    %cst_40 = arith.constant dense<0.000000e+00> : vector<256x128xf32>
    %53 = tpu.matmul %51, %52, %cst_40 {dimension_numbers = #tpu.dot_dimension_numbers<[1], [0], [0], [1], [0, 0, 1, 1], [], []>} : vector<256x256xbf16>, vector<256x128xbf16>, vector<256x128xf32> -> vector<256x128xf32>
    %54 = vector.broadcast %26 : vector<1x128xf32> to vector<256x128xf32>
    %55 = arith.mulf %53, %54 : vector<256x128xf32>
    %56 = arith.truncf %55 : vector<256x128xf32> to vector<256x128xbf16>
    %cst_41 = arith.constant dense<0.000000e+00> : vector<256x128xf32>
    %57 = tpu.matmul %56, %38, %cst_41 {dimension_numbers = #tpu.dot_dimension_numbers<[1], [0], [0], [1], [0, 0, 1, 1], [], []>} : vector<256x128xbf16>, vector<128x128xbf16>, vector<256x128xf32> -> vector<256x128xf32>
    %c256_i32 = arith.constant 256 : i32
    %58 = arith.muli %c0_i32_29, %c256_i32 : i32
    %59 = tpu.assume_multiple %58, 256 : i32
    %60 = arith.index_cast %59 : i32 to index
    %c0_42 = arith.constant 0 : index
    %61 = vector.load %arg2[%60, %c0_42] : memref<256x1xf32, #tpu.memory_space<vmem>>, vector<256x1xf32>
    %62 = vector.broadcast %61 : vector<256x1xf32> to vector<256x128xf32>
    %63 = vector.broadcast %33 : vector<1x128xf32> to vector<256x128xf32>
    %64 = arith.mulf %62, %63 : vector<256x128xf32>
    %65 = arith.addf %57, %64 : vector<256x128xf32>
    %66 = vector.broadcast %35 : vector<1x128xf32> to vector<256x128xf32>
    %67 = arith.addf %65, %66 : vector<256x128xf32>
    %cst_43 = arith.constant 0.000000e+00 : f32
    %68 = vector.broadcast %cst_43 : f32 to vector<256x128xf32>
    %69 = arith.maximumf %67, %68 : vector<256x128xf32>
    %70 = arith.index_cast %59 : i32 to index
    %c0_44 = arith.constant 0 : index
    %71 = vector.load %arg3[%70, %c0_44] : memref<256x1xf32, #tpu.memory_space<vmem>>, vector<256x1xf32>
    %72 = vector.broadcast %71 : vector<256x1xf32> to vector<256x128xf32>
    %73 = arith.mulf %69, %72 : vector<256x128xf32>
    %74 = arith.index_cast %59 : i32 to index
    %c0_45 = arith.constant 0 : index
    %75 = vector.load %arg17[%74, %c0_45] : memref<256x128xf32, #tpu.memory_space<vmem>>, vector<256x128xf32>
    tpu.vector_store %arg17[%74, %c0_45], %73 {strides = array<i32>} : memref<256x128xf32, #tpu.memory_space<vmem>>, vector<256x128xf32>,
    %c1_i32_46 = arith.constant 1 : i32
    %c0_i32_47 = arith.constant 0 : i32
    %c0_i32_48 = arith.constant 0 : i32
    %c0_i32_49 = arith.constant 0 : i32
    %c0_i32_50 = arith.constant 0 : i32
    %76 = tpu.memref_slice %arg1[%c0_i32_49, %c0_i32_50] : memref<256x256xbf16, #tpu.memory_space<any>> -> memref<256x256xbf16, #tpu.memory_space<any>>
    %c0_i32_51 = arith.constant 0 : i32
    %c0_i32_52 = arith.constant 0 : i32
    %77 = tpu.memref_slice %arg20[%c0_i32_47, %c0_i32_51, %c0_i32_52] : memref<2x256x256xbf16, #tpu.memory_space<vmem>> -> memref<1x256x256xbf16, #tpu.memory_space<vmem>>
    %78 = tpu.memref_squeeze %77 : memref<1x256x256xbf16, #tpu.memory_space<vmem>> -> memref<256x256xbf16, #tpu.memory_space<vmem>>
    %79 = tpu.memref_slice %arg21[%c0_i32_48] : memref<2x!tpu.dma_semaphore, #tpu.memory_space<semaphore_mem>> -> memref<1x!tpu.dma_semaphore, #tpu.memory_space<semaphore_mem>>
    %80 = tpu.memref_squeeze %79 : memref<1x!tpu.dma_semaphore, #tpu.memory_space<semaphore_mem>> -> memref<!tpu.dma_semaphore, #tpu.memory_space<semaphore_mem>>
    tpu.enqueue_dma source(%76 : memref<256x256xbf16, #tpu.memory_space<any>>) target(%78 : memref<256x256xbf16, #tpu.memory_space<vmem>>) target_semaphore(%80 : memref<!tpu.dma_semaphore, #tpu.memory_space<semaphore_mem>>)
    %c0_53 = arith.constant 0 : index
    %c0_54 = arith.constant 0 : index
    %81 = vector.load %arg17[%c0_53, %c0_54] : memref<256x128xf32, #tpu.memory_space<vmem>>, vector<256x128xf32>
    %82 = arith.truncf %81 : vector<256x128xf32> to vector<256x128xbf16>
    %c0_55 = arith.constant 0 : index
    %c0_56 = arith.constant 0 : index
    %83 = vector.load %arg19[%c0_55, %c0_56] : memref<256x128xbf16, #tpu.memory_space<vmem>>, vector<256x128xbf16>
    tpu.vector_store %arg19[%c0_55, %c0_56], %82 {strides = array<i32>} : memref<256x128xbf16, #tpu.memory_space<vmem>>, vector<256x128xbf16>,
    %cst_57 = arith.constant dense<0.000000e+00> : vector<128xf32>
    %84 = vector.multi_reduction <add>, %81, %cst_57 [0] : vector<256x128xf32> to vector<128xf32>
    %85 = vector.shape_cast %84 : vector<128xf32> to vector<1x128xf32>
    %86 = arith.mulf %81, %81 : vector<256x128xf32>
    %cst_58 = arith.constant dense<0.000000e+00> : vector<128xf32>
    %87 = vector.multi_reduction <add>, %86, %cst_58 [0] : vector<256x128xf32> to vector<128xf32>
    %88 = vector.shape_cast %87 : vector<128xf32> to vector<1x128xf32>
    %cst_59 = arith.constant 6.250000e-02 : f32
    %89 = vector.broadcast %cst_59 : f32 to vector<1x128xf32>
    %90 = arith.mulf %85, %89 : vector<1x128xf32>
    %cst_60 = arith.constant 6.250000e-02 : f32
    %91 = vector.broadcast %cst_60 : f32 to vector<1x128xf32>
    %92 = arith.mulf %88, %91 : vector<1x128xf32>
    %93 = arith.mulf %90, %90 : vector<1x128xf32>
    %94 = arith.subf %92, %93 : vector<1x128xf32>
    %cst_61 = arith.constant 0.000000e+00 : f32
    %95 = vector.broadcast %cst_61 : f32 to vector<1x128xf32>
    %96 = arith.maximumf %94, %95 : vector<1x128xf32>
    %c1 = arith.constant 1 : index
    %c0_62 = arith.constant 0 : index
    %c0_63 = arith.constant 0 : index
    %97 = vector.load %arg7[%c1, %c0_62, %c0_63] : memref<4x1x128xf32, #tpu.memory_space<vmem>>, vector<1x1x128xf32>
    %98 = vector.shape_cast %97 : vector<1x1x128xf32> to vector<1x128xf32>
    %cst_64 = arith.constant 9.99999974E-6 : f32
    %99 = vector.broadcast %cst_64 : f32 to vector<1x128xf32>
    %100 = arith.addf %96, %99 : vector<1x128xf32>
    %101 = math.rsqrt %100 : vector<1x128xf32>
    %102 = arith.mulf %98, %101 : vector<1x128xf32>
    %c1_65 = arith.constant 1 : index
    %c0_66 = arith.constant 0 : index
    %c0_67 = arith.constant 0 : index
    %103 = vector.load %arg8[%c1_65, %c0_66, %c0_67] : memref<4x1x128xf32, #tpu.memory_space<vmem>>, vector<1x1x128xf32>
    %104 = vector.shape_cast %103 : vector<1x1x128xf32> to vector<1x128xf32>
    %105 = arith.mulf %90, %102 : vector<1x128xf32>
    %106 = arith.subf %104, %105 : vector<1x128xf32>
    %c1_68 = arith.constant 1 : index
    %c0_69 = arith.constant 0 : index
    %c0_70 = arith.constant 0 : index
    %107 = vector.load %arg5[%c1_68, %c0_69, %c0_70] : memref<4x128x128xf32, #tpu.memory_space<vmem>>, vector<1x128x128xf32>
    %108 = vector.shape_cast %107 : vector<1x128x128xf32> to vector<128x128xf32>
    %cst_71 = arith.constant dense<0.000000e+00> : vector<1x128xf32>
    %109 = tpu.matmul %106, %108, %cst_71 {dimension_numbers = #tpu.dot_dimension_numbers<[1], [0], [0], [1], [0, 0, 1, 1], [], []>} : vector<1x128xf32>, vector<128x128xf32>, vector<1x128xf32> -> vector<1x128xf32>
    %c1_72 = arith.constant 1 : index
    %c0_73 = arith.constant 0 : index
    %c0_74 = arith.constant 0 : index
    %110 = vector.load %arg6[%c1_72, %c0_73, %c0_74] : memref<4x1x128xf32, #tpu.memory_space<vmem>>, vector<1x1x128xf32>
    %111 = vector.shape_cast %110 : vector<1x1x128xf32> to vector<1x128xf32>
    %c1_75 = arith.constant 1 : index
    %c0_76 = arith.constant 0 : index
    %c0_77 = arith.constant 0 : index
    %112 = vector.load %arg5[%c1_75, %c0_76, %c0_77] : memref<4x128x128xf32, #tpu.memory_space<vmem>>, vector<1x128x128xf32>
    %113 = vector.shape_cast %112 : vector<1x128x128xf32> to vector<128x128xf32>
    %114 = arith.truncf %113 : vector<128x128xf32> to vector<128x128xbf16>
    %c0_i32_78 = arith.constant 0 : i32
    %c2_i32_79 = arith.constant 2 : i32
    %115 = arith.remsi %c0_i32_78, %c2_i32_79 : i32
    %c0_i32_80 = arith.constant 0 : i32
    %c0_i32_81 = arith.constant 0 : i32
    %116 = tpu.memref_slice %arg1[%c0_i32_80, %c0_i32_81] : memref<256x256xbf16, #tpu.memory_space<any>> -> memref<256x256xbf16, #tpu.memory_space<any>>
    %c0_i32_82 = arith.constant 0 : i32
    %c0_i32_83 = arith.constant 0 : i32
    %117 = tpu.memref_slice %arg20[%115, %c0_i32_82, %c0_i32_83] : memref<2x256x256xbf16, #tpu.memory_space<vmem>> -> memref<1x256x256xbf16, #tpu.memory_space<vmem>>
    %118 = tpu.memref_squeeze %117 : memref<1x256x256xbf16, #tpu.memory_space<vmem>> -> memref<256x256xbf16, #tpu.memory_space<vmem>>
    %119 = tpu.memref_slice %arg21[%115] : memref<2x!tpu.dma_semaphore, #tpu.memory_space<semaphore_mem>> -> memref<1x!tpu.dma_semaphore, #tpu.memory_space<semaphore_mem>>
    %120 = tpu.memref_squeeze %119 : memref<1x!tpu.dma_semaphore, #tpu.memory_space<semaphore_mem>> -> memref<!tpu.dma_semaphore, #tpu.memory_space<semaphore_mem>>
    tpu.wait_dma2 semaphore(%120 : memref<!tpu.dma_semaphore, #tpu.memory_space<semaphore_mem>>) src(%116 : memref<256x256xbf16, #tpu.memory_space<any>>) dst(%118 : memref<256x256xbf16, #tpu.memory_space<vmem>>)
    %c1_i32_84 = arith.constant 1 : i32
    %121 = arith.addi %c0_i32_78, %c1_i32_84 : i32
    %c1_i32_85 = arith.constant 1 : i32
    %122 = arith.cmpi slt, %121, %c1_i32_85 : i32
    %123 = arith.extui %122 : i1 to i32
    %c0_i32_86 = arith.constant 0 : i32
    %124 = arith.cmpi ne, %123, %c0_i32_86 : i32
    scf.if %124 {
      %c1_i32_244 = arith.constant 1 : i32
      %376 = arith.addi %c0_i32_78, %c1_i32_244 : i32
      %c1_i32_245 = arith.constant 1 : i32
      %377 = arith.subi %c1_i32_245, %115 : i32
      %c256_i32_246 = arith.constant 256 : i32
      %378 = arith.muli %376, %c256_i32_246 : i32
      %c0_i32_247 = arith.constant 0 : i32
      %379 = tpu.memref_slice %arg1[%378, %c0_i32_247] : memref<256x256xbf16, #tpu.memory_space<any>> -> memref<256x256xbf16, #tpu.memory_space<any>>
      %c0_i32_248 = arith.constant 0 : i32
      %c0_i32_249 = arith.constant 0 : i32
      %380 = tpu.memref_slice %arg20[%377, %c0_i32_248, %c0_i32_249] : memref<2x256x256xbf16, #tpu.memory_space<vmem>> -> memref<1x256x256xbf16, #tpu.memory_space<vmem>>
      %381 = tpu.memref_squeeze %380 : memref<1x256x256xbf16, #tpu.memory_space<vmem>> -> memref<256x256xbf16, #tpu.memory_space<vmem>>
      %382 = tpu.memref_slice %arg21[%377] : memref<2x!tpu.dma_semaphore, #tpu.memory_space<semaphore_mem>> -> memref<1x!tpu.dma_semaphore, #tpu.memory_space<semaphore_mem>>
      %383 = tpu.memref_squeeze %382 : memref<1x!tpu.dma_semaphore, #tpu.memory_space<semaphore_mem>> -> memref<!tpu.dma_semaphore, #tpu.memory_space<semaphore_mem>>
      tpu.enqueue_dma source(%379 : memref<256x256xbf16, #tpu.memory_space<any>>) target(%381 : memref<256x256xbf16, #tpu.memory_space<vmem>>) target_semaphore(%383 : memref<!tpu.dma_semaphore, #tpu.memory_space<semaphore_mem>>)
    } else {
    }
    %125 = arith.index_cast %115 : i32 to index
    %c0_87 = arith.constant 0 : index
    %c0_88 = arith.constant 0 : index
    %126 = vector.load %arg20[%125, %c0_87, %c0_88] : memref<2x256x256xbf16, #tpu.memory_space<vmem>>, vector<1x256x256xbf16>
    %127 = vector.shape_cast %126 : vector<1x256x256xbf16> to vector<256x256xbf16>
    %c0_89 = arith.constant 0 : index
    %c0_90 = arith.constant 0 : index
    %128 = vector.load %arg19[%c0_89, %c0_90] : memref<256x128xbf16, #tpu.memory_space<vmem>>, vector<256x128xbf16>
    %cst_91 = arith.constant dense<0.000000e+00> : vector<256x128xf32>
    %129 = tpu.matmul %127, %128, %cst_91 {dimension_numbers = #tpu.dot_dimension_numbers<[1], [0], [0], [1], [0, 0, 1, 1], [], []>} : vector<256x256xbf16>, vector<256x128xbf16>, vector<256x128xf32> -> vector<256x128xf32>
    %130 = vector.broadcast %102 : vector<1x128xf32> to vector<256x128xf32>
    %131 = arith.mulf %129, %130 : vector<256x128xf32>
    %132 = arith.truncf %131 : vector<256x128xf32> to vector<256x128xbf16>
    %cst_92 = arith.constant dense<0.000000e+00> : vector<256x128xf32>
    %133 = tpu.matmul %132, %114, %cst_92 {dimension_numbers = #tpu.dot_dimension_numbers<[1], [0], [0], [1], [0, 0, 1, 1], [], []>} : vector<256x128xbf16>, vector<128x128xbf16>, vector<256x128xf32> -> vector<256x128xf32>
    %c256_i32_93 = arith.constant 256 : i32
    %134 = arith.muli %c0_i32_78, %c256_i32_93 : i32
    %135 = tpu.assume_multiple %134, 256 : i32
    %136 = arith.index_cast %135 : i32 to index
    %c0_94 = arith.constant 0 : index
    %137 = vector.load %arg2[%136, %c0_94] : memref<256x1xf32, #tpu.memory_space<vmem>>, vector<256x1xf32>
    %138 = vector.broadcast %137 : vector<256x1xf32> to vector<256x128xf32>
    %139 = vector.broadcast %109 : vector<1x128xf32> to vector<256x128xf32>
    %140 = arith.mulf %138, %139 : vector<256x128xf32>
    %141 = arith.addf %133, %140 : vector<256x128xf32>
    %142 = vector.broadcast %111 : vector<1x128xf32> to vector<256x128xf32>
    %143 = arith.addf %141, %142 : vector<256x128xf32>
    %cst_95 = arith.constant 0.000000e+00 : f32
    %144 = vector.broadcast %cst_95 : f32 to vector<256x128xf32>
    %145 = arith.maximumf %143, %144 : vector<256x128xf32>
    %146 = arith.index_cast %135 : i32 to index
    %c0_96 = arith.constant 0 : index
    %147 = vector.load %arg3[%146, %c0_96] : memref<256x1xf32, #tpu.memory_space<vmem>>, vector<256x1xf32>
    %148 = vector.broadcast %147 : vector<256x1xf32> to vector<256x128xf32>
    %149 = arith.mulf %145, %148 : vector<256x128xf32>
    %150 = arith.index_cast %135 : i32 to index
    %c0_97 = arith.constant 0 : index
    %151 = vector.load %arg18[%150, %c0_97] : memref<256x128xf32, #tpu.memory_space<vmem>>, vector<256x128xf32>
    tpu.vector_store %arg18[%150, %c0_97], %149 {strides = array<i32>} : memref<256x128xf32, #tpu.memory_space<vmem>>, vector<256x128xf32>,
    %c1_i32_98 = arith.constant 1 : i32
    %c0_i32_99 = arith.constant 0 : i32
    %c0_i32_100 = arith.constant 0 : i32
    %c0_i32_101 = arith.constant 0 : i32
    %c0_i32_102 = arith.constant 0 : i32
    %152 = tpu.memref_slice %arg1[%c0_i32_101, %c0_i32_102] : memref<256x256xbf16, #tpu.memory_space<any>> -> memref<256x256xbf16, #tpu.memory_space<any>>
    %c0_i32_103 = arith.constant 0 : i32
    %c0_i32_104 = arith.constant 0 : i32
    %153 = tpu.memref_slice %arg20[%c0_i32_99, %c0_i32_103, %c0_i32_104] : memref<2x256x256xbf16, #tpu.memory_space<vmem>> -> memref<1x256x256xbf16, #tpu.memory_space<vmem>>
    %154 = tpu.memref_squeeze %153 : memref<1x256x256xbf16, #tpu.memory_space<vmem>> -> memref<256x256xbf16, #tpu.memory_space<vmem>>
    %155 = tpu.memref_slice %arg21[%c0_i32_100] : memref<2x!tpu.dma_semaphore, #tpu.memory_space<semaphore_mem>> -> memref<1x!tpu.dma_semaphore, #tpu.memory_space<semaphore_mem>>
    %156 = tpu.memref_squeeze %155 : memref<1x!tpu.dma_semaphore, #tpu.memory_space<semaphore_mem>> -> memref<!tpu.dma_semaphore, #tpu.memory_space<semaphore_mem>>
    tpu.enqueue_dma source(%152 : memref<256x256xbf16, #tpu.memory_space<any>>) target(%154 : memref<256x256xbf16, #tpu.memory_space<vmem>>) target_semaphore(%156 : memref<!tpu.dma_semaphore, #tpu.memory_space<semaphore_mem>>)
    %c0_105 = arith.constant 0 : index
    %c0_106 = arith.constant 0 : index
    %157 = vector.load %arg18[%c0_105, %c0_106] : memref<256x128xf32, #tpu.memory_space<vmem>>, vector<256x128xf32>
    %158 = arith.truncf %157 : vector<256x128xf32> to vector<256x128xbf16>
    %c0_107 = arith.constant 0 : index
    %c0_108 = arith.constant 0 : index
    %159 = vector.load %arg19[%c0_107, %c0_108] : memref<256x128xbf16, #tpu.memory_space<vmem>>, vector<256x128xbf16>
    tpu.vector_store %arg19[%c0_107, %c0_108], %158 {strides = array<i32>} : memref<256x128xbf16, #tpu.memory_space<vmem>>, vector<256x128xbf16>,
    %cst_109 = arith.constant dense<0.000000e+00> : vector<128xf32>
    %160 = vector.multi_reduction <add>, %157, %cst_109 [0] : vector<256x128xf32> to vector<128xf32>
    %161 = vector.shape_cast %160 : vector<128xf32> to vector<1x128xf32>
    %162 = arith.mulf %157, %157 : vector<256x128xf32>
    %cst_110 = arith.constant dense<0.000000e+00> : vector<128xf32>
    %163 = vector.multi_reduction <add>, %162, %cst_110 [0] : vector<256x128xf32> to vector<128xf32>
    %164 = vector.shape_cast %163 : vector<128xf32> to vector<1x128xf32>
    %cst_111 = arith.constant 6.250000e-02 : f32
    %165 = vector.broadcast %cst_111 : f32 to vector<1x128xf32>
    %166 = arith.mulf %161, %165 : vector<1x128xf32>
    %cst_112 = arith.constant 6.250000e-02 : f32
    %167 = vector.broadcast %cst_112 : f32 to vector<1x128xf32>
    %168 = arith.mulf %164, %167 : vector<1x128xf32>
    %169 = arith.mulf %166, %166 : vector<1x128xf32>
    %170 = arith.subf %168, %169 : vector<1x128xf32>
    %cst_113 = arith.constant 0.000000e+00 : f32
    %171 = vector.broadcast %cst_113 : f32 to vector<1x128xf32>
    %172 = arith.maximumf %170, %171 : vector<1x128xf32>
    %c2 = arith.constant 2 : index
    %c0_114 = arith.constant 0 : index
    %c0_115 = arith.constant 0 : index
    %173 = vector.load %arg7[%c2, %c0_114, %c0_115] : memref<4x1x128xf32, #tpu.memory_space<vmem>>, vector<1x1x128xf32>
    %174 = vector.shape_cast %173 : vector<1x1x128xf32> to vector<1x128xf32>
    %cst_116 = arith.constant 9.99999974E-6 : f32
    %175 = vector.broadcast %cst_116 : f32 to vector<1x128xf32>
    %176 = arith.addf %172, %175 : vector<1x128xf32>
    %177 = math.rsqrt %176 : vector<1x128xf32>
    %178 = arith.mulf %174, %177 : vector<1x128xf32>
    %c2_117 = arith.constant 2 : index
    %c0_118 = arith.constant 0 : index
    %c0_119 = arith.constant 0 : index
    %179 = vector.load %arg8[%c2_117, %c0_118, %c0_119] : memref<4x1x128xf32, #tpu.memory_space<vmem>>, vector<1x1x128xf32>
    %180 = vector.shape_cast %179 : vector<1x1x128xf32> to vector<1x128xf32>
    %181 = arith.mulf %166, %178 : vector<1x128xf32>
    %182 = arith.subf %180, %181 : vector<1x128xf32>
    %c2_120 = arith.constant 2 : index
    %c0_121 = arith.constant 0 : index
    %c0_122 = arith.constant 0 : index
    %183 = vector.load %arg5[%c2_120, %c0_121, %c0_122] : memref<4x128x128xf32, #tpu.memory_space<vmem>>, vector<1x128x128xf32>
    %184 = vector.shape_cast %183 : vector<1x128x128xf32> to vector<128x128xf32>
    %cst_123 = arith.constant dense<0.000000e+00> : vector<1x128xf32>
    %185 = tpu.matmul %182, %184, %cst_123 {dimension_numbers = #tpu.dot_dimension_numbers<[1], [0], [0], [1], [0, 0, 1, 1], [], []>} : vector<1x128xf32>, vector<128x128xf32>, vector<1x128xf32> -> vector<1x128xf32>
    %c2_124 = arith.constant 2 : index
    %c0_125 = arith.constant 0 : index
    %c0_126 = arith.constant 0 : index
    %186 = vector.load %arg6[%c2_124, %c0_125, %c0_126] : memref<4x1x128xf32, #tpu.memory_space<vmem>>, vector<1x1x128xf32>
    %187 = vector.shape_cast %186 : vector<1x1x128xf32> to vector<1x128xf32>
    %c2_127 = arith.constant 2 : index
    %c0_128 = arith.constant 0 : index
    %c0_129 = arith.constant 0 : index
    %188 = vector.load %arg5[%c2_127, %c0_128, %c0_129] : memref<4x128x128xf32, #tpu.memory_space<vmem>>, vector<1x128x128xf32>
    %189 = vector.shape_cast %188 : vector<1x128x128xf32> to vector<128x128xf32>
    %190 = arith.truncf %189 : vector<128x128xf32> to vector<128x128xbf16>
    %c0_i32_130 = arith.constant 0 : i32
    %c2_i32_131 = arith.constant 2 : i32
    %191 = arith.remsi %c0_i32_130, %c2_i32_131 : i32
    %c0_i32_132 = arith.constant 0 : i32
    %c0_i32_133 = arith.constant 0 : i32
    %192 = tpu.memref_slice %arg1[%c0_i32_132, %c0_i32_133] : memref<256x256xbf16, #tpu.memory_space<any>> -> memref<256x256xbf16, #tpu.memory_space<any>>
    %c0_i32_134 = arith.constant 0 : i32
    %c0_i32_135 = arith.constant 0 : i32
    %193 = tpu.memref_slice %arg20[%191, %c0_i32_134, %c0_i32_135] : memref<2x256x256xbf16, #tpu.memory_space<vmem>> -> memref<1x256x256xbf16, #tpu.memory_space<vmem>>
    %194 = tpu.memref_squeeze %193 : memref<1x256x256xbf16, #tpu.memory_space<vmem>> -> memref<256x256xbf16, #tpu.memory_space<vmem>>
    %195 = tpu.memref_slice %arg21[%191] : memref<2x!tpu.dma_semaphore, #tpu.memory_space<semaphore_mem>> -> memref<1x!tpu.dma_semaphore, #tpu.memory_space<semaphore_mem>>
    %196 = tpu.memref_squeeze %195 : memref<1x!tpu.dma_semaphore, #tpu.memory_space<semaphore_mem>> -> memref<!tpu.dma_semaphore, #tpu.memory_space<semaphore_mem>>
    tpu.wait_dma2 semaphore(%196 : memref<!tpu.dma_semaphore, #tpu.memory_space<semaphore_mem>>) src(%192 : memref<256x256xbf16, #tpu.memory_space<any>>) dst(%194 : memref<256x256xbf16, #tpu.memory_space<vmem>>)
    %c1_i32_136 = arith.constant 1 : i32
    %197 = arith.addi %c0_i32_130, %c1_i32_136 : i32
    %c1_i32_137 = arith.constant 1 : i32
    %198 = arith.cmpi slt, %197, %c1_i32_137 : i32
    %199 = arith.extui %198 : i1 to i32
    %c0_i32_138 = arith.constant 0 : i32
    %200 = arith.cmpi ne, %199, %c0_i32_138 : i32
    scf.if %200 {
      %c1_i32_244 = arith.constant 1 : i32
      %376 = arith.addi %c0_i32_130, %c1_i32_244 : i32
      %c1_i32_245 = arith.constant 1 : i32
      %377 = arith.subi %c1_i32_245, %191 : i32
      %c256_i32_246 = arith.constant 256 : i32
      %378 = arith.muli %376, %c256_i32_246 : i32
      %c0_i32_247 = arith.constant 0 : i32
      %379 = tpu.memref_slice %arg1[%378, %c0_i32_247] : memref<256x256xbf16, #tpu.memory_space<any>> -> memref<256x256xbf16, #tpu.memory_space<any>>
      %c0_i32_248 = arith.constant 0 : i32
      %c0_i32_249 = arith.constant 0 : i32
      %380 = tpu.memref_slice %arg20[%377, %c0_i32_248, %c0_i32_249] : memref<2x256x256xbf16, #tpu.memory_space<vmem>> -> memref<1x256x256xbf16, #tpu.memory_space<vmem>>
      %381 = tpu.memref_squeeze %380 : memref<1x256x256xbf16, #tpu.memory_space<vmem>> -> memref<256x256xbf16, #tpu.memory_space<vmem>>
      %382 = tpu.memref_slice %arg21[%377] : memref<2x!tpu.dma_semaphore, #tpu.memory_space<semaphore_mem>> -> memref<1x!tpu.dma_semaphore, #tpu.memory_space<semaphore_mem>>
      %383 = tpu.memref_squeeze %382 : memref<1x!tpu.dma_semaphore, #tpu.memory_space<semaphore_mem>> -> memref<!tpu.dma_semaphore, #tpu.memory_space<semaphore_mem>>
      tpu.enqueue_dma source(%379 : memref<256x256xbf16, #tpu.memory_space<any>>) target(%381 : memref<256x256xbf16, #tpu.memory_space<vmem>>) target_semaphore(%383 : memref<!tpu.dma_semaphore, #tpu.memory_space<semaphore_mem>>)
    } else {
    }
    %201 = arith.index_cast %191 : i32 to index
    %c0_139 = arith.constant 0 : index
    %c0_140 = arith.constant 0 : index
    %202 = vector.load %arg20[%201, %c0_139, %c0_140] : memref<2x256x256xbf16, #tpu.memory_space<vmem>>, vector<1x256x256xbf16>
    %203 = vector.shape_cast %202 : vector<1x256x256xbf16> to vector<256x256xbf16>
    %c0_141 = arith.constant 0 : index
    %c0_142 = arith.constant 0 : index
    %204 = vector.load %arg19[%c0_141, %c0_142] : memref<256x128xbf16, #tpu.memory_space<vmem>>, vector<256x128xbf16>
    %cst_143 = arith.constant dense<0.000000e+00> : vector<256x128xf32>
    %205 = tpu.matmul %203, %204, %cst_143 {dimension_numbers = #tpu.dot_dimension_numbers<[1], [0], [0], [1], [0, 0, 1, 1], [], []>} : vector<256x256xbf16>, vector<256x128xbf16>, vector<256x128xf32> -> vector<256x128xf32>
    %206 = vector.broadcast %178 : vector<1x128xf32> to vector<256x128xf32>
    %207 = arith.mulf %205, %206 : vector<256x128xf32>
    %208 = arith.truncf %207 : vector<256x128xf32> to vector<256x128xbf16>
    %cst_144 = arith.constant dense<0.000000e+00> : vector<256x128xf32>
    %209 = tpu.matmul %208, %190, %cst_144 {dimension_numbers = #tpu.dot_dimension_numbers<[1], [0], [0], [1], [0, 0, 1, 1], [], []>} : vector<256x128xbf16>, vector<128x128xbf16>, vector<256x128xf32> -> vector<256x128xf32>
    %c256_i32_145 = arith.constant 256 : i32
    %210 = arith.muli %c0_i32_130, %c256_i32_145 : i32
    %211 = tpu.assume_multiple %210, 256 : i32
    %212 = arith.index_cast %211 : i32 to index
    %c0_146 = arith.constant 0 : index
    %213 = vector.load %arg2[%212, %c0_146] : memref<256x1xf32, #tpu.memory_space<vmem>>, vector<256x1xf32>
    %214 = vector.broadcast %213 : vector<256x1xf32> to vector<256x128xf32>
    %215 = vector.broadcast %185 : vector<1x128xf32> to vector<256x128xf32>
    %216 = arith.mulf %214, %215 : vector<256x128xf32>
    %217 = arith.addf %209, %216 : vector<256x128xf32>
    %218 = vector.broadcast %187 : vector<1x128xf32> to vector<256x128xf32>
    %219 = arith.addf %217, %218 : vector<256x128xf32>
    %cst_147 = arith.constant 0.000000e+00 : f32
    %220 = vector.broadcast %cst_147 : f32 to vector<256x128xf32>
    %221 = arith.maximumf %219, %220 : vector<256x128xf32>
    %222 = arith.index_cast %211 : i32 to index
    %c0_148 = arith.constant 0 : index
    %223 = vector.load %arg3[%222, %c0_148] : memref<256x1xf32, #tpu.memory_space<vmem>>, vector<256x1xf32>
    %224 = vector.broadcast %223 : vector<256x1xf32> to vector<256x128xf32>
    %225 = arith.mulf %221, %224 : vector<256x128xf32>
    %226 = arith.index_cast %211 : i32 to index
    %c0_149 = arith.constant 0 : index
    %227 = vector.load %arg17[%226, %c0_149] : memref<256x128xf32, #tpu.memory_space<vmem>>, vector<256x128xf32>
    tpu.vector_store %arg17[%226, %c0_149], %225 {strides = array<i32>} : memref<256x128xf32, #tpu.memory_space<vmem>>, vector<256x128xf32>,
    %c1_i32_150 = arith.constant 1 : i32
    %c0_i32_151 = arith.constant 0 : i32
    %c0_i32_152 = arith.constant 0 : i32
    %c0_i32_153 = arith.constant 0 : i32
    %c0_i32_154 = arith.constant 0 : i32
    %228 = tpu.memref_slice %arg1[%c0_i32_153, %c0_i32_154] : memref<256x256xbf16, #tpu.memory_space<any>> -> memref<256x256xbf16, #tpu.memory_space<any>>
    %c0_i32_155 = arith.constant 0 : i32
    %c0_i32_156 = arith.constant 0 : i32
    %229 = tpu.memref_slice %arg20[%c0_i32_151, %c0_i32_155, %c0_i32_156] : memref<2x256x256xbf16, #tpu.memory_space<vmem>> -> memref<1x256x256xbf16, #tpu.memory_space<vmem>>
    %230 = tpu.memref_squeeze %229 : memref<1x256x256xbf16, #tpu.memory_space<vmem>> -> memref<256x256xbf16, #tpu.memory_space<vmem>>
    %231 = tpu.memref_slice %arg21[%c0_i32_152] : memref<2x!tpu.dma_semaphore, #tpu.memory_space<semaphore_mem>> -> memref<1x!tpu.dma_semaphore, #tpu.memory_space<semaphore_mem>>
    %232 = tpu.memref_squeeze %231 : memref<1x!tpu.dma_semaphore, #tpu.memory_space<semaphore_mem>> -> memref<!tpu.dma_semaphore, #tpu.memory_space<semaphore_mem>>
    tpu.enqueue_dma source(%228 : memref<256x256xbf16, #tpu.memory_space<any>>) target(%230 : memref<256x256xbf16, #tpu.memory_space<vmem>>) target_semaphore(%232 : memref<!tpu.dma_semaphore, #tpu.memory_space<semaphore_mem>>)
    %c0_157 = arith.constant 0 : index
    %c0_158 = arith.constant 0 : index
    %233 = vector.load %arg17[%c0_157, %c0_158] : memref<256x128xf32, #tpu.memory_space<vmem>>, vector<256x128xf32>
    %234 = arith.truncf %233 : vector<256x128xf32> to vector<256x128xbf16>
    %c0_159 = arith.constant 0 : index
    %c0_160 = arith.constant 0 : index
    %235 = vector.load %arg19[%c0_159, %c0_160] : memref<256x128xbf16, #tpu.memory_space<vmem>>, vector<256x128xbf16>
    tpu.vector_store %arg19[%c0_159, %c0_160], %234 {strides = array<i32>} : memref<256x128xbf16, #tpu.memory_space<vmem>>, vector<256x128xbf16>,
    %cst_161 = arith.constant dense<0.000000e+00> : vector<128xf32>
    %236 = vector.multi_reduction <add>, %233, %cst_161 [0] : vector<256x128xf32> to vector<128xf32>
    %237 = vector.shape_cast %236 : vector<128xf32> to vector<1x128xf32>
    %238 = arith.mulf %233, %233 : vector<256x128xf32>
    %cst_162 = arith.constant dense<0.000000e+00> : vector<128xf32>
    %239 = vector.multi_reduction <add>, %238, %cst_162 [0] : vector<256x128xf32> to vector<128xf32>
    %240 = vector.shape_cast %239 : vector<128xf32> to vector<1x128xf32>
    %cst_163 = arith.constant 6.250000e-02 : f32
    %241 = vector.broadcast %cst_163 : f32 to vector<1x128xf32>
    %242 = arith.mulf %237, %241 : vector<1x128xf32>
    %cst_164 = arith.constant 6.250000e-02 : f32
    %243 = vector.broadcast %cst_164 : f32 to vector<1x128xf32>
    %244 = arith.mulf %240, %243 : vector<1x128xf32>
    %245 = arith.mulf %242, %242 : vector<1x128xf32>
    %246 = arith.subf %244, %245 : vector<1x128xf32>
    %cst_165 = arith.constant 0.000000e+00 : f32
    %247 = vector.broadcast %cst_165 : f32 to vector<1x128xf32>
    %248 = arith.maximumf %246, %247 : vector<1x128xf32>
    %c3 = arith.constant 3 : index
    %c0_166 = arith.constant 0 : index
    %c0_167 = arith.constant 0 : index
    %249 = vector.load %arg7[%c3, %c0_166, %c0_167] : memref<4x1x128xf32, #tpu.memory_space<vmem>>, vector<1x1x128xf32>
    %250 = vector.shape_cast %249 : vector<1x1x128xf32> to vector<1x128xf32>
    %cst_168 = arith.constant 9.99999974E-6 : f32
    %251 = vector.broadcast %cst_168 : f32 to vector<1x128xf32>
    %252 = arith.addf %248, %251 : vector<1x128xf32>
    %253 = math.rsqrt %252 : vector<1x128xf32>
    %254 = arith.mulf %250, %253 : vector<1x128xf32>
    %c3_169 = arith.constant 3 : index
    %c0_170 = arith.constant 0 : index
    %c0_171 = arith.constant 0 : index
    %255 = vector.load %arg8[%c3_169, %c0_170, %c0_171] : memref<4x1x128xf32, #tpu.memory_space<vmem>>, vector<1x1x128xf32>
    %256 = vector.shape_cast %255 : vector<1x1x128xf32> to vector<1x128xf32>
    %257 = arith.mulf %242, %254 : vector<1x128xf32>
    %258 = arith.subf %256, %257 : vector<1x128xf32>
    %c3_172 = arith.constant 3 : index
    %c0_173 = arith.constant 0 : index
    %c0_174 = arith.constant 0 : index
    %259 = vector.load %arg5[%c3_172, %c0_173, %c0_174] : memref<4x128x128xf32, #tpu.memory_space<vmem>>, vector<1x128x128xf32>
    %260 = vector.shape_cast %259 : vector<1x128x128xf32> to vector<128x128xf32>
    %cst_175 = arith.constant dense<0.000000e+00> : vector<1x128xf32>
    %261 = tpu.matmul %258, %260, %cst_175 {dimension_numbers = #tpu.dot_dimension_numbers<[1], [0], [0], [1], [0, 0, 1, 1], [], []>} : vector<1x128xf32>, vector<128x128xf32>, vector<1x128xf32> -> vector<1x128xf32>
    %c3_176 = arith.constant 3 : index
    %c0_177 = arith.constant 0 : index
    %c0_178 = arith.constant 0 : index
    %262 = vector.load %arg6[%c3_176, %c0_177, %c0_178] : memref<4x1x128xf32, #tpu.memory_space<vmem>>, vector<1x1x128xf32>
    %263 = vector.shape_cast %262 : vector<1x1x128xf32> to vector<1x128xf32>
    %c3_179 = arith.constant 3 : index
    %c0_180 = arith.constant 0 : index
    %c0_181 = arith.constant 0 : index
    %264 = vector.load %arg5[%c3_179, %c0_180, %c0_181] : memref<4x128x128xf32, #tpu.memory_space<vmem>>, vector<1x128x128xf32>
    %265 = vector.shape_cast %264 : vector<1x128x128xf32> to vector<128x128xf32>
    %266 = arith.truncf %265 : vector<128x128xf32> to vector<128x128xbf16>
    %c0_i32_182 = arith.constant 0 : i32
    %c2_i32_183 = arith.constant 2 : i32
    %267 = arith.remsi %c0_i32_182, %c2_i32_183 : i32
    %c0_i32_184 = arith.constant 0 : i32
    %c0_i32_185 = arith.constant 0 : i32
    %268 = tpu.memref_slice %arg1[%c0_i32_184, %c0_i32_185] : memref<256x256xbf16, #tpu.memory_space<any>> -> memref<256x256xbf16, #tpu.memory_space<any>>
    %c0_i32_186 = arith.constant 0 : i32
    %c0_i32_187 = arith.constant 0 : i32
    %269 = tpu.memref_slice %arg20[%267, %c0_i32_186, %c0_i32_187] : memref<2x256x256xbf16, #tpu.memory_space<vmem>> -> memref<1x256x256xbf16, #tpu.memory_space<vmem>>
    %270 = tpu.memref_squeeze %269 : memref<1x256x256xbf16, #tpu.memory_space<vmem>> -> memref<256x256xbf16, #tpu.memory_space<vmem>>
    %271 = tpu.memref_slice %arg21[%267] : memref<2x!tpu.dma_semaphore, #tpu.memory_space<semaphore_mem>> -> memref<1x!tpu.dma_semaphore, #tpu.memory_space<semaphore_mem>>
    %272 = tpu.memref_squeeze %271 : memref<1x!tpu.dma_semaphore, #tpu.memory_space<semaphore_mem>> -> memref<!tpu.dma_semaphore, #tpu.memory_space<semaphore_mem>>
    tpu.wait_dma2 semaphore(%272 : memref<!tpu.dma_semaphore, #tpu.memory_space<semaphore_mem>>) src(%268 : memref<256x256xbf16, #tpu.memory_space<any>>) dst(%270 : memref<256x256xbf16, #tpu.memory_space<vmem>>)
    %c1_i32_188 = arith.constant 1 : i32
    %273 = arith.addi %c0_i32_182, %c1_i32_188 : i32
    %c1_i32_189 = arith.constant 1 : i32
    %274 = arith.cmpi slt, %273, %c1_i32_189 : i32
    %275 = arith.extui %274 : i1 to i32
    %c0_i32_190 = arith.constant 0 : i32
    %276 = arith.cmpi ne, %275, %c0_i32_190 : i32
    scf.if %276 {
      %c1_i32_244 = arith.constant 1 : i32
      %376 = arith.addi %c0_i32_182, %c1_i32_244 : i32
      %c1_i32_245 = arith.constant 1 : i32
      %377 = arith.subi %c1_i32_245, %267 : i32
      %c256_i32_246 = arith.constant 256 : i32
      %378 = arith.muli %376, %c256_i32_246 : i32
      %c0_i32_247 = arith.constant 0 : i32
      %379 = tpu.memref_slice %arg1[%378, %c0_i32_247] : memref<256x256xbf16, #tpu.memory_space<any>> -> memref<256x256xbf16, #tpu.memory_space<any>>
      %c0_i32_248 = arith.constant 0 : i32
      %c0_i32_249 = arith.constant 0 : i32
      %380 = tpu.memref_slice %arg20[%377, %c0_i32_248, %c0_i32_249] : memref<2x256x256xbf16, #tpu.memory_space<vmem>> -> memref<1x256x256xbf16, #tpu.memory_space<vmem>>
      %381 = tpu.memref_squeeze %380 : memref<1x256x256xbf16, #tpu.memory_space<vmem>> -> memref<256x256xbf16, #tpu.memory_space<vmem>>
      %382 = tpu.memref_slice %arg21[%377] : memref<2x!tpu.dma_semaphore, #tpu.memory_space<semaphore_mem>> -> memref<1x!tpu.dma_semaphore, #tpu.memory_space<semaphore_mem>>
      %383 = tpu.memref_squeeze %382 : memref<1x!tpu.dma_semaphore, #tpu.memory_space<semaphore_mem>> -> memref<!tpu.dma_semaphore, #tpu.memory_space<semaphore_mem>>
      tpu.enqueue_dma source(%379 : memref<256x256xbf16, #tpu.memory_space<any>>) target(%381 : memref<256x256xbf16, #tpu.memory_space<vmem>>) target_semaphore(%383 : memref<!tpu.dma_semaphore, #tpu.memory_space<semaphore_mem>>)
    } else {
    }
    %277 = arith.index_cast %267 : i32 to index
    %c0_191 = arith.constant 0 : index
    %c0_192 = arith.constant 0 : index
    %278 = vector.load %arg20[%277, %c0_191, %c0_192] : memref<2x256x256xbf16, #tpu.memory_space<vmem>>, vector<1x256x256xbf16>
    %279 = vector.shape_cast %278 : vector<1x256x256xbf16> to vector<256x256xbf16>
    %c0_193 = arith.constant 0 : index
    %c0_194 = arith.constant 0 : index
    %280 = vector.load %arg19[%c0_193, %c0_194] : memref<256x128xbf16, #tpu.memory_space<vmem>>, vector<256x128xbf16>
    %cst_195 = arith.constant dense<0.000000e+00> : vector<256x128xf32>
    %281 = tpu.matmul %279, %280, %cst_195 {dimension_numbers = #tpu.dot_dimension_numbers<[1], [0], [0], [1], [0, 0, 1, 1], [], []>} : vector<256x256xbf16>, vector<256x128xbf16>, vector<256x128xf32> -> vector<256x128xf32>
    %282 = vector.broadcast %254 : vector<1x128xf32> to vector<256x128xf32>
    %283 = arith.mulf %281, %282 : vector<256x128xf32>
    %284 = arith.truncf %283 : vector<256x128xf32> to vector<256x128xbf16>
    %cst_196 = arith.constant dense<0.000000e+00> : vector<256x128xf32>
    %285 = tpu.matmul %284, %266, %cst_196 {dimension_numbers = #tpu.dot_dimension_numbers<[1], [0], [0], [1], [0, 0, 1, 1], [], []>} : vector<256x128xbf16>, vector<128x128xbf16>, vector<256x128xf32> -> vector<256x128xf32>
    %c256_i32_197 = arith.constant 256 : i32
    %286 = arith.muli %c0_i32_182, %c256_i32_197 : i32
    %287 = tpu.assume_multiple %286, 256 : i32
    %288 = arith.index_cast %287 : i32 to index
    %c0_198 = arith.constant 0 : index
    %289 = vector.load %arg2[%288, %c0_198] : memref<256x1xf32, #tpu.memory_space<vmem>>, vector<256x1xf32>
    %290 = vector.broadcast %289 : vector<256x1xf32> to vector<256x128xf32>
    %291 = vector.broadcast %261 : vector<1x128xf32> to vector<256x128xf32>
    %292 = arith.mulf %290, %291 : vector<256x128xf32>
    %293 = arith.addf %285, %292 : vector<256x128xf32>
    %294 = vector.broadcast %263 : vector<1x128xf32> to vector<256x128xf32>
    %295 = arith.addf %293, %294 : vector<256x128xf32>
    %cst_199 = arith.constant 0.000000e+00 : f32
    %296 = vector.broadcast %cst_199 : f32 to vector<256x128xf32>
    %297 = arith.maximumf %295, %296 : vector<256x128xf32>
    %298 = arith.index_cast %287 : i32 to index
    %c0_200 = arith.constant 0 : index
    %299 = vector.load %arg3[%298, %c0_200] : memref<256x1xf32, #tpu.memory_space<vmem>>, vector<256x1xf32>
    %300 = vector.broadcast %299 : vector<256x1xf32> to vector<256x128xf32>
    %301 = arith.mulf %297, %300 : vector<256x128xf32>
    %302 = arith.index_cast %287 : i32 to index
    %c0_201 = arith.constant 0 : index
    %303 = vector.load %arg18[%302, %c0_201] : memref<256x128xf32, #tpu.memory_space<vmem>>, vector<256x128xf32>
    tpu.vector_store %arg18[%302, %c0_201], %301 {strides = array<i32>} : memref<256x128xf32, #tpu.memory_space<vmem>>, vector<256x128xf32>,
    %c1_i32_202 = arith.constant 1 : i32
    %c0_203 = arith.constant 0 : index
    %c0_204 = arith.constant 0 : index
    %304 = vector.load %arg18[%c0_203, %c0_204] : memref<256x128xf32, #tpu.memory_space<vmem>>, vector<256x128xf32>
    %c0_205 = arith.constant 0 : index
    %c0_206 = arith.constant 0 : index
    %305 = vector.load %arg15[%c0_205, %c0_206] : memref<256x128xf32, #tpu.memory_space<vmem>>, vector<256x128xf32>
    tpu.vector_store %arg15[%c0_205, %c0_206], %304 {strides = array<i32>} : memref<256x128xf32, #tpu.memory_space<vmem>>, vector<256x128xf32>,
    %c0_207 = arith.constant 0 : index
    %c0_208 = arith.constant 0 : index
    %306 = vector.load %arg4[%c0_207, %c0_208] : memref<2x256xbf16, #tpu.memory_space<vmem>>, vector<2x256xbf16>
    %c0_209 = arith.constant 0 : index
    %c0_210 = arith.constant 0 : index
    %307 = vector.load %arg18[%c0_209, %c0_210] : memref<256x128xf32, #tpu.memory_space<vmem>>, vector<256x128xf32>
    %308 = arith.truncf %307 : vector<256x128xf32> to vector<256x128xbf16>
    %cst_211 = arith.constant dense<0.000000e+00> : vector<2x128xf32>
    %309 = tpu.matmul %306, %308, %cst_211 {dimension_numbers = #tpu.dot_dimension_numbers<[1], [0], [0], [1], [0, 0, 1, 1], [], []>} : vector<2x256xbf16>, vector<256x128xbf16>, vector<2x128xf32> -> vector<2x128xf32>
    %cst_212 = arith.constant dense<0.000000e+00> : vector<128xf32>
    %310 = vector.multi_reduction <add>, %309, %cst_212 [0] : vector<2x128xf32> to vector<128xf32>
    %311 = vector.shape_cast %310 : vector<128xf32> to vector<1x128xf32>
    %312 = arith.mulf %309, %309 : vector<2x128xf32>
    %cst_213 = arith.constant dense<0.000000e+00> : vector<128xf32>
    %313 = vector.multi_reduction <add>, %312, %cst_213 [0] : vector<2x128xf32> to vector<128xf32>
    %314 = vector.shape_cast %313 : vector<128xf32> to vector<1x128xf32>
    %cst_214 = arith.constant 5.000000e-01 : f32
    %315 = vector.broadcast %cst_214 : f32 to vector<1x128xf32>
    %316 = arith.mulf %311, %315 : vector<1x128xf32>
    %cst_215 = arith.constant 5.000000e-01 : f32
    %317 = vector.broadcast %cst_215 : f32 to vector<1x128xf32>
    %318 = arith.mulf %314, %317 : vector<1x128xf32>
    %319 = arith.mulf %316, %316 : vector<1x128xf32>
    %320 = arith.subf %318, %319 : vector<1x128xf32>
    %cst_216 = arith.constant 0.000000e+00 : f32
    %321 = vector.broadcast %cst_216 : f32 to vector<1x128xf32>
    %322 = arith.maximumf %320, %321 : vector<1x128xf32>
    %323 = vector.broadcast %316 : vector<1x128xf32> to vector<2x128xf32>
    %324 = arith.subf %309, %323 : vector<2x128xf32>
    %cst_217 = arith.constant 9.99999974E-6 : f32
    %325 = vector.broadcast %cst_217 : f32 to vector<1x128xf32>
    %326 = arith.addf %322, %325 : vector<1x128xf32>
    %327 = math.rsqrt %326 : vector<1x128xf32>
    %328 = vector.broadcast %327 : vector<1x128xf32> to vector<2x128xf32>
    %329 = arith.mulf %324, %328 : vector<2x128xf32>
    %c0_218 = arith.constant 0 : index
    %c0_219 = arith.constant 0 : index
    %c0_220 = arith.constant 0 : index
    %330 = vector.load %arg11[%c0_218, %c0_219, %c0_220] : memref<1x1x128xf32, #tpu.memory_space<vmem>>, vector<1x1x128xf32>
    %331 = vector.shape_cast %330 : vector<1x1x128xf32> to vector<1x128xf32>
    %332 = vector.broadcast %331 : vector<1x128xf32> to vector<2x128xf32>
    %333 = arith.mulf %329, %332 : vector<2x128xf32>
    %c0_221 = arith.constant 0 : index
    %c0_222 = arith.constant 0 : index
    %c0_223 = arith.constant 0 : index
    %334 = vector.load %arg12[%c0_221, %c0_222, %c0_223] : memref<1x1x128xf32, #tpu.memory_space<vmem>>, vector<1x1x128xf32>
    %335 = vector.shape_cast %334 : vector<1x1x128xf32> to vector<1x128xf32>
    %336 = vector.broadcast %335 : vector<1x128xf32> to vector<2x128xf32>
    %337 = arith.addf %333, %336 : vector<2x128xf32>
    %338 = arith.truncf %337 : vector<2x128xf32> to vector<2x128xbf16>
    %c0_224 = arith.constant 0 : index
    %c0_225 = arith.constant 0 : index
    %c0_226 = arith.constant 0 : index
    %339 = vector.load %arg9[%c0_224, %c0_225, %c0_226] : memref<1x128x128xf32, #tpu.memory_space<vmem>>, vector<1x128x128xf32>
    %340 = vector.shape_cast %339 : vector<1x128x128xf32> to vector<128x128xf32>
    %341 = arith.truncf %340 : vector<128x128xf32> to vector<128x128xbf16>
    %cst_227 = arith.constant dense<0.000000e+00> : vector<2x128xf32>
    %342 = tpu.matmul %338, %341, %cst_227 {dimension_numbers = #tpu.dot_dimension_numbers<[1], [0], [0], [1], [0, 0, 1, 1], [], []>} : vector<2x128xbf16>, vector<128x128xbf16>, vector<2x128xf32> -> vector<2x128xf32>
    %c0_228 = arith.constant 0 : index
    %c0_229 = arith.constant 0 : index
    %c0_230 = arith.constant 0 : index
    %343 = vector.load %arg10[%c0_228, %c0_229, %c0_230] : memref<1x1x128xf32, #tpu.memory_space<vmem>>, vector<1x1x128xf32>
    %344 = vector.shape_cast %343 : vector<1x1x128xf32> to vector<1x128xf32>
    %345 = vector.broadcast %344 : vector<1x128xf32> to vector<2x128xf32>
    %346 = arith.addf %342, %345 : vector<2x128xf32>
    %cst_231 = arith.constant 0.000000e+00 : f32
    %347 = vector.broadcast %cst_231 : f32 to vector<2x128xf32>
    %348 = arith.maximumf %346, %347 : vector<2x128xf32>
    %cst_232 = arith.constant dense<0.000000e+00> : vector<128xf32>
    %349 = vector.multi_reduction <add>, %348, %cst_232 [0] : vector<2x128xf32> to vector<128xf32>
    %350 = vector.shape_cast %349 : vector<128xf32> to vector<1x128xf32>
    %351 = arith.mulf %348, %348 : vector<2x128xf32>
    %cst_233 = arith.constant dense<0.000000e+00> : vector<128xf32>
    %352 = vector.multi_reduction <add>, %351, %cst_233 [0] : vector<2x128xf32> to vector<128xf32>
    %353 = vector.shape_cast %352 : vector<128xf32> to vector<1x128xf32>
    %cst_234 = arith.constant 5.000000e-01 : f32
    %354 = vector.broadcast %cst_234 : f32 to vector<1x128xf32>
    %355 = arith.mulf %350, %354 : vector<1x128xf32>
    %cst_235 = arith.constant 5.000000e-01 : f32
    %356 = vector.broadcast %cst_235 : f32 to vector<1x128xf32>
    %357 = arith.mulf %353, %356 : vector<1x128xf32>
    %358 = arith.mulf %355, %355 : vector<1x128xf32>
    %359 = arith.subf %357, %358 : vector<1x128xf32>
    %cst_236 = arith.constant 0.000000e+00 : f32
    %360 = vector.broadcast %cst_236 : f32 to vector<1x128xf32>
    %361 = arith.maximumf %359, %360 : vector<1x128xf32>
    %362 = vector.broadcast %355 : vector<1x128xf32> to vector<2x128xf32>
    %363 = arith.subf %348, %362 : vector<2x128xf32>
    %cst_237 = arith.constant 9.99999974E-6 : f32
    %364 = vector.broadcast %cst_237 : f32 to vector<1x128xf32>
    %365 = arith.addf %361, %364 : vector<1x128xf32>
    %366 = math.rsqrt %365 : vector<1x128xf32>
    %367 = vector.broadcast %366 : vector<1x128xf32> to vector<2x128xf32>
    %368 = arith.mulf %363, %367 : vector<2x128xf32>
    %c0_238 = arith.constant 0 : index
    %c0_239 = arith.constant 0 : index
    %369 = vector.load %arg13[%c0_238, %c0_239] : memref<1x128xf32, #tpu.memory_space<vmem>>, vector<1x128xf32>
    %370 = vector.broadcast %369 : vector<1x128xf32> to vector<2x128xf32>
    %371 = arith.mulf %368, %370 : vector<2x128xf32>
    %c0_240 = arith.constant 0 : index
    %c0_241 = arith.constant 0 : index
    %372 = vector.load %arg14[%c0_240, %c0_241] : memref<1x128xf32, #tpu.memory_space<vmem>>, vector<1x128xf32>
    %373 = vector.broadcast %372 : vector<1x128xf32> to vector<2x128xf32>
    %374 = arith.addf %371, %373 : vector<2x128xf32>
    %c0_242 = arith.constant 0 : index
    %c0_243 = arith.constant 0 : index
    %375 = vector.load %arg16[%c0_242, %c0_243] : memref<2x128xf32, #tpu.memory_space<vmem>>, vector<2x128xf32>
    tpu.vector_store %arg16[%c0_242, %c0_243], %374 {strides = array<i32>} : memref<2x128xf32, #tpu.memory_space<vmem>>, vector<2x128xf32>,
    return
  }
}

</mosaic_0001>

<llo_original>
// kernel: resgcn_forward.1
$region0: #{resgcn_forward.1}
  #allocation0 [shape = 'u32[]', space=smem, size = 0x4, offset = 0x4, fixed_abs, tag = 'smem constant byte address 0x4 - core index']
  #allocation1 [shape = 'u32[144,128]{1,0:T(1,128)}', space=vmem, size = 0x12000, scoped, tag = 'internal scratch']
  #allocation2 [shape = 'f32[256,128]{1,0:T(8,128)}', space=vmem, size = 0x20000, scoped, tag = 'scratch operand']
  #allocation3 [shape = 'f32[256,128]{1,0:T(8,128)}', space=vmem, size = 0x20000, scoped, tag = 'scratch operand']
  #allocation4 [shape = 'bf16[256,128]{1,0:T(16,128)(2,1)}', space=vmem, size = 0x10000, scoped, tag = 'scratch operand']
  #allocation5 [shape = 'bf16[2,256,256]{2,1,0:T(16,128)(2,1)}', space=vmem, size = 0x40000, scoped, tag = 'scratch operand']
  #allocation6 [shape = 's32[2]{0}', space=sflag, size = 0x8, scoped, tag = 'scratch operand']
  #allocation9 [shape = 's32[]', space=sflag, size = 0x4, offset = 0, fixed_abs, tag = 'sflag constant byte address 0x0 - dummy sync flag']
  #allocation10 [shape = 's32[]', space=sflag, size = 0x4, offset = 0, fixed_abs, tag = 'sflag constant byte address 0x0 - dummy sync flag']
  #allocation11 [shape = 's32[]', space=sflag, size = 0x4, offset = 0, fixed_abs, tag = 'sflag constant byte address 0x0 - dummy sync flag']
  #allocation12 [shape = 's32[]', space=sflag, size = 0x4, offset = 0, fixed_abs, tag = 'sflag constant byte address 0x0 - dummy sync flag']
  %s0 = inlined_call_operand.vmem [shape: f32[256,128], index: 0, kind: input, shape index: {}]
  %s1 = inlined_call_operand.vmem [shape: bf16[256,256], index: 1, kind: input, shape index: {}]
  %s2 = inlined_call_operand.vmem [shape: f32[256,1], index: 2, kind: input, shape index: {}]
  %s3 = inlined_call_operand.vmem [shape: f32[256,1], index: 3, kind: input, shape index: {}]
  %s4 = inlined_call_operand.vmem [shape: bf16[2,256], index: 4, kind: input, shape index: {}]
  %s5 = inlined_call_operand.vmem [shape: f32[4,128,128], index: 5, kind: input, shape index: {}]
  %s6 = inlined_call_operand.vmem [shape: f32[4,1,128], index: 6, kind: input, shape index: {}]
  %s7 = inlined_call_operand.vmem [shape: f32[4,1,128], index: 7, kind: input, shape index: {}]
  %s8 = inlined_call_operand.vmem [shape: f32[4,1,128], index: 8, kind: input, shape index: {}]
  %s9 = inlined_call_operand.vmem [shape: f32[1,128,128], index: 9, kind: input, shape index: {}]
  %s10 = inlined_call_operand.vmem [shape: f32[1,1,128], index: 10, kind: input, shape index: {}]
  %s11 = inlined_call_operand.vmem [shape: f32[1,1,128], index: 11, kind: input, shape index: {}]
  %s12 = inlined_call_operand.vmem [shape: f32[1,1,128], index: 12, kind: input, shape index: {}]
  %s13 = inlined_call_operand.vmem [shape: f32[1,128], index: 13, kind: input, shape index: {}]
  %s14 = inlined_call_operand.vmem [shape: f32[1,128], index: 14, kind: input, shape index: {}]
  %s15 = inlined_call_operand.vmem [shape: f32[256,128], index: 15, kind: output, shape index: {0}]
  %s16 = inlined_call_operand.hbm [shape: f32[2,128], index: 16, kind: output, shape index: {1}]
  %17 = xla_tuple %s15, %s16
  %s18 = sld [smem:[#allocation0]]
  $region222: #{resgcn_forward.1} parent=0
    _
  %s20 = ssub.s32 1, %s18
  %s21 = scalar_select 0, %s20, %s18
  $region1: #{resgcn_forward.1} parent=0
    #allocation7 [shape = 'u8[1024]{0}', space=vmem, size = 0x400, scoped, tag = 'output window, operand 1, single buffered']
    #allocation8 [shape = 's32[1]{0}', space=sflag, size = 0x4, scoped, tag = 'scoped memory for resgcn_forward.1']
    %22 = vsyncpa [#allocation8], 0
    // Predicated region
    $region2: #{resgcn_forward.1} parent=1 // pred_check
      _
    $region3: #{resgcn_forward.1} parent=1 // pred_check_branch
      %24 = sbr.rel (0) target = $region5
    $region4: #{resgcn_forward.1} parent=1 // pred_region
      _
    $region5: #{resgcn_forward.1} parent=1 // pred_fallthru
      _
    // Predicated region
    $region6: #{resgcn_forward.1} parent=1 // pred_check
      _
    $region7: #{resgcn_forward.1} parent=1 // pred_check_branch
      %26 = sbr.rel (0) target = $region9
    $region8: #{resgcn_forward.1} parent=1 // pred_region
      _
    $region9: #{resgcn_forward.1} parent=1 // pred_fallthru
      _
    // Predicated region
    $region10: #{resgcn_forward.1} parent=1 // pred_check
      _
    $region11: #{resgcn_forward.1} parent=1 // pred_check_branch
      %28 = sbr.rel (0) target = $region13
    $region12: #{resgcn_forward.1} parent=1 // pred_region
      _
    $region13: #{resgcn_forward.1} parent=1 // pred_fallthru
      _
    // Predicated region
    $region14: #{resgcn_forward.1} parent=1 // pred_check
      _
    $region15: #{resgcn_forward.1} parent=1 // pred_check_branch
      %30 = sbr.rel (0) target = $region17
    $region16: #{resgcn_forward.1} parent=1 // pred_region
      _
    $region17: #{resgcn_forward.1} parent=1 // pred_fallthru
      _
    // Predicated region
    $region18: #{resgcn_forward.1} parent=1 // pred_check
      _
    $region19: #{resgcn_forward.1} parent=1 // pred_check_branch
      %32 = sbr.rel (0) target = $region21
    $region20: #{resgcn_forward.1} parent=1 // pred_region
      _
    $region21: #{resgcn_forward.1} parent=1 // pred_fallthru
      _
    // Predicated region
    $region22: #{resgcn_forward.1} parent=1 // pred_check
      _
    $region23: #{resgcn_forward.1} parent=1 // pred_check_branch
      %34 = sbr.rel (0) target = $region25
    $region24: #{resgcn_forward.1} parent=1 // pred_region
      _
    $region25: #{resgcn_forward.1} parent=1 // pred_fallthru
      _
    // Predicated region
    $region26: #{resgcn_forward.1} parent=1 // pred_check
      _
    $region27: #{resgcn_forward.1} parent=1 // pred_check_branch
      %36 = sbr.rel (0) target = $region29
    $region28: #{resgcn_forward.1} parent=1 // pred_region
      _
    $region29: #{resgcn_forward.1} parent=1 // pred_fallthru
      _
    // Predicated region
    $region30: #{resgcn_forward.1} parent=1 // pred_check
      _
    $region31: #{resgcn_forward.1} parent=1 // pred_check_branch
      %38 = sbr.rel (0) target = $region33
    $region32: #{resgcn_forward.1} parent=1 // pred_region
      _
    $region33: #{resgcn_forward.1} parent=1 // pred_fallthru
      _
    // Predicated region
    $region34: #{resgcn_forward.1} parent=1 // pred_check
      _
    $region35: #{resgcn_forward.1} parent=1 // pred_check_branch
      %40 = sbr.rel (0) target = $region37
    $region36: #{resgcn_forward.1} parent=1 // pred_region
      _
    $region37: #{resgcn_forward.1} parent=1 // pred_fallthru
      _
    // Predicated region
    $region38: #{resgcn_forward.1} parent=1 // pred_check
      _
    $region39: #{resgcn_forward.1} parent=1 // pred_check_branch
      %42 = sbr.rel (0) target = $region41
    $region40: #{resgcn_forward.1} parent=1 // pred_region
      _
    $region41: #{resgcn_forward.1} parent=1 // pred_fallthru
      _
    // Predicated region
    $region42: #{resgcn_forward.1} parent=1 // pred_check
      _
    $region43: #{resgcn_forward.1} parent=1 // pred_check_branch
      %44 = sbr.rel (0) target = $region45
    $region44: #{resgcn_forward.1} parent=1 // pred_region
      _
    $region45: #{resgcn_forward.1} parent=1 // pred_fallthru
      _
    // Predicated region
    $region46: #{resgcn_forward.1} parent=1 // pred_check
      _
    $region47: #{resgcn_forward.1} parent=1 // pred_check_branch
      %46 = sbr.rel (0) target = $region49
    $region48: #{resgcn_forward.1} parent=1 // pred_region
      _
    $region49: #{resgcn_forward.1} parent=1 // pred_fallthru
      _
    // Predicated region
    $region50: #{resgcn_forward.1} parent=1 // pred_check
      _
    $region51: #{resgcn_forward.1} parent=1 // pred_check_branch
      %48 = sbr.rel (0) target = $region53
    $region52: #{resgcn_forward.1} parent=1 // pred_region
      _
    $region53: #{resgcn_forward.1} parent=1 // pred_fallthru
      _
    // Predicated region
    $region54: #{resgcn_forward.1} parent=1 // pred_check
      _
    $region55: #{resgcn_forward.1} parent=1 // pred_check_branch
      %50 = sbr.rel (0) target = $region57
    $region56: #{resgcn_forward.1} parent=1 // pred_region
      _
    $region57: #{resgcn_forward.1} parent=1 // pred_fallthru
      _
    %p53 = scmp.lt.u32.totalorder 4, 8
    %p54 = pneg %p53
    // Predicated region
    $region58: #{resgcn_forward.1} parent=1 // pred_check
      _
    $region59: #{resgcn_forward.1} parent=1 // pred_check_branch
      %56 = sbr.rel (%p53) target = $region61
    $region60: #{resgcn_forward.1} parent=1 // pred_region
      %s197 = sand.u32 4, 7
      %p198 = scmp.eq.s32.totalorder %s197, 0
      %p199 = pneg %p198
      // Predicated region
      $region73: #{resgcn_forward.1} parent=60 // pred_check
        _
      $region74: #{resgcn_forward.1} parent=60 // pred_check_branch
        %201 = sbr.rel (%p198) target = $region76
      $region75: #{resgcn_forward.1} parent=60 // pred_region
        %s202 = sand.u32 4, 7
        %s203 = ssub.s32 4, %s202
        %s204 = scalar_lea.vmem %s1, %s203
        %s205 = ssub.s32 4, %s202
        %s206 = scalar_lea.vmem [#allocation5], %s205
        loop: start=0, step=1, limit=1
        $region77: #{resgcn_forward.1} parent=75 // loop_pre_header
          _
        $region78: #{resgcn_forward.1} parent=75 // loop_header
          %s208 = sphi 0, %s212
          %p209 = scmp.ge.s32.totalorder %s208, 1
          %s213 = sphi %s1, %s1
          %s214 = sphi [#allocation5], [#allocation5]
        $region79: #{resgcn_forward.1} parent=75 // loop_header_branch
          %211 = sbr.rel (%p209) target = $region83
        $region80: #{resgcn_forward.1} parent=75 // loop_body
          _
        $region81: #{resgcn_forward.1} parent=75 // loop_footer
          %s212 = sadd.s32 1, %s208
        $region82: #{resgcn_forward.1} parent=75 // loop_footer_branch
          %207 = sbr.rel target = $region78
        $region83: #{resgcn_forward.1} parent=75 // loop_exit
          _
        %s215 = sshllo.u32 0, %s202
        loop: start=0, step=1, limit=1
        $region84: #{resgcn_forward.1} parent=75 // loop_pre_header
          _
        $region85: #{resgcn_forward.1} parent=75 // loop_header
          %s217 = sphi 0, %s221
          %p218 = scmp.ge.s32.totalorder %s217, 1
          %s222 = sphi %s204, %s204
          %s223 = sphi %s206, %s206
        $region86: #{resgcn_forward.1} parent=75 // loop_header_branch
          %220 = sbr.rel (%p218) target = $region90
        $region87: #{resgcn_forward.1} parent=75 // loop_body
          %v224 = vld [vmem:[%s222] sm:%s215]
          %225 = vst [vmem:[%s223] sm:%s215] %v224
          %v226 = vld [vmem:[%s222 + $0x8] sm:%s215]
          %227 = vst [vmem:[%s223 + $0x4] sm:%s215] %v226
          %v228 = vld [vmem:[%s222 + $0x4] sm:%s215]
          %229 = vst [vmem:[%s223 + $0x8] sm:%s215] %v228
          %v230 = vld [vmem:[%s222 + $0xc] sm:%s215]
          %231 = vst [vmem:[%s223 + $0xc] sm:%s215] %v230
          %v232 = vld [vmem:[%s222 + $0x10] sm:%s215]
          %233 = vst [vmem:[%s223 + $0x10] sm:%s215] %v232
          %v234 = vld [vmem:[%s222 + $0x18] sm:%s215]
          %235 = vst [vmem:[%s223 + $0x14] sm:%s215] %v234
          %v236 = vld [vmem:[%s222 + $0x14] sm:%s215]
          %237 = vst [vmem:[%s223 + $0x18] sm:%s215] %v236
          %v238 = vld [vmem:[%s222 + $0x1c] sm:%s215]
          %239 = vst [vmem:[%s223 + $0x1c] sm:%s215] %v238
          %v240 = vld [vmem:[%s222 + $0x20] sm:%s215]
          %241 = vst [vmem:[%s223 + $0x20] sm:%s215] %v240
          %v242 = vld [vmem:[%s222 + $0x28] sm:%s215]
          %243 = vst [vmem:[%s223 + $0x24] sm:%s215] %v242
          %v244 = vld [vmem:[%s222 + $0x24] sm:%s215]
          %245 = vst [vmem:[%s223 + $0x28] sm:%s215] %v244
          %v246 = vld [vmem:[%s222 + $0x2c] sm:%s215]
          %247 = vst [vmem:[%s223 + $0x2c] sm:%s215] %v246
          %v248 = vld [vmem:[%s222 + $0x30] sm:%s215]
          %249 = vst [vmem:[%s223 + $0x30] sm:%s215] %v248
          %v250 = vld [vmem:[%s222 + $0x38] sm:%s215]
          %251 = vst [vmem:[%s223 + $0x34] sm:%s215] %v250
          %v252 = vld [vmem:[%s222 + $0x34] sm:%s215]
          %253 = vst [vmem:[%s223 + $0x38] sm:%s215] %v252
          %v254 = vld [vmem:[%s222 + $0x3c] sm:%s215]
          %255 = vst [vmem:[%s223 + $0x3c] sm:%s215] %v254
          %v256 = vld [vmem:[%s222 + $0x40] sm:%s215]
          %257 = vst [vmem:[%s223 + $0x40] sm:%s215] %v256
          %v258 = vld [vmem:[%s222 + $0x48] sm:%s215]
          %259 = vst [vmem:[%s223 + $0x44] sm:%s215] %v258
          %v260 = vld [vmem:[%s222 + $0x44] sm:%s215]
          %261 = vst [vmem:[%s223 + $0x48] sm:%s215] %v260
          %v262 = vld [vmem:[%s222 + $0x4c] sm:%s215]
          %263 = vst [vmem:[%s223 + $0x4c] sm:%s215] %v262
          %v264 = vld [vmem:[%s222 + $0x50] sm:%s215]
          %265 = vst [vmem:[%s223 + $0x50] sm:%s215] %v264
          %v266 = vld [vmem:[%s222 + $0x58] sm:%s215]
          %267 = vst [vmem:[%s223 + $0x54] sm:%s215] %v266
          %v268 = vld [vmem:[%s222 + $0x54] sm:%s215]
          %269 = vst [vmem:[%s223 + $0x58] sm:%s215] %v268
          %v270 = vld [vmem:[%s222 + $0x5c] sm:%s215]
          %271 = vst [vmem:[%s223 + $0x5c] sm:%s215] %v270
          %v272 = vld [vmem:[%s222 + $0x60] sm:%s215]
          %273 = vst [vmem:[%s223 + $0x60] sm:%s215] %v272
          %v274 = vld [vmem:[%s222 + $0x68] sm:%s215]
          %275 = vst [vmem:[%s223 + $0x64] sm:%s215] %v274
          %v276 = vld [vmem:[%s222 + $0x64] sm:%s215]
          %277 = vst [vmem:[%s223 + $0x68] sm:%s215] %v276
          %v278 = vld [vmem:[%s222 + $0x6c] sm:%s215]
          %279 = vst [vmem:[%s223 + $0x6c] sm:%s215] %v278
          %v280 = vld [vmem:[%s222 + $0x70] sm:%s215]
          %281 = vst [vmem:[%s223 + $0x70] sm:%s215] %v280
          %v282 = vld [vmem:[%s222 + $0x78] sm:%s215]
          %283 = vst [vmem:[%s223 + $0x74] sm:%s215] %v282
          %v284 = vld [vmem:[%s222 + $0x74] sm:%s215]
          %285 = vst [vmem:[%s223 + $0x78] sm:%s215] %v284
          %v286 = vld [vmem:[%s222 + $0x7c] sm:%s215]
          %287 = vst [vmem:[%s223 + $0x7c] sm:%s215] %v286
          %v288 = vld [vmem:[%s222 + $0x80] sm:%s215]
          %289 = vst [vmem:[%s223 + $0x80] sm:%s215] %v288
          %v290 = vld [vmem:[%s222 + $0x88] sm:%s215]
          %291 = vst [vmem:[%s223 + $0x84] sm:%s215] %v290
          %v292 = vld [vmem:[%s222 + $0x84] sm:%s215]
          %293 = vst [vmem:[%s223 + $0x88] sm:%s215] %v292
          %v294 = vld [vmem:[%s222 + $0x8c] sm:%s215]
          %295 = vst [vmem:[%s223 + $0x8c] sm:%s215] %v294
          %v296 = vld [vmem:[%s222 + $0x90] sm:%s215]
          %297 = vst [vmem:[%s223 + $0x90] sm:%s215] %v296
          %v298 = vld [vmem:[%s222 + $0x98] sm:%s215]
          %299 = vst [vmem:[%s223 + $0x94] sm:%s215] %v298
          %v300 = vld [vmem:[%s222 + $0x94] sm:%s215]
          %301 = vst [vmem:[%s223 + $0x98] sm:%s215] %v300
          %v302 = vld [vmem:[%s222 + $0x9c] sm:%s215]
          %303 = vst [vmem:[%s223 + $0x9c] sm:%s215] %v302
          %v304 = vld [vmem:[%s222 + $0xa0] sm:%s215]
          %305 = vst [vmem:[%s223 + $0xa0] sm:%s215] %v304
          %v306 = vld [vmem:[%s222 + $0xa8] sm:%s215]
          %307 = vst [vmem:[%s223 + $0xa4] sm:%s215] %v306
          %v308 = vld [vmem:[%s222 + $0xa4] sm:%s215]
          %309 = vst [vmem:[%s223 + $0xa8] sm:%s215] %v308
          %v310 = vld [vmem:[%s222 + $0xac] sm:%s215]
          %311 = vst [vmem:[%s223 + $0xac] sm:%s215] %v310
          %v312 = vld [vmem:[%s222 + $0xb0] sm:%s215]
          %313 = vst [vmem:[%s223 + $0xb0] sm:%s215] %v312
          %v314 = vld [vmem:[%s222 + $0xb8] sm:%s215]
          %315 = vst [vmem:[%s223 + $0xb4] sm:%s215] %v314
          %v316 = vld [vmem:[%s222 + $0xb4] sm:%s215]
          %317 = vst [vmem:[%s223 + $0xb8] sm:%s215] %v316
          %v318 = vld [vmem:[%s222 + $0xbc] sm:%s215]
          %319 = vst [vmem:[%s223 + $0xbc] sm:%s215] %v318
          %v320 = vld [vmem:[%s222 + $0xc0] sm:%s215]
          %321 = vst [vmem:[%s223 + $0xc0] sm:%s215] %v320
          %v322 = vld [vmem:[%s222 + $0xc8] sm:%s215]
          %323 = vst [vmem:[%s223 + $0xc4] sm:%s215] %v322
          %v324 = vld [vmem:[%s222 + $0xc4] sm:%s215]
          %325 = vst [vmem:[%s223 + $0xc8] sm:%s215] %v324
          %v326 = vld [vmem:[%s222 + $0xcc] sm:%s215]
          %327 = vst [vmem:[%s223 + $0xcc] sm:%s215] %v326
          %v328 = vld [vmem:[%s222 + $0xd0] sm:%s215]
          %329 = vst [vmem:[%s223 + $0xd0] sm:%s215] %v328
          %v330 = vld [vmem:[%s222 + $0xd8] sm:%s215]
          %331 = vst [vmem:[%s223 + $0xd4] sm:%s215] %v330
          %v332 = vld [vmem:[%s222 + $0xd4] sm:%s215]
          %333 = vst [vmem:[%s223 + $0xd8] sm:%s215] %v332
          %v334 = vld [vmem:[%s222 + $0xdc] sm:%s215]
          %335 = vst [vmem:[%s223 + $0xdc] sm:%s215] %v334
          %v336 = vld [vmem:[%s222 + $0xe0] sm:%s215]
          %337 = vst [vmem:[%s223 + $0xe0] sm:%s215] %v336
          %v338 = vld [vmem:[%s222 + $0xe8] sm:%s215]
          %339 = vst [vmem:[%s223 + $0xe4] sm:%s215] %v338
          %v340 = vld [vmem:[%s222 + $0xe4] sm:%s215]
          %341 = vst [vmem:[%s223 + $0xe8] sm:%s215] %v340
          %v342 = vld [vmem:[%s222 + $0xec] sm:%s215]
          %343 = vst [vmem:[%s223 + $0xec] sm:%s215] %v342
          %v344 = vld [vmem:[%s222 + $0xf0] sm:%s215]
          %345 = vst [vmem:[%s223 + $0xf0] sm:%s215] %v344
          %v346 = vld [vmem:[%s222 + $0xf8] sm:%s215]
          %347 = vst [vmem:[%s223 + $0xf4] sm:%s215] %v346
          %v348 = vld [vmem:[%s222 + $0xf4] sm:%s215]
          %349 = vst [vmem:[%s223 + $0xf8] sm:%s215] %v348
          %v350 = vld [vmem:[%s222 + $0xfc] sm:%s215]
          %351 = vst [vmem:[%s223 + $0xfc] sm:%s215] %v350
        $region88: #{resgcn_forward.1} parent=75 // loop_footer
          %s221 = sadd.s32 1, %s217
        $region89: #{resgcn_forward.1} parent=75 // loop_footer_branch
          %216 = sbr.rel target = $region85
        $region90: #{resgcn_forward.1} parent=75 // loop_exit
          _
      $region76: #{resgcn_forward.1} parent=60 // pred_fallthru
        _
    $region61: #{resgcn_forward.1} parent=1 // pred_fallthru
      _
    // Predicated region
    $region62: #{resgcn_forward.1} parent=1 // pred_check
      %p57 = pneg %p53
    $region63: #{resgcn_forward.1} parent=1 // pred_check_branch
      %59 = sbr.rel (%p57) target = $region65
    $region64: #{resgcn_forward.1} parent=1 // pred_region
      %s60 = sshllo.u32 0, 4
      loop: start=0, step=1, limit=1
      $region66: #{resgcn_forward.1} parent=64 // loop_pre_header
        _
      $region67: #{resgcn_forward.1} parent=64 // loop_header
        %s62 = sphi 0, %s66
        %p63 = scmp.ge.s32.totalorder %s62, 1
        %s67 = sphi %s1, %s1
        %s68 = sphi [#allocation5], [#allocation5]
      $region68: #{resgcn_forward.1} parent=64 // loop_header_branch
        %65 = sbr.rel (%p63) target = $region72
      $region69: #{resgcn_forward.1} parent=64 // loop_body
        %v69 = vld [vmem:[%s67] sm:%s60]
        %70 = vst [vmem:[%s68] sm:%s60] %v69
        %v71 = vld [vmem:[%s67 + $0x8] sm:%s60]
        %72 = vst [vmem:[%s68 + $0x4] sm:%s60] %v71
        %v73 = vld [vmem:[%s67 + $0x4] sm:%s60]
        %74 = vst [vmem:[%s68 + $0x8] sm:%s60] %v73
        %v75 = vld [vmem:[%s67 + $0xc] sm:%s60]
        %76 = vst [vmem:[%s68 + $0xc] sm:%s60] %v75
        %v77 = vld [vmem:[%s67 + $0x10] sm:%s60]
        %78 = vst [vmem:[%s68 + $0x10] sm:%s60] %v77
        %v79 = vld [vmem:[%s67 + $0x18] sm:%s60]
        %80 = vst [vmem:[%s68 + $0x14] sm:%s60] %v79
        %v81 = vld [vmem:[%s67 + $0x14] sm:%s60]
        %82 = vst [vmem:[%s68 + $0x18] sm:%s60] %v81
        %v83 = vld [vmem:[%s67 + $0x1c] sm:%s60]
        %84 = vst [vmem:[%s68 + $0x1c] sm:%s60] %v83
        %v85 = vld [vmem:[%s67 + $0x20] sm:%s60]
        %86 = vst [vmem:[%s68 + $0x20] sm:%s60] %v85
        %v87 = vld [vmem:[%s67 + $0x28] sm:%s60]
        %88 = vst [vmem:[%s68 + $0x24] sm:%s60] %v87
        %v89 = vld [vmem:[%s67 + $0x24] sm:%s60]
        %90 = vst [vmem:[%s68 + $0x28] sm:%s60] %v89
        %v91 = vld [vmem:[%s67 + $0x2c] sm:%s60]
        %92 = vst [vmem:[%s68 + $0x2c] sm:%s60] %v91
        %v93 = vld [vmem:[%s67 + $0x30] sm:%s60]
        %94 = vst [vmem:[%s68 + $0x30] sm:%s60] %v93
        %v95 = vld [vmem:[%s67 + $0x38] sm:%s60]
        %96 = vst [vmem:[%s68 + $0x34] sm:%s60] %v95
        %v97 = vld [vmem:[%s67 + $0x34] sm:%s60]
        %98 = vst [vmem:[%s68 + $0x38] sm:%s60] %v97
        %v99 = vld [vmem:[%s67 + $0x3c] sm:%s60]
        %100 = vst [vmem:[%s68 + $0x3c] sm:%s60] %v99
        %v101 = vld [vmem:[%s67 + $0x40] sm:%s60]
        %102 = vst [vmem:[%s68 + $0x40] sm:%s60] %v101
        %v103 = vld [vmem:[%s67 + $0x48] sm:%s60]
        %104 = vst [vmem:[%s68 + $0x44] sm:%s60] %v103
        %v105 = vld [vmem:[%s67 + $0x44] sm:%s60]
        %106 = vst [vmem:[%s68 + $0x48] sm:%s60] %v105
        %v107 = vld [vmem:[%s67 + $0x4c] sm:%s60]
        %108 = vst [vmem:[%s68 + $0x4c] sm:%s60] %v107
        %v109 = vld [vmem:[%s67 + $0x50] sm:%s60]
        %110 = vst [vmem:[%s68 + $0x50] sm:%s60] %v109
        %v111 = vld [vmem:[%s67 + $0x58] sm:%s60]
        %112 = vst [vmem:[%s68 + $0x54] sm:%s60] %v111
        %v113 = vld [vmem:[%s67 + $0x54] sm:%s60]
        %114 = vst [vmem:[%s68 + $0x58] sm:%s60] %v113
        %v115 = vld [vmem:[%s67 + $0x5c] sm:%s60]
        %116 = vst [vmem:[%s68 + $0x5c] sm:%s60] %v115
        %v117 = vld [vmem:[%s67 + $0x60] sm:%s60]
        %118 = vst [vmem:[%s68 + $0x60] sm:%s60] %v117
        %v119 = vld [vmem:[%s67 + $0x68] sm:%s60]
        %120 = vst [vmem:[%s68 + $0x64] sm:%s60] %v119
        %v121 = vld [vmem:[%s67 + $0x64] sm:%s60]
        %122 = vst [vmem:[%s68 + $0x68] sm:%s60] %v121
        %v123 = vld [vmem:[%s67 + $0x6c] sm:%s60]
        %124 = vst [vmem:[%s68 + $0x6c] sm:%s60] %v123
        %v125 = vld [vmem:[%s67 + $0x70] sm:%s60]
        %126 = vst [vmem:[%s68 + $0x70] sm:%s60] %v125
        %v127 = vld [vmem:[%s67 + $0x78] sm:%s60]
        %128 = vst [vmem:[%s68 + $0x74] sm:%s60] %v127
        %v129 = vld [vmem:[%s67 + $0x74] sm:%s60]
        %130 = vst [vmem:[%s68 + $0x78] sm:%s60] %v129
        %v131 = vld [vmem:[%s67 + $0x7c] sm:%s60]
        %132 = vst [vmem:[%s68 + $0x7c] sm:%s60] %v131
        %v133 = vld [vmem:[%s67 + $0x80] sm:%s60]
        %134 = vst [vmem:[%s68 + $0x80] sm:%s60] %v133
        %v135 = vld [vmem:[%s67 + $0x88] sm:%s60]
        %136 = vst [vmem:[%s68 + $0x84] sm:%s60] %v135
        %v137 = vld [vmem:[%s67 + $0x84] sm:%s60]
        %138 = vst [vmem:[%s68 + $0x88] sm:%s60] %v137
        %v139 = vld [vmem:[%s67 + $0x8c] sm:%s60]
        %140 = vst [vmem:[%s68 + $0x8c] sm:%s60] %v139
        %v141 = vld [vmem:[%s67 + $0x90] sm:%s60]
        %142 = vst [vmem:[%s68 + $0x90] sm:%s60] %v141
        %v143 = vld [vmem:[%s67 + $0x98] sm:%s60]
        %144 = vst [vmem:[%s68 + $0x94] sm:%s60] %v143
        %v145 = vld [vmem:[%s67 + $0x94] sm:%s60]
        %146 = vst [vmem:[%s68 + $0x98] sm:%s60] %v145
        %v147 = vld [vmem:[%s67 + $0x9c] sm:%s60]
        %148 = vst [vmem:[%s68 + $0x9c] sm:%s60] %v147
        %v149 = vld [vmem:[%s67 + $0xa0] sm:%s60]
        %150 = vst [vmem:[%s68 + $0xa0] sm:%s60] %v149
        %v151 = vld [vmem:[%s67 + $0xa8] sm:%s60]
        %152 = vst [vmem:[%s68 + $0xa4] sm:%s60] %v151
        %v153 = vld [vmem:[%s67 + $0xa4] sm:%s60]
        %154 = vst [vmem:[%s68 + $0xa8] sm:%s60] %v153
        %v155 = vld [vmem:[%s67 + $0xac] sm:%s60]
        %156 = vst [vmem:[%s68 + $0xac] sm:%s60] %v155
        %v157 = vld [vmem:[%s67 + $0xb0] sm:%s60]
        %158 = vst [vmem:[%s68 + $0xb0] sm:%s60] %v157
        %v159 = vld [vmem:[%s67 + $0xb8] sm:%s60]
        %160 = vst [vmem:[%s68 + $0xb4] sm:%s60] %v159
        %v161 = vld [vmem:[%s67 + $0xb4] sm:%s60]
        %162 = vst [vmem:[%s68 + $0xb8] sm:%s60] %v161
        %v163 = vld [vmem:[%s67 + $0xbc] sm:%s60]
        %164 = vst [vmem:[%s68 + $0xbc] sm:%s60] %v163
        %v165 = vld [vmem:[%s67 + $0xc0] sm:%s60]
        %166 = vst [vmem:[%s68 + $0xc0] sm:%s60] %v165
        %v167 = vld [vmem:[%s67 + $0xc8] sm:%s60]
        %168 = vst [vmem:[%s68 + $0xc4] sm:%s60] %v167
        %v169 = vld [vmem:[%s67 + $0xc4] sm:%s60]
        %170 = vst [vmem:[%s68 + $0xc8] sm:%s60] %v169
        %v171 = vld [vmem:[%s67 + $0xcc] sm:%s60]
        %172 = vst [vmem:[%s68 + $0xcc] sm:%s60] %v171
        %v173 = vld [vmem:[%s67 + $0xd0] sm:%s60]
        %174 = vst [vmem:[%s68 + $0xd0] sm:%s60] %v173
        %v175 = vld [vmem:[%s67 + $0xd8] sm:%s60]
        %176 = vst [vmem:[%s68 + $0xd4] sm:%s60] %v175
        %v177 = vld [vmem:[%s67 + $0xd4] sm:%s60]
        %178 = vst [vmem:[%s68 + $0xd8] sm:%s60] %v177
        %v179 = vld [vmem:[%s67 + $0xdc] sm:%s60]
        %180 = vst [vmem:[%s68 + $0xdc] sm:%s60] %v179
        %v181 = vld [vmem:[%s67 + $0xe0] sm:%s60]
        %182 = vst [vmem:[%s68 + $0xe0] sm:%s60] %v181
        %v183 = vld [vmem:[%s67 + $0xe8] sm:%s60]
        %184 = vst [vmem:[%s68 + $0xe4] sm:%s60] %v183
        %v185 = vld [vmem:[%s67 + $0xe4] sm:%s60]
        %186 = vst [vmem:[%s68 + $0xe8] sm:%s60] %v185
        %v187 = vld [vmem:[%s67 + $0xec] sm:%s60]
        %188 = vst [vmem:[%s68 + $0xec] sm:%s60] %v187
        %v189 = vld [vmem:[%s67 + $0xf0] sm:%s60]
        %190 = vst [vmem:[%s68 + $0xf0] sm:%s60] %v189
        %v191 = vld [vmem:[%s67 + $0xf8] sm:%s60]
        %192 = vst [vmem:[%s68 + $0xf4] sm:%s60] %v191
        %v193 = vld [vmem:[%s67 + $0xf4] sm:%s60]
        %194 = vst [vmem:[%s68 + $0xf8] sm:%s60] %v193
        %v195 = vld [vmem:[%s67 + $0xfc] sm:%s60]
        %196 = vst [vmem:[%s68 + $0xfc] sm:%s60] %v195
      $region70: #{resgcn_forward.1} parent=64 // loop_footer
        %s66 = sadd.s32 1, %s62
      $region71: #{resgcn_forward.1} parent=64 // loop_footer_branch
        %61 = sbr.rel target = $region67
      $region72: #{resgcn_forward.1} parent=64 // loop_exit
        _
    $region65: #{resgcn_forward.1} parent=1 // pred_fallthru
      _
    // Predicated region
    $region91: #{resgcn_forward.1} parent=1 // pred_check
      _
    $region92: #{resgcn_forward.1} parent=1 // pred_check_branch
      %354 = sbr.rel (0) target = $region94
    $region93: #{resgcn_forward.1} parent=1 // pred_region
      %355 = vsyncadd [#allocation6], 4096
    $region94: #{resgcn_forward.1} parent=1 // pred_fallthru
      _
    %v356 = vld [vmem:[%s0] sm:$0xff]
    %v357 = vld [vmem:[%s0 + $0x8] sm:$0xff]
    %v358 = vld [vmem:[%s0 + $0x10] sm:$0xff]
    %v359 = vld [vmem:[%s0 + $0x18] sm:$0xff]
    %v360 = vld [vmem:[%s0 + $0x20] sm:$0xff]
    %v361 = vld [vmem:[%s0 + $0x28] sm:$0xff]
    %v362 = vld [vmem:[%s0 + $0x30] sm:$0xff]
    %v363 = vld [vmem:[%s0 + $0x38] sm:$0xff]
    %v364 = vld [vmem:[%s0 + $0x40] sm:$0xff]
    %v365 = vld [vmem:[%s0 + $0x48] sm:$0xff]
    %v366 = vld [vmem:[%s0 + $0x50] sm:$0xff]
    %v367 = vld [vmem:[%s0 + $0x58] sm:$0xff]
    %v368 = vld [vmem:[%s0 + $0x60] sm:$0xff]
    %v369 = vld [vmem:[%s0 + $0x68] sm:$0xff]
    %v370 = vld [vmem:[%s0 + $0x70] sm:$0xff]
    %v371 = vld [vmem:[%s0 + $0x78] sm:$0xff]
    %v372 = vld [vmem:[%s0 + $0x80] sm:$0xff]
    %v373 = vld [vmem:[%s0 + $0x88] sm:$0xff]
    %v374 = vld [vmem:[%s0 + $0x90] sm:$0xff]
    %v375 = vld [vmem:[%s0 + $0x98] sm:$0xff]
    %v376 = vld [vmem:[%s0 + $0xa0] sm:$0xff]
    %v377 = vld [vmem:[%s0 + $0xa8] sm:$0xff]
    %v378 = vld [vmem:[%s0 + $0xb0] sm:$0xff]
    %v379 = vld [vmem:[%s0 + $0xb8] sm:$0xff]
    %v380 = vld [vmem:[%s0 + $0xc0] sm:$0xff]
    %v381 = vld [vmem:[%s0 + $0xc8] sm:$0xff]
    %v382 = vld [vmem:[%s0 + $0xd0] sm:$0xff]
    %v383 = vld [vmem:[%s0 + $0xd8] sm:$0xff]
    %v384 = vld [vmem:[%s0 + $0xe0] sm:$0xff]
    %v385 = vld [vmem:[%s0 + $0xe8] sm:$0xff]
    %v386 = vld [vmem:[%s0 + $0xf0] sm:$0xff]
    %v387 = vld [vmem:[%s0 + $0xf8] sm:$0xff]
    %v388 = vpack.c.bf16 %v357, %v356
    %v389 = vpack.c.bf16 %v359, %v358
    %v390 = vpack.c.bf16 %v361, %v360
    %v391 = vpack.c.bf16 %v363, %v362
    %v392 = vpack.c.bf16 %v365, %v364
    %v393 = vpack.c.bf16 %v367, %v366
    %v394 = vpack.c.bf16 %v369, %v368
    %v395 = vpack.c.bf16 %v371, %v370
    %v396 = vpack.c.bf16 %v373, %v372
    %v397 = vpack.c.bf16 %v375, %v374
    %v398 = vpack.c.bf16 %v377, %v376
    %v399 = vpack.c.bf16 %v379, %v378
    %v400 = vpack.c.bf16 %v381, %v380
    %v401 = vpack.c.bf16 %v383, %v382
    %v402 = vpack.c.bf16 %v385, %v384
    %v403 = vpack.c.bf16 %v387, %v386
    %404 = vst [vmem:[#allocation4] sm:$0xff] %v388
    %405 = vst [vmem:[#allocation4 + $0x8] sm:$0xff] %v389
    %406 = vst [vmem:[#allocation4 + $0x10] sm:$0xff] %v390
    %407 = vst [vmem:[#allocation4 + $0x18] sm:$0xff] %v391
    %408 = vst [vmem:[#allocation4 + $0x20] sm:$0xff] %v392
    %409 = vst [vmem:[#allocation4 + $0x28] sm:$0xff] %v393
    %410 = vst [vmem:[#allocation4 + $0x30] sm:$0xff] %v394
    %411 = vst [vmem:[#allocation4 + $0x38] sm:$0xff] %v395
    %412 = vst [vmem:[#allocation4 + $0x40] sm:$0xff] %v396
    %413 = vst [vmem:[#allocation4 + $0x48] sm:$0xff] %v397
    %414 = vst [vmem:[#allocation4 + $0x50] sm:$0xff] %v398
    %415 = vst [vmem:[#allocation4 + $0x58] sm:$0xff] %v399
    %416 = vst [vmem:[#allocation4 + $0x60] sm:$0xff] %v400
    %417 = vst [vmem:[#allocation4 + $0x68] sm:$0xff] %v401
    %418 = vst [vmem:[#allocation4 + $0x70] sm:$0xff] %v402
    %419 = vst [vmem:[#allocation4 + $0x78] sm:$0xff] %v403
    %v420 = vadd.f32 %v356, %v357
    %v421 = vadd.f32 %v420, %v358
    %v422 = vadd.f32 %v421, %v359
    %v423 = vadd.f32 %v422, %v360
    %v424 = vadd.f32 %v423, %v361
    %v425 = vadd.f32 %v424, %v362
    %v426 = vadd.f32 %v425, %v363
    %v427 = vadd.f32 %v426, %v364
    %v428 = vadd.f32 %v427, %v365
    %v429 = vadd.f32 %v428, %v366
    %v430 = vadd.f32 %v429, %v367
    %v431 = vadd.f32 %v430, %v368
    %v432 = vadd.f32 %v431, %v369
    %v433 = vadd.f32 %v432, %v370
    %v434 = vadd.f32 %v433, %v371
    %v435 = vadd.f32 %v434, %v372
    %v436 = vadd.f32 %v435, %v373
    %v437 = vadd.f32 %v436, %v374
    %v438 = vadd.f32 %v437, %v375
    %v439 = vadd.f32 %v438, %v376
    %v440 = vadd.f32 %v439, %v377
    %v441 = vadd.f32 %v440, %v378
    %v442 = vadd.f32 %v441, %v379
    %v443 = vadd.f32 %v442, %v380
    %v444 = vadd.f32 %v443, %v381
    %v445 = vadd.f32 %v444, %v382
    %v446 = vadd.f32 %v445, %v383
    %v447 = vadd.f32 %v446, %v384
    %v448 = vadd.f32 %v447, %v385
    %v449 = vadd.f32 %v448, %v386
    %v450 = vadd.f32 %v449, %v387
    %v451 = vrot.slane %v450, 4
    %v452 = vadd.f32 %v450, %v451
    %v453 = vrot.slane %v452, 2
    %v454 = vadd.f32 %v452, %v453
    %v455 = vrot.slane %v454, 1
    %v456 = vadd.f32 %v454, %v455
    %v457 = vmul.f32 %v356, %v356
    %v458 = vmul.f32 %v357, %v357
    %v459 = vmul.f32 %v358, %v358
    %v460 = vmul.f32 %v359, %v359
    %v461 = vmul.f32 %v360, %v360
    %v462 = vmul.f32 %v361, %v361
    %v463 = vmul.f32 %v362, %v362
    %v464 = vmul.f32 %v363, %v363
    %v465 = vmul.f32 %v364, %v364
    %v466 = vmul.f32 %v365, %v365
    %v467 = vmul.f32 %v366, %v366
    %v468 = vmul.f32 %v367, %v367
    %v469 = vmul.f32 %v368, %v368
    %v470 = vmul.f32 %v369, %v369
    %v471 = vmul.f32 %v370, %v370
    %v472 = vmul.f32 %v371, %v371
    %v473 = vmul.f32 %v372, %v372
    %v474 = vmul.f32 %v373, %v373
    %v475 = vmul.f32 %v374, %v374
    %v476 = vmul.f32 %v375, %v375
    %v477 = vmul.f32 %v376, %v376
    %v478 = vmul.f32 %v377, %v377
    %v479 = vmul.f32 %v378, %v378
    %v480 = vmul.f32 %v379, %v379
    %v481 = vmul.f32 %v380, %v380
    %v482 = vmul.f32 %v381, %v381
    %v483 = vmul.f32 %v382, %v382
    %v484 = vmul.f32 %v383, %v383
    %v485 = vmul.f32 %v384, %v384
    %v486 = vmul.f32 %v385, %v385
    %v487 = vmul.f32 %v386, %v386
    %v488 = vmul.f32 %v387, %v387
    %v489 = vadd.f32 %v457, %v458
    %v490 = vadd.f32 %v489, %v459
    %v491 = vadd.f32 %v490, %v460
    %v492 = vadd.f32 %v491, %v461
    %v493 = vadd.f32 %v492, %v462
    %v494 = vadd.f32 %v493, %v463
    %v495 = vadd.f32 %v494, %v464
    %v496 = vadd.f32 %v495, %v465
    %v497 = vadd.f32 %v496, %v466
    %v498 = vadd.f32 %v497, %v467
    %v499 = vadd.f32 %v498, %v468
    %v500 = vadd.f32 %v499, %v469
    %v501 = vadd.f32 %v500, %v470
    %v502 = vadd.f32 %v501, %v471
    %v503 = vadd.f32 %v502, %v472
    %v504 = vadd.f32 %v503, %v473
    %v505 = vadd.f32 %v504, %v474
    %v506 = vadd.f32 %v505, %v475
    %v507 = vadd.f32 %v506, %v476
    %v508 = vadd.f32 %v507, %v477
    %v509 = vadd.f32 %v508, %v478
    %v510 = vadd.f32 %v509, %v479
    %v511 = vadd.f32 %v510, %v480
    %v512 = vadd.f32 %v511, %v481
    %v513 = vadd.f32 %v512, %v482
    %v514 = vadd.f32 %v513, %v483
    %v515 = vadd.f32 %v514, %v484
    %v516 = vadd.f32 %v515, %v485
    %v517 = vadd.f32 %v516, %v486
    %v518 = vadd.f32 %v517, %v487
    %v519 = vadd.f32 %v518, %v488
    %v520 = vrot.slane %v519, 4
    %v521 = vadd.f32 %v519, %v520
    %v522 = vrot.slane %v521, 2
    %v523 = vadd.f32 %v521, %v522
    %v524 = vrot.slane %v523, 1
    %v525 = vadd.f32 %v523, %v524
    %v526 = vmul.f32 %v456, 0.0625
    %v527 = vmul.f32 %v525, 0.0625
    %v528 = vmul.f32 %v526, %v526
    %v529 = vsub.f32 %v527, %v528
    %v530 = vmax.f32 %v529, 0.0
    %v531 = vld [vmem:[%s7] sm:$0x1]
    %v532 = vadd.f32 %v530, 1e-05
    %v533 = vrsqrt.pop %v532
    %v534 = vmul.f32 %v531, %v533
    %v535 = vld [vmem:[%s8] sm:$0x1]
    %v536 = vmul.f32 %v526, %v534
    %v537 = vsub.f32 %v535, %v536
    %v538 = vld [vmem:[%s5] sm:$0xff]
    %v539 = vld [vmem:[%s5 + $0x8] sm:$0xff]
    %v540 = vld [vmem:[%s5 + $0x10] sm:$0xff]
    %v541 = vld [vmem:[%s5 + $0x18] sm:$0xff]
    %v542 = vld [vmem:[%s5 + $0x20] sm:$0xff]
    %v543 = vld [vmem:[%s5 + $0x28] sm:$0xff]
    %v544 = vld [vmem:[%s5 + $0x30] sm:$0xff]
    %v545 = vld [vmem:[%s5 + $0x38] sm:$0xff]
    %v546 = vld [vmem:[%s5 + $0x40] sm:$0xff]
    %v547 = vld [vmem:[%s5 + $0x48] sm:$0xff]
    %v548 = vld [vmem:[%s5 + $0x50] sm:$0xff]
    %v549 = vld [vmem:[%s5 + $0x58] sm:$0xff]
    %v550 = vld [vmem:[%s5 + $0x60] sm:$0xff]
    %v551 = vld [vmem:[%s5 + $0x68] sm:$0xff]
    %v552 = vld [vmem:[%s5 + $0x70] sm:$0xff]
    %v553 = vld [vmem:[%s5 + $0x78] sm:$0xff]
    %554 = vmatprep.subr.mxu0 0.0
    %555 = vmatpush1.msra.mxu0 %v538
    %556 = vmatprep.subr.mxu0 0.0
    %557 = vmatpush1.msra.mxu0 %v539
    %558 = vmatprep.subr.mxu0 0.0
    %559 = vmatpush1.msra.mxu0 %v540
    %560 = vmatprep.subr.mxu0 0.0
    %561 = vmatpush1.msra.mxu0 %v541
    %562 = vmatprep.subr.mxu0 0.0
    %563 = vmatpush1.msra.mxu0 %v542
    %564 = vmatprep.subr.mxu0 0.0
    %565 = vmatpush1.msra.mxu0 %v543
    %566 = vmatprep.subr.mxu0 0.0
    %567 = vmatpush1.msra.mxu0 %v544
    %568 = vmatprep.subr.mxu0 0.0
    %569 = vmatpush1.msra.mxu0 %v545
    %570 = vmatprep.subr.mxu0 0.0
    %571 = vmatpush1.msra.mxu0 %v546
    %572 = vmatprep.subr.mxu0 0.0
    %573 = vmatpush1.msra.mxu0 %v547
    %574 = vmatprep.subr.mxu0 0.0
    %575 = vmatpush1.msra.mxu0 %v548
    %576 = vmatprep.subr.mxu0 0.0
    %577 = vmatpush1.msra.mxu0 %v549
    %578 = vmatprep.subr.mxu0 0.0
    %579 = vmatpush1.msra.mxu0 %v550
    %580 = vmatprep.subr.mxu0 0.0
    %581 = vmatpush1.msra.mxu0 %v551
    %582 = vmatprep.subr.mxu0 0.0
    %583 = vmatpush1.msra.mxu0 %v552
    %584 = vmatprep.subr.mxu0 0.0
    %585 = vmatpush1.msra.mxu0 %v553
    %586 = vmatprep.subr.mxu0 0.0
    %587 = vmatpush1.msra.mxu0 0.0
    %588 = vmatprep.subr.mxu0 0.0
    %589 = vmatpush1.msra.mxu0 0.0
    %590 = vmatprep.subr.mxu0 0.0
    %591 = vmatpush1.msra.mxu0 0.0
    %592 = vmatprep.subr.mxu0 0.0
    %593 = vmatpush1.msra.mxu0 0.0
    %594 = vmatprep.subr.mxu0 0.0
    %595 = vmatpush1.msra.mxu0 0.0
    %596 = vmatprep.subr.mxu0 0.0
    %597 = vmatpush1.msra.mxu0 0.0
    %598 = vmatprep.subr.mxu0 0.0
    %599 = vmatpush1.msra.mxu0 0.0
    %600 = vmatprep.subr.mxu0 0.0
    %601 = vmatpush1.msra.mxu0 0.0
    %602 = vmatprep.subr.mxu0 0.0
    %603 = vmatpush1.msra.mxu0 0.0
    %604 = vmatprep.subr.mxu0 0.0
    %605 = vmatpush1.msra.mxu0 0.0
    %606 = vmatprep.subr.mxu0 0.0
    %607 = vmatpush1.msra.mxu0 0.0
    %608 = vmatprep.subr.mxu0 0.0
    %609 = vmatpush1.msra.mxu0 0.0
    %610 = vmatprep.subr.mxu0 0.0
    %611 = vmatpush1.msra.mxu0 0.0
    %612 = vmatprep.subr.mxu0 0.0
    %613 = vmatpush1.msra.mxu0 0.0
    %614 = vmatprep.subr.mxu0 0.0
    %615 = vmatpush1.msra.mxu0 0.0
    %616 = vmatprep.subr.mxu0 0.0
    %617 = vmatpush1.msra.mxu0 0.0
    %618 = vmatprep.mubr.f32.mxu0 0.0
    %619 = vmatmul.mubr.f32.gmra.mrb[0].mxu0 %v537
    %v620 = vpop.f32.mrb[0].mxu0
    %v621 = vadd.f32 0.0, %v620
    %v622 = vpop.f32.mrb[0].mxu0
    %623 = vdwg.mxu0
    %v624 = vld [vmem:[%s6] sm:$0x1]
    %v625 = vpack.c.bf16 %v539, %v538
    %v626 = vpack.c.bf16 %v541, %v540
    %v627 = vpack.c.bf16 %v543, %v542
    %v628 = vpack.c.bf16 %v545, %v544
    %v629 = vpack.c.bf16 %v547, %v546
    %v630 = vpack.c.bf16 %v549, %v548
    %v631 = vpack.c.bf16 %v551, %v550
    %v632 = vpack.c.bf16 %v553, %v552
    %s633 = smul.u32 4, 32
    %s634 = smul.u32 %s633, 2
    %s635 = sshll.u32 %s634, 4
    %636 = dma.done [#allocation6], %s635
    %v637 = vld [vmem:[#allocation5] sm:$0xff]
    %v638 = vld [vmem:[#allocation5 + $0x8] sm:$0xff]
    %v639 = vld [vmem:[#allocation5 + $0x10] sm:$0xff]
    %v640 = vld [vmem:[#allocation5 + $0x18] sm:$0xff]
    %v641 = vld [vmem:[#allocation5 + $0x20] sm:$0xff]
    %v642 = vld [vmem:[#allocation5 + $0x28] sm:$0xff]
    %v643 = vld [vmem:[#allocation5 + $0x30] sm:$0xff]
    %v644 = vld [vmem:[#allocation5 + $0x38] sm:$0xff]
    %v645 = vld [vmem:[#allocation5 + $0x40] sm:$0xff]
    %v646 = vld [vmem:[#allocation5 + $0x48] sm:$0xff]
    %v647 = vld [vmem:[#allocation5 + $0x50] sm:$0xff]
    %v648 = vld [vmem:[#allocation5 + $0x58] sm:$0xff]
    %v649 = vld [vmem:[#allocation5 + $0x60] sm:$0xff]
    %v650 = vld [vmem:[#allocation5 + $0x68] sm:$0xff]
    %v651 = vld [vmem:[#allocation5 + $0x70] sm:$0xff]
    %v652 = vld [vmem:[#allocation5 + $0x78] sm:$0xff]
    %v653 = vld [vmem:[#allocation5 + $0x80] sm:$0xff]
    %v654 = vld [vmem:[#allocation5 + $0x88] sm:$0xff]
    %v655 = vld [vmem:[#allocation5 + $0x90] sm:$0xff]
    %v656 = vld [vmem:[#allocation5 + $0x98] sm:$0xff]
    %v657 = vld [vmem:[#allocation5 + $0xa0] sm:$0xff]
    %v658 = vld [vmem:[#allocation5 + $0xa8] sm:$0xff]
    %v659 = vld [vmem:[#allocation5 + $0xb0] sm:$0xff]
    %v660 = vld [vmem:[#allocation5 + $0xb8] sm:$0xff]
    %v661 = vld [vmem:[#allocation5 + $0xc0] sm:$0xff]
    %v662 = vld [vmem:[#allocation5 + $0xc8] sm:$0xff]
    %v663 = vld [vmem:[#allocation5 + $0xd0] sm:$0xff]
    %v664 = vld [vmem:[#allocation5 + $0xd8] sm:$0xff]
    %v665 = vld [vmem:[#allocation5 + $0xe0] sm:$0xff]
    %v666 = vld [vmem:[#allocation5 + $0xe8] sm:$0xff]
    %v667 = vld [vmem:[#allocation5 + $0xf0] sm:$0xff]
    %v668 = vld [vmem:[#allocation5 + $0xf8] sm:$0xff]
    %v669 = vld [vmem:[#allocation4] sm:$0xff]
    %v670 = vld [vmem:[#allocation4 + $0x8] sm:$0xff]
    %v671 = vld [vmem:[#allocation4 + $0x10] sm:$0xff]
    %v672 = vld [vmem:[#allocation4 + $0x18] sm:$0xff]
    %v673 = vld [vmem:[#allocation4 + $0x20] sm:$0xff]
    %v674 = vld [vmem:[#allocation4 + $0x28] sm:$0xff]
    %v675 = vld [vmem:[#allocation4 + $0x30] sm:$0xff]
    %v676 = vld [vmem:[#allocation4 + $0x38] sm:$0xff]
    %v677 = vld [vmem:[#allocation4 + $0x40] sm:$0xff]
    %v678 = vld [vmem:[#allocation4 + $0x48] sm:$0xff]
    %v679 = vld [vmem:[#allocation4 + $0x50] sm:$0xff]
    %v680 = vld [vmem:[#allocation4 + $0x58] sm:$0xff]
    %v681 = vld [vmem:[#allocation4 + $0x60] sm:$0xff]
    %v682 = vld [vmem:[#allocation4 + $0x68] sm:$0xff]
    %v683 = vld [vmem:[#allocation4 + $0x70] sm:$0xff]
    %v684 = vld [vmem:[#allocation4 + $0x78] sm:$0xff]
    %685 = vmatprep.subr.bf16.mxu0 0
    %686 = vmatpush1.bf16.msra.mxu0 %v669
    %687 = vmatprep.subr.bf16.mxu0 0
    %688 = vmatpush1.bf16.msra.mxu0 %v670
    %689 = vmatprep.subr.bf16.mxu0 0
    %690 = vmatpush1.bf16.msra.mxu0 %v671
    %691 = vmatprep.subr.bf16.mxu0 0
    %692 = vmatpush1.bf16.msra.mxu0 %v672
    %693 = vmatprep.subr.bf16.mxu0 0
    %694 = vmatpush1.bf16.msra.mxu0 %v673
    %695 = vmatprep.subr.bf16.mxu0 0
    %696 = vmatpush1.bf16.msra.mxu0 %v674
    %697 = vmatprep.subr.bf16.mxu0 0
    %698 = vmatpush1.bf16.msra.mxu0 %v675
    %699 = vmatprep.subr.bf16.mxu0 0
    %700 = vmatpush1.bf16.msra.mxu0 %v676
    %701 = vmatprep.subr.bf16.mxu0 0
    %702 = vmatpush1.bf16.msra.mxu0 %v677
    %703 = vmatprep.subr.bf16.mxu0 0
    %704 = vmatpush1.bf16.msra.mxu0 %v678
    %705 = vmatprep.subr.bf16.mxu0 0
    %706 = vmatpush1.bf16.msra.mxu0 %v679
    %707 = vmatprep.subr.bf16.mxu0 0
    %708 = vmatpush1.bf16.msra.mxu0 %v680
    %709 = vmatprep.subr.bf16.mxu0 0
    %710 = vmatpush1.bf16.msra.mxu0 %v681
    %711 = vmatprep.subr.bf16.mxu0 0
    %712 = vmatpush1.bf16.msra.mxu0 %v682
    %713 = vmatprep.subr.bf16.mxu0 0
    %714 = vmatpush1.bf16.msra.mxu0 %v683
    %715 = vmatprep.subr.bf16.mxu0 0
    %716 = vmatpush1.bf16.msra.mxu0 %v684
    %717 = vmatprep.mubr.bf16.mxu0 %v638
    %718 = vmatmul.mubr.bf16.gmra.mrb[0].mxu0 %v637
    %v719 = vpop.f32.mrb[0].mxu0
    %v720 = vadd.f32 0.0, %v719
    %v721 = vpop.f32.mrb[0].mxu0
    %v722 = vpop.f32.mrb[0].mxu0
    %v723 = vadd.f32 0.0, %v722
    %v724 = vpop.f32.mrb[0].mxu0
    %725 = vmatprep.mubr.bf16.mxu0 %v640
    %726 = vmatmul.mubr.bf16.gmra.mrb[0].mxu0 %v639
    %v727 = vpop.f32.mrb[0].mxu0
    %v728 = vadd.f32 0.0, %v727
    %v729 = vpop.f32.mrb[0].mxu0
    %v730 = vpop.f32.mrb[0].mxu0
    %v731 = vadd.f32 0.0, %v730
    %v732 = vpop.f32.mrb[0].mxu0
    %733 = vmatprep.mubr.bf16.mxu0 %v642
    %734 = vmatmul.mubr.bf16.gmra.mrb[0].mxu0 %v641
    %v735 = vpop.f32.mrb[0].mxu0
    %v736 = vadd.f32 0.0, %v735
    %v737 = vpop.f32.mrb[0].mxu0
    %v738 = vpop.f32.mrb[0].mxu0
    %v739 = vadd.f32 0.0, %v738
    %v740 = vpop.f32.mrb[0].mxu0
    %741 = vmatprep.mubr.bf16.mxu0 %v644
    %742 = vmatmul.mubr.bf16.gmra.mrb[0].mxu0 %v643
    %v743 = vpop.f32.mrb[0].mxu0
    %v744 = vadd.f32 0.0, %v743
    %v745 = vpop.f32.mrb[0].mxu0
    %v746 = vpop.f32.mrb[0].mxu0
    %v747 = vadd.f32 0.0, %v746
    %v748 = vpop.f32.mrb[0].mxu0
    %749 = vmatprep.mubr.bf16.mxu0 %v646
    %750 = vmatmul.mubr.bf16.gmra.mrb[0].mxu0 %v645
    %v751 = vpop.f32.mrb[0].mxu0
    %v752 = vadd.f32 0.0, %v751
    %v753 = vpop.f32.mrb[0].mxu0
    %v754 = vpop.f32.mrb[0].mxu0
    %v755 = vadd.f32 0.0, %v754
    %v756 = vpop.f32.mrb[0].mxu0
    %757 = vmatprep.mubr.bf16.mxu0 %v648
    %758 = vmatmul.mubr.bf16.gmra.mrb[0].mxu0 %v647
    %v759 = vpop.f32.mrb[0].mxu0
    %v760 = vadd.f32 0.0, %v759
    %v761 = vpop.f32.mrb[0].mxu0
    %v762 = vpop.f32.mrb[0].mxu0
    %v763 = vadd.f32 0.0, %v762
    %v764 = vpop.f32.mrb[0].mxu0
    %765 = vmatprep.mubr.bf16.mxu0 %v650
    %766 = vmatmul.mubr.bf16.gmra.mrb[0].mxu0 %v649
    %v767 = vpop.f32.mrb[0].mxu0
    %v768 = vadd.f32 0.0, %v767
    %v769 = vpop.f32.mrb[0].mxu0
    %v770 = vpop.f32.mrb[0].mxu0
    %v771 = vadd.f32 0.0, %v770
    %v772 = vpop.f32.mrb[0].mxu0
    %773 = vmatprep.mubr.bf16.mxu0 %v652
    %774 = vmatmul.mubr.bf16.gmra.mrb[0].mxu0 %v651
    %v775 = vpop.f32.mrb[0].mxu0
    %v776 = vadd.f32 0.0, %v775
    %v777 = vpop.f32.mrb[0].mxu0
    %v778 = vpop.f32.mrb[0].mxu0
    %v779 = vadd.f32 0.0, %v778
    %v780 = vpop.f32.mrb[0].mxu0
    %781 = vmatprep.mubr.bf16.mxu0 %v654
    %782 = vmatmul.mubr.bf16.gmra.mrb[0].mxu0 %v653
    %v783 = vpop.f32.mrb[0].mxu0
    %v784 = vadd.f32 0.0, %v783
    %v785 = vpop.f32.mrb[0].mxu0
    %v786 = vpop.f32.mrb[0].mxu0
    %v787 = vadd.f32 0.0, %v786
    %v788 = vpop.f32.mrb[0].mxu0
    %789 = vmatprep.mubr.bf16.mxu0 %v656
    %790 = vmatmul.mubr.bf16.gmra.mrb[0].mxu0 %v655
    %v791 = vpop.f32.mrb[0].mxu0
    %v792 = vadd.f32 0.0, %v791
    %v793 = vpop.f32.mrb[0].mxu0
    %v794 = vpop.f32.mrb[0].mxu0
    %v795 = vadd.f32 0.0, %v794
    %v796 = vpop.f32.mrb[0].mxu0
    %797 = vmatprep.mubr.bf16.mxu0 %v658
    %798 = vmatmul.mubr.bf16.gmra.mrb[0].mxu0 %v657
    %v799 = vpop.f32.mrb[0].mxu0
    %v800 = vadd.f32 0.0, %v799
    %v801 = vpop.f32.mrb[0].mxu0
    %v802 = vpop.f32.mrb[0].mxu0
    %v803 = vadd.f32 0.0, %v802
    %v804 = vpop.f32.mrb[0].mxu0
    %805 = vmatprep.mubr.bf16.mxu0 %v660
    %806 = vmatmul.mubr.bf16.gmra.mrb[0].mxu0 %v659
    %v807 = vpop.f32.mrb[0].mxu0
    %v808 = vadd.f32 0.0, %v807
    %v809 = vpop.f32.mrb[0].mxu0
    %v810 = vpop.f32.mrb[0].mxu0
    %v811 = vadd.f32 0.0, %v810
    %v812 = vpop.f32.mrb[0].mxu0
    %813 = vmatprep.mubr.bf16.mxu0 %v662
    %814 = vmatmul.mubr.bf16.gmra.mrb[0].mxu0 %v661
    %v815 = vpop.f32.mrb[0].mxu0
    %v816 = vadd.f32 0.0, %v815
    %v817 = vpop.f32.mrb[0].mxu0
    %v818 = vpop.f32.mrb[0].mxu0
    %v819 = vadd.f32 0.0, %v818
    %v820 = vpop.f32.mrb[0].mxu0
    %821 = vmatprep.mubr.bf16.mxu0 %v664
    %822 = vmatmul.mubr.bf16.gmra.mrb[0].mxu0 %v663
    %v823 = vpop.f32.mrb[0].mxu0
    %v824 = vadd.f32 0.0, %v823
    %v825 = vpop.f32.mrb[0].mxu0
    %v826 = vpop.f32.mrb[0].mxu0
    %v827 = vadd.f32 0.0, %v826
    %v828 = vpop.f32.mrb[0].mxu0
    %829 = vmatprep.mubr.bf16.mxu0 %v666
    %830 = vmatmul.mubr.bf16.gmra.mrb[0].mxu0 %v665
    %v831 = vpop.f32.mrb[0].mxu0
    %v832 = vadd.f32 0.0, %v831
    %v833 = vpop.f32.mrb[0].mxu0
    %v834 = vpop.f32.mrb[0].mxu0
    %v835 = vadd.f32 0.0, %v834
    %v836 = vpop.f32.mrb[0].mxu0
    %837 = vmatprep.mubr.bf16.mxu0 %v668
    %838 = vmatmul.mubr.bf16.gmra.mrb[0].mxu0 %v667
    %v839 = vpop.f32.mrb[0].mxu0
    %v840 = vadd.f32 0.0, %v839
    %v841 = vpop.f32.mrb[0].mxu0
    %v842 = vpop.f32.mrb[0].mxu0
    %v843 = vadd.f32 0.0, %v842
    %v844 = vpop.f32.mrb[0].mxu0
    %845 = vdwg.mxu0
    %v847 = vlaneseq
    %v848 = vshrl.u32 %v847, 7
    %v849 = vsub.s32 0, %v848
    %v850 = vrot.slane %v534, %v849
    %v852 = vmul.f32 %v720, %v850
    %v853 = vmul.f32 %v723, %v850
    %v854 = vmul.f32 %v728, %v850
    %v855 = vmul.f32 %v731, %v850
    %v856 = vmul.f32 %v736, %v850
    %v857 = vmul.f32 %v739, %v850
    %v858 = vmul.f32 %v744, %v850
    %v859 = vmul.f32 %v747, %v850
    %v860 = vmul.f32 %v752, %v850
    %v861 = vmul.f32 %v755, %v850
    %v862 = vmul.f32 %v760, %v850
    %v863 = vmul.f32 %v763, %v850
    %v864 = vmul.f32 %v768, %v850
    %v865 = vmul.f32 %v771, %v850
    %v866 = vmul.f32 %v776, %v850
    %v867 = vmul.f32 %v779, %v850
    %v868 = vmul.f32 %v784, %v850
    %v869 = vmul.f32 %v787, %v850
    %v870 = vmul.f32 %v792, %v850
    %v871 = vmul.f32 %v795, %v850
    %v872 = vmul.f32 %v800, %v850
    %v873 = vmul.f32 %v803, %v850
    %v874 = vmul.f32 %v808, %v850
    %v875 = vmul.f32 %v811, %v850
    %v876 = vmul.f32 %v816, %v850
    %v877 = vmul.f32 %v819, %v850
    %v878 = vmul.f32 %v824, %v850
    %v879 = vmul.f32 %v827, %v850
    %v880 = vmul.f32 %v832, %v850
    %v881 = vmul.f32 %v835, %v850
    %v882 = vmul.f32 %v840, %v850
    %v883 = vmul.f32 %v843, %v850
    %v884 = vpack.c.bf16 %v853, %v852
    %v885 = vpack.c.bf16 %v855, %v854
    %v886 = vpack.c.bf16 %v857, %v856
    %v887 = vpack.c.bf16 %v859, %v858
    %v888 = vpack.c.bf16 %v861, %v860
    %v889 = vpack.c.bf16 %v863, %v862
    %v890 = vpack.c.bf16 %v865, %v864
    %v891 = vpack.c.bf16 %v867, %v866
    %v892 = vpack.c.bf16 %v869, %v868
    %v893 = vpack.c.bf16 %v871, %v870
    %v894 = vpack.c.bf16 %v873, %v872
    %v895 = vpack.c.bf16 %v875, %v874
    %v896 = vpack.c.bf16 %v877, %v876
    %v897 = vpack.c.bf16 %v879, %v878
    %v898 = vpack.c.bf16 %v881, %v880
    %v899 = vpack.c.bf16 %v883, %v882
    %v900 = vld [vmem:[%s2] sm:$0xff]
    %v901 = vld [vmem:[%s2 + $0x8] sm:$0xff]
    %v902 = vld [vmem:[%s2 + $0x10] sm:$0xff]
    %v903 = vld [vmem:[%s2 + $0x18] sm:$0xff]
    %v904 = vld [vmem:[%s2 + $0x20] sm:$0xff]
    %v905 = vld [vmem:[%s2 + $0x28] sm:$0xff]
    %v906 = vld [vmem:[%s2 + $0x30] sm:$0xff]
    %v907 = vld [vmem:[%s2 + $0x38] sm:$0xff]
    %v908 = vld [vmem:[%s2 + $0x40] sm:$0xff]
    %v909 = vld [vmem:[%s2 + $0x48] sm:$0xff]
    %v910 = vld [vmem:[%s2 + $0x50] sm:$0xff]
    %v911 = vld [vmem:[%s2 + $0x58] sm:$0xff]
    %v912 = vld [vmem:[%s2 + $0x60] sm:$0xff]
    %v913 = vld [vmem:[%s2 + $0x68] sm:$0xff]
    %v914 = vld [vmem:[%s2 + $0x70] sm:$0xff]
    %v915 = vld [vmem:[%s2 + $0x78] sm:$0xff]
    %v916 = vld [vmem:[%s2 + $0x80] sm:$0xff]
    %v917 = vld [vmem:[%s2 + $0x88] sm:$0xff]
    %v918 = vld [vmem:[%s2 + $0x90] sm:$0xff]
    %v919 = vld [vmem:[%s2 + $0x98] sm:$0xff]
    %v920 = vld [vmem:[%s2 + $0xa0] sm:$0xff]
    %v921 = vld [vmem:[%s2 + $0xa8] sm:$0xff]
    %v922 = vld [vmem:[%s2 + $0xb0] sm:$0xff]
    %v923 = vld [vmem:[%s2 + $0xb8] sm:$0xff]
    %v924 = vld [vmem:[%s2 + $0xc0] sm:$0xff]
    %v925 = vld [vmem:[%s2 + $0xc8] sm:$0xff]
    %v926 = vld [vmem:[%s2 + $0xd0] sm:$0xff]
    %v927 = vld [vmem:[%s2 + $0xd8] sm:$0xff]
    %v928 = vld [vmem:[%s2 + $0xe0] sm:$0xff]
    %v929 = vld [vmem:[%s2 + $0xe8] sm:$0xff]
    %v930 = vld [vmem:[%s2 + $0xf0] sm:$0xff]
    %v931 = vld [vmem:[%s2 + $0xf8] sm:$0xff]
    %933 = vset.pattern.permute.xlu0 0
    %934 = vperm.xlu0 %933, %v900
    %v935 = vpop.permute.xlu0 %934
    %938 = vset.pattern.permute.xlu0 0
    %939 = vperm.xlu0 %938, %v901
    %v940 = vpop.permute.xlu0 %939
    %943 = vset.pattern.permute.xlu0 0
    %944 = vperm.xlu0 %943, %v902
    %v945 = vpop.permute.xlu0 %944
    %948 = vset.pattern.permute.xlu0 0
    %949 = vperm.xlu0 %948, %v903
    %v950 = vpop.permute.xlu0 %949
    %953 = vset.pattern.permute.xlu0 0
    %954 = vperm.xlu0 %953, %v904
    %v955 = vpop.permute.xlu0 %954
    %958 = vset.pattern.permute.xlu0 0
    %959 = vperm.xlu0 %958, %v905
    %v960 = vpop.permute.xlu0 %959
    %963 = vset.pattern.permute.xlu0 0
    %964 = vperm.xlu0 %963, %v906
    %v965 = vpop.permute.xlu0 %964
    %968 = vset.pattern.permute.xlu0 0
    %969 = vperm.xlu0 %968, %v907
    %v970 = vpop.permute.xlu0 %969
    %973 = vset.pattern.permute.xlu0 0
    %974 = vperm.xlu0 %973, %v908
    %v975 = vpop.permute.xlu0 %974
    %978 = vset.pattern.permute.xlu0 0
    %979 = vperm.xlu0 %978, %v909
    %v980 = vpop.permute.xlu0 %979
    %983 = vset.pattern.permute.xlu0 0
    %984 = vperm.xlu0 %983, %v910
    %v985 = vpop.permute.xlu0 %984
    %988 = vset.pattern.permute.xlu0 0
    %989 = vperm.xlu0 %988, %v911
    %v990 = vpop.permute.xlu0 %989
    %993 = vset.pattern.permute.xlu0 0
    %994 = vperm.xlu0 %993, %v912
    %v995 = vpop.permute.xlu0 %994
    %998 = vset.pattern.permute.xlu0 0
    %999 = vperm.xlu0 %998, %v913
    %v1000 = vpop.permute.xlu0 %999
    %1003 = vset.pattern.permute.xlu0 0
    %1004 = vperm.xlu0 %1003, %v914
    %v1005 = vpop.permute.xlu0 %1004
    %1008 = vset.pattern.permute.xlu0 0
    %1009 = vperm.xlu0 %1008, %v915
    %v1010 = vpop.permute.xlu0 %1009
    %1013 = vset.pattern.permute.xlu0 0
    %1014 = vperm.xlu0 %1013, %v916
    %v1015 = vpop.permute.xlu0 %1014
    %1018 = vset.pattern.permute.xlu0 0
    %1019 = vperm.xlu0 %1018, %v917
    %v1020 = vpop.permute.xlu0 %1019
    %1023 = vset.pattern.permute.xlu0 0
    %1024 = vperm.xlu0 %1023, %v918
    %v1025 = vpop.permute.xlu0 %1024
    %1028 = vset.pattern.permute.xlu0 0
    %1029 = vperm.xlu0 %1028, %v919
    %v1030 = vpop.permute.xlu0 %1029
    %1033 = vset.pattern.permute.xlu0 0
    %1034 = vperm.xlu0 %1033, %v920
    %v1035 = vpop.permute.xlu0 %1034
    %1038 = vset.pattern.permute.xlu0 0
    %1039 = vperm.xlu0 %1038, %v921
    %v1040 = vpop.permute.xlu0 %1039
    %1043 = vset.pattern.permute.xlu0 0
    %1044 = vperm.xlu0 %1043, %v922
    %v1045 = vpop.permute.xlu0 %1044
    %1048 = vset.pattern.permute.xlu0 0
    %1049 = vperm.xlu0 %1048, %v923
    %v1050 = vpop.permute.xlu0 %1049
    %1053 = vset.pattern.permute.xlu0 0
    %1054 = vperm.xlu0 %1053, %v924
    %v1055 = vpop.permute.xlu0 %1054
    %1058 = vset.pattern.permute.xlu0 0
    %1059 = vperm.xlu0 %1058, %v925
    %v1060 = vpop.permute.xlu0 %1059
    %1063 = vset.pattern.permute.xlu0 0
    %1064 = vperm.xlu0 %1063, %v926
    %v1065 = vpop.permute.xlu0 %1064
    %1068 = vset.pattern.permute.xlu0 0
    %1069 = vperm.xlu0 %1068, %v927
    %v1070 = vpop.permute.xlu0 %1069
    %1073 = vset.pattern.permute.xlu0 0
    %1074 = vperm.xlu0 %1073, %v928
    %v1075 = vpop.permute.xlu0 %1074
    %1078 = vset.pattern.permute.xlu0 0
    %1079 = vperm.xlu0 %1078, %v929
    %v1080 = vpop.permute.xlu0 %1079
    %1083 = vset.pattern.permute.xlu0 0
    %1084 = vperm.xlu0 %1083, %v930
    %v1085 = vpop.permute.xlu0 %1084
    %1088 = vset.pattern.permute.xlu0 0
    %1089 = vperm.xlu0 %1088, %v931
    %v1090 = vpop.permute.xlu0 %1089
    %v1092 = vlaneseq
    %v1093 = vshrl.u32 %v1092, 7
    %v1094 = vsub.s32 0, %v1093
    %v1095 = vrot.slane %v621, %v1094
    %v1096 = vmul.f32 %v935, %v1095
    %v1097 = vmul.f32 %v940, %v1095
    %v1098 = vmul.f32 %v945, %v1095
    %v1099 = vmul.f32 %v950, %v1095
    %v1100 = vmul.f32 %v955, %v1095
    %v1101 = vmul.f32 %v960, %v1095
    %v1102 = vmul.f32 %v965, %v1095
    %v1103 = vmul.f32 %v970, %v1095
    %v1104 = vmul.f32 %v975, %v1095
    %v1105 = vmul.f32 %v980, %v1095
    %v1106 = vmul.f32 %v985, %v1095
    %v1107 = vmul.f32 %v990, %v1095
    %v1108 = vmul.f32 %v995, %v1095
    %v1109 = vmul.f32 %v1000, %v1095
    %v1110 = vmul.f32 %v1005, %v1095
    %v1111 = vmul.f32 %v1010, %v1095
    %v1112 = vmul.f32 %v1015, %v1095
    %v1113 = vmul.f32 %v1020, %v1095
    %v1114 = vmul.f32 %v1025, %v1095
    %v1115 = vmul.f32 %v1030, %v1095
    %v1116 = vmul.f32 %v1035, %v1095
    %v1117 = vmul.f32 %v1040, %v1095
    %v1118 = vmul.f32 %v1045, %v1095
    %v1119 = vmul.f32 %v1050, %v1095
    %v1120 = vmul.f32 %v1055, %v1095
    %v1121 = vmul.f32 %v1060, %v1095
    %v1122 = vmul.f32 %v1065, %v1095
    %v1123 = vmul.f32 %v1070, %v1095
    %v1124 = vmul.f32 %v1075, %v1095
    %v1125 = vmul.f32 %v1080, %v1095
    %v1126 = vmul.f32 %v1085, %v1095
    %v1127 = vmul.f32 %v1090, %v1095
    %1128 = vmatprep.subr.bf16.mxu0 0
    %1129 = vmatpush1.bf16.msra.mxu0 %v625
    %1130 = vmatprep.subr.bf16.mxu0 0
    %1131 = vmatpush1.bf16.msra.mxu0 %v626
    %1132 = vmatprep.subr.bf16.mxu0 0
    %1133 = vmatpush1.bf16.msra.mxu0 %v627
    %1134 = vmatprep.subr.bf16.mxu0 0
    %1135 = vmatpush1.bf16.msra.mxu0 %v628
    %1136 = vmatprep.subr.bf16.mxu0 0
    %1137 = vmatpush1.bf16.msra.mxu0 %v629
    %1138 = vmatprep.subr.bf16.mxu0 0
    %1139 = vmatpush1.bf16.msra.mxu0 %v630
    %1140 = vmatprep.subr.bf16.mxu0 0
    %1141 = vmatpush1.bf16.msra.mxu0 %v631
    %1142 = vmatprep.subr.bf16.mxu0 0
    %1143 = vmatpush1.bf16.msra.mxu0 %v632
    %1144 = vmatprep.subr.bf16.mxu0 0
    %1145 = vmatpush1.bf16.msra.mxu0 0
    %1146 = vmatprep.subr.bf16.mxu0 0
    %1147 = vmatpush1.bf16.msra.mxu0 0
    %1148 = vmatprep.subr.bf16.mxu0 0
    %1149 = vmatpush1.bf16.msra.mxu0 0
    %1150 = vmatprep.subr.bf16.mxu0 0
    %1151 = vmatpush1.bf16.msra.mxu0 0
    %1152 = vmatprep.subr.bf16.mxu0 0
    %1153 = vmatpush1.bf16.msra.mxu0 0
    %1154 = vmatprep.subr.bf16.mxu0 0
    %1155 = vmatpush1.bf16.msra.mxu0 0
    %1156 = vmatprep.subr.bf16.mxu0 0
    %1157 = vmatpush1.bf16.msra.mxu0 0
    %1158 = vmatprep.subr.bf16.mxu0 0
    %1159 = vmatpush1.bf16.msra.mxu0 0
    %1160 = vmatprep.mubr.bf16.mxu0 0
    %1161 = vmatmul.mubr.bf16.gmra.mrb[0].mxu0 %v884
    %v1162 = vpop.f32.mrb[0].mxu0
    %v1163 = vadd.f32 %v1096, %v1162
    %v1164 = vpop.f32.mrb[0].mxu0
    %v1165 = vpop.f32.mrb[0].mxu0
    %v1166 = vadd.f32 %v1097, %v1165
    %v1167 = vpop.f32.mrb[0].mxu0
    %1168 = vmatprep.mubr.bf16.mxu0 0
    %1169 = vmatmul.mubr.bf16.gmra.mrb[0].mxu0 %v885
    %v1170 = vpop.f32.mrb[0].mxu0
    %v1171 = vadd.f32 %v1098, %v1170
    %v1172 = vpop.f32.mrb[0].mxu0
    %v1173 = vpop.f32.mrb[0].mxu0
    %v1174 = vadd.f32 %v1099, %v1173
    %v1175 = vpop.f32.mrb[0].mxu0
    %1176 = vmatprep.mubr.bf16.mxu0 0
    %1177 = vmatmul.mubr.bf16.gmra.mrb[0].mxu0 %v886
    %v1178 = vpop.f32.mrb[0].mxu0
    %v1179 = vadd.f32 %v1100, %v1178
    %v1180 = vpop.f32.mrb[0].mxu0
    %v1181 = vpop.f32.mrb[0].mxu0
    %v1182 = vadd.f32 %v1101, %v1181
    %v1183 = vpop.f32.mrb[0].mxu0
    %1184 = vmatprep.mubr.bf16.mxu0 0
    %1185 = vmatmul.mubr.bf16.gmra.mrb[0].mxu0 %v887
    %v1186 = vpop.f32.mrb[0].mxu0
    %v1187 = vadd.f32 %v1102, %v1186
    %v1188 = vpop.f32.mrb[0].mxu0
    %v1189 = vpop.f32.mrb[0].mxu0
    %v1190 = vadd.f32 %v1103, %v1189
    %v1191 = vpop.f32.mrb[0].mxu0
    %1192 = vmatprep.mubr.bf16.mxu0 0
    %1193 = vmatmul.mubr.bf16.gmra.mrb[0].mxu0 %v888
    %v1194 = vpop.f32.mrb[0].mxu0
    %v1195 = vadd.f32 %v1104, %v1194
    %v1196 = vpop.f32.mrb[0].mxu0
    %v1197 = vpop.f32.mrb[0].mxu0
    %v1198 = vadd.f32 %v1105, %v1197
    %v1199 = vpop.f32.mrb[0].mxu0
    %1200 = vmatprep.mubr.bf16.mxu0 0
    %1201 = vmatmul.mubr.bf16.gmra.mrb[0].mxu0 %v889
    %v1202 = vpop.f32.mrb[0].mxu0
    %v1203 = vadd.f32 %v1106, %v1202
    %v1204 = vpop.f32.mrb[0].mxu0
    %v1205 = vpop.f32.mrb[0].mxu0
    %v1206 = vadd.f32 %v1107, %v1205
    %v1207 = vpop.f32.mrb[0].mxu0
    %1208 = vmatprep.mubr.bf16.mxu0 0
    %1209 = vmatmul.mubr.bf16.gmra.mrb[0].mxu0 %v890
    %v1210 = vpop.f32.mrb[0].mxu0
    %v1211 = vadd.f32 %v1108, %v1210
    %v1212 = vpop.f32.mrb[0].mxu0
    %v1213 = vpop.f32.mrb[0].mxu0
    %v1214 = vadd.f32 %v1109, %v1213
    %v1215 = vpop.f32.mrb[0].mxu0
    %1216 = vmatprep.mubr.bf16.mxu0 0
    %1217 = vmatmul.mubr.bf16.gmra.mrb[0].mxu0 %v891
    %v1218 = vpop.f32.mrb[0].mxu0
    %v1219 = vadd.f32 %v1110, %v1218
    %v1220 = vpop.f32.mrb[0].mxu0
    %v1221 = vpop.f32.mrb[0].mxu0
    %v1222 = vadd.f32 %v1111, %v1221
    %v1223 = vpop.f32.mrb[0].mxu0
    %1224 = vmatprep.mubr.bf16.mxu0 0
    %1225 = vmatmul.mubr.bf16.gmra.mrb[0].mxu0 %v892
    %v1226 = vpop.f32.mrb[0].mxu0
    %v1227 = vadd.f32 %v1112, %v1226
    %v1228 = vpop.f32.mrb[0].mxu0
    %v1229 = vpop.f32.mrb[0].mxu0
    %v1230 = vadd.f32 %v1113, %v1229
    %v1231 = vpop.f32.mrb[0].mxu0
    %1232 = vmatprep.mubr.bf16.mxu0 0
    %1233 = vmatmul.mubr.bf16.gmra.mrb[0].mxu0 %v893
    %v1234 = vpop.f32.mrb[0].mxu0
    %v1235 = vadd.f32 %v1114, %v1234
    %v1236 = vpop.f32.mrb[0].mxu0
    %v1237 = vpop.f32.mrb[0].mxu0
    %v1238 = vadd.f32 %v1115, %v1237
    %v1239 = vpop.f32.mrb[0].mxu0
    %1240 = vmatprep.mubr.bf16.mxu0 0
    %1241 = vmatmul.mubr.bf16.gmra.mrb[0].mxu0 %v894
    %v1242 = vpop.f32.mrb[0].mxu0
    %v1243 = vadd.f32 %v1116, %v1242
    %v1244 = vpop.f32.mrb[0].mxu0
    %v1245 = vpop.f32.mrb[0].mxu0
    %v1246 = vadd.f32 %v1117, %v1245
    %v1247 = vpop.f32.mrb[0].mxu0
    %1248 = vmatprep.mubr.bf16.mxu0 0
    %1249 = vmatmul.mubr.bf16.gmra.mrb[0].mxu0 %v895
    %v1250 = vpop.f32.mrb[0].mxu0
    %v1251 = vadd.f32 %v1118, %v1250
    %v1252 = vpop.f32.mrb[0].mxu0
    %v1253 = vpop.f32.mrb[0].mxu0
    %v1254 = vadd.f32 %v1119, %v1253
    %v1255 = vpop.f32.mrb[0].mxu0
    %1256 = vmatprep.mubr.bf16.mxu0 0
    %1257 = vmatmul.mubr.bf16.gmra.mrb[0].mxu0 %v896
    %v1258 = vpop.f32.mrb[0].mxu0
    %v1259 = vadd.f32 %v1120, %v1258
    %v1260 = vpop.f32.mrb[0].mxu0
    %v1261 = vpop.f32.mrb[0].mxu0
    %v1262 = vadd.f32 %v1121, %v1261
    %v1263 = vpop.f32.mrb[0].mxu0
    %1264 = vmatprep.mubr.bf16.mxu0 0
    %1265 = vmatmul.mubr.bf16.gmra.mrb[0].mxu0 %v897
    %v1266 = vpop.f32.mrb[0].mxu0
    %v1267 = vadd.f32 %v1122, %v1266
    %v1268 = vpop.f32.mrb[0].mxu0
    %v1269 = vpop.f32.mrb[0].mxu0
    %v1270 = vadd.f32 %v1123, %v1269
    %v1271 = vpop.f32.mrb[0].mxu0
    %1272 = vmatprep.mubr.bf16.mxu0 0
    %1273 = vmatmul.mubr.bf16.gmra.mrb[0].mxu0 %v898
    %v1274 = vpop.f32.mrb[0].mxu0
    %v1275 = vadd.f32 %v1124, %v1274
    %v1276 = vpop.f32.mrb[0].mxu0
    %v1277 = vpop.f32.mrb[0].mxu0
    %v1278 = vadd.f32 %v1125, %v1277
    %v1279 = vpop.f32.mrb[0].mxu0
    %1280 = vmatprep.mubr.bf16.mxu0 0
    %1281 = vmatmul.mubr.bf16.gmra.mrb[0].mxu0 %v899
    %v1282 = vpop.f32.mrb[0].mxu0
    %v1283 = vadd.f32 %v1126, %v1282
    %v1284 = vpop.f32.mrb[0].mxu0
    %v1285 = vpop.f32.mrb[0].mxu0
    %v1286 = vadd.f32 %v1127, %v1285
    %v1287 = vpop.f32.mrb[0].mxu0
    %1288 = vdwg.mxu0
    %v1290 = vlaneseq
    %v1291 = vshrl.u32 %v1290, 7
    %v1292 = vsub.s32 0, %v1291
    %v1293 = vrot.slane %v624, %v1292
    %v1295 = vadd.f32 %v1163, %v1293
    %v1296 = vadd.f32 %v1166, %v1293
    %v1297 = vadd.f32 %v1171, %v1293
    %v1298 = vadd.f32 %v1174, %v1293
    %v1299 = vadd.f32 %v1179, %v1293
    %v1300 = vadd.f32 %v1182, %v1293
    %v1301 = vadd.f32 %v1187, %v1293
    %v1302 = vadd.f32 %v1190, %v1293
    %v1303 = vadd.f32 %v1195, %v1293
    %v1304 = vadd.f32 %v1198, %v1293
    %v1305 = vadd.f32 %v1203, %v1293
    %v1306 = vadd.f32 %v1206, %v1293
    %v1307 = vadd.f32 %v1211, %v1293
    %v1308 = vadd.f32 %v1214, %v1293
    %v1309 = vadd.f32 %v1219, %v1293
    %v1310 = vadd.f32 %v1222, %v1293
    %v1311 = vadd.f32 %v1227, %v1293
    %v1312 = vadd.f32 %v1230, %v1293
    %v1313 = vadd.f32 %v1235, %v1293
    %v1314 = vadd.f32 %v1238, %v1293
    %v1315 = vadd.f32 %v1243, %v1293
    %v1316 = vadd.f32 %v1246, %v1293
    %v1317 = vadd.f32 %v1251, %v1293
    %v1318 = vadd.f32 %v1254, %v1293
    %v1319 = vadd.f32 %v1259, %v1293
    %v1320 = vadd.f32 %v1262, %v1293
    %v1321 = vadd.f32 %v1267, %v1293
    %v1322 = vadd.f32 %v1270, %v1293
    %v1323 = vadd.f32 %v1275, %v1293
    %v1324 = vadd.f32 %v1278, %v1293
    %v1325 = vadd.f32 %v1283, %v1293
    %v1326 = vadd.f32 %v1286, %v1293
    %v1327 = vmax.f32 %v1295, 0.0
    %v1328 = vmax.f32 %v1296, 0.0
    %v1329 = vmax.f32 %v1297, 0.0
    %v1330 = vmax.f32 %v1298, 0.0
    %v1331 = vmax.f32 %v1299, 0.0
    %v1332 = vmax.f32 %v1300, 0.0
    %v1333 = vmax.f32 %v1301, 0.0
    %v1334 = vmax.f32 %v1302, 0.0
    %v1335 = vmax.f32 %v1303, 0.0
    %v1336 = vmax.f32 %v1304, 0.0
    %v1337 = vmax.f32 %v1305, 0.0
    %v1338 = vmax.f32 %v1306, 0.0
    %v1339 = vmax.f32 %v1307, 0.0
    %v1340 = vmax.f32 %v1308, 0.0
    %v1341 = vmax.f32 %v1309, 0.0
    %v1342 = vmax.f32 %v1310, 0.0
    %v1343 = vmax.f32 %v1311, 0.0
    %v1344 = vmax.f32 %v1312, 0.0
    %v1345 = vmax.f32 %v1313, 0.0
    %v1346 = vmax.f32 %v1314, 0.0
    %v1347 = vmax.f32 %v1315, 0.0
    %v1348 = vmax.f32 %v1316, 0.0
    %v1349 = vmax.f32 %v1317, 0.0
    %v1350 = vmax.f32 %v1318, 0.0
    %v1351 = vmax.f32 %v1319, 0.0
    %v1352 = vmax.f32 %v1320, 0.0
    %v1353 = vmax.f32 %v1321, 0.0
    %v1354 = vmax.f32 %v1322, 0.0
    %v1355 = vmax.f32 %v1323, 0.0
    %v1356 = vmax.f32 %v1324, 0.0
    %v1357 = vmax.f32 %v1325, 0.0
    %v1358 = vmax.f32 %v1326, 0.0
    %v1359 = vld [vmem:[%s3] sm:$0xff]
    %v1360 = vld [vmem:[%s3 + $0x8] sm:$0xff]
    %v1361 = vld [vmem:[%s3 + $0x10] sm:$0xff]
    %v1362 = vld [vmem:[%s3 + $0x18] sm:$0xff]
    %v1363 = vld [vmem:[%s3 + $0x20] sm:$0xff]
    %v1364 = vld [vmem:[%s3 + $0x28] sm:$0xff]
    %v1365 = vld [vmem:[%s3 + $0x30] sm:$0xff]
    %v1366 = vld [vmem:[%s3 + $0x38] sm:$0xff]
    %v1367 = vld [vmem:[%s3 + $0x40] sm:$0xff]
    %v1368 = vld [vmem:[%s3 + $0x48] sm:$0xff]
    %v1369 = vld [vmem:[%s3 + $0x50] sm:$0xff]
    %v1370 = vld [vmem:[%s3 + $0x58] sm:$0xff]
    %v1371 = vld [vmem:[%s3 + $0x60] sm:$0xff]
    %v1372 = vld [vmem:[%s3 + $0x68] sm:$0xff]
    %v1373 = vld [vmem:[%s3 + $0x70] sm:$0xff]
    %v1374 = vld [vmem:[%s3 + $0x78] sm:$0xff]
    %v1375 = vld [vmem:[%s3 + $0x80] sm:$0xff]
    %v1376 = vld [vmem:[%s3 + $0x88] sm:$0xff]
    %v1377 = vld [vmem:[%s3 + $0x90] sm:$0xff]
    %v1378 = vld [vmem:[%s3 + $0x98] sm:$0xff]
    %v1379 = vld [vmem:[%s3 + $0xa0] sm:$0xff]
    %v1380 = vld [vmem:[%s3 + $0xa8] sm:$0xff]
    %v1381 = vld [vmem:[%s3 + $0xb0] sm:$0xff]
    %v1382 = vld [vmem:[%s3 + $0xb8] sm:$0xff]
    %v1383 = vld [vmem:[%s3 + $0xc0] sm:$0xff]
    %v1384 = vld [vmem:[%s3 + $0xc8] sm:$0xff]
    %v1385 = vld [vmem:[%s3 + $0xd0] sm:$0xff]
    %v1386 = vld [vmem:[%s3 + $0xd8] sm:$0xff]
    %v1387 = vld [vmem:[%s3 + $0xe0] sm:$0xff]
    %v1388 = vld [vmem:[%s3 + $0xe8] sm:$0xff]
    %v1389 = vld [vmem:[%s3 + $0xf0] sm:$0xff]
    %v1390 = vld [vmem:[%s3 + $0xf8] sm:$0xff]
    %1392 = vset.pattern.permute.xlu0 0
    %1393 = vperm.xlu0 %1392, %v1359
    %v1394 = vpop.permute.xlu0 %1393
    %1397 = vset.pattern.permute.xlu0 0
    %1398 = vperm.xlu0 %1397, %v1360
    %v1399 = vpop.permute.xlu0 %1398
    %1402 = vset.pattern.permute.xlu0 0
    %1403 = vperm.xlu0 %1402, %v1361
    %v1404 = vpop.permute.xlu0 %1403
    %1407 = vset.pattern.permute.xlu0 0
    %1408 = vperm.xlu0 %1407, %v1362
    %v1409 = vpop.permute.xlu0 %1408
    %1412 = vset.pattern.permute.xlu0 0
    %1413 = vperm.xlu0 %1412, %v1363
    %v1414 = vpop.permute.xlu0 %1413
    %1417 = vset.pattern.permute.xlu0 0
    %1418 = vperm.xlu0 %1417, %v1364
    %v1419 = vpop.permute.xlu0 %1418
    %1422 = vset.pattern.permute.xlu0 0
    %1423 = vperm.xlu0 %1422, %v1365
    %v1424 = vpop.permute.xlu0 %1423
    %1427 = vset.pattern.permute.xlu0 0
    %1428 = vperm.xlu0 %1427, %v1366
    %v1429 = vpop.permute.xlu0 %1428
    %1432 = vset.pattern.permute.xlu0 0
    %1433 = vperm.xlu0 %1432, %v1367
    %v1434 = vpop.permute.xlu0 %1433
    %1437 = vset.pattern.permute.xlu0 0
    %1438 = vperm.xlu0 %1437, %v1368
    %v1439 = vpop.permute.xlu0 %1438
    %1442 = vset.pattern.permute.xlu0 0
    %1443 = vperm.xlu0 %1442, %v1369
    %v1444 = vpop.permute.xlu0 %1443
    %1447 = vset.pattern.permute.xlu0 0
    %1448 = vperm.xlu0 %1447, %v1370
    %v1449 = vpop.permute.xlu0 %1448
    %1452 = vset.pattern.permute.xlu0 0
    %1453 = vperm.xlu0 %1452, %v1371
    %v1454 = vpop.permute.xlu0 %1453
    %1457 = vset.pattern.permute.xlu0 0
    %1458 = vperm.xlu0 %1457, %v1372
    %v1459 = vpop.permute.xlu0 %1458
    %1462 = vset.pattern.permute.xlu0 0
    %1463 = vperm.xlu0 %1462, %v1373
    %v1464 = vpop.permute.xlu0 %1463
    %1467 = vset.pattern.permute.xlu0 0
    %1468 = vperm.xlu0 %1467, %v1374
    %v1469 = vpop.permute.xlu0 %1468
    %1472 = vset.pattern.permute.xlu0 0
    %1473 = vperm.xlu0 %1472, %v1375
    %v1474 = vpop.permute.xlu0 %1473
    %1477 = vset.pattern.permute.xlu0 0
    %1478 = vperm.xlu0 %1477, %v1376
    %v1479 = vpop.permute.xlu0 %1478
    %1482 = vset.pattern.permute.xlu0 0
    %1483 = vperm.xlu0 %1482, %v1377
    %v1484 = vpop.permute.xlu0 %1483
    %1487 = vset.pattern.permute.xlu0 0
    %1488 = vperm.xlu0 %1487, %v1378
    %v1489 = vpop.permute.xlu0 %1488
    %1492 = vset.pattern.permute.xlu0 0
    %1493 = vperm.xlu0 %1492, %v1379
    %v1494 = vpop.permute.xlu0 %1493
    %1497 = vset.pattern.permute.xlu0 0
    %1498 = vperm.xlu0 %1497, %v1380
    %v1499 = vpop.permute.xlu0 %1498
    %1502 = vset.pattern.permute.xlu0 0
    %1503 = vperm.xlu0 %1502, %v1381
    %v1504 = vpop.permute.xlu0 %1503
    %1507 = vset.pattern.permute.xlu0 0
    %1508 = vperm.xlu0 %1507, %v1382
    %v1509 = vpop.permute.xlu0 %1508
    %1512 = vset.pattern.permute.xlu0 0
    %1513 = vperm.xlu0 %1512, %v1383
    %v1514 = vpop.permute.xlu0 %1513
    %1517 = vset.pattern.permute.xlu0 0
    %1518 = vperm.xlu0 %1517, %v1384
    %v1519 = vpop.permute.xlu0 %1518
    %1522 = vset.pattern.permute.xlu0 0
    %1523 = vperm.xlu0 %1522, %v1385
    %v1524 = vpop.permute.xlu0 %1523
    %1527 = vset.pattern.permute.xlu0 0
    %1528 = vperm.xlu0 %1527, %v1386
    %v1529 = vpop.permute.xlu0 %1528
    %1532 = vset.pattern.permute.xlu0 0
    %1533 = vperm.xlu0 %1532, %v1387
    %v1534 = vpop.permute.xlu0 %1533
    %1537 = vset.pattern.permute.xlu0 0
    %1538 = vperm.xlu0 %1537, %v1388
    %v1539 = vpop.permute.xlu0 %1538
    %1542 = vset.pattern.permute.xlu0 0
    %1543 = vperm.xlu0 %1542, %v1389
    %v1544 = vpop.permute.xlu0 %1543
    %1547 = vset.pattern.permute.xlu0 0
    %1548 = vperm.xlu0 %1547, %v1390
    %v1549 = vpop.permute.xlu0 %1548
    %v1551 = vmul.f32 %v1327, %v1394
    %v1552 = vmul.f32 %v1328, %v1399
    %v1553 = vmul.f32 %v1329, %v1404
    %v1554 = vmul.f32 %v1330, %v1409
    %v1555 = vmul.f32 %v1331, %v1414
    %v1556 = vmul.f32 %v1332, %v1419
    %v1557 = vmul.f32 %v1333, %v1424
    %v1558 = vmul.f32 %v1334, %v1429
    %v1559 = vmul.f32 %v1335, %v1434
    %v1560 = vmul.f32 %v1336, %v1439
    %v1561 = vmul.f32 %v1337, %v1444
    %v1562 = vmul.f32 %v1338, %v1449
    %v1563 = vmul.f32 %v1339, %v1454
    %v1564 = vmul.f32 %v1340, %v1459
    %v1565 = vmul.f32 %v1341, %v1464
    %v1566 = vmul.f32 %v1342, %v1469
    %v1567 = vmul.f32 %v1343, %v1474
    %v1568 = vmul.f32 %v1344, %v1479
    %v1569 = vmul.f32 %v1345, %v1484
    %v1570 = vmul.f32 %v1346, %v1489
    %v1571 = vmul.f32 %v1347, %v1494
    %v1572 = vmul.f32 %v1348, %v1499
    %v1573 = vmul.f32 %v1349, %v1504
    %v1574 = vmul.f32 %v1350, %v1509
    %v1575 = vmul.f32 %v1351, %v1514
    %v1576 = vmul.f32 %v1352, %v1519
    %v1577 = vmul.f32 %v1353, %v1524
    %v1578 = vmul.f32 %v1354, %v1529
    %v1579 = vmul.f32 %v1355, %v1534
    %v1580 = vmul.f32 %v1356, %v1539
    %v1581 = vmul.f32 %v1357, %v1544
    %v1582 = vmul.f32 %v1358, %v1549
    %1583 = vst [vmem:[#allocation2] sm:$0xff] %v1551
    %1584 = vst [vmem:[#allocation2 + $0x8] sm:$0xff] %v1552
    %1585 = vst [vmem:[#allocation2 + $0x10] sm:$0xff] %v1553
    %1586 = vst [vmem:[#allocation2 + $0x18] sm:$0xff] %v1554
    %1587 = vst [vmem:[#allocation2 + $0x20] sm:$0xff] %v1555
    %1588 = vst [vmem:[#allocation2 + $0x28] sm:$0xff] %v1556
    %1589 = vst [vmem:[#allocation2 + $0x30] sm:$0xff] %v1557
    %1590 = vst [vmem:[#allocation2 + $0x38] sm:$0xff] %v1558
    %1591 = vst [vmem:[#allocation2 + $0x40] sm:$0xff] %v1559
    %1592 = vst [vmem:[#allocation2 + $0x48] sm:$0xff] %v1560
    %1593 = vst [vmem:[#allocation2 + $0x50] sm:$0xff] %v1561
    %1594 = vst [vmem:[#allocation2 + $0x58] sm:$0xff] %v1562
    %1595 = vst [vmem:[#allocation2 + $0x60] sm:$0xff] %v1563
    %1596 = vst [vmem:[#allocation2 + $0x68] sm:$0xff] %v1564
    %1597 = vst [vmem:[#allocation2 + $0x70] sm:$0xff] %v1565
    %1598 = vst [vmem:[#allocation2 + $0x78] sm:$0xff] %v1566
    %1599 = vst [vmem:[#allocation2 + $0x80] sm:$0xff] %v1567
    %1600 = vst [vmem:[#allocation2 + $0x88] sm:$0xff] %v1568
    %1601 = vst [vmem:[#allocation2 + $0x90] sm:$0xff] %v1569
    %1602 = vst [vmem:[#allocation2 + $0x98] sm:$0xff] %v1570
    %1603 = vst [vmem:[#allocation2 + $0xa0] sm:$0xff] %v1571
    %1604 = vst [vmem:[#allocation2 + $0xa8] sm:$0xff] %v1572
    %1605 = vst [vmem:[#allocation2 + $0xb0] sm:$0xff] %v1573
    %1606 = vst [vmem:[#allocation2 + $0xb8] sm:$0xff] %v1574
    %1607 = vst [vmem:[#allocation2 + $0xc0] sm:$0xff] %v1575
    %1608 = vst [vmem:[#allocation2 + $0xc8] sm:$0xff] %v1576
    %1609 = vst [vmem:[#allocation2 + $0xd0] sm:$0xff] %v1577
    %1610 = vst [vmem:[#allocation2 + $0xd8] sm:$0xff] %v1578
    %1611 = vst [vmem:[#allocation2 + $0xe0] sm:$0xff] %v1579
    %1612 = vst [vmem:[#allocation2 + $0xe8] sm:$0xff] %v1580
    %1613 = vst [vmem:[#allocation2 + $0xf0] sm:$0xff] %v1581
    %1614 = vst [vmem:[#allocation2 + $0xf8] sm:$0xff] %v1582
    %p1616 = scmp.lt.u32.totalorder 4, 8
    %p1617 = pneg %p1616
    // Predicated region
    $region95: #{resgcn_forward.1} parent=1 // pred_check
      _
    $region96: #{resgcn_forward.1} parent=1 // pred_check_branch
      %1619 = sbr.rel (%p1616) target = $region98
    $region97: #{resgcn_forward.1} parent=1 // pred_region
      %s1760 = sand.u32 4, 7
      %p1761 = scmp.eq.s32.totalorder %s1760, 0
      %p1762 = pneg %p1761
      // Predicated region
      $region110: #{resgcn_forward.1} parent=97 // pred_check
        _
      $region111: #{resgcn_forward.1} parent=97 // pred_check_branch
        %1764 = sbr.rel (%p1761) target = $region113
      $region112: #{resgcn_forward.1} parent=97 // pred_region
        %s1765 = sand.u32 4, 7
        %s1766 = ssub.s32 4, %s1765
        %s1767 = scalar_lea.vmem %s1, %s1766
        %s1768 = ssub.s32 4, %s1765
        %s1769 = scalar_lea.vmem [#allocation5], %s1768
        loop: start=0, step=1, limit=1
        $region114: #{resgcn_forward.1} parent=112 // loop_pre_header
          _
        $region115: #{resgcn_forward.1} parent=112 // loop_header
          %s1771 = sphi 0, %s1775
          %p1772 = scmp.ge.s32.totalorder %s1771, 1
          %s1776 = sphi %s1, %s1
          %s1777 = sphi [#allocation5], [#allocation5]
        $region116: #{resgcn_forward.1} parent=112 // loop_header_branch
          %1774 = sbr.rel (%p1772) target = $region120
        $region117: #{resgcn_forward.1} parent=112 // loop_body
          _
        $region118: #{resgcn_forward.1} parent=112 // loop_footer
          %s1775 = sadd.s32 1, %s1771
        $region119: #{resgcn_forward.1} parent=112 // loop_footer_branch
          %1770 = sbr.rel target = $region115
        $region120: #{resgcn_forward.1} parent=112 // loop_exit
          _
        %s1778 = sshllo.u32 0, %s1765
        loop: start=0, step=1, limit=1
        $region121: #{resgcn_forward.1} parent=112 // loop_pre_header
          _
        $region122: #{resgcn_forward.1} parent=112 // loop_header
          %s1780 = sphi 0, %s1784
          %p1781 = scmp.ge.s32.totalorder %s1780, 1
          %s1785 = sphi %s1767, %s1767
          %s1786 = sphi %s1769, %s1769
        $region123: #{resgcn_forward.1} parent=112 // loop_header_branch
          %1783 = sbr.rel (%p1781) target = $region127
        $region124: #{resgcn_forward.1} parent=112 // loop_body
          %v1787 = vld [vmem:[%s1785] sm:%s1778]
          %1788 = vst [vmem:[%s1786] sm:%s1778] %v1787
          %v1789 = vld [vmem:[%s1785 + $0x8] sm:%s1778]
          %1790 = vst [vmem:[%s1786 + $0x4] sm:%s1778] %v1789
          %v1791 = vld [vmem:[%s1785 + $0x4] sm:%s1778]
          %1792 = vst [vmem:[%s1786 + $0x8] sm:%s1778] %v1791
          %v1793 = vld [vmem:[%s1785 + $0xc] sm:%s1778]
          %1794 = vst [vmem:[%s1786 + $0xc] sm:%s1778] %v1793
          %v1795 = vld [vmem:[%s1785 + $0x10] sm:%s1778]
          %1796 = vst [vmem:[%s1786 + $0x10] sm:%s1778] %v1795
          %v1797 = vld [vmem:[%s1785 + $0x18] sm:%s1778]
          %1798 = vst [vmem:[%s1786 + $0x14] sm:%s1778] %v1797
          %v1799 = vld [vmem:[%s1785 + $0x14] sm:%s1778]
          %1800 = vst [vmem:[%s1786 + $0x18] sm:%s1778] %v1799
          %v1801 = vld [vmem:[%s1785 + $0x1c] sm:%s1778]
          %1802 = vst [vmem:[%s1786 + $0x1c] sm:%s1778] %v1801
          %v1803 = vld [vmem:[%s1785 + $0x20] sm:%s1778]
          %1804 = vst [vmem:[%s1786 + $0x20] sm:%s1778] %v1803
          %v1805 = vld [vmem:[%s1785 + $0x28] sm:%s1778]
          %1806 = vst [vmem:[%s1786 + $0x24] sm:%s1778] %v1805
          %v1807 = vld [vmem:[%s1785 + $0x24] sm:%s1778]
          %1808 = vst [vmem:[%s1786 + $0x28] sm:%s1778] %v1807
          %v1809 = vld [vmem:[%s1785 + $0x2c] sm:%s1778]
          %1810 = vst [vmem:[%s1786 + $0x2c] sm:%s1778] %v1809
          %v1811 = vld [vmem:[%s1785 + $0x30] sm:%s1778]
          %1812 = vst [vmem:[%s1786 + $0x30] sm:%s1778] %v1811
          %v1813 = vld [vmem:[%s1785 + $0x38] sm:%s1778]
          %1814 = vst [vmem:[%s1786 + $0x34] sm:%s1778] %v1813
          %v1815 = vld [vmem:[%s1785 + $0x34] sm:%s1778]
          %1816 = vst [vmem:[%s1786 + $0x38] sm:%s1778] %v1815
          %v1817 = vld [vmem:[%s1785 + $0x3c] sm:%s1778]
          %1818 = vst [vmem:[%s1786 + $0x3c] sm:%s1778] %v1817
          %v1819 = vld [vmem:[%s1785 + $0x40] sm:%s1778]
          %1820 = vst [vmem:[%s1786 + $0x40] sm:%s1778] %v1819
          %v1821 = vld [vmem:[%s1785 + $0x48] sm:%s1778]
          %1822 = vst [vmem:[%s1786 + $0x44] sm:%s1778] %v1821
          %v1823 = vld [vmem:[%s1785 + $0x44] sm:%s1778]
          %1824 = vst [vmem:[%s1786 + $0x48] sm:%s1778] %v1823
          %v1825 = vld [vmem:[%s1785 + $0x4c] sm:%s1778]
          %1826 = vst [vmem:[%s1786 + $0x4c] sm:%s1778] %v1825
          %v1827 = vld [vmem:[%s1785 + $0x50] sm:%s1778]
          %1828 = vst [vmem:[%s1786 + $0x50] sm:%s1778] %v1827
          %v1829 = vld [vmem:[%s1785 + $0x58] sm:%s1778]
          %1830 = vst [vmem:[%s1786 + $0x54] sm:%s1778] %v1829
          %v1831 = vld [vmem:[%s1785 + $0x54] sm:%s1778]
          %1832 = vst [vmem:[%s1786 + $0x58] sm:%s1778] %v1831
          %v1833 = vld [vmem:[%s1785 + $0x5c] sm:%s1778]
          %1834 = vst [vmem:[%s1786 + $0x5c] sm:%s1778] %v1833
          %v1835 = vld [vmem:[%s1785 + $0x60] sm:%s1778]
          %1836 = vst [vmem:[%s1786 + $0x60] sm:%s1778] %v1835
          %v1837 = vld [vmem:[%s1785 + $0x68] sm:%s1778]
          %1838 = vst [vmem:[%s1786 + $0x64] sm:%s1778] %v1837
          %v1839 = vld [vmem:[%s1785 + $0x64] sm:%s1778]
          %1840 = vst [vmem:[%s1786 + $0x68] sm:%s1778] %v1839
          %v1841 = vld [vmem:[%s1785 + $0x6c] sm:%s1778]
          %1842 = vst [vmem:[%s1786 + $0x6c] sm:%s1778] %v1841
          %v1843 = vld [vmem:[%s1785 + $0x70] sm:%s1778]
          %1844 = vst [vmem:[%s1786 + $0x70] sm:%s1778] %v1843
          %v1845 = vld [vmem:[%s1785 + $0x78] sm:%s1778]
          %1846 = vst [vmem:[%s1786 + $0x74] sm:%s1778] %v1845
          %v1847 = vld [vmem:[%s1785 + $0x74] sm:%s1778]
          %1848 = vst [vmem:[%s1786 + $0x78] sm:%s1778] %v1847
          %v1849 = vld [vmem:[%s1785 + $0x7c] sm:%s1778]
          %1850 = vst [vmem:[%s1786 + $0x7c] sm:%s1778] %v1849
          %v1851 = vld [vmem:[%s1785 + $0x80] sm:%s1778]
          %1852 = vst [vmem:[%s1786 + $0x80] sm:%s1778] %v1851
          %v1853 = vld [vmem:[%s1785 + $0x88] sm:%s1778]
          %1854 = vst [vmem:[%s1786 + $0x84] sm:%s1778] %v1853
          %v1855 = vld [vmem:[%s1785 + $0x84] sm:%s1778]
          %1856 = vst [vmem:[%s1786 + $0x88] sm:%s1778] %v1855
          %v1857 = vld [vmem:[%s1785 + $0x8c] sm:%s1778]
          %1858 = vst [vmem:[%s1786 + $0x8c] sm:%s1778] %v1857
          %v1859 = vld [vmem:[%s1785 + $0x90] sm:%s1778]
          %1860 = vst [vmem:[%s1786 + $0x90] sm:%s1778] %v1859
          %v1861 = vld [vmem:[%s1785 + $0x98] sm:%s1778]
          %1862 = vst [vmem:[%s1786 + $0x94] sm:%s1778] %v1861
          %v1863 = vld [vmem:[%s1785 + $0x94] sm:%s1778]
          %1864 = vst [vmem:[%s1786 + $0x98] sm:%s1778] %v1863
          %v1865 = vld [vmem:[%s1785 + $0x9c] sm:%s1778]
          %1866 = vst [vmem:[%s1786 + $0x9c] sm:%s1778] %v1865
          %v1867 = vld [vmem:[%s1785 + $0xa0] sm:%s1778]
          %1868 = vst [vmem:[%s1786 + $0xa0] sm:%s1778] %v1867
          %v1869 = vld [vmem:[%s1785 + $0xa8] sm:%s1778]
          %1870 = vst [vmem:[%s1786 + $0xa4] sm:%s1778] %v1869
          %v1871 = vld [vmem:[%s1785 + $0xa4] sm:%s1778]
          %1872 = vst [vmem:[%s1786 + $0xa8] sm:%s1778] %v1871
          %v1873 = vld [vmem:[%s1785 + $0xac] sm:%s1778]
          %1874 = vst [vmem:[%s1786 + $0xac] sm:%s1778] %v1873
          %v1875 = vld [vmem:[%s1785 + $0xb0] sm:%s1778]
          %1876 = vst [vmem:[%s1786 + $0xb0] sm:%s1778] %v1875
          %v1877 = vld [vmem:[%s1785 + $0xb8] sm:%s1778]
          %1878 = vst [vmem:[%s1786 + $0xb4] sm:%s1778] %v1877
          %v1879 = vld [vmem:[%s1785 + $0xb4] sm:%s1778]
          %1880 = vst [vmem:[%s1786 + $0xb8] sm:%s1778] %v1879
          %v1881 = vld [vmem:[%s1785 + $0xbc] sm:%s1778]
          %1882 = vst [vmem:[%s1786 + $0xbc] sm:%s1778] %v1881
          %v1883 = vld [vmem:[%s1785 + $0xc0] sm:%s1778]
          %1884 = vst [vmem:[%s1786 + $0xc0] sm:%s1778] %v1883
          %v1885 = vld [vmem:[%s1785 + $0xc8] sm:%s1778]
          %1886 = vst [vmem:[%s1786 + $0xc4] sm:%s1778] %v1885
          %v1887 = vld [vmem:[%s1785 + $0xc4] sm:%s1778]
          %1888 = vst [vmem:[%s1786 + $0xc8] sm:%s1778] %v1887
          %v1889 = vld [vmem:[%s1785 + $0xcc] sm:%s1778]
          %1890 = vst [vmem:[%s1786 + $0xcc] sm:%s1778] %v1889
          %v1891 = vld [vmem:[%s1785 + $0xd0] sm:%s1778]
          %1892 = vst [vmem:[%s1786 + $0xd0] sm:%s1778] %v1891
          %v1893 = vld [vmem:[%s1785 + $0xd8] sm:%s1778]
          %1894 = vst [vmem:[%s1786 + $0xd4] sm:%s1778] %v1893
          %v1895 = vld [vmem:[%s1785 + $0xd4] sm:%s1778]
          %1896 = vst [vmem:[%s1786 + $0xd8] sm:%s1778] %v1895
          %v1897 = vld [vmem:[%s1785 + $0xdc] sm:%s1778]
          %1898 = vst [vmem:[%s1786 + $0xdc] sm:%s1778] %v1897
          %v1899 = vld [vmem:[%s1785 + $0xe0] sm:%s1778]
          %1900 = vst [vmem:[%s1786 + $0xe0] sm:%s1778] %v1899
          %v1901 = vld [vmem:[%s1785 + $0xe8] sm:%s1778]
          %1902 = vst [vmem:[%s1786 + $0xe4] sm:%s1778] %v1901
          %v1903 = vld [vmem:[%s1785 + $0xe4] sm:%s1778]
          %1904 = vst [vmem:[%s1786 + $0xe8] sm:%s1778] %v1903
          %v1905 = vld [vmem:[%s1785 + $0xec] sm:%s1778]
          %1906 = vst [vmem:[%s1786 + $0xec] sm:%s1778] %v1905
          %v1907 = vld [vmem:[%s1785 + $0xf0] sm:%s1778]
          %1908 = vst [vmem:[%s1786 + $0xf0] sm:%s1778] %v1907
          %v1909 = vld [vmem:[%s1785 + $0xf8] sm:%s1778]
          %1910 = vst [vmem:[%s1786 + $0xf4] sm:%s1778] %v1909
          %v1911 = vld [vmem:[%s1785 + $0xf4] sm:%s1778]
          %1912 = vst [vmem:[%s1786 + $0xf8] sm:%s1778] %v1911
          %v1913 = vld [vmem:[%s1785 + $0xfc] sm:%s1778]
          %1914 = vst [vmem:[%s1786 + $0xfc] sm:%s1778] %v1913
        $region125: #{resgcn_forward.1} parent=112 // loop_footer
          %s1784 = sadd.s32 1, %s1780
        $region126: #{resgcn_forward.1} parent=112 // loop_footer_branch
          %1779 = sbr.rel target = $region122
        $region127: #{resgcn_forward.1} parent=112 // loop_exit
          _
      $region113: #{resgcn_forward.1} parent=97 // pred_fallthru
        _
    $region98: #{resgcn_forward.1} parent=1 // pred_fallthru
      _
    // Predicated region
    $region99: #{resgcn_forward.1} parent=1 // pred_check
      %p1620 = pneg %p1616
    $region100: #{resgcn_forward.1} parent=1 // pred_check_branch
      %1622 = sbr.rel (%p1620) target = $region102
    $region101: #{resgcn_forward.1} parent=1 // pred_region
      %s1623 = sshllo.u32 0, 4
      loop: start=0, step=1, limit=1
      $region103: #{resgcn_forward.1} parent=101 // loop_pre_header
        _
      $region104: #{resgcn_forward.1} parent=101 // loop_header
        %s1625 = sphi 0, %s1629
        %p1626 = scmp.ge.s32.totalorder %s1625, 1
        %s1630 = sphi %s1, %s1
        %s1631 = sphi [#allocation5], [#allocation5]
      $region105: #{resgcn_forward.1} parent=101 // loop_header_branch
        %1628 = sbr.rel (%p1626) target = $region109
      $region106: #{resgcn_forward.1} parent=101 // loop_body
        %v1632 = vld [vmem:[%s1630] sm:%s1623]
        %1633 = vst [vmem:[%s1631] sm:%s1623] %v1632
        %v1634 = vld [vmem:[%s1630 + $0x8] sm:%s1623]
        %1635 = vst [vmem:[%s1631 + $0x4] sm:%s1623] %v1634
        %v1636 = vld [vmem:[%s1630 + $0x4] sm:%s1623]
        %1637 = vst [vmem:[%s1631 + $0x8] sm:%s1623] %v1636
        %v1638 = vld [vmem:[%s1630 + $0xc] sm:%s1623]
        %1639 = vst [vmem:[%s1631 + $0xc] sm:%s1623] %v1638
        %v1640 = vld [vmem:[%s1630 + $0x10] sm:%s1623]
        %1641 = vst [vmem:[%s1631 + $0x10] sm:%s1623] %v1640
        %v1642 = vld [vmem:[%s1630 + $0x18] sm:%s1623]
        %1643 = vst [vmem:[%s1631 + $0x14] sm:%s1623] %v1642
        %v1644 = vld [vmem:[%s1630 + $0x14] sm:%s1623]
        %1645 = vst [vmem:[%s1631 + $0x18] sm:%s1623] %v1644
        %v1646 = vld [vmem:[%s1630 + $0x1c] sm:%s1623]
        %1647 = vst [vmem:[%s1631 + $0x1c] sm:%s1623] %v1646
        %v1648 = vld [vmem:[%s1630 + $0x20] sm:%s1623]
        %1649 = vst [vmem:[%s1631 + $0x20] sm:%s1623] %v1648
        %v1650 = vld [vmem:[%s1630 + $0x28] sm:%s1623]
        %1651 = vst [vmem:[%s1631 + $0x24] sm:%s1623] %v1650
        %v1652 = vld [vmem:[%s1630 + $0x24] sm:%s1623]
        %1653 = vst [vmem:[%s1631 + $0x28] sm:%s1623] %v1652
        %v1654 = vld [vmem:[%s1630 + $0x2c] sm:%s1623]
        %1655 = vst [vmem:[%s1631 + $0x2c] sm:%s1623] %v1654
        %v1656 = vld [vmem:[%s1630 + $0x30] sm:%s1623]
        %1657 = vst [vmem:[%s1631 + $0x30] sm:%s1623] %v1656
        %v1658 = vld [vmem:[%s1630 + $0x38] sm:%s1623]
        %1659 = vst [vmem:[%s1631 + $0x34] sm:%s1623] %v1658
        %v1660 = vld [vmem:[%s1630 + $0x34] sm:%s1623]
        %1661 = vst [vmem:[%s1631 + $0x38] sm:%s1623] %v1660
        %v1662 = vld [vmem:[%s1630 + $0x3c] sm:%s1623]
        %1663 = vst [vmem:[%s1631 + $0x3c] sm:%s1623] %v1662
        %v1664 = vld [vmem:[%s1630 + $0x40] sm:%s1623]
        %1665 = vst [vmem:[%s1631 + $0x40] sm:%s1623] %v1664
        %v1666 = vld [vmem:[%s1630 + $0x48] sm:%s1623]
        %1667 = vst [vmem:[%s1631 + $0x44] sm:%s1623] %v1666
        %v1668 = vld [vmem:[%s1630 + $0x44] sm:%s1623]
        %1669 = vst [vmem:[%s1631 + $0x48] sm:%s1623] %v1668
        %v1670 = vld [vmem:[%s1630 + $0x4c] sm:%s1623]
        %1671 = vst [vmem:[%s1631 + $0x4c] sm:%s1623] %v1670
        %v1672 = vld [vmem:[%s1630 + $0x50] sm:%s1623]
        %1673 = vst [vmem:[%s1631 + $0x50] sm:%s1623] %v1672
        %v1674 = vld [vmem:[%s1630 + $0x58] sm:%s1623]
        %1675 = vst [vmem:[%s1631 + $0x54] sm:%s1623] %v1674
        %v1676 = vld [vmem:[%s1630 + $0x54] sm:%s1623]
        %1677 = vst [vmem:[%s1631 + $0x58] sm:%s1623] %v1676
        %v1678 = vld [vmem:[%s1630 + $0x5c] sm:%s1623]
        %1679 = vst [vmem:[%s1631 + $0x5c] sm:%s1623] %v1678
        %v1680 = vld [vmem:[%s1630 + $0x60] sm:%s1623]
        %1681 = vst [vmem:[%s1631 + $0x60] sm:%s1623] %v1680
        %v1682 = vld [vmem:[%s1630 + $0x68] sm:%s1623]
        %1683 = vst [vmem:[%s1631 + $0x64] sm:%s1623] %v1682
        %v1684 = vld [vmem:[%s1630 + $0x64] sm:%s1623]
        %1685 = vst [vmem:[%s1631 + $0x68] sm:%s1623] %v1684
        %v1686 = vld [vmem:[%s1630 + $0x6c] sm:%s1623]
        %1687 = vst [vmem:[%s1631 + $0x6c] sm:%s1623] %v1686
        %v1688 = vld [vmem:[%s1630 + $0x70] sm:%s1623]
        %1689 = vst [vmem:[%s1631 + $0x70] sm:%s1623] %v1688
        %v1690 = vld [vmem:[%s1630 + $0x78] sm:%s1623]
        %1691 = vst [vmem:[%s1631 + $0x74] sm:%s1623] %v1690
        %v1692 = vld [vmem:[%s1630 + $0x74] sm:%s1623]
        %1693 = vst [vmem:[%s1631 + $0x78] sm:%s1623] %v1692
        %v1694 = vld [vmem:[%s1630 + $0x7c] sm:%s1623]
        %1695 = vst [vmem:[%s1631 + $0x7c] sm:%s1623] %v1694
        %v1696 = vld [vmem:[%s1630 + $0x80] sm:%s1623]
        %1697 = vst [vmem:[%s1631 + $0x80] sm:%s1623] %v1696
        %v1698 = vld [vmem:[%s1630 + $0x88] sm:%s1623]
        %1699 = vst [vmem:[%s1631 + $0x84] sm:%s1623] %v1698
        %v1700 = vld [vmem:[%s1630 + $0x84] sm:%s1623]
        %1701 = vst [vmem:[%s1631 + $0x88] sm:%s1623] %v1700
        %v1702 = vld [vmem:[%s1630 + $0x8c] sm:%s1623]
        %1703 = vst [vmem:[%s1631 + $0x8c] sm:%s1623] %v1702
        %v1704 = vld [vmem:[%s1630 + $0x90] sm:%s1623]
        %1705 = vst [vmem:[%s1631 + $0x90] sm:%s1623] %v1704
        %v1706 = vld [vmem:[%s1630 + $0x98] sm:%s1623]
        %1707 = vst [vmem:[%s1631 + $0x94] sm:%s1623] %v1706
        %v1708 = vld [vmem:[%s1630 + $0x94] sm:%s1623]
        %1709 = vst [vmem:[%s1631 + $0x98] sm:%s1623] %v1708
        %v1710 = vld [vmem:[%s1630 + $0x9c] sm:%s1623]
        %1711 = vst [vmem:[%s1631 + $0x9c] sm:%s1623] %v1710
        %v1712 = vld [vmem:[%s1630 + $0xa0] sm:%s1623]
        %1713 = vst [vmem:[%s1631 + $0xa0] sm:%s1623] %v1712
        %v1714 = vld [vmem:[%s1630 + $0xa8] sm:%s1623]
        %1715 = vst [vmem:[%s1631 + $0xa4] sm:%s1623] %v1714
        %v1716 = vld [vmem:[%s1630 + $0xa4] sm:%s1623]
        %1717 = vst [vmem:[%s1631 + $0xa8] sm:%s1623] %v1716
        %v1718 = vld [vmem:[%s1630 + $0xac] sm:%s1623]
        %1719 = vst [vmem:[%s1631 + $0xac] sm:%s1623] %v1718
        %v1720 = vld [vmem:[%s1630 + $0xb0] sm:%s1623]
        %1721 = vst [vmem:[%s1631 + $0xb0] sm:%s1623] %v1720
        %v1722 = vld [vmem:[%s1630 + $0xb8] sm:%s1623]
        %1723 = vst [vmem:[%s1631 + $0xb4] sm:%s1623] %v1722
        %v1724 = vld [vmem:[%s1630 + $0xb4] sm:%s1623]
        %1725 = vst [vmem:[%s1631 + $0xb8] sm:%s1623] %v1724
        %v1726 = vld [vmem:[%s1630 + $0xbc] sm:%s1623]
        %1727 = vst [vmem:[%s1631 + $0xbc] sm:%s1623] %v1726
        %v1728 = vld [vmem:[%s1630 + $0xc0] sm:%s1623]
        %1729 = vst [vmem:[%s1631 + $0xc0] sm:%s1623] %v1728
        %v1730 = vld [vmem:[%s1630 + $0xc8] sm:%s1623]
        %1731 = vst [vmem:[%s1631 + $0xc4] sm:%s1623] %v1730
        %v1732 = vld [vmem:[%s1630 + $0xc4] sm:%s1623]
        %1733 = vst [vmem:[%s1631 + $0xc8] sm:%s1623] %v1732
        %v1734 = vld [vmem:[%s1630 + $0xcc] sm:%s1623]
        %1735 = vst [vmem:[%s1631 + $0xcc] sm:%s1623] %v1734
        %v1736 = vld [vmem:[%s1630 + $0xd0] sm:%s1623]
        %1737 = vst [vmem:[%s1631 + $0xd0] sm:%s1623] %v1736
        %v1738 = vld [vmem:[%s1630 + $0xd8] sm:%s1623]
        %1739 = vst [vmem:[%s1631 + $0xd4] sm:%s1623] %v1738
        %v1740 = vld [vmem:[%s1630 + $0xd4] sm:%s1623]
        %1741 = vst [vmem:[%s1631 + $0xd8] sm:%s1623] %v1740
        %v1742 = vld [vmem:[%s1630 + $0xdc] sm:%s1623]
        %1743 = vst [vmem:[%s1631 + $0xdc] sm:%s1623] %v1742
        %v1744 = vld [vmem:[%s1630 + $0xe0] sm:%s1623]
        %1745 = vst [vmem:[%s1631 + $0xe0] sm:%s1623] %v1744
        %v1746 = vld [vmem:[%s1630 + $0xe8] sm:%s1623]
        %1747 = vst [vmem:[%s1631 + $0xe4] sm:%s1623] %v1746
        %v1748 = vld [vmem:[%s1630 + $0xe4] sm:%s1623]
        %1749 = vst [vmem:[%s1631 + $0xe8] sm:%s1623] %v1748
        %v1750 = vld [vmem:[%s1630 + $0xec] sm:%s1623]
        %1751 = vst [vmem:[%s1631 + $0xec] sm:%s1623] %v1750
        %v1752 = vld [vmem:[%s1630 + $0xf0] sm:%s1623]
        %1753 = vst [vmem:[%s1631 + $0xf0] sm:%s1623] %v1752
        %v1754 = vld [vmem:[%s1630 + $0xf8] sm:%s1623]
        %1755 = vst [vmem:[%s1631 + $0xf4] sm:%s1623] %v1754
        %v1756 = vld [vmem:[%s1630 + $0xf4] sm:%s1623]
        %1757 = vst [vmem:[%s1631 + $0xf8] sm:%s1623] %v1756
        %v1758 = vld [vmem:[%s1630 + $0xfc] sm:%s1623]
        %1759 = vst [vmem:[%s1631 + $0xfc] sm:%s1623] %v1758
      $region107: #{resgcn_forward.1} parent=101 // loop_footer
        %s1629 = sadd.s32 1, %s1625
      $region108: #{resgcn_forward.1} parent=101 // loop_footer_branch
        %1624 = sbr.rel target = $region104
      $region109: #{resgcn_forward.1} parent=101 // loop_exit
        _
    $region102: #{resgcn_forward.1} parent=1 // pred_fallthru
      _
    // Predicated region
    $region128: #{resgcn_forward.1} parent=1 // pred_check
      _
    $region129: #{resgcn_forward.1} parent=1 // pred_check_branch
      %1917 = sbr.rel (0) target = $region131
    $region130: #{resgcn_forward.1} parent=1 // pred_region
      %1918 = vsyncadd [#allocation6], 4096
    $region131: #{resgcn_forward.1} parent=1 // pred_fallthru
      _
    %v1919 = vld [vmem:[#allocation2] sm:$0xff]
    %v1920 = vld [vmem:[#allocation2 + $0x8] sm:$0xff]
    %v1921 = vld [vmem:[#allocation2 + $0x10] sm:$0xff]
    %v1922 = vld [vmem:[#allocation2 + $0x18] sm:$0xff]
    %v1923 = vld [vmem:[#allocation2 + $0x20] sm:$0xff]
    %v1924 = vld [vmem:[#allocation2 + $0x28] sm:$0xff]
    %v1925 = vld [vmem:[#allocation2 + $0x30] sm:$0xff]
    %v1926 = vld [vmem:[#allocation2 + $0x38] sm:$0xff]
    %v1927 = vld [vmem:[#allocation2 + $0x40] sm:$0xff]
    %v1928 = vld [vmem:[#allocation2 + $0x48] sm:$0xff]
    %v1929 = vld [vmem:[#allocation2 + $0x50] sm:$0xff]
    %v1930 = vld [vmem:[#allocation2 + $0x58] sm:$0xff]
    %v1931 = vld [vmem:[#allocation2 + $0x60] sm:$0xff]
    %v1932 = vld [vmem:[#allocation2 + $0x68] sm:$0xff]
    %v1933 = vld [vmem:[#allocation2 + $0x70] sm:$0xff]
    %v1934 = vld [vmem:[#allocation2 + $0x78] sm:$0xff]
    %v1935 = vld [vmem:[#allocation2 + $0x80] sm:$0xff]
    %v1936 = vld [vmem:[#allocation2 + $0x88] sm:$0xff]
    %v1937 = vld [vmem:[#allocation2 + $0x90] sm:$0xff]
    %v1938 = vld [vmem:[#allocation2 + $0x98] sm:$0xff]
    %v1939 = vld [vmem:[#allocation2 + $0xa0] sm:$0xff]
    %v1940 = vld [vmem:[#allocation2 + $0xa8] sm:$0xff]
    %v1941 = vld [vmem:[#allocation2 + $0xb0] sm:$0xff]
    %v1942 = vld [vmem:[#allocation2 + $0xb8] sm:$0xff]
    %v1943 = vld [vmem:[#allocation2 + $0xc0] sm:$0xff]
    %v1944 = vld [vmem:[#allocation2 + $0xc8] sm:$0xff]
    %v1945 = vld [vmem:[#allocation2 + $0xd0] sm:$0xff]
    %v1946 = vld [vmem:[#allocation2 + $0xd8] sm:$0xff]
    %v1947 = vld [vmem:[#allocation2 + $0xe0] sm:$0xff]
    %v1948 = vld [vmem:[#allocation2 + $0xe8] sm:$0xff]
    %v1949 = vld [vmem:[#allocation2 + $0xf0] sm:$0xff]
    %v1950 = vld [vmem:[#allocation2 + $0xf8] sm:$0xff]
    %v1951 = vpack.c.bf16 %v1920, %v1919
    %v1952 = vpack.c.bf16 %v1922, %v1921
    %v1953 = vpack.c.bf16 %v1924, %v1923
    %v1954 = vpack.c.bf16 %v1926, %v1925
    %v1955 = vpack.c.bf16 %v1928, %v1927
    %v1956 = vpack.c.bf16 %v1930, %v1929
    %v1957 = vpack.c.bf16 %v1932, %v1931
    %v1958 = vpack.c.bf16 %v1934, %v1933
    %v1959 = vpack.c.bf16 %v1936, %v1935
    %v1960 = vpack.c.bf16 %v1938, %v1937
    %v1961 = vpack.c.bf16 %v1940, %v1939
    %v1962 = vpack.c.bf16 %v1942, %v1941
    %v1963 = vpack.c.bf16 %v1944, %v1943
    %v1964 = vpack.c.bf16 %v1946, %v1945
    %v1965 = vpack.c.bf16 %v1948, %v1947
    %v1966 = vpack.c.bf16 %v1950, %v1949
    %1967 = vst [vmem:[#allocation4] sm:$0xff] %v1951
    %1968 = vst [vmem:[#allocation4 + $0x8] sm:$0xff] %v1952
    %1969 = vst [vmem:[#allocation4 + $0x10] sm:$0xff] %v1953
    %1970 = vst [vmem:[#allocation4 + $0x18] sm:$0xff] %v1954
    %1971 = vst [vmem:[#allocation4 + $0x20] sm:$0xff] %v1955
    %1972 = vst [vmem:[#allocation4 + $0x28] sm:$0xff] %v1956
    %1973 = vst [vmem:[#allocation4 + $0x30] sm:$0xff] %v1957
    %1974 = vst [vmem:[#allocation4 + $0x38] sm:$0xff] %v1958
    %1975 = vst [vmem:[#allocation4 + $0x40] sm:$0xff] %v1959
    %1976 = vst [vmem:[#allocation4 + $0x48] sm:$0xff] %v1960
    %1977 = vst [vmem:[#allocation4 + $0x50] sm:$0xff] %v1961
    %1978 = vst [vmem:[#allocation4 + $0x58] sm:$0xff] %v1962
    %1979 = vst [vmem:[#allocation4 + $0x60] sm:$0xff] %v1963
    %1980 = vst [vmem:[#allocation4 + $0x68] sm:$0xff] %v1964
    %1981 = vst [vmem:[#allocation4 + $0x70] sm:$0xff] %v1965
    %1982 = vst [vmem:[#allocation4 + $0x78] sm:$0xff] %v1966
    %v1983 = vadd.f32 %v1919, %v1920
    %v1984 = vadd.f32 %v1983, %v1921
    %v1985 = vadd.f32 %v1984, %v1922
    %v1986 = vadd.f32 %v1985, %v1923
    %v1987 = vadd.f32 %v1986, %v1924
    %v1988 = vadd.f32 %v1987, %v1925
    %v1989 = vadd.f32 %v1988, %v1926
    %v1990 = vadd.f32 %v1989, %v1927
    %v1991 = vadd.f32 %v1990, %v1928
    %v1992 = vadd.f32 %v1991, %v1929
    %v1993 = vadd.f32 %v1992, %v1930
    %v1994 = vadd.f32 %v1993, %v1931
    %v1995 = vadd.f32 %v1994, %v1932
    %v1996 = vadd.f32 %v1995, %v1933
    %v1997 = vadd.f32 %v1996, %v1934
    %v1998 = vadd.f32 %v1997, %v1935
    %v1999 = vadd.f32 %v1998, %v1936
    %v2000 = vadd.f32 %v1999, %v1937
    %v2001 = vadd.f32 %v2000, %v1938
    %v2002 = vadd.f32 %v2001, %v1939
    %v2003 = vadd.f32 %v2002, %v1940
    %v2004 = vadd.f32 %v2003, %v1941
    %v2005 = vadd.f32 %v2004, %v1942
    %v2006 = vadd.f32 %v2005, %v1943
    %v2007 = vadd.f32 %v2006, %v1944
    %v2008 = vadd.f32 %v2007, %v1945
    %v2009 = vadd.f32 %v2008, %v1946
    %v2010 = vadd.f32 %v2009, %v1947
    %v2011 = vadd.f32 %v2010, %v1948
    %v2012 = vadd.f32 %v2011, %v1949
    %v2013 = vadd.f32 %v2012, %v1950
    %v2014 = vrot.slane %v2013, 4
    %v2015 = vadd.f32 %v2013, %v2014
    %v2016 = vrot.slane %v2015, 2
    %v2017 = vadd.f32 %v2015, %v2016
    %v2018 = vrot.slane %v2017, 1
    %v2019 = vadd.f32 %v2017, %v2018
    %v2020 = vmul.f32 %v1919, %v1919
    %v2021 = vmul.f32 %v1920, %v1920
    %v2022 = vmul.f32 %v1921, %v1921
    %v2023 = vmul.f32 %v1922, %v1922
    %v2024 = vmul.f32 %v1923, %v1923
    %v2025 = vmul.f32 %v1924, %v1924
    %v2026 = vmul.f32 %v1925, %v1925
    %v2027 = vmul.f32 %v1926, %v1926
    %v2028 = vmul.f32 %v1927, %v1927
    %v2029 = vmul.f32 %v1928, %v1928
    %v2030 = vmul.f32 %v1929, %v1929
    %v2031 = vmul.f32 %v1930, %v1930
    %v2032 = vmul.f32 %v1931, %v1931
    %v2033 = vmul.f32 %v1932, %v1932
    %v2034 = vmul.f32 %v1933, %v1933
    %v2035 = vmul.f32 %v1934, %v1934
    %v2036 = vmul.f32 %v1935, %v1935
    %v2037 = vmul.f32 %v1936, %v1936
    %v2038 = vmul.f32 %v1937, %v1937
    %v2039 = vmul.f32 %v1938, %v1938
    %v2040 = vmul.f32 %v1939, %v1939
    %v2041 = vmul.f32 %v1940, %v1940
    %v2042 = vmul.f32 %v1941, %v1941
    %v2043 = vmul.f32 %v1942, %v1942
    %v2044 = vmul.f32 %v1943, %v1943
    %v2045 = vmul.f32 %v1944, %v1944
    %v2046 = vmul.f32 %v1945, %v1945
    %v2047 = vmul.f32 %v1946, %v1946
    %v2048 = vmul.f32 %v1947, %v1947
    %v2049 = vmul.f32 %v1948, %v1948
    %v2050 = vmul.f32 %v1949, %v1949
    %v2051 = vmul.f32 %v1950, %v1950
    %v2052 = vadd.f32 %v2020, %v2021
    %v2053 = vadd.f32 %v2052, %v2022
    %v2054 = vadd.f32 %v2053, %v2023
    %v2055 = vadd.f32 %v2054, %v2024
    %v2056 = vadd.f32 %v2055, %v2025
    %v2057 = vadd.f32 %v2056, %v2026
    %v2058 = vadd.f32 %v2057, %v2027
    %v2059 = vadd.f32 %v2058, %v2028
    %v2060 = vadd.f32 %v2059, %v2029
    %v2061 = vadd.f32 %v2060, %v2030
    %v2062 = vadd.f32 %v2061, %v2031
    %v2063 = vadd.f32 %v2062, %v2032
    %v2064 = vadd.f32 %v2063, %v2033
    %v2065 = vadd.f32 %v2064, %v2034
    %v2066 = vadd.f32 %v2065, %v2035
    %v2067 = vadd.f32 %v2066, %v2036
    %v2068 = vadd.f32 %v2067, %v2037
    %v2069 = vadd.f32 %v2068, %v2038
    %v2070 = vadd.f32 %v2069, %v2039
    %v2071 = vadd.f32 %v2070, %v2040
    %v2072 = vadd.f32 %v2071, %v2041
    %v2073 = vadd.f32 %v2072, %v2042
    %v2074 = vadd.f32 %v2073, %v2043
    %v2075 = vadd.f32 %v2074, %v2044
    %v2076 = vadd.f32 %v2075, %v2045
    %v2077 = vadd.f32 %v2076, %v2046
    %v2078 = vadd.f32 %v2077, %v2047
    %v2079 = vadd.f32 %v2078, %v2048
    %v2080 = vadd.f32 %v2079, %v2049
    %v2081 = vadd.f32 %v2080, %v2050
    %v2082 = vadd.f32 %v2081, %v2051
    %v2083 = vrot.slane %v2082, 4
    %v2084 = vadd.f32 %v2082, %v2083
    %v2085 = vrot.slane %v2084, 2
    %v2086 = vadd.f32 %v2084, %v2085
    %v2087 = vrot.slane %v2086, 1
    %v2088 = vadd.f32 %v2086, %v2087
    %v2089 = vmul.f32 %v2019, 0.0625
    %v2090 = vmul.f32 %v2088, 0.0625
    %v2091 = vmul.f32 %v2089, %v2089
    %v2092 = vsub.f32 %v2090, %v2091
    %v2093 = vmax.f32 %v2092, 0.0
    %s2094 = scalar_lea.vmem %s7, 1
    %v2095 = vld [vmem:[%s2094] sm:$0x1]
    %v2096 = vadd.f32 %v2093, 1e-05
    %v2097 = vrsqrt.pop %v2096
    %v2098 = vmul.f32 %v2095, %v2097
    %s2099 = scalar_lea.vmem %s8, 1
    %v2100 = vld [vmem:[%s2099] sm:$0x1]
    %v2101 = vmul.f32 %v2089, %v2098
    %v2102 = vsub.f32 %v2100, %v2101
    %s2103 = scalar_lea.vmem %s5, 128
    %v2104 = vld [vmem:[%s2103] sm:$0xff]
    %v2105 = vld [vmem:[%s2103 + $0x8] sm:$0xff]
    %v2106 = vld [vmem:[%s2103 + $0x10] sm:$0xff]
    %v2107 = vld [vmem:[%s2103 + $0x18] sm:$0xff]
    %v2108 = vld [vmem:[%s2103 + $0x20] sm:$0xff]
    %v2109 = vld [vmem:[%s2103 + $0x28] sm:$0xff]
    %v2110 = vld [vmem:[%s2103 + $0x30] sm:$0xff]
    %v2111 = vld [vmem:[%s2103 + $0x38] sm:$0xff]
    %v2112 = vld [vmem:[%s2103 + $0x40] sm:$0xff]
    %v2113 = vld [vmem:[%s2103 + $0x48] sm:$0xff]
    %v2114 = vld [vmem:[%s2103 + $0x50] sm:$0xff]
    %v2115 = vld [vmem:[%s2103 + $0x58] sm:$0xff]
    %v2116 = vld [vmem:[%s2103 + $0x60] sm:$0xff]
    %v2117 = vld [vmem:[%s2103 + $0x68] sm:$0xff]
    %v2118 = vld [vmem:[%s2103 + $0x70] sm:$0xff]
    %v2119 = vld [vmem:[%s2103 + $0x78] sm:$0xff]
    %2120 = vmatprep.subr.mxu0 0.0
    %2121 = vmatpush1.msra.mxu0 %v2104
    %2122 = vmatprep.subr.mxu0 0.0
    %2123 = vmatpush1.msra.mxu0 %v2105
    %2124 = vmatprep.subr.mxu0 0.0
    %2125 = vmatpush1.msra.mxu0 %v2106
    %2126 = vmatprep.subr.mxu0 0.0
    %2127 = vmatpush1.msra.mxu0 %v2107
    %2128 = vmatprep.subr.mxu0 0.0
    %2129 = vmatpush1.msra.mxu0 %v2108
    %2130 = vmatprep.subr.mxu0 0.0
    %2131 = vmatpush1.msra.mxu0 %v2109
    %2132 = vmatprep.subr.mxu0 0.0
    %2133 = vmatpush1.msra.mxu0 %v2110
    %2134 = vmatprep.subr.mxu0 0.0
    %2135 = vmatpush1.msra.mxu0 %v2111
    %2136 = vmatprep.subr.mxu0 0.0
    %2137 = vmatpush1.msra.mxu0 %v2112
    %2138 = vmatprep.subr.mxu0 0.0
    %2139 = vmatpush1.msra.mxu0 %v2113
    %2140 = vmatprep.subr.mxu0 0.0
    %2141 = vmatpush1.msra.mxu0 %v2114
    %2142 = vmatprep.subr.mxu0 0.0
    %2143 = vmatpush1.msra.mxu0 %v2115
    %2144 = vmatprep.subr.mxu0 0.0
    %2145 = vmatpush1.msra.mxu0 %v2116
    %2146 = vmatprep.subr.mxu0 0.0
    %2147 = vmatpush1.msra.mxu0 %v2117
    %2148 = vmatprep.subr.mxu0 0.0
    %2149 = vmatpush1.msra.mxu0 %v2118
    %2150 = vmatprep.subr.mxu0 0.0
    %2151 = vmatpush1.msra.mxu0 %v2119
    %2152 = vmatprep.subr.mxu0 0.0
    %2153 = vmatpush1.msra.mxu0 0.0
    %2154 = vmatprep.subr.mxu0 0.0
    %2155 = vmatpush1.msra.mxu0 0.0
    %2156 = vmatprep.subr.mxu0 0.0
    %2157 = vmatpush1.msra.mxu0 0.0
    %2158 = vmatprep.subr.mxu0 0.0
    %2159 = vmatpush1.msra.mxu0 0.0
    %2160 = vmatprep.subr.mxu0 0.0
    %2161 = vmatpush1.msra.mxu0 0.0
    %2162 = vmatprep.subr.mxu0 0.0
    %2163 = vmatpush1.msra.mxu0 0.0
    %2164 = vmatprep.subr.mxu0 0.0
    %2165 = vmatpush1.msra.mxu0 0.0
    %2166 = vmatprep.subr.mxu0 0.0
    %2167 = vmatpush1.msra.mxu0 0.0
    %2168 = vmatprep.subr.mxu0 0.0
    %2169 = vmatpush1.msra.mxu0 0.0
    %2170 = vmatprep.subr.mxu0 0.0
    %2171 = vmatpush1.msra.mxu0 0.0
    %2172 = vmatprep.subr.mxu0 0.0
    %2173 = vmatpush1.msra.mxu0 0.0
    %2174 = vmatprep.subr.mxu0 0.0
    %2175 = vmatpush1.msra.mxu0 0.0
    %2176 = vmatprep.subr.mxu0 0.0
    %2177 = vmatpush1.msra.mxu0 0.0
    %2178 = vmatprep.subr.mxu0 0.0
    %2179 = vmatpush1.msra.mxu0 0.0
    %2180 = vmatprep.subr.mxu0 0.0
    %2181 = vmatpush1.msra.mxu0 0.0
    %2182 = vmatprep.subr.mxu0 0.0
    %2183 = vmatpush1.msra.mxu0 0.0
    %2184 = vmatprep.mubr.f32.mxu0 0.0
    %2185 = vmatmul.mubr.f32.gmra.mrb[0].mxu0 %v2102
    %v2186 = vpop.f32.mrb[0].mxu0
    %v2187 = vadd.f32 0.0, %v2186
    %v2188 = vpop.f32.mrb[0].mxu0
    %2189 = vdwg.mxu0
    %s2190 = scalar_lea.vmem %s6, 1
    %v2191 = vld [vmem:[%s2190] sm:$0x1]
    %v2192 = vpack.c.bf16 %v2105, %v2104
    %v2193 = vpack.c.bf16 %v2107, %v2106
    %v2194 = vpack.c.bf16 %v2109, %v2108
    %v2195 = vpack.c.bf16 %v2111, %v2110
    %v2196 = vpack.c.bf16 %v2113, %v2112
    %v2197 = vpack.c.bf16 %v2115, %v2114
    %v2198 = vpack.c.bf16 %v2117, %v2116
    %v2199 = vpack.c.bf16 %v2119, %v2118
    %s2200 = sshll.u32 %s634, 4
    %2201 = dma.done [#allocation6], %s2200
    %v2202 = vld [vmem:[#allocation5] sm:$0xff]
    %v2203 = vld [vmem:[#allocation5 + $0x8] sm:$0xff]
    %v2204 = vld [vmem:[#allocation5 + $0x10] sm:$0xff]
    %v2205 = vld [vmem:[#allocation5 + $0x18] sm:$0xff]
    %v2206 = vld [vmem:[#allocation5 + $0x20] sm:$0xff]
    %v2207 = vld [vmem:[#allocation5 + $0x28] sm:$0xff]
    %v2208 = vld [vmem:[#allocation5 + $0x30] sm:$0xff]
    %v2209 = vld [vmem:[#allocation5 + $0x38] sm:$0xff]
    %v2210 = vld [vmem:[#allocation5 + $0x40] sm:$0xff]
    %v2211 = vld [vmem:[#allocation5 + $0x48] sm:$0xff]
    %v2212 = vld [vmem:[#allocation5 + $0x50] sm:$0xff]
    %v2213 = vld [vmem:[#allocation5 + $0x58] sm:$0xff]
    %v2214 = vld [vmem:[#allocation5 + $0x60] sm:$0xff]
    %v2215 = vld [vmem:[#allocation5 + $0x68] sm:$0xff]
    %v2216 = vld [vmem:[#allocation5 + $0x70] sm:$0xff]
    %v2217 = vld [vmem:[#allocation5 + $0x78] sm:$0xff]
    %v2218 = vld [vmem:[#allocation5 + $0x80] sm:$0xff]
    %v2219 = vld [vmem:[#allocation5 + $0x88] sm:$0xff]
    %v2220 = vld [vmem:[#allocation5 + $0x90] sm:$0xff]
    %v2221 = vld [vmem:[#allocation5 + $0x98] sm:$0xff]
    %v2222 = vld [vmem:[#allocation5 + $0xa0] sm:$0xff]
    %v2223 = vld [vmem:[#allocation5 + $0xa8] sm:$0xff]
    %v2224 = vld [vmem:[#allocation5 + $0xb0] sm:$0xff]
    %v2225 = vld [vmem:[#allocation5 + $0xb8] sm:$0xff]
    %v2226 = vld [vmem:[#allocation5 + $0xc0] sm:$0xff]
    %v2227 = vld [vmem:[#allocation5 + $0xc8] sm:$0xff]
    %v2228 = vld [vmem:[#allocation5 + $0xd0] sm:$0xff]
    %v2229 = vld [vmem:[#allocation5 + $0xd8] sm:$0xff]
    %v2230 = vld [vmem:[#allocation5 + $0xe0] sm:$0xff]
    %v2231 = vld [vmem:[#allocation5 + $0xe8] sm:$0xff]
    %v2232 = vld [vmem:[#allocation5 + $0xf0] sm:$0xff]
    %v2233 = vld [vmem:[#allocation5 + $0xf8] sm:$0xff]
    %v2234 = vld [vmem:[#allocation4] sm:$0xff]
    %v2235 = vld [vmem:[#allocation4 + $0x8] sm:$0xff]
    %v2236 = vld [vmem:[#allocation4 + $0x10] sm:$0xff]
    %v2237 = vld [vmem:[#allocation4 + $0x18] sm:$0xff]
    %v2238 = vld [vmem:[#allocation4 + $0x20] sm:$0xff]
    %v2239 = vld [vmem:[#allocation4 + $0x28] sm:$0xff]
    %v2240 = vld [vmem:[#allocation4 + $0x30] sm:$0xff]
    %v2241 = vld [vmem:[#allocation4 + $0x38] sm:$0xff]
    %v2242 = vld [vmem:[#allocation4 + $0x40] sm:$0xff]
    %v2243 = vld [vmem:[#allocation4 + $0x48] sm:$0xff]
    %v2244 = vld [vmem:[#allocation4 + $0x50] sm:$0xff]
    %v2245 = vld [vmem:[#allocation4 + $0x58] sm:$0xff]
    %v2246 = vld [vmem:[#allocation4 + $0x60] sm:$0xff]
    %v2247 = vld [vmem:[#allocation4 + $0x68] sm:$0xff]
    %v2248 = vld [vmem:[#allocation4 + $0x70] sm:$0xff]
    %v2249 = vld [vmem:[#allocation4 + $0x78] sm:$0xff]
    %2250 = vmatprep.subr.bf16.mxu0 0
    %2251 = vmatpush1.bf16.msra.mxu0 %v2234
    %2252 = vmatprep.subr.bf16.mxu0 0
    %2253 = vmatpush1.bf16.msra.mxu0 %v2235
    %2254 = vmatprep.subr.bf16.mxu0 0
    %2255 = vmatpush1.bf16.msra.mxu0 %v2236
    %2256 = vmatprep.subr.bf16.mxu0 0
    %2257 = vmatpush1.bf16.msra.mxu0 %v2237
    %2258 = vmatprep.subr.bf16.mxu0 0
    %2259 = vmatpush1.bf16.msra.mxu0 %v2238
    %2260 = vmatprep.subr.bf16.mxu0 0
    %2261 = vmatpush1.bf16.msra.mxu0 %v2239
    %2262 = vmatprep.subr.bf16.mxu0 0
    %2263 = vmatpush1.bf16.msra.mxu0 %v2240
    %2264 = vmatprep.subr.bf16.mxu0 0
    %2265 = vmatpush1.bf16.msra.mxu0 %v2241
    %2266 = vmatprep.subr.bf16.mxu0 0
    %2267 = vmatpush1.bf16.msra.mxu0 %v2242
    %2268 = vmatprep.subr.bf16.mxu0 0
    %2269 = vmatpush1.bf16.msra.mxu0 %v2243
    %2270 = vmatprep.subr.bf16.mxu0 0
    %2271 = vmatpush1.bf16.msra.mxu0 %v2244
    %2272 = vmatprep.subr.bf16.mxu0 0
    %2273 = vmatpush1.bf16.msra.mxu0 %v2245
    %2274 = vmatprep.subr.bf16.mxu0 0
    %2275 = vmatpush1.bf16.msra.mxu0 %v2246
    %2276 = vmatprep.subr.bf16.mxu0 0
    %2277 = vmatpush1.bf16.msra.mxu0 %v2247
    %2278 = vmatprep.subr.bf16.mxu0 0
    %2279 = vmatpush1.bf16.msra.mxu0 %v2248
    %2280 = vmatprep.subr.bf16.mxu0 0
    %2281 = vmatpush1.bf16.msra.mxu0 %v2249
    %2282 = vmatprep.mubr.bf16.mxu0 %v2203
    %2283 = vmatmul.mubr.bf16.gmra.mrb[0].mxu0 %v2202
    %v2284 = vpop.f32.mrb[0].mxu0
    %v2285 = vadd.f32 0.0, %v2284
    %v2286 = vpop.f32.mrb[0].mxu0
    %v2287 = vpop.f32.mrb[0].mxu0
    %v2288 = vadd.f32 0.0, %v2287
    %v2289 = vpop.f32.mrb[0].mxu0
    %2290 = vmatprep.mubr.bf16.mxu0 %v2205
    %2291 = vmatmul.mubr.bf16.gmra.mrb[0].mxu0 %v2204
    %v2292 = vpop.f32.mrb[0].mxu0
    %v2293 = vadd.f32 0.0, %v2292
    %v2294 = vpop.f32.mrb[0].mxu0
    %v2295 = vpop.f32.mrb[0].mxu0
    %v2296 = vadd.f32 0.0, %v2295
    %v2297 = vpop.f32.mrb[0].mxu0
    %2298 = vmatprep.mubr.bf16.mxu0 %v2207
    %2299 = vmatmul.mubr.bf16.gmra.mrb[0].mxu0 %v2206
    %v2300 = vpop.f32.mrb[0].mxu0
    %v2301 = vadd.f32 0.0, %v2300
    %v2302 = vpop.f32.mrb[0].mxu0
    %v2303 = vpop.f32.mrb[0].mxu0
    %v2304 = vadd.f32 0.0, %v2303
    %v2305 = vpop.f32.mrb[0].mxu0
    %2306 = vmatprep.mubr.bf16.mxu0 %v2209
    %2307 = vmatmul.mubr.bf16.gmra.mrb[0].mxu0 %v2208
    %v2308 = vpop.f32.mrb[0].mxu0
    %v2309 = vadd.f32 0.0, %v2308
    %v2310 = vpop.f32.mrb[0].mxu0
    %v2311 = vpop.f32.mrb[0].mxu0
    %v2312 = vadd.f32 0.0, %v2311
    %v2313 = vpop.f32.mrb[0].mxu0
    %2314 = vmatprep.mubr.bf16.mxu0 %v2211
    %2315 = vmatmul.mubr.bf16.gmra.mrb[0].mxu0 %v2210
    %v2316 = vpop.f32.mrb[0].mxu0
    %v2317 = vadd.f32 0.0, %v2316
    %v2318 = vpop.f32.mrb[0].mxu0
    %v2319 = vpop.f32.mrb[0].mxu0
    %v2320 = vadd.f32 0.0, %v2319
    %v2321 = vpop.f32.mrb[0].mxu0
    %2322 = vmatprep.mubr.bf16.mxu0 %v2213
    %2323 = vmatmul.mubr.bf16.gmra.mrb[0].mxu0 %v2212
    %v2324 = vpop.f32.mrb[0].mxu0
    %v2325 = vadd.f32 0.0, %v2324
    %v2326 = vpop.f32.mrb[0].mxu0
    %v2327 = vpop.f32.mrb[0].mxu0
    %v2328 = vadd.f32 0.0, %v2327
    %v2329 = vpop.f32.mrb[0].mxu0
    %2330 = vmatprep.mubr.bf16.mxu0 %v2215
    %2331 = vmatmul.mubr.bf16.gmra.mrb[0].mxu0 %v2214
    %v2332 = vpop.f32.mrb[0].mxu0
    %v2333 = vadd.f32 0.0, %v2332
    %v2334 = vpop.f32.mrb[0].mxu0
    %v2335 = vpop.f32.mrb[0].mxu0
    %v2336 = vadd.f32 0.0, %v2335
    %v2337 = vpop.f32.mrb[0].mxu0
    %2338 = vmatprep.mubr.bf16.mxu0 %v2217
    %2339 = vmatmul.mubr.bf16.gmra.mrb[0].mxu0 %v2216
    %v2340 = vpop.f32.mrb[0].mxu0
    %v2341 = vadd.f32 0.0, %v2340
    %v2342 = vpop.f32.mrb[0].mxu0
    %v2343 = vpop.f32.mrb[0].mxu0
    %v2344 = vadd.f32 0.0, %v2343
    %v2345 = vpop.f32.mrb[0].mxu0
    %2346 = vmatprep.mubr.bf16.mxu0 %v2219
    %2347 = vmatmul.mubr.bf16.gmra.mrb[0].mxu0 %v2218
    %v2348 = vpop.f32.mrb[0].mxu0
    %v2349 = vadd.f32 0.0, %v2348
    %v2350 = vpop.f32.mrb[0].mxu0
    %v2351 = vpop.f32.mrb[0].mxu0
    %v2352 = vadd.f32 0.0, %v2351
    %v2353 = vpop.f32.mrb[0].mxu0
    %2354 = vmatprep.mubr.bf16.mxu0 %v2221
    %2355 = vmatmul.mubr.bf16.gmra.mrb[0].mxu0 %v2220
    %v2356 = vpop.f32.mrb[0].mxu0
    %v2357 = vadd.f32 0.0, %v2356
    %v2358 = vpop.f32.mrb[0].mxu0
    %v2359 = vpop.f32.mrb[0].mxu0
    %v2360 = vadd.f32 0.0, %v2359
    %v2361 = vpop.f32.mrb[0].mxu0
    %2362 = vmatprep.mubr.bf16.mxu0 %v2223
    %2363 = vmatmul.mubr.bf16.gmra.mrb[0].mxu0 %v2222
    %v2364 = vpop.f32.mrb[0].mxu0
    %v2365 = vadd.f32 0.0, %v2364
    %v2366 = vpop.f32.mrb[0].mxu0
    %v2367 = vpop.f32.mrb[0].mxu0
    %v2368 = vadd.f32 0.0, %v2367
    %v2369 = vpop.f32.mrb[0].mxu0
    %2370 = vmatprep.mubr.bf16.mxu0 %v2225
    %2371 = vmatmul.mubr.bf16.gmra.mrb[0].mxu0 %v2224
    %v2372 = vpop.f32.mrb[0].mxu0
    %v2373 = vadd.f32 0.0, %v2372
    %v2374 = vpop.f32.mrb[0].mxu0
    %v2375 = vpop.f32.mrb[0].mxu0
    %v2376 = vadd.f32 0.0, %v2375
    %v2377 = vpop.f32.mrb[0].mxu0
    %2378 = vmatprep.mubr.bf16.mxu0 %v2227
    %2379 = vmatmul.mubr.bf16.gmra.mrb[0].mxu0 %v2226
    %v2380 = vpop.f32.mrb[0].mxu0
    %v2381 = vadd.f32 0.0, %v2380
    %v2382 = vpop.f32.mrb[0].mxu0
    %v2383 = vpop.f32.mrb[0].mxu0
    %v2384 = vadd.f32 0.0, %v2383
    %v2385 = vpop.f32.mrb[0].mxu0
    %2386 = vmatprep.mubr.bf16.mxu0 %v2229
    %2387 = vmatmul.mubr.bf16.gmra.mrb[0].mxu0 %v2228
    %v2388 = vpop.f32.mrb[0].mxu0
    %v2389 = vadd.f32 0.0, %v2388
    %v2390 = vpop.f32.mrb[0].mxu0
    %v2391 = vpop.f32.mrb[0].mxu0
    %v2392 = vadd.f32 0.0, %v2391
    %v2393 = vpop.f32.mrb[0].mxu0
    %2394 = vmatprep.mubr.bf16.mxu0 %v2231
    %2395 = vmatmul.mubr.bf16.gmra.mrb[0].mxu0 %v2230
    %v2396 = vpop.f32.mrb[0].mxu0
    %v2397 = vadd.f32 0.0, %v2396
    %v2398 = vpop.f32.mrb[0].mxu0
    %v2399 = vpop.f32.mrb[0].mxu0
    %v2400 = vadd.f32 0.0, %v2399
    %v2401 = vpop.f32.mrb[0].mxu0
    %2402 = vmatprep.mubr.bf16.mxu0 %v2233
    %2403 = vmatmul.mubr.bf16.gmra.mrb[0].mxu0 %v2232
    %v2404 = vpop.f32.mrb[0].mxu0
    %v2405 = vadd.f32 0.0, %v2404
    %v2406 = vpop.f32.mrb[0].mxu0
    %v2407 = vpop.f32.mrb[0].mxu0
    %v2408 = vadd.f32 0.0, %v2407
    %v2409 = vpop.f32.mrb[0].mxu0
    %2410 = vdwg.mxu0
    %v2412 = vlaneseq
    %v2413 = vshrl.u32 %v2412, 7
    %v2414 = vsub.s32 0, %v2413
    %v2415 = vrot.slane %v2098, %v2414
    %v2417 = vmul.f32 %v2285, %v2415
    %v2418 = vmul.f32 %v2288, %v2415
    %v2419 = vmul.f32 %v2293, %v2415
    %v2420 = vmul.f32 %v2296, %v2415
    %v2421 = vmul.f32 %v2301, %v2415
    %v2422 = vmul.f32 %v2304, %v2415
    %v2423 = vmul.f32 %v2309, %v2415
    %v2424 = vmul.f32 %v2312, %v2415
    %v2425 = vmul.f32 %v2317, %v2415
    %v2426 = vmul.f32 %v2320, %v2415
    %v2427 = vmul.f32 %v2325, %v2415
    %v2428 = vmul.f32 %v2328, %v2415
    %v2429 = vmul.f32 %v2333, %v2415
    %v2430 = vmul.f32 %v2336, %v2415
    %v2431 = vmul.f32 %v2341, %v2415
    %v2432 = vmul.f32 %v2344, %v2415
    %v2433 = vmul.f32 %v2349, %v2415
    %v2434 = vmul.f32 %v2352, %v2415
    %v2435 = vmul.f32 %v2357, %v2415
    %v2436 = vmul.f32 %v2360, %v2415
    %v2437 = vmul.f32 %v2365, %v2415
    %v2438 = vmul.f32 %v2368, %v2415
    %v2439 = vmul.f32 %v2373, %v2415
    %v2440 = vmul.f32 %v2376, %v2415
    %v2441 = vmul.f32 %v2381, %v2415
    %v2442 = vmul.f32 %v2384, %v2415
    %v2443 = vmul.f32 %v2389, %v2415
    %v2444 = vmul.f32 %v2392, %v2415
    %v2445 = vmul.f32 %v2397, %v2415
    %v2446 = vmul.f32 %v2400, %v2415
    %v2447 = vmul.f32 %v2405, %v2415
    %v2448 = vmul.f32 %v2408, %v2415
    %v2449 = vpack.c.bf16 %v2418, %v2417
    %v2450 = vpack.c.bf16 %v2420, %v2419
    %v2451 = vpack.c.bf16 %v2422, %v2421
    %v2452 = vpack.c.bf16 %v2424, %v2423
    %v2453 = vpack.c.bf16 %v2426, %v2425
    %v2454 = vpack.c.bf16 %v2428, %v2427
    %v2455 = vpack.c.bf16 %v2430, %v2429
    %v2456 = vpack.c.bf16 %v2432, %v2431
    %v2457 = vpack.c.bf16 %v2434, %v2433
    %v2458 = vpack.c.bf16 %v2436, %v2435
    %v2459 = vpack.c.bf16 %v2438, %v2437
    %v2460 = vpack.c.bf16 %v2440, %v2439
    %v2461 = vpack.c.bf16 %v2442, %v2441
    %v2462 = vpack.c.bf16 %v2444, %v2443
    %v2463 = vpack.c.bf16 %v2446, %v2445
    %v2464 = vpack.c.bf16 %v2448, %v2447
    %v2465 = vld [vmem:[%s2] sm:$0xff]
    %v2466 = vld [vmem:[%s2 + $0x8] sm:$0xff]
    %v2467 = vld [vmem:[%s2 + $0x10] sm:$0xff]
    %v2468 = vld [vmem:[%s2 + $0x18] sm:$0xff]
    %v2469 = vld [vmem:[%s2 + $0x20] sm:$0xff]
    %v2470 = vld [vmem:[%s2 + $0x28] sm:$0xff]
    %v2471 = vld [vmem:[%s2 + $0x30] sm:$0xff]
    %v2472 = vld [vmem:[%s2 + $0x38] sm:$0xff]
    %v2473 = vld [vmem:[%s2 + $0x40] sm:$0xff]
    %v2474 = vld [vmem:[%s2 + $0x48] sm:$0xff]
    %v2475 = vld [vmem:[%s2 + $0x50] sm:$0xff]
    %v2476 = vld [vmem:[%s2 + $0x58] sm:$0xff]
    %v2477 = vld [vmem:[%s2 + $0x60] sm:$0xff]
    %v2478 = vld [vmem:[%s2 + $0x68] sm:$0xff]
    %v2479 = vld [vmem:[%s2 + $0x70] sm:$0xff]
    %v2480 = vld [vmem:[%s2 + $0x78] sm:$0xff]
    %v2481 = vld [vmem:[%s2 + $0x80] sm:$0xff]
    %v2482 = vld [vmem:[%s2 + $0x88] sm:$0xff]
    %v2483 = vld [vmem:[%s2 + $0x90] sm:$0xff]
    %v2484 = vld [vmem:[%s2 + $0x98] sm:$0xff]
    %v2485 = vld [vmem:[%s2 + $0xa0] sm:$0xff]
    %v2486 = vld [vmem:[%s2 + $0xa8] sm:$0xff]
    %v2487 = vld [vmem:[%s2 + $0xb0] sm:$0xff]
    %v2488 = vld [vmem:[%s2 + $0xb8] sm:$0xff]
    %v2489 = vld [vmem:[%s2 + $0xc0] sm:$0xff]
    %v2490 = vld [vmem:[%s2 + $0xc8] sm:$0xff]
    %v2491 = vld [vmem:[%s2 + $0xd0] sm:$0xff]
    %v2492 = vld [vmem:[%s2 + $0xd8] sm:$0xff]
    %v2493 = vld [vmem:[%s2 + $0xe0] sm:$0xff]
    %v2494 = vld [vmem:[%s2 + $0xe8] sm:$0xff]
    %v2495 = vld [vmem:[%s2 + $0xf0] sm:$0xff]
    %v2496 = vld [vmem:[%s2 + $0xf8] sm:$0xff]
    %2498 = vset.pattern.permute.xlu0 0
    %2499 = vperm.xlu0 %2498, %v2465
    %v2500 = vpop.permute.xlu0 %2499
    %2503 = vset.pattern.permute.xlu0 0
    %2504 = vperm.xlu0 %2503, %v2466
    %v2505 = vpop.permute.xlu0 %2504
    %2508 = vset.pattern.permute.xlu0 0
    %2509 = vperm.xlu0 %2508, %v2467
    %v2510 = vpop.permute.xlu0 %2509
    %2513 = vset.pattern.permute.xlu0 0
    %2514 = vperm.xlu0 %2513, %v2468
    %v2515 = vpop.permute.xlu0 %2514
    %2518 = vset.pattern.permute.xlu0 0
    %2519 = vperm.xlu0 %2518, %v2469
    %v2520 = vpop.permute.xlu0 %2519
    %2523 = vset.pattern.permute.xlu0 0
    %2524 = vperm.xlu0 %2523, %v2470
    %v2525 = vpop.permute.xlu0 %2524
    %2528 = vset.pattern.permute.xlu0 0
    %2529 = vperm.xlu0 %2528, %v2471
    %v2530 = vpop.permute.xlu0 %2529
    %2533 = vset.pattern.permute.xlu0 0
    %2534 = vperm.xlu0 %2533, %v2472
    %v2535 = vpop.permute.xlu0 %2534
    %2538 = vset.pattern.permute.xlu0 0
    %2539 = vperm.xlu0 %2538, %v2473
    %v2540 = vpop.permute.xlu0 %2539
    %2543 = vset.pattern.permute.xlu0 0
    %2544 = vperm.xlu0 %2543, %v2474
    %v2545 = vpop.permute.xlu0 %2544
    %2548 = vset.pattern.permute.xlu0 0
    %2549 = vperm.xlu0 %2548, %v2475
    %v2550 = vpop.permute.xlu0 %2549
    %2553 = vset.pattern.permute.xlu0 0
    %2554 = vperm.xlu0 %2553, %v2476
    %v2555 = vpop.permute.xlu0 %2554
    %2558 = vset.pattern.permute.xlu0 0
    %2559 = vperm.xlu0 %2558, %v2477
    %v2560 = vpop.permute.xlu0 %2559
    %2563 = vset.pattern.permute.xlu0 0
    %2564 = vperm.xlu0 %2563, %v2478
    %v2565 = vpop.permute.xlu0 %2564
    %2568 = vset.pattern.permute.xlu0 0
    %2569 = vperm.xlu0 %2568, %v2479
    %v2570 = vpop.permute.xlu0 %2569
    %2573 = vset.pattern.permute.xlu0 0
    %2574 = vperm.xlu0 %2573, %v2480
    %v2575 = vpop.permute.xlu0 %2574
    %2578 = vset.pattern.permute.xlu0 0
    %2579 = vperm.xlu0 %2578, %v2481
    %v2580 = vpop.permute.xlu0 %2579
    %2583 = vset.pattern.permute.xlu0 0
    %2584 = vperm.xlu0 %2583, %v2482
    %v2585 = vpop.permute.xlu0 %2584
    %2588 = vset.pattern.permute.xlu0 0
    %2589 = vperm.xlu0 %2588, %v2483
    %v2590 = vpop.permute.xlu0 %2589
    %2593 = vset.pattern.permute.xlu0 0
    %2594 = vperm.xlu0 %2593, %v2484
    %v2595 = vpop.permute.xlu0 %2594
    %2598 = vset.pattern.permute.xlu0 0
    %2599 = vperm.xlu0 %2598, %v2485
    %v2600 = vpop.permute.xlu0 %2599
    %2603 = vset.pattern.permute.xlu0 0
    %2604 = vperm.xlu0 %2603, %v2486
    %v2605 = vpop.permute.xlu0 %2604
    %2608 = vset.pattern.permute.xlu0 0
    %2609 = vperm.xlu0 %2608, %v2487
    %v2610 = vpop.permute.xlu0 %2609
    %2613 = vset.pattern.permute.xlu0 0
    %2614 = vperm.xlu0 %2613, %v2488
    %v2615 = vpop.permute.xlu0 %2614
    %2618 = vset.pattern.permute.xlu0 0
    %2619 = vperm.xlu0 %2618, %v2489
    %v2620 = vpop.permute.xlu0 %2619
    %2623 = vset.pattern.permute.xlu0 0
    %2624 = vperm.xlu0 %2623, %v2490
    %v2625 = vpop.permute.xlu0 %2624
    %2628 = vset.pattern.permute.xlu0 0
    %2629 = vperm.xlu0 %2628, %v2491
    %v2630 = vpop.permute.xlu0 %2629
    %2633 = vset.pattern.permute.xlu0 0
    %2634 = vperm.xlu0 %2633, %v2492
    %v2635 = vpop.permute.xlu0 %2634
    %2638 = vset.pattern.permute.xlu0 0
    %2639 = vperm.xlu0 %2638, %v2493
    %v2640 = vpop.permute.xlu0 %2639
    %2643 = vset.pattern.permute.xlu0 0
    %2644 = vperm.xlu0 %2643, %v2494
    %v2645 = vpop.permute.xlu0 %2644
    %2648 = vset.pattern.permute.xlu0 0
    %2649 = vperm.xlu0 %2648, %v2495
    %v2650 = vpop.permute.xlu0 %2649
    %2653 = vset.pattern.permute.xlu0 0
    %2654 = vperm.xlu0 %2653, %v2496
    %v2655 = vpop.permute.xlu0 %2654
    %v2657 = vlaneseq
    %v2658 = vshrl.u32 %v2657, 7
    %v2659 = vsub.s32 0, %v2658
    %v2660 = vrot.slane %v2187, %v2659
    %v2661 = vmul.f32 %v2500, %v2660
    %v2662 = vmul.f32 %v2505, %v2660
    %v2663 = vmul.f32 %v2510, %v2660
    %v2664 = vmul.f32 %v2515, %v2660
    %v2665 = vmul.f32 %v2520, %v2660
    %v2666 = vmul.f32 %v2525, %v2660
    %v2667 = vmul.f32 %v2530, %v2660
    %v2668 = vmul.f32 %v2535, %v2660
    %v2669 = vmul.f32 %v2540, %v2660
    %v2670 = vmul.f32 %v2545, %v2660
    %v2671 = vmul.f32 %v2550, %v2660
    %v2672 = vmul.f32 %v2555, %v2660
    %v2673 = vmul.f32 %v2560, %v2660
    %v2674 = vmul.f32 %v2565, %v2660
    %v2675 = vmul.f32 %v2570, %v2660
    %v2676 = vmul.f32 %v2575, %v2660
    %v2677 = vmul.f32 %v2580, %v2660
    %v2678 = vmul.f32 %v2585, %v2660
    %v2679 = vmul.f32 %v2590, %v2660
    %v2680 = vmul.f32 %v2595, %v2660
    %v2681 = vmul.f32 %v2600, %v2660
    %v2682 = vmul.f32 %v2605, %v2660
    %v2683 = vmul.f32 %v2610, %v2660
    %v2684 = vmul.f32 %v2615, %v2660
    %v2685 = vmul.f32 %v2620, %v2660
    %v2686 = vmul.f32 %v2625, %v2660
    %v2687 = vmul.f32 %v2630, %v2660
    %v2688 = vmul.f32 %v2635, %v2660
    %v2689 = vmul.f32 %v2640, %v2660
    %v2690 = vmul.f32 %v2645, %v2660
    %v2691 = vmul.f32 %v2650, %v2660
    %v2692 = vmul.f32 %v2655, %v2660
    %2693 = vmatprep.subr.bf16.mxu0 0
    %2694 = vmatpush1.bf16.msra.mxu0 %v2192
    %2695 = vmatprep.subr.bf16.mxu0 0
    %2696 = vmatpush1.bf16.msra.mxu0 %v2193
    %2697 = vmatprep.subr.bf16.mxu0 0
    %2698 = vmatpush1.bf16.msra.mxu0 %v2194
    %2699 = vmatprep.subr.bf16.mxu0 0
    %2700 = vmatpush1.bf16.msra.mxu0 %v2195
    %2701 = vmatprep.subr.bf16.mxu0 0
    %2702 = vmatpush1.bf16.msra.mxu0 %v2196
    %2703 = vmatprep.subr.bf16.mxu0 0
    %2704 = vmatpush1.bf16.msra.mxu0 %v2197
    %2705 = vmatprep.subr.bf16.mxu0 0
    %2706 = vmatpush1.bf16.msra.mxu0 %v2198
    %2707 = vmatprep.subr.bf16.mxu0 0
    %2708 = vmatpush1.bf16.msra.mxu0 %v2199
    %2709 = vmatprep.subr.bf16.mxu0 0
    %2710 = vmatpush1.bf16.msra.mxu0 0
    %2711 = vmatprep.subr.bf16.mxu0 0
    %2712 = vmatpush1.bf16.msra.mxu0 0
    %2713 = vmatprep.subr.bf16.mxu0 0
    %2714 = vmatpush1.bf16.msra.mxu0 0
    %2715 = vmatprep.subr.bf16.mxu0 0
    %2716 = vmatpush1.bf16.msra.mxu0 0
    %2717 = vmatprep.subr.bf16.mxu0 0
    %2718 = vmatpush1.bf16.msra.mxu0 0
    %2719 = vmatprep.subr.bf16.mxu0 0
    %2720 = vmatpush1.bf16.msra.mxu0 0
    %2721 = vmatprep.subr.bf16.mxu0 0
    %2722 = vmatpush1.bf16.msra.mxu0 0
    %2723 = vmatprep.subr.bf16.mxu0 0
    %2724 = vmatpush1.bf16.msra.mxu0 0
    %2725 = vmatprep.mubr.bf16.mxu0 0
    %2726 = vmatmul.mubr.bf16.gmra.mrb[0].mxu0 %v2449
    %v2727 = vpop.f32.mrb[0].mxu0
    %v2728 = vadd.f32 %v2661, %v2727
    %v2729 = vpop.f32.mrb[0].mxu0
    %v2730 = vpop.f32.mrb[0].mxu0
    %v2731 = vadd.f32 %v2662, %v2730
    %v2732 = vpop.f32.mrb[0].mxu0
    %2733 = vmatprep.mubr.bf16.mxu0 0
    %2734 = vmatmul.mubr.bf16.gmra.mrb[0].mxu0 %v2450
    %v2735 = vpop.f32.mrb[0].mxu0
    %v2736 = vadd.f32 %v2663, %v2735
    %v2737 = vpop.f32.mrb[0].mxu0
    %v2738 = vpop.f32.mrb[0].mxu0
    %v2739 = vadd.f32 %v2664, %v2738
    %v2740 = vpop.f32.mrb[0].mxu0
    %2741 = vmatprep.mubr.bf16.mxu0 0
    %2742 = vmatmul.mubr.bf16.gmra.mrb[0].mxu0 %v2451
    %v2743 = vpop.f32.mrb[0].mxu0
    %v2744 = vadd.f32 %v2665, %v2743
    %v2745 = vpop.f32.mrb[0].mxu0
    %v2746 = vpop.f32.mrb[0].mxu0
    %v2747 = vadd.f32 %v2666, %v2746
    %v2748 = vpop.f32.mrb[0].mxu0
    %2749 = vmatprep.mubr.bf16.mxu0 0
    %2750 = vmatmul.mubr.bf16.gmra.mrb[0].mxu0 %v2452
    %v2751 = vpop.f32.mrb[0].mxu0
    %v2752 = vadd.f32 %v2667, %v2751
    %v2753 = vpop.f32.mrb[0].mxu0
    %v2754 = vpop.f32.mrb[0].mxu0
    %v2755 = vadd.f32 %v2668, %v2754
    %v2756 = vpop.f32.mrb[0].mxu0
    %2757 = vmatprep.mubr.bf16.mxu0 0
    %2758 = vmatmul.mubr.bf16.gmra.mrb[0].mxu0 %v2453
    %v2759 = vpop.f32.mrb[0].mxu0
    %v2760 = vadd.f32 %v2669, %v2759
    %v2761 = vpop.f32.mrb[0].mxu0
    %v2762 = vpop.f32.mrb[0].mxu0
    %v2763 = vadd.f32 %v2670, %v2762
    %v2764 = vpop.f32.mrb[0].mxu0
    %2765 = vmatprep.mubr.bf16.mxu0 0
    %2766 = vmatmul.mubr.bf16.gmra.mrb[0].mxu0 %v2454
    %v2767 = vpop.f32.mrb[0].mxu0
    %v2768 = vadd.f32 %v2671, %v2767
    %v2769 = vpop.f32.mrb[0].mxu0
    %v2770 = vpop.f32.mrb[0].mxu0
    %v2771 = vadd.f32 %v2672, %v2770
    %v2772 = vpop.f32.mrb[0].mxu0
    %2773 = vmatprep.mubr.bf16.mxu0 0
    %2774 = vmatmul.mubr.bf16.gmra.mrb[0].mxu0 %v2455
    %v2775 = vpop.f32.mrb[0].mxu0
    %v2776 = vadd.f32 %v2673, %v2775
    %v2777 = vpop.f32.mrb[0].mxu0
    %v2778 = vpop.f32.mrb[0].mxu0
    %v2779 = vadd.f32 %v2674, %v2778
    %v2780 = vpop.f32.mrb[0].mxu0
    %2781 = vmatprep.mubr.bf16.mxu0 0
    %2782 = vmatmul.mubr.bf16.gmra.mrb[0].mxu0 %v2456
    %v2783 = vpop.f32.mrb[0].mxu0
    %v2784 = vadd.f32 %v2675, %v2783
    %v2785 = vpop.f32.mrb[0].mxu0
    %v2786 = vpop.f32.mrb[0].mxu0
    %v2787 = vadd.f32 %v2676, %v2786
    %v2788 = vpop.f32.mrb[0].mxu0
    %2789 = vmatprep.mubr.bf16.mxu0 0
    %2790 = vmatmul.mubr.bf16.gmra.mrb[0].mxu0 %v2457
    %v2791 = vpop.f32.mrb[0].mxu0
    %v2792 = vadd.f32 %v2677, %v2791
    %v2793 = vpop.f32.mrb[0].mxu0
    %v2794 = vpop.f32.mrb[0].mxu0
    %v2795 = vadd.f32 %v2678, %v2794
    %v2796 = vpop.f32.mrb[0].mxu0
    %2797 = vmatprep.mubr.bf16.mxu0 0
    %2798 = vmatmul.mubr.bf16.gmra.mrb[0].mxu0 %v2458
    %v2799 = vpop.f32.mrb[0].mxu0
    %v2800 = vadd.f32 %v2679, %v2799
    %v2801 = vpop.f32.mrb[0].mxu0
    %v2802 = vpop.f32.mrb[0].mxu0
    %v2803 = vadd.f32 %v2680, %v2802
    %v2804 = vpop.f32.mrb[0].mxu0
    %2805 = vmatprep.mubr.bf16.mxu0 0
    %2806 = vmatmul.mubr.bf16.gmra.mrb[0].mxu0 %v2459
    %v2807 = vpop.f32.mrb[0].mxu0
    %v2808 = vadd.f32 %v2681, %v2807
    %v2809 = vpop.f32.mrb[0].mxu0
    %v2810 = vpop.f32.mrb[0].mxu0
    %v2811 = vadd.f32 %v2682, %v2810
    %v2812 = vpop.f32.mrb[0].mxu0
    %2813 = vmatprep.mubr.bf16.mxu0 0
    %2814 = vmatmul.mubr.bf16.gmra.mrb[0].mxu0 %v2460
    %v2815 = vpop.f32.mrb[0].mxu0
    %v2816 = vadd.f32 %v2683, %v2815
    %v2817 = vpop.f32.mrb[0].mxu0
    %v2818 = vpop.f32.mrb[0].mxu0
    %v2819 = vadd.f32 %v2684, %v2818
    %v2820 = vpop.f32.mrb[0].mxu0
    %2821 = vmatprep.mubr.bf16.mxu0 0
    %2822 = vmatmul.mubr.bf16.gmra.mrb[0].mxu0 %v2461
    %v2823 = vpop.f32.mrb[0].mxu0
    %v2824 = vadd.f32 %v2685, %v2823
    %v2825 = vpop.f32.mrb[0].mxu0
    %v2826 = vpop.f32.mrb[0].mxu0
    %v2827 = vadd.f32 %v2686, %v2826
    %v2828 = vpop.f32.mrb[0].mxu0
    %2829 = vmatprep.mubr.bf16.mxu0 0
    %2830 = vmatmul.mubr.bf16.gmra.mrb[0].mxu0 %v2462
    %v2831 = vpop.f32.mrb[0].mxu0
    %v2832 = vadd.f32 %v2687, %v2831
    %v2833 = vpop.f32.mrb[0].mxu0
    %v2834 = vpop.f32.mrb[0].mxu0
    %v2835 = vadd.f32 %v2688, %v2834
    %v2836 = vpop.f32.mrb[0].mxu0
    %2837 = vmatprep.mubr.bf16.mxu0 0
    %2838 = vmatmul.mubr.bf16.gmra.mrb[0].mxu0 %v2463
    %v2839 = vpop.f32.mrb[0].mxu0
    %v2840 = vadd.f32 %v2689, %v2839
    %v2841 = vpop.f32.mrb[0].mxu0
    %v2842 = vpop.f32.mrb[0].mxu0
    %v2843 = vadd.f32 %v2690, %v2842
    %v2844 = vpop.f32.mrb[0].mxu0
    %2845 = vmatprep.mubr.bf16.mxu0 0
    %2846 = vmatmul.mubr.bf16.gmra.mrb[0].mxu0 %v2464
    %v2847 = vpop.f32.mrb[0].mxu0
    %v2848 = vadd.f32 %v2691, %v2847
    %v2849 = vpop.f32.mrb[0].mxu0
    %v2850 = vpop.f32.mrb[0].mxu0
    %v2851 = vadd.f32 %v2692, %v2850
    %v2852 = vpop.f32.mrb[0].mxu0
    %2853 = vdwg.mxu0
    %v2855 = vlaneseq
    %v2856 = vshrl.u32 %v2855, 7
    %v2857 = vsub.s32 0, %v2856
    %v2858 = vrot.slane %v2191, %v2857
    %v2860 = vadd.f32 %v2728, %v2858
    %v2861 = vadd.f32 %v2731, %v2858
    %v2862 = vadd.f32 %v2736, %v2858
    %v2863 = vadd.f32 %v2739, %v2858
    %v2864 = vadd.f32 %v2744, %v2858
    %v2865 = vadd.f32 %v2747, %v2858
    %v2866 = vadd.f32 %v2752, %v2858
    %v2867 = vadd.f32 %v2755, %v2858
    %v2868 = vadd.f32 %v2760, %v2858
    %v2869 = vadd.f32 %v2763, %v2858
    %v2870 = vadd.f32 %v2768, %v2858
    %v2871 = vadd.f32 %v2771, %v2858
    %v2872 = vadd.f32 %v2776, %v2858
    %v2873 = vadd.f32 %v2779, %v2858
    %v2874 = vadd.f32 %v2784, %v2858
    %v2875 = vadd.f32 %v2787, %v2858
    %v2876 = vadd.f32 %v2792, %v2858
    %v2877 = vadd.f32 %v2795, %v2858
    %v2878 = vadd.f32 %v2800, %v2858
    %v2879 = vadd.f32 %v2803, %v2858
    %v2880 = vadd.f32 %v2808, %v2858
    %v2881 = vadd.f32 %v2811, %v2858
    %v2882 = vadd.f32 %v2816, %v2858
    %v2883 = vadd.f32 %v2819, %v2858
    %v2884 = vadd.f32 %v2824, %v2858
    %v2885 = vadd.f32 %v2827, %v2858
    %v2886 = vadd.f32 %v2832, %v2858
    %v2887 = vadd.f32 %v2835, %v2858
    %v2888 = vadd.f32 %v2840, %v2858
    %v2889 = vadd.f32 %v2843, %v2858
    %v2890 = vadd.f32 %v2848, %v2858
    %v2891 = vadd.f32 %v2851, %v2858
    %v2892 = vmax.f32 %v2860, 0.0
    %v2893 = vmax.f32 %v2861, 0.0
    %v2894 = vmax.f32 %v2862, 0.0
    %v2895 = vmax.f32 %v2863, 0.0
    %v2896 = vmax.f32 %v2864, 0.0
    %v2897 = vmax.f32 %v2865, 0.0
    %v2898 = vmax.f32 %v2866, 0.0
    %v2899 = vmax.f32 %v2867, 0.0
    %v2900 = vmax.f32 %v2868, 0.0
    %v2901 = vmax.f32 %v2869, 0.0
    %v2902 = vmax.f32 %v2870, 0.0
    %v2903 = vmax.f32 %v2871, 0.0
    %v2904 = vmax.f32 %v2872, 0.0
    %v2905 = vmax.f32 %v2873, 0.0
    %v2906 = vmax.f32 %v2874, 0.0
    %v2907 = vmax.f32 %v2875, 0.0
    %v2908 = vmax.f32 %v2876, 0.0
    %v2909 = vmax.f32 %v2877, 0.0
    %v2910 = vmax.f32 %v2878, 0.0
    %v2911 = vmax.f32 %v2879, 0.0
    %v2912 = vmax.f32 %v2880, 0.0
    %v2913 = vmax.f32 %v2881, 0.0
    %v2914 = vmax.f32 %v2882, 0.0
    %v2915 = vmax.f32 %v2883, 0.0
    %v2916 = vmax.f32 %v2884, 0.0
    %v2917 = vmax.f32 %v2885, 0.0
    %v2918 = vmax.f32 %v2886, 0.0
    %v2919 = vmax.f32 %v2887, 0.0
    %v2920 = vmax.f32 %v2888, 0.0
    %v2921 = vmax.f32 %v2889, 0.0
    %v2922 = vmax.f32 %v2890, 0.0
    %v2923 = vmax.f32 %v2891, 0.0
    %v2924 = vld [vmem:[%s3] sm:$0xff]
    %v2925 = vld [vmem:[%s3 + $0x8] sm:$0xff]
    %v2926 = vld [vmem:[%s3 + $0x10] sm:$0xff]
    %v2927 = vld [vmem:[%s3 + $0x18] sm:$0xff]
    %v2928 = vld [vmem:[%s3 + $0x20] sm:$0xff]
    %v2929 = vld [vmem:[%s3 + $0x28] sm:$0xff]
    %v2930 = vld [vmem:[%s3 + $0x30] sm:$0xff]
    %v2931 = vld [vmem:[%s3 + $0x38] sm:$0xff]
    %v2932 = vld [vmem:[%s3 + $0x40] sm:$0xff]
    %v2933 = vld [vmem:[%s3 + $0x48] sm:$0xff]
    %v2934 = vld [vmem:[%s3 + $0x50] sm:$0xff]
    %v2935 = vld [vmem:[%s3 + $0x58] sm:$0xff]
    %v2936 = vld [vmem:[%s3 + $0x60] sm:$0xff]
    %v2937 = vld [vmem:[%s3 + $0x68] sm:$0xff]
    %v2938 = vld [vmem:[%s3 + $0x70] sm:$0xff]
    %v2939 = vld [vmem:[%s3 + $0x78] sm:$0xff]
    %v2940 = vld [vmem:[%s3 + $0x80] sm:$0xff]
    %v2941 = vld [vmem:[%s3 + $0x88] sm:$0xff]
    %v2942 = vld [vmem:[%s3 + $0x90] sm:$0xff]
    %v2943 = vld [vmem:[%s3 + $0x98] sm:$0xff]
    %v2944 = vld [vmem:[%s3 + $0xa0] sm:$0xff]
    %v2945 = vld [vmem:[%s3 + $0xa8] sm:$0xff]
    %v2946 = vld [vmem:[%s3 + $0xb0] sm:$0xff]
    %v2947 = vld [vmem:[%s3 + $0xb8] sm:$0xff]
    %v2948 = vld [vmem:[%s3 + $0xc0] sm:$0xff]
    %v2949 = vld [vmem:[%s3 + $0xc8] sm:$0xff]
    %v2950 = vld [vmem:[%s3 + $0xd0] sm:$0xff]
    %v2951 = vld [vmem:[%s3 + $0xd8] sm:$0xff]
    %v2952 = vld [vmem:[%s3 + $0xe0] sm:$0xff]
    %v2953 = vld [vmem:[%s3 + $0xe8] sm:$0xff]
    %v2954 = vld [vmem:[%s3 + $0xf0] sm:$0xff]
    %v2955 = vld [vmem:[%s3 + $0xf8] sm:$0xff]
    %2957 = vset.pattern.permute.xlu0 0
    %2958 = vperm.xlu0 %2957, %v2924
    %v2959 = vpop.permute.xlu0 %2958
    %2962 = vset.pattern.permute.xlu0 0
    %2963 = vperm.xlu0 %2962, %v2925
    %v2964 = vpop.permute.xlu0 %2963
    %2967 = vset.pattern.permute.xlu0 0
    %2968 = vperm.xlu0 %2967, %v2926
    %v2969 = vpop.permute.xlu0 %2968
    %2972 = vset.pattern.permute.xlu0 0
    %2973 = vperm.xlu0 %2972, %v2927
    %v2974 = vpop.permute.xlu0 %2973
    %2977 = vset.pattern.permute.xlu0 0
    %2978 = vperm.xlu0 %2977, %v2928
    %v2979 = vpop.permute.xlu0 %2978
    %2982 = vset.pattern.permute.xlu0 0
    %2983 = vperm.xlu0 %2982, %v2929
    %v2984 = vpop.permute.xlu0 %2983
    %2987 = vset.pattern.permute.xlu0 0
    %2988 = vperm.xlu0 %2987, %v2930
    %v2989 = vpop.permute.xlu0 %2988
    %2992 = vset.pattern.permute.xlu0 0
    %2993 = vperm.xlu0 %2992, %v2931
    %v2994 = vpop.permute.xlu0 %2993
    %2997 = vset.pattern.permute.xlu0 0
    %2998 = vperm.xlu0 %2997, %v2932
    %v2999 = vpop.permute.xlu0 %2998
    %3002 = vset.pattern.permute.xlu0 0
    %3003 = vperm.xlu0 %3002, %v2933
    %v3004 = vpop.permute.xlu0 %3003
    %3007 = vset.pattern.permute.xlu0 0
    %3008 = vperm.xlu0 %3007, %v2934
    %v3009 = vpop.permute.xlu0 %3008
    %3012 = vset.pattern.permute.xlu0 0
    %3013 = vperm.xlu0 %3012, %v2935
    %v3014 = vpop.permute.xlu0 %3013
    %3017 = vset.pattern.permute.xlu0 0
    %3018 = vperm.xlu0 %3017, %v2936
    %v3019 = vpop.permute.xlu0 %3018
    %3022 = vset.pattern.permute.xlu0 0
    %3023 = vperm.xlu0 %3022, %v2937
    %v3024 = vpop.permute.xlu0 %3023
    %3027 = vset.pattern.permute.xlu0 0
    %3028 = vperm.xlu0 %3027, %v2938
    %v3029 = vpop.permute.xlu0 %3028
    %3032 = vset.pattern.permute.xlu0 0
    %3033 = vperm.xlu0 %3032, %v2939
    %v3034 = vpop.permute.xlu0 %3033
    %3037 = vset.pattern.permute.xlu0 0
    %3038 = vperm.xlu0 %3037, %v2940
    %v3039 = vpop.permute.xlu0 %3038
    %3042 = vset.pattern.permute.xlu0 0
    %3043 = vperm.xlu0 %3042, %v2941
    %v3044 = vpop.permute.xlu0 %3043
    %3047 = vset.pattern.permute.xlu0 0
    %3048 = vperm.xlu0 %3047, %v2942
    %v3049 = vpop.permute.xlu0 %3048
    %3052 = vset.pattern.permute.xlu0 0
    %3053 = vperm.xlu0 %3052, %v2943
    %v3054 = vpop.permute.xlu0 %3053
    %3057 = vset.pattern.permute.xlu0 0
    %3058 = vperm.xlu0 %3057, %v2944
    %v3059 = vpop.permute.xlu0 %3058
    %3062 = vset.pattern.permute.xlu0 0
    %3063 = vperm.xlu0 %3062, %v2945
    %v3064 = vpop.permute.xlu0 %3063
    %3067 = vset.pattern.permute.xlu0 0
    %3068 = vperm.xlu0 %3067, %v2946
    %v3069 = vpop.permute.xlu0 %3068
    %3072 = vset.pattern.permute.xlu0 0
    %3073 = vperm.xlu0 %3072, %v2947
    %v3074 = vpop.permute.xlu0 %3073
    %3077 = vset.pattern.permute.xlu0 0
    %3078 = vperm.xlu0 %3077, %v2948
    %v3079 = vpop.permute.xlu0 %3078
    %3082 = vset.pattern.permute.xlu0 0
    %3083 = vperm.xlu0 %3082, %v2949
    %v3084 = vpop.permute.xlu0 %3083
    %3087 = vset.pattern.permute.xlu0 0
    %3088 = vperm.xlu0 %3087, %v2950
    %v3089 = vpop.permute.xlu0 %3088
    %3092 = vset.pattern.permute.xlu0 0
    %3093 = vperm.xlu0 %3092, %v2951
    %v3094 = vpop.permute.xlu0 %3093
    %3097 = vset.pattern.permute.xlu0 0
    %3098 = vperm.xlu0 %3097, %v2952
    %v3099 = vpop.permute.xlu0 %3098
    %3102 = vset.pattern.permute.xlu0 0
    %3103 = vperm.xlu0 %3102, %v2953
    %v3104 = vpop.permute.xlu0 %3103
    %3107 = vset.pattern.permute.xlu0 0
    %3108 = vperm.xlu0 %3107, %v2954
    %v3109 = vpop.permute.xlu0 %3108
    %3112 = vset.pattern.permute.xlu0 0
    %3113 = vperm.xlu0 %3112, %v2955
    %v3114 = vpop.permute.xlu0 %3113
    %v3116 = vmul.f32 %v2892, %v2959
    %v3117 = vmul.f32 %v2893, %v2964
    %v3118 = vmul.f32 %v2894, %v2969
    %v3119 = vmul.f32 %v2895, %v2974
    %v3120 = vmul.f32 %v2896, %v2979
    %v3121 = vmul.f32 %v2897, %v2984
    %v3122 = vmul.f32 %v2898, %v2989
    %v3123 = vmul.f32 %v2899, %v2994
    %v3124 = vmul.f32 %v2900, %v2999
    %v3125 = vmul.f32 %v2901, %v3004
    %v3126 = vmul.f32 %v2902, %v3009
    %v3127 = vmul.f32 %v2903, %v3014
    %v3128 = vmul.f32 %v2904, %v3019
    %v3129 = vmul.f32 %v2905, %v3024
    %v3130 = vmul.f32 %v2906, %v3029
    %v3131 = vmul.f32 %v2907, %v3034
    %v3132 = vmul.f32 %v2908, %v3039
    %v3133 = vmul.f32 %v2909, %v3044
    %v3134 = vmul.f32 %v2910, %v3049
    %v3135 = vmul.f32 %v2911, %v3054
    %v3136 = vmul.f32 %v2912, %v3059
    %v3137 = vmul.f32 %v2913, %v3064
    %v3138 = vmul.f32 %v2914, %v3069
    %v3139 = vmul.f32 %v2915, %v3074
    %v3140 = vmul.f32 %v2916, %v3079
    %v3141 = vmul.f32 %v2917, %v3084
    %v3142 = vmul.f32 %v2918, %v3089
    %v3143 = vmul.f32 %v2919, %v3094
    %v3144 = vmul.f32 %v2920, %v3099
    %v3145 = vmul.f32 %v2921, %v3104
    %v3146 = vmul.f32 %v2922, %v3109
    %v3147 = vmul.f32 %v2923, %v3114
    %3148 = vst [vmem:[#allocation3] sm:$0xff] %v3116
    %3149 = vst [vmem:[#allocation3 + $0x8] sm:$0xff] %v3117
    %3150 = vst [vmem:[#allocation3 + $0x10] sm:$0xff] %v3118
    %3151 = vst [vmem:[#allocation3 + $0x18] sm:$0xff] %v3119
    %3152 = vst [vmem:[#allocation3 + $0x20] sm:$0xff] %v3120
    %3153 = vst [vmem:[#allocation3 + $0x28] sm:$0xff] %v3121
    %3154 = vst [vmem:[#allocation3 + $0x30] sm:$0xff] %v3122
    %3155 = vst [vmem:[#allocation3 + $0x38] sm:$0xff] %v3123
    %3156 = vst [vmem:[#allocation3 + $0x40] sm:$0xff] %v3124
    %3157 = vst [vmem:[#allocation3 + $0x48] sm:$0xff] %v3125
    %3158 = vst [vmem:[#allocation3 + $0x50] sm:$0xff] %v3126
    %3159 = vst [vmem:[#allocation3 + $0x58] sm:$0xff] %v3127
    %3160 = vst [vmem:[#allocation3 + $0x60] sm:$0xff] %v3128
    %3161 = vst [vmem:[#allocation3 + $0x68] sm:$0xff] %v3129
    %3162 = vst [vmem:[#allocation3 + $0x70] sm:$0xff] %v3130
    %3163 = vst [vmem:[#allocation3 + $0x78] sm:$0xff] %v3131
    %3164 = vst [vmem:[#allocation3 + $0x80] sm:$0xff] %v3132
    %3165 = vst [vmem:[#allocation3 + $0x88] sm:$0xff] %v3133
    %3166 = vst [vmem:[#allocation3 + $0x90] sm:$0xff] %v3134
    %3167 = vst [vmem:[#allocation3 + $0x98] sm:$0xff] %v3135
    %3168 = vst [vmem:[#allocation3 + $0xa0] sm:$0xff] %v3136
    %3169 = vst [vmem:[#allocation3 + $0xa8] sm:$0xff] %v3137
    %3170 = vst [vmem:[#allocation3 + $0xb0] sm:$0xff] %v3138
    %3171 = vst [vmem:[#allocation3 + $0xb8] sm:$0xff] %v3139
    %3172 = vst [vmem:[#allocation3 + $0xc0] sm:$0xff] %v3140
    %3173 = vst [vmem:[#allocation3 + $0xc8] sm:$0xff] %v3141
    %3174 = vst [vmem:[#allocation3 + $0xd0] sm:$0xff] %v3142
    %3175 = vst [vmem:[#allocation3 + $0xd8] sm:$0xff] %v3143
    %3176 = vst [vmem:[#allocation3 + $0xe0] sm:$0xff] %v3144
    %3177 = vst [vmem:[#allocation3 + $0xe8] sm:$0xff] %v3145
    %3178 = vst [vmem:[#allocation3 + $0xf0] sm:$0xff] %v3146
    %3179 = vst [vmem:[#allocation3 + $0xf8] sm:$0xff] %v3147
    %p3181 = scmp.lt.u32.totalorder 4, 8
    %p3182 = pneg %p3181
    // Predicated region
    $region132: #{resgcn_forward.1} parent=1 // pred_check
      _
    $region133: #{resgcn_forward.1} parent=1 // pred_check_branch
      %3184 = sbr.rel (%p3181) target = $region135
    $region134: #{resgcn_forward.1} parent=1 // pred_region
      %s3325 = sand.u32 4, 7
      %p3326 = scmp.eq.s32.totalorder %s3325, 0
      %p3327 = pneg %p3326
      // Predicated region
      $region147: #{resgcn_forward.1} parent=134 // pred_check
        _
      $region148: #{resgcn_forward.1} parent=134 // pred_check_branch
        %3329 = sbr.rel (%p3326) target = $region150
      $region149: #{resgcn_forward.1} parent=134 // pred_region
        %s3330 = sand.u32 4, 7
        %s3331 = ssub.s32 4, %s3330
        %s3332 = scalar_lea.vmem %s1, %s3331
        %s3333 = ssub.s32 4, %s3330
        %s3334 = scalar_lea.vmem [#allocation5], %s3333
        loop: start=0, step=1, limit=1
        $region151: #{resgcn_forward.1} parent=149 // loop_pre_header
          _
        $region152: #{resgcn_forward.1} parent=149 // loop_header
          %s3336 = sphi 0, %s3340
          %p3337 = scmp.ge.s32.totalorder %s3336, 1
          %s3341 = sphi %s1, %s1
          %s3342 = sphi [#allocation5], [#allocation5]
        $region153: #{resgcn_forward.1} parent=149 // loop_header_branch
          %3339 = sbr.rel (%p3337) target = $region157
        $region154: #{resgcn_forward.1} parent=149 // loop_body
          _
        $region155: #{resgcn_forward.1} parent=149 // loop_footer
          %s3340 = sadd.s32 1, %s3336
        $region156: #{resgcn_forward.1} parent=149 // loop_footer_branch
          %3335 = sbr.rel target = $region152
        $region157: #{resgcn_forward.1} parent=149 // loop_exit
          _
        %s3343 = sshllo.u32 0, %s3330
        loop: start=0, step=1, limit=1
        $region158: #{resgcn_forward.1} parent=149 // loop_pre_header
          _
        $region159: #{resgcn_forward.1} parent=149 // loop_header
          %s3345 = sphi 0, %s3349
          %p3346 = scmp.ge.s32.totalorder %s3345, 1
          %s3350 = sphi %s3332, %s3332
          %s3351 = sphi %s3334, %s3334
        $region160: #{resgcn_forward.1} parent=149 // loop_header_branch
          %3348 = sbr.rel (%p3346) target = $region164
        $region161: #{resgcn_forward.1} parent=149 // loop_body
          %v3352 = vld [vmem:[%s3350] sm:%s3343]
          %3353 = vst [vmem:[%s3351] sm:%s3343] %v3352
          %v3354 = vld [vmem:[%s3350 + $0x8] sm:%s3343]
          %3355 = vst [vmem:[%s3351 + $0x4] sm:%s3343] %v3354
          %v3356 = vld [vmem:[%s3350 + $0x4] sm:%s3343]
          %3357 = vst [vmem:[%s3351 + $0x8] sm:%s3343] %v3356
          %v3358 = vld [vmem:[%s3350 + $0xc] sm:%s3343]
          %3359 = vst [vmem:[%s3351 + $0xc] sm:%s3343] %v3358
          %v3360 = vld [vmem:[%s3350 + $0x10] sm:%s3343]
          %3361 = vst [vmem:[%s3351 + $0x10] sm:%s3343] %v3360
          %v3362 = vld [vmem:[%s3350 + $0x18] sm:%s3343]
          %3363 = vst [vmem:[%s3351 + $0x14] sm:%s3343] %v3362
          %v3364 = vld [vmem:[%s3350 + $0x14] sm:%s3343]
          %3365 = vst [vmem:[%s3351 + $0x18] sm:%s3343] %v3364
          %v3366 = vld [vmem:[%s3350 + $0x1c] sm:%s3343]
          %3367 = vst [vmem:[%s3351 + $0x1c] sm:%s3343] %v3366
          %v3368 = vld [vmem:[%s3350 + $0x20] sm:%s3343]
          %3369 = vst [vmem:[%s3351 + $0x20] sm:%s3343] %v3368
          %v3370 = vld [vmem:[%s3350 + $0x28] sm:%s3343]
          %3371 = vst [vmem:[%s3351 + $0x24] sm:%s3343] %v3370
          %v3372 = vld [vmem:[%s3350 + $0x24] sm:%s3343]
          %3373 = vst [vmem:[%s3351 + $0x28] sm:%s3343] %v3372
          %v3374 = vld [vmem:[%s3350 + $0x2c] sm:%s3343]
          %3375 = vst [vmem:[%s3351 + $0x2c] sm:%s3343] %v3374
          %v3376 = vld [vmem:[%s3350 + $0x30] sm:%s3343]
          %3377 = vst [vmem:[%s3351 + $0x30] sm:%s3343] %v3376
          %v3378 = vld [vmem:[%s3350 + $0x38] sm:%s3343]
          %3379 = vst [vmem:[%s3351 + $0x34] sm:%s3343] %v3378
          %v3380 = vld [vmem:[%s3350 + $0x34] sm:%s3343]
          %3381 = vst [vmem:[%s3351 + $0x38] sm:%s3343] %v3380
          %v3382 = vld [vmem:[%s3350 + $0x3c] sm:%s3343]
          %3383 = vst [vmem:[%s3351 + $0x3c] sm:%s3343] %v3382
          %v3384 = vld [vmem:[%s3350 + $0x40] sm:%s3343]
          %3385 = vst [vmem:[%s3351 + $0x40] sm:%s3343] %v3384
          %v3386 = vld [vmem:[%s3350 + $0x48] sm:%s3343]
          %3387 = vst [vmem:[%s3351 + $0x44] sm:%s3343] %v3386
          %v3388 = vld [vmem:[%s3350 + $0x44] sm:%s3343]
          %3389 = vst [vmem:[%s3351 + $0x48] sm:%s3343] %v3388
          %v3390 = vld [vmem:[%s3350 + $0x4c] sm:%s3343]
          %3391 = vst [vmem:[%s3351 + $0x4c] sm:%s3343] %v3390
          %v3392 = vld [vmem:[%s3350 + $0x50] sm:%s3343]
          %3393 = vst [vmem:[%s3351 + $0x50] sm:%s3343] %v3392
          %v3394 = vld [vmem:[%s3350 + $0x58] sm:%s3343]
          %3395 = vst [vmem:[%s3351 + $0x54] sm:%s3343] %v3394
          %v3396 = vld [vmem:[%s3350 + $0x54] sm:%s3343]
          %3397 = vst [vmem:[%s3351 + $0x58] sm:%s3343] %v3396
          %v3398 = vld [vmem:[%s3350 + $0x5c] sm:%s3343]
          %3399 = vst [vmem:[%s3351 + $0x5c] sm:%s3343] %v3398
          %v3400 = vld [vmem:[%s3350 + $0x60] sm:%s3343]
          %3401 = vst [vmem:[%s3351 + $0x60] sm:%s3343] %v3400
          %v3402 = vld [vmem:[%s3350 + $0x68] sm:%s3343]
          %3403 = vst [vmem:[%s3351 + $0x64] sm:%s3343] %v3402
          %v3404 = vld [vmem:[%s3350 + $0x64] sm:%s3343]
          %3405 = vst [vmem:[%s3351 + $0x68] sm:%s3343] %v3404
          %v3406 = vld [vmem:[%s3350 + $0x6c] sm:%s3343]
          %3407 = vst [vmem:[%s3351 + $0x6c] sm:%s3343] %v3406
          %v3408 = vld [vmem:[%s3350 + $0x70] sm:%s3343]
          %3409 = vst [vmem:[%s3351 + $0x70] sm:%s3343] %v3408
          %v3410 = vld [vmem:[%s3350 + $0x78] sm:%s3343]
          %3411 = vst [vmem:[%s3351 + $0x74] sm:%s3343] %v3410
          %v3412 = vld [vmem:[%s3350 + $0x74] sm:%s3343]
          %3413 = vst [vmem:[%s3351 + $0x78] sm:%s3343] %v3412
          %v3414 = vld [vmem:[%s3350 + $0x7c] sm:%s3343]
          %3415 = vst [vmem:[%s3351 + $0x7c] sm:%s3343] %v3414
          %v3416 = vld [vmem:[%s3350 + $0x80] sm:%s3343]
          %3417 = vst [vmem:[%s3351 + $0x80] sm:%s3343] %v3416
          %v3418 = vld [vmem:[%s3350 + $0x88] sm:%s3343]
          %3419 = vst [vmem:[%s3351 + $0x84] sm:%s3343] %v3418
          %v3420 = vld [vmem:[%s3350 + $0x84] sm:%s3343]
          %3421 = vst [vmem:[%s3351 + $0x88] sm:%s3343] %v3420
          %v3422 = vld [vmem:[%s3350 + $0x8c] sm:%s3343]
          %3423 = vst [vmem:[%s3351 + $0x8c] sm:%s3343] %v3422
          %v3424 = vld [vmem:[%s3350 + $0x90] sm:%s3343]
          %3425 = vst [vmem:[%s3351 + $0x90] sm:%s3343] %v3424
          %v3426 = vld [vmem:[%s3350 + $0x98] sm:%s3343]
          %3427 = vst [vmem:[%s3351 + $0x94] sm:%s3343] %v3426
          %v3428 = vld [vmem:[%s3350 + $0x94] sm:%s3343]
          %3429 = vst [vmem:[%s3351 + $0x98] sm:%s3343] %v3428
          %v3430 = vld [vmem:[%s3350 + $0x9c] sm:%s3343]
          %3431 = vst [vmem:[%s3351 + $0x9c] sm:%s3343] %v3430
          %v3432 = vld [vmem:[%s3350 + $0xa0] sm:%s3343]
          %3433 = vst [vmem:[%s3351 + $0xa0] sm:%s3343] %v3432
          %v3434 = vld [vmem:[%s3350 + $0xa8] sm:%s3343]
          %3435 = vst [vmem:[%s3351 + $0xa4] sm:%s3343] %v3434
          %v3436 = vld [vmem:[%s3350 + $0xa4] sm:%s3343]
          %3437 = vst [vmem:[%s3351 + $0xa8] sm:%s3343] %v3436
          %v3438 = vld [vmem:[%s3350 + $0xac] sm:%s3343]
          %3439 = vst [vmem:[%s3351 + $0xac] sm:%s3343] %v3438
          %v3440 = vld [vmem:[%s3350 + $0xb0] sm:%s3343]
          %3441 = vst [vmem:[%s3351 + $0xb0] sm:%s3343] %v3440
          %v3442 = vld [vmem:[%s3350 + $0xb8] sm:%s3343]
          %3443 = vst [vmem:[%s3351 + $0xb4] sm:%s3343] %v3442
          %v3444 = vld [vmem:[%s3350 + $0xb4] sm:%s3343]
          %3445 = vst [vmem:[%s3351 + $0xb8] sm:%s3343] %v3444
          %v3446 = vld [vmem:[%s3350 + $0xbc] sm:%s3343]
          %3447 = vst [vmem:[%s3351 + $0xbc] sm:%s3343] %v3446
          %v3448 = vld [vmem:[%s3350 + $0xc0] sm:%s3343]
          %3449 = vst [vmem:[%s3351 + $0xc0] sm:%s3343] %v3448
          %v3450 = vld [vmem:[%s3350 + $0xc8] sm:%s3343]
          %3451 = vst [vmem:[%s3351 + $0xc4] sm:%s3343] %v3450
          %v3452 = vld [vmem:[%s3350 + $0xc4] sm:%s3343]
          %3453 = vst [vmem:[%s3351 + $0xc8] sm:%s3343] %v3452
          %v3454 = vld [vmem:[%s3350 + $0xcc] sm:%s3343]
          %3455 = vst [vmem:[%s3351 + $0xcc] sm:%s3343] %v3454
          %v3456 = vld [vmem:[%s3350 + $0xd0] sm:%s3343]
          %3457 = vst [vmem:[%s3351 + $0xd0] sm:%s3343] %v3456
          %v3458 = vld [vmem:[%s3350 + $0xd8] sm:%s3343]
          %3459 = vst [vmem:[%s3351 + $0xd4] sm:%s3343] %v3458
          %v3460 = vld [vmem:[%s3350 + $0xd4] sm:%s3343]
          %3461 = vst [vmem:[%s3351 + $0xd8] sm:%s3343] %v3460
          %v3462 = vld [vmem:[%s3350 + $0xdc] sm:%s3343]
          %3463 = vst [vmem:[%s3351 + $0xdc] sm:%s3343] %v3462
          %v3464 = vld [vmem:[%s3350 + $0xe0] sm:%s3343]
          %3465 = vst [vmem:[%s3351 + $0xe0] sm:%s3343] %v3464
          %v3466 = vld [vmem:[%s3350 + $0xe8] sm:%s3343]
          %3467 = vst [vmem:[%s3351 + $0xe4] sm:%s3343] %v3466
          %v3468 = vld [vmem:[%s3350 + $0xe4] sm:%s3343]
          %3469 = vst [vmem:[%s3351 + $0xe8] sm:%s3343] %v3468
          %v3470 = vld [vmem:[%s3350 + $0xec] sm:%s3343]
          %3471 = vst [vmem:[%s3351 + $0xec] sm:%s3343] %v3470
          %v3472 = vld [vmem:[%s3350 + $0xf0] sm:%s3343]
          %3473 = vst [vmem:[%s3351 + $0xf0] sm:%s3343] %v3472
          %v3474 = vld [vmem:[%s3350 + $0xf8] sm:%s3343]
          %3475 = vst [vmem:[%s3351 + $0xf4] sm:%s3343] %v3474
          %v3476 = vld [vmem:[%s3350 + $0xf4] sm:%s3343]
          %3477 = vst [vmem:[%s3351 + $0xf8] sm:%s3343] %v3476
          %v3478 = vld [vmem:[%s3350 + $0xfc] sm:%s3343]
          %3479 = vst [vmem:[%s3351 + $0xfc] sm:%s3343] %v3478
        $region162: #{resgcn_forward.1} parent=149 // loop_footer
          %s3349 = sadd.s32 1, %s3345
        $region163: #{resgcn_forward.1} parent=149 // loop_footer_branch
          %3344 = sbr.rel target = $region159
        $region164: #{resgcn_forward.1} parent=149 // loop_exit
          _
      $region150: #{resgcn_forward.1} parent=134 // pred_fallthru
        _
    $region135: #{resgcn_forward.1} parent=1 // pred_fallthru
      _
    // Predicated region
    $region136: #{resgcn_forward.1} parent=1 // pred_check
      %p3185 = pneg %p3181
    $region137: #{resgcn_forward.1} parent=1 // pred_check_branch
      %3187 = sbr.rel (%p3185) target = $region139
    $region138: #{resgcn_forward.1} parent=1 // pred_region
      %s3188 = sshllo.u32 0, 4
      loop: start=0, step=1, limit=1
      $region140: #{resgcn_forward.1} parent=138 // loop_pre_header
        _
      $region141: #{resgcn_forward.1} parent=138 // loop_header
        %s3190 = sphi 0, %s3194
        %p3191 = scmp.ge.s32.totalorder %s3190, 1
        %s3195 = sphi %s1, %s1
        %s3196 = sphi [#allocation5], [#allocation5]
      $region142: #{resgcn_forward.1} parent=138 // loop_header_branch
        %3193 = sbr.rel (%p3191) target = $region146
      $region143: #{resgcn_forward.1} parent=138 // loop_body
        %v3197 = vld [vmem:[%s3195] sm:%s3188]
        %3198 = vst [vmem:[%s3196] sm:%s3188] %v3197
        %v3199 = vld [vmem:[%s3195 + $0x8] sm:%s3188]
        %3200 = vst [vmem:[%s3196 + $0x4] sm:%s3188] %v3199
        %v3201 = vld [vmem:[%s3195 + $0x4] sm:%s3188]
        %3202 = vst [vmem:[%s3196 + $0x8] sm:%s3188] %v3201
        %v3203 = vld [vmem:[%s3195 + $0xc] sm:%s3188]
        %3204 = vst [vmem:[%s3196 + $0xc] sm:%s3188] %v3203
        %v3205 = vld [vmem:[%s3195 + $0x10] sm:%s3188]
        %3206 = vst [vmem:[%s3196 + $0x10] sm:%s3188] %v3205
        %v3207 = vld [vmem:[%s3195 + $0x18] sm:%s3188]
        %3208 = vst [vmem:[%s3196 + $0x14] sm:%s3188] %v3207
        %v3209 = vld [vmem:[%s3195 + $0x14] sm:%s3188]
        %3210 = vst [vmem:[%s3196 + $0x18] sm:%s3188] %v3209
        %v3211 = vld [vmem:[%s3195 + $0x1c] sm:%s3188]
        %3212 = vst [vmem:[%s3196 + $0x1c] sm:%s3188] %v3211
        %v3213 = vld [vmem:[%s3195 + $0x20] sm:%s3188]
        %3214 = vst [vmem:[%s3196 + $0x20] sm:%s3188] %v3213
        %v3215 = vld [vmem:[%s3195 + $0x28] sm:%s3188]
        %3216 = vst [vmem:[%s3196 + $0x24] sm:%s3188] %v3215
        %v3217 = vld [vmem:[%s3195 + $0x24] sm:%s3188]
        %3218 = vst [vmem:[%s3196 + $0x28] sm:%s3188] %v3217
        %v3219 = vld [vmem:[%s3195 + $0x2c] sm:%s3188]
        %3220 = vst [vmem:[%s3196 + $0x2c] sm:%s3188] %v3219
        %v3221 = vld [vmem:[%s3195 + $0x30] sm:%s3188]
        %3222 = vst [vmem:[%s3196 + $0x30] sm:%s3188] %v3221
        %v3223 = vld [vmem:[%s3195 + $0x38] sm:%s3188]
        %3224 = vst [vmem:[%s3196 + $0x34] sm:%s3188] %v3223
        %v3225 = vld [vmem:[%s3195 + $0x34] sm:%s3188]
        %3226 = vst [vmem:[%s3196 + $0x38] sm:%s3188] %v3225
        %v3227 = vld [vmem:[%s3195 + $0x3c] sm:%s3188]
        %3228 = vst [vmem:[%s3196 + $0x3c] sm:%s3188] %v3227
        %v3229 = vld [vmem:[%s3195 + $0x40] sm:%s3188]
        %3230 = vst [vmem:[%s3196 + $0x40] sm:%s3188] %v3229
        %v3231 = vld [vmem:[%s3195 + $0x48] sm:%s3188]
        %3232 = vst [vmem:[%s3196 + $0x44] sm:%s3188] %v3231
        %v3233 = vld [vmem:[%s3195 + $0x44] sm:%s3188]
        %3234 = vst [vmem:[%s3196 + $0x48] sm:%s3188] %v3233
        %v3235 = vld [vmem:[%s3195 + $0x4c] sm:%s3188]
        %3236 = vst [vmem:[%s3196 + $0x4c] sm:%s3188] %v3235
        %v3237 = vld [vmem:[%s3195 + $0x50] sm:%s3188]
        %3238 = vst [vmem:[%s3196 + $0x50] sm:%s3188] %v3237
        %v3239 = vld [vmem:[%s3195 + $0x58] sm:%s3188]
        %3240 = vst [vmem:[%s3196 + $0x54] sm:%s3188] %v3239
        %v3241 = vld [vmem:[%s3195 + $0x54] sm:%s3188]
        %3242 = vst [vmem:[%s3196 + $0x58] sm:%s3188] %v3241
        %v3243 = vld [vmem:[%s3195 + $0x5c] sm:%s3188]
        %3244 = vst [vmem:[%s3196 + $0x5c] sm:%s3188] %v3243
        %v3245 = vld [vmem:[%s3195 + $0x60] sm:%s3188]
        %3246 = vst [vmem:[%s3196 + $0x60] sm:%s3188] %v3245
        %v3247 = vld [vmem:[%s3195 + $0x68] sm:%s3188]
        %3248 = vst [vmem:[%s3196 + $0x64] sm:%s3188] %v3247
        %v3249 = vld [vmem:[%s3195 + $0x64] sm:%s3188]
        %3250 = vst [vmem:[%s3196 + $0x68] sm:%s3188] %v3249
        %v3251 = vld [vmem:[%s3195 + $0x6c] sm:%s3188]
        %3252 = vst [vmem:[%s3196 + $0x6c] sm:%s3188] %v3251
        %v3253 = vld [vmem:[%s3195 + $0x70] sm:%s3188]
        %3254 = vst [vmem:[%s3196 + $0x70] sm:%s3188] %v3253
        %v3255 = vld [vmem:[%s3195 + $0x78] sm:%s3188]
        %3256 = vst [vmem:[%s3196 + $0x74] sm:%s3188] %v3255
        %v3257 = vld [vmem:[%s3195 + $0x74] sm:%s3188]
        %3258 = vst [vmem:[%s3196 + $0x78] sm:%s3188] %v3257
        %v3259 = vld [vmem:[%s3195 + $0x7c] sm:%s3188]
        %3260 = vst [vmem:[%s3196 + $0x7c] sm:%s3188] %v3259
        %v3261 = vld [vmem:[%s3195 + $0x80] sm:%s3188]
        %3262 = vst [vmem:[%s3196 + $0x80] sm:%s3188] %v3261
        %v3263 = vld [vmem:[%s3195 + $0x88] sm:%s3188]
        %3264 = vst [vmem:[%s3196 + $0x84] sm:%s3188] %v3263
        %v3265 = vld [vmem:[%s3195 + $0x84] sm:%s3188]
        %3266 = vst [vmem:[%s3196 + $0x88] sm:%s3188] %v3265
        %v3267 = vld [vmem:[%s3195 + $0x8c] sm:%s3188]
        %3268 = vst [vmem:[%s3196 + $0x8c] sm:%s3188] %v3267
        %v3269 = vld [vmem:[%s3195 + $0x90] sm:%s3188]
        %3270 = vst [vmem:[%s3196 + $0x90] sm:%s3188] %v3269
        %v3271 = vld [vmem:[%s3195 + $0x98] sm:%s3188]
        %3272 = vst [vmem:[%s3196 + $0x94] sm:%s3188] %v3271
        %v3273 = vld [vmem:[%s3195 + $0x94] sm:%s3188]
        %3274 = vst [vmem:[%s3196 + $0x98] sm:%s3188] %v3273
        %v3275 = vld [vmem:[%s3195 + $0x9c] sm:%s3188]
        %3276 = vst [vmem:[%s3196 + $0x9c] sm:%s3188] %v3275
        %v3277 = vld [vmem:[%s3195 + $0xa0] sm:%s3188]
        %3278 = vst [vmem:[%s3196 + $0xa0] sm:%s3188] %v3277
        %v3279 = vld [vmem:[%s3195 + $0xa8] sm:%s3188]
        %3280 = vst [vmem:[%s3196 + $0xa4] sm:%s3188] %v3279
        %v3281 = vld [vmem:[%s3195 + $0xa4] sm:%s3188]
        %3282 = vst [vmem:[%s3196 + $0xa8] sm:%s3188] %v3281
        %v3283 = vld [vmem:[%s3195 + $0xac] sm:%s3188]
        %3284 = vst [vmem:[%s3196 + $0xac] sm:%s3188] %v3283
        %v3285 = vld [vmem:[%s3195 + $0xb0] sm:%s3188]
        %3286 = vst [vmem:[%s3196 + $0xb0] sm:%s3188] %v3285
        %v3287 = vld [vmem:[%s3195 + $0xb8] sm:%s3188]
        %3288 = vst [vmem:[%s3196 + $0xb4] sm:%s3188] %v3287
        %v3289 = vld [vmem:[%s3195 + $0xb4] sm:%s3188]
        %3290 = vst [vmem:[%s3196 + $0xb8] sm:%s3188] %v3289
        %v3291 = vld [vmem:[%s3195 + $0xbc] sm:%s3188]
        %3292 = vst [vmem:[%s3196 + $0xbc] sm:%s3188] %v3291
        %v3293 = vld [vmem:[%s3195 + $0xc0] sm:%s3188]
        %3294 = vst [vmem:[%s3196 + $0xc0] sm:%s3188] %v3293
        %v3295 = vld [vmem:[%s3195 + $0xc8] sm:%s3188]
        %3296 = vst [vmem:[%s3196 + $0xc4] sm:%s3188] %v3295
        %v3297 = vld [vmem:[%s3195 + $0xc4] sm:%s3188]
        %3298 = vst [vmem:[%s3196 + $0xc8] sm:%s3188] %v3297
        %v3299 = vld [vmem:[%s3195 + $0xcc] sm:%s3188]
        %3300 = vst [vmem:[%s3196 + $0xcc] sm:%s3188] %v3299
        %v3301 = vld [vmem:[%s3195 + $0xd0] sm:%s3188]
        %3302 = vst [vmem:[%s3196 + $0xd0] sm:%s3188] %v3301
        %v3303 = vld [vmem:[%s3195 + $0xd8] sm:%s3188]
        %3304 = vst [vmem:[%s3196 + $0xd4] sm:%s3188] %v3303
        %v3305 = vld [vmem:[%s3195 + $0xd4] sm:%s3188]
        %3306 = vst [vmem:[%s3196 + $0xd8] sm:%s3188] %v3305
        %v3307 = vld [vmem:[%s3195 + $0xdc] sm:%s3188]
        %3308 = vst [vmem:[%s3196 + $0xdc] sm:%s3188] %v3307
        %v3309 = vld [vmem:[%s3195 + $0xe0] sm:%s3188]
        %3310 = vst [vmem:[%s3196 + $0xe0] sm:%s3188] %v3309
        %v3311 = vld [vmem:[%s3195 + $0xe8] sm:%s3188]
        %3312 = vst [vmem:[%s3196 + $0xe4] sm:%s3188] %v3311
        %v3313 = vld [vmem:[%s3195 + $0xe4] sm:%s3188]
        %3314 = vst [vmem:[%s3196 + $0xe8] sm:%s3188] %v3313
        %v3315 = vld [vmem:[%s3195 + $0xec] sm:%s3188]
        %3316 = vst [vmem:[%s3196 + $0xec] sm:%s3188] %v3315
        %v3317 = vld [vmem:[%s3195 + $0xf0] sm:%s3188]
        %3318 = vst [vmem:[%s3196 + $0xf0] sm:%s3188] %v3317
        %v3319 = vld [vmem:[%s3195 + $0xf8] sm:%s3188]
        %3320 = vst [vmem:[%s3196 + $0xf4] sm:%s3188] %v3319
        %v3321 = vld [vmem:[%s3195 + $0xf4] sm:%s3188]
        %3322 = vst [vmem:[%s3196 + $0xf8] sm:%s3188] %v3321
        %v3323 = vld [vmem:[%s3195 + $0xfc] sm:%s3188]
        %3324 = vst [vmem:[%s3196 + $0xfc] sm:%s3188] %v3323
      $region144: #{resgcn_forward.1} parent=138 // loop_footer
        %s3194 = sadd.s32 1, %s3190
      $region145: #{resgcn_forward.1} parent=138 // loop_footer_branch
        %3189 = sbr.rel target = $region141
      $region146: #{resgcn_forward.1} parent=138 // loop_exit
        _
    $region139: #{resgcn_forward.1} parent=1 // pred_fallthru
      _
    // Predicated region
    $region165: #{resgcn_forward.1} parent=1 // pred_check
      _
    $region166: #{resgcn_forward.1} parent=1 // pred_check_branch
      %3482 = sbr.rel (0) target = $region168
    $region167: #{resgcn_forward.1} parent=1 // pred_region
      %3483 = vsyncadd [#allocation6], 4096
    $region168: #{resgcn_forward.1} parent=1 // pred_fallthru
      _
    %v3484 = vld [vmem:[#allocation3] sm:$0xff]
    %v3485 = vld [vmem:[#allocation3 + $0x8] sm:$0xff]
    %v3486 = vld [vmem:[#allocation3 + $0x10] sm:$0xff]
    %v3487 = vld [vmem:[#allocation3 + $0x18] sm:$0xff]
    %v3488 = vld [vmem:[#allocation3 + $0x20] sm:$0xff]
    %v3489 = vld [vmem:[#allocation3 + $0x28] sm:$0xff]
    %v3490 = vld [vmem:[#allocation3 + $0x30] sm:$0xff]
    %v3491 = vld [vmem:[#allocation3 + $0x38] sm:$0xff]
    %v3492 = vld [vmem:[#allocation3 + $0x40] sm:$0xff]
    %v3493 = vld [vmem:[#allocation3 + $0x48] sm:$0xff]
    %v3494 = vld [vmem:[#allocation3 + $0x50] sm:$0xff]
    %v3495 = vld [vmem:[#allocation3 + $0x58] sm:$0xff]
    %v3496 = vld [vmem:[#allocation3 + $0x60] sm:$0xff]
    %v3497 = vld [vmem:[#allocation3 + $0x68] sm:$0xff]
    %v3498 = vld [vmem:[#allocation3 + $0x70] sm:$0xff]
    %v3499 = vld [vmem:[#allocation3 + $0x78] sm:$0xff]
    %v3500 = vld [vmem:[#allocation3 + $0x80] sm:$0xff]
    %v3501 = vld [vmem:[#allocation3 + $0x88] sm:$0xff]
    %v3502 = vld [vmem:[#allocation3 + $0x90] sm:$0xff]
    %v3503 = vld [vmem:[#allocation3 + $0x98] sm:$0xff]
    %v3504 = vld [vmem:[#allocation3 + $0xa0] sm:$0xff]
    %v3505 = vld [vmem:[#allocation3 + $0xa8] sm:$0xff]
    %v3506 = vld [vmem:[#allocation3 + $0xb0] sm:$0xff]
    %v3507 = vld [vmem:[#allocation3 + $0xb8] sm:$0xff]
    %v3508 = vld [vmem:[#allocation3 + $0xc0] sm:$0xff]
    %v3509 = vld [vmem:[#allocation3 + $0xc8] sm:$0xff]
    %v3510 = vld [vmem:[#allocation3 + $0xd0] sm:$0xff]
    %v3511 = vld [vmem:[#allocation3 + $0xd8] sm:$0xff]
    %v3512 = vld [vmem:[#allocation3 + $0xe0] sm:$0xff]
    %v3513 = vld [vmem:[#allocation3 + $0xe8] sm:$0xff]
    %v3514 = vld [vmem:[#allocation3 + $0xf0] sm:$0xff]
    %v3515 = vld [vmem:[#allocation3 + $0xf8] sm:$0xff]
    %v3516 = vpack.c.bf16 %v3485, %v3484
    %v3517 = vpack.c.bf16 %v3487, %v3486
    %v3518 = vpack.c.bf16 %v3489, %v3488
    %v3519 = vpack.c.bf16 %v3491, %v3490
    %v3520 = vpack.c.bf16 %v3493, %v3492
    %v3521 = vpack.c.bf16 %v3495, %v3494
    %v3522 = vpack.c.bf16 %v3497, %v3496
    %v3523 = vpack.c.bf16 %v3499, %v3498
    %v3524 = vpack.c.bf16 %v3501, %v3500
    %v3525 = vpack.c.bf16 %v3503, %v3502
    %v3526 = vpack.c.bf16 %v3505, %v3504
    %v3527 = vpack.c.bf16 %v3507, %v3506
    %v3528 = vpack.c.bf16 %v3509, %v3508
    %v3529 = vpack.c.bf16 %v3511, %v3510
    %v3530 = vpack.c.bf16 %v3513, %v3512
    %v3531 = vpack.c.bf16 %v3515, %v3514
    %3532 = vst [vmem:[#allocation4] sm:$0xff] %v3516
    %3533 = vst [vmem:[#allocation4 + $0x8] sm:$0xff] %v3517
    %3534 = vst [vmem:[#allocation4 + $0x10] sm:$0xff] %v3518
    %3535 = vst [vmem:[#allocation4 + $0x18] sm:$0xff] %v3519
    %3536 = vst [vmem:[#allocation4 + $0x20] sm:$0xff] %v3520
    %3537 = vst [vmem:[#allocation4 + $0x28] sm:$0xff] %v3521
    %3538 = vst [vmem:[#allocation4 + $0x30] sm:$0xff] %v3522
    %3539 = vst [vmem:[#allocation4 + $0x38] sm:$0xff] %v3523
    %3540 = vst [vmem:[#allocation4 + $0x40] sm:$0xff] %v3524
    %3541 = vst [vmem:[#allocation4 + $0x48] sm:$0xff] %v3525
    %3542 = vst [vmem:[#allocation4 + $0x50] sm:$0xff] %v3526
    %3543 = vst [vmem:[#allocation4 + $0x58] sm:$0xff] %v3527
    %3544 = vst [vmem:[#allocation4 + $0x60] sm:$0xff] %v3528
    %3545 = vst [vmem:[#allocation4 + $0x68] sm:$0xff] %v3529
    %3546 = vst [vmem:[#allocation4 + $0x70] sm:$0xff] %v3530
    %3547 = vst [vmem:[#allocation4 + $0x78] sm:$0xff] %v3531
    %v3548 = vadd.f32 %v3484, %v3485
    %v3549 = vadd.f32 %v3548, %v3486
    %v3550 = vadd.f32 %v3549, %v3487
    %v3551 = vadd.f32 %v3550, %v3488
    %v3552 = vadd.f32 %v3551, %v3489
    %v3553 = vadd.f32 %v3552, %v3490
    %v3554 = vadd.f32 %v3553, %v3491
    %v3555 = vadd.f32 %v3554, %v3492
    %v3556 = vadd.f32 %v3555, %v3493
    %v3557 = vadd.f32 %v3556, %v3494
    %v3558 = vadd.f32 %v3557, %v3495
    %v3559 = vadd.f32 %v3558, %v3496
    %v3560 = vadd.f32 %v3559, %v3497
    %v3561 = vadd.f32 %v3560, %v3498
    %v3562 = vadd.f32 %v3561, %v3499
    %v3563 = vadd.f32 %v3562, %v3500
    %v3564 = vadd.f32 %v3563, %v3501
    %v3565 = vadd.f32 %v3564, %v3502
    %v3566 = vadd.f32 %v3565, %v3503
    %v3567 = vadd.f32 %v3566, %v3504
    %v3568 = vadd.f32 %v3567, %v3505
    %v3569 = vadd.f32 %v3568, %v3506
    %v3570 = vadd.f32 %v3569, %v3507
    %v3571 = vadd.f32 %v3570, %v3508
    %v3572 = vadd.f32 %v3571, %v3509
    %v3573 = vadd.f32 %v3572, %v3510
    %v3574 = vadd.f32 %v3573, %v3511
    %v3575 = vadd.f32 %v3574, %v3512
    %v3576 = vadd.f32 %v3575, %v3513
    %v3577 = vadd.f32 %v3576, %v3514
    %v3578 = vadd.f32 %v3577, %v3515
    %v3579 = vrot.slane %v3578, 4
    %v3580 = vadd.f32 %v3578, %v3579
    %v3581 = vrot.slane %v3580, 2
    %v3582 = vadd.f32 %v3580, %v3581
    %v3583 = vrot.slane %v3582, 1
    %v3584 = vadd.f32 %v3582, %v3583
    %v3585 = vmul.f32 %v3484, %v3484
    %v3586 = vmul.f32 %v3485, %v3485
    %v3587 = vmul.f32 %v3486, %v3486
    %v3588 = vmul.f32 %v3487, %v3487
    %v3589 = vmul.f32 %v3488, %v3488
    %v3590 = vmul.f32 %v3489, %v3489
    %v3591 = vmul.f32 %v3490, %v3490
    %v3592 = vmul.f32 %v3491, %v3491
    %v3593 = vmul.f32 %v3492, %v3492
    %v3594 = vmul.f32 %v3493, %v3493
    %v3595 = vmul.f32 %v3494, %v3494
    %v3596 = vmul.f32 %v3495, %v3495
    %v3597 = vmul.f32 %v3496, %v3496
    %v3598 = vmul.f32 %v3497, %v3497
    %v3599 = vmul.f32 %v3498, %v3498
    %v3600 = vmul.f32 %v3499, %v3499
    %v3601 = vmul.f32 %v3500, %v3500
    %v3602 = vmul.f32 %v3501, %v3501
    %v3603 = vmul.f32 %v3502, %v3502
    %v3604 = vmul.f32 %v3503, %v3503
    %v3605 = vmul.f32 %v3504, %v3504
    %v3606 = vmul.f32 %v3505, %v3505
    %v3607 = vmul.f32 %v3506, %v3506
    %v3608 = vmul.f32 %v3507, %v3507
    %v3609 = vmul.f32 %v3508, %v3508
    %v3610 = vmul.f32 %v3509, %v3509
    %v3611 = vmul.f32 %v3510, %v3510
    %v3612 = vmul.f32 %v3511, %v3511
    %v3613 = vmul.f32 %v3512, %v3512
    %v3614 = vmul.f32 %v3513, %v3513
    %v3615 = vmul.f32 %v3514, %v3514
    %v3616 = vmul.f32 %v3515, %v3515
    %v3617 = vadd.f32 %v3585, %v3586
    %v3618 = vadd.f32 %v3617, %v3587
    %v3619 = vadd.f32 %v3618, %v3588
    %v3620 = vadd.f32 %v3619, %v3589
    %v3621 = vadd.f32 %v3620, %v3590
    %v3622 = vadd.f32 %v3621, %v3591
    %v3623 = vadd.f32 %v3622, %v3592
    %v3624 = vadd.f32 %v3623, %v3593
    %v3625 = vadd.f32 %v3624, %v3594
    %v3626 = vadd.f32 %v3625, %v3595
    %v3627 = vadd.f32 %v3626, %v3596
    %v3628 = vadd.f32 %v3627, %v3597
    %v3629 = vadd.f32 %v3628, %v3598
    %v3630 = vadd.f32 %v3629, %v3599
    %v3631 = vadd.f32 %v3630, %v3600
    %v3632 = vadd.f32 %v3631, %v3601
    %v3633 = vadd.f32 %v3632, %v3602
    %v3634 = vadd.f32 %v3633, %v3603
    %v3635 = vadd.f32 %v3634, %v3604
    %v3636 = vadd.f32 %v3635, %v3605
    %v3637 = vadd.f32 %v3636, %v3606
    %v3638 = vadd.f32 %v3637, %v3607
    %v3639 = vadd.f32 %v3638, %v3608
    %v3640 = vadd.f32 %v3639, %v3609
    %v3641 = vadd.f32 %v3640, %v3610
    %v3642 = vadd.f32 %v3641, %v3611
    %v3643 = vadd.f32 %v3642, %v3612
    %v3644 = vadd.f32 %v3643, %v3613
    %v3645 = vadd.f32 %v3644, %v3614
    %v3646 = vadd.f32 %v3645, %v3615
    %v3647 = vadd.f32 %v3646, %v3616
    %v3648 = vrot.slane %v3647, 4
    %v3649 = vadd.f32 %v3647, %v3648
    %v3650 = vrot.slane %v3649, 2
    %v3651 = vadd.f32 %v3649, %v3650
    %v3652 = vrot.slane %v3651, 1
    %v3653 = vadd.f32 %v3651, %v3652
    %v3654 = vmul.f32 %v3584, 0.0625
    %v3655 = vmul.f32 %v3653, 0.0625
    %v3656 = vmul.f32 %v3654, %v3654
    %v3657 = vsub.f32 %v3655, %v3656
    %v3658 = vmax.f32 %v3657, 0.0
    %s3659 = scalar_lea.vmem %s7, 2
    %v3660 = vld [vmem:[%s3659] sm:$0x1]
    %v3661 = vadd.f32 %v3658, 1e-05
    %v3662 = vrsqrt.pop %v3661
    %v3663 = vmul.f32 %v3660, %v3662
    %s3664 = scalar_lea.vmem %s8, 2
    %v3665 = vld [vmem:[%s3664] sm:$0x1]
    %v3666 = vmul.f32 %v3654, %v3663
    %v3667 = vsub.f32 %v3665, %v3666
    %s3668 = scalar_lea.vmem %s5, 256
    %v3669 = vld [vmem:[%s3668] sm:$0xff]
    %v3670 = vld [vmem:[%s3668 + $0x8] sm:$0xff]
    %v3671 = vld [vmem:[%s3668 + $0x10] sm:$0xff]
    %v3672 = vld [vmem:[%s3668 + $0x18] sm:$0xff]
    %v3673 = vld [vmem:[%s3668 + $0x20] sm:$0xff]
    %v3674 = vld [vmem:[%s3668 + $0x28] sm:$0xff]
    %v3675 = vld [vmem:[%s3668 + $0x30] sm:$0xff]
    %v3676 = vld [vmem:[%s3668 + $0x38] sm:$0xff]
    %v3677 = vld [vmem:[%s3668 + $0x40] sm:$0xff]
    %v3678 = vld [vmem:[%s3668 + $0x48] sm:$0xff]
    %v3679 = vld [vmem:[%s3668 + $0x50] sm:$0xff]
    %v3680 = vld [vmem:[%s3668 + $0x58] sm:$0xff]
    %v3681 = vld [vmem:[%s3668 + $0x60] sm:$0xff]
    %v3682 = vld [vmem:[%s3668 + $0x68] sm:$0xff]
    %v3683 = vld [vmem:[%s3668 + $0x70] sm:$0xff]
    %v3684 = vld [vmem:[%s3668 + $0x78] sm:$0xff]
    %3685 = vmatprep.subr.mxu0 0.0
    %3686 = vmatpush1.msra.mxu0 %v3669
    %3687 = vmatprep.subr.mxu0 0.0
    %3688 = vmatpush1.msra.mxu0 %v3670
    %3689 = vmatprep.subr.mxu0 0.0
    %3690 = vmatpush1.msra.mxu0 %v3671
    %3691 = vmatprep.subr.mxu0 0.0
    %3692 = vmatpush1.msra.mxu0 %v3672
    %3693 = vmatprep.subr.mxu0 0.0
    %3694 = vmatpush1.msra.mxu0 %v3673
    %3695 = vmatprep.subr.mxu0 0.0
    %3696 = vmatpush1.msra.mxu0 %v3674
    %3697 = vmatprep.subr.mxu0 0.0
    %3698 = vmatpush1.msra.mxu0 %v3675
    %3699 = vmatprep.subr.mxu0 0.0
    %3700 = vmatpush1.msra.mxu0 %v3676
    %3701 = vmatprep.subr.mxu0 0.0
    %3702 = vmatpush1.msra.mxu0 %v3677
    %3703 = vmatprep.subr.mxu0 0.0
    %3704 = vmatpush1.msra.mxu0 %v3678
    %3705 = vmatprep.subr.mxu0 0.0
    %3706 = vmatpush1.msra.mxu0 %v3679
    %3707 = vmatprep.subr.mxu0 0.0
    %3708 = vmatpush1.msra.mxu0 %v3680
    %3709 = vmatprep.subr.mxu0 0.0
    %3710 = vmatpush1.msra.mxu0 %v3681
    %3711 = vmatprep.subr.mxu0 0.0
    %3712 = vmatpush1.msra.mxu0 %v3682
    %3713 = vmatprep.subr.mxu0 0.0
    %3714 = vmatpush1.msra.mxu0 %v3683
    %3715 = vmatprep.subr.mxu0 0.0
    %3716 = vmatpush1.msra.mxu0 %v3684
    %3717 = vmatprep.subr.mxu0 0.0
    %3718 = vmatpush1.msra.mxu0 0.0
    %3719 = vmatprep.subr.mxu0 0.0
    %3720 = vmatpush1.msra.mxu0 0.0
    %3721 = vmatprep.subr.mxu0 0.0
    %3722 = vmatpush1.msra.mxu0 0.0
    %3723 = vmatprep.subr.mxu0 0.0
    %3724 = vmatpush1.msra.mxu0 0.0
    %3725 = vmatprep.subr.mxu0 0.0
    %3726 = vmatpush1.msra.mxu0 0.0
    %3727 = vmatprep.subr.mxu0 0.0
    %3728 = vmatpush1.msra.mxu0 0.0
    %3729 = vmatprep.subr.mxu0 0.0
    %3730 = vmatpush1.msra.mxu0 0.0
    %3731 = vmatprep.subr.mxu0 0.0
    %3732 = vmatpush1.msra.mxu0 0.0
    %3733 = vmatprep.subr.mxu0 0.0
    %3734 = vmatpush1.msra.mxu0 0.0
    %3735 = vmatprep.subr.mxu0 0.0
    %3736 = vmatpush1.msra.mxu0 0.0
    %3737 = vmatprep.subr.mxu0 0.0
    %3738 = vmatpush1.msra.mxu0 0.0
    %3739 = vmatprep.subr.mxu0 0.0
    %3740 = vmatpush1.msra.mxu0 0.0
    %3741 = vmatprep.subr.mxu0 0.0
    %3742 = vmatpush1.msra.mxu0 0.0
    %3743 = vmatprep.subr.mxu0 0.0
    %3744 = vmatpush1.msra.mxu0 0.0
    %3745 = vmatprep.subr.mxu0 0.0
    %3746 = vmatpush1.msra.mxu0 0.0
    %3747 = vmatprep.subr.mxu0 0.0
    %3748 = vmatpush1.msra.mxu0 0.0
    %3749 = vmatprep.mubr.f32.mxu0 0.0
    %3750 = vmatmul.mubr.f32.gmra.mrb[0].mxu0 %v3667
    %v3751 = vpop.f32.mrb[0].mxu0
    %v3752 = vadd.f32 0.0, %v3751
    %v3753 = vpop.f32.mrb[0].mxu0
    %3754 = vdwg.mxu0
    %s3755 = scalar_lea.vmem %s6, 2
    %v3756 = vld [vmem:[%s3755] sm:$0x1]
    %v3757 = vpack.c.bf16 %v3670, %v3669
    %v3758 = vpack.c.bf16 %v3672, %v3671
    %v3759 = vpack.c.bf16 %v3674, %v3673
    %v3760 = vpack.c.bf16 %v3676, %v3675
    %v3761 = vpack.c.bf16 %v3678, %v3677
    %v3762 = vpack.c.bf16 %v3680, %v3679
    %v3763 = vpack.c.bf16 %v3682, %v3681
    %v3764 = vpack.c.bf16 %v3684, %v3683
    %s3765 = sshll.u32 %s634, 4
    %3766 = dma.done [#allocation6], %s3765
    %v3767 = vld [vmem:[#allocation5] sm:$0xff]
    %v3768 = vld [vmem:[#allocation5 + $0x8] sm:$0xff]
    %v3769 = vld [vmem:[#allocation5 + $0x10] sm:$0xff]
    %v3770 = vld [vmem:[#allocation5 + $0x18] sm:$0xff]
    %v3771 = vld [vmem:[#allocation5 + $0x20] sm:$0xff]
    %v3772 = vld [vmem:[#allocation5 + $0x28] sm:$0xff]
    %v3773 = vld [vmem:[#allocation5 + $0x30] sm:$0xff]
    %v3774 = vld [vmem:[#allocation5 + $0x38] sm:$0xff]
    %v3775 = vld [vmem:[#allocation5 + $0x40] sm:$0xff]
    %v3776 = vld [vmem:[#allocation5 + $0x48] sm:$0xff]
    %v3777 = vld [vmem:[#allocation5 + $0x50] sm:$0xff]
    %v3778 = vld [vmem:[#allocation5 + $0x58] sm:$0xff]
    %v3779 = vld [vmem:[#allocation5 + $0x60] sm:$0xff]
    %v3780 = vld [vmem:[#allocation5 + $0x68] sm:$0xff]
    %v3781 = vld [vmem:[#allocation5 + $0x70] sm:$0xff]
    %v3782 = vld [vmem:[#allocation5 + $0x78] sm:$0xff]
    %v3783 = vld [vmem:[#allocation5 + $0x80] sm:$0xff]
    %v3784 = vld [vmem:[#allocation5 + $0x88] sm:$0xff]
    %v3785 = vld [vmem:[#allocation5 + $0x90] sm:$0xff]
    %v3786 = vld [vmem:[#allocation5 + $0x98] sm:$0xff]
    %v3787 = vld [vmem:[#allocation5 + $0xa0] sm:$0xff]
    %v3788 = vld [vmem:[#allocation5 + $0xa8] sm:$0xff]
    %v3789 = vld [vmem:[#allocation5 + $0xb0] sm:$0xff]
    %v3790 = vld [vmem:[#allocation5 + $0xb8] sm:$0xff]
    %v3791 = vld [vmem:[#allocation5 + $0xc0] sm:$0xff]
    %v3792 = vld [vmem:[#allocation5 + $0xc8] sm:$0xff]
    %v3793 = vld [vmem:[#allocation5 + $0xd0] sm:$0xff]
    %v3794 = vld [vmem:[#allocation5 + $0xd8] sm:$0xff]
    %v3795 = vld [vmem:[#allocation5 + $0xe0] sm:$0xff]
    %v3796 = vld [vmem:[#allocation5 + $0xe8] sm:$0xff]
    %v3797 = vld [vmem:[#allocation5 + $0xf0] sm:$0xff]
    %v3798 = vld [vmem:[#allocation5 + $0xf8] sm:$0xff]
    %v3799 = vld [vmem:[#allocation4] sm:$0xff]
    %v3800 = vld [vmem:[#allocation4 + $0x8] sm:$0xff]
    %v3801 = vld [vmem:[#allocation4 + $0x10] sm:$0xff]
    %v3802 = vld [vmem:[#allocation4 + $0x18] sm:$0xff]
    %v3803 = vld [vmem:[#allocation4 + $0x20] sm:$0xff]
    %v3804 = vld [vmem:[#allocation4 + $0x28] sm:$0xff]
    %v3805 = vld [vmem:[#allocation4 + $0x30] sm:$0xff]
    %v3806 = vld [vmem:[#allocation4 + $0x38] sm:$0xff]
    %v3807 = vld [vmem:[#allocation4 + $0x40] sm:$0xff]
    %v3808 = vld [vmem:[#allocation4 + $0x48] sm:$0xff]
    %v3809 = vld [vmem:[#allocation4 + $0x50] sm:$0xff]
    %v3810 = vld [vmem:[#allocation4 + $0x58] sm:$0xff]
    %v3811 = vld [vmem:[#allocation4 + $0x60] sm:$0xff]
    %v3812 = vld [vmem:[#allocation4 + $0x68] sm:$0xff]
    %v3813 = vld [vmem:[#allocation4 + $0x70] sm:$0xff]
    %v3814 = vld [vmem:[#allocation4 + $0x78] sm:$0xff]
    %3815 = vmatprep.subr.bf16.mxu0 0
    %3816 = vmatpush1.bf16.msra.mxu0 %v3799
    %3817 = vmatprep.subr.bf16.mxu0 0
    %3818 = vmatpush1.bf16.msra.mxu0 %v3800
    %3819 = vmatprep.subr.bf16.mxu0 0
    %3820 = vmatpush1.bf16.msra.mxu0 %v3801
    %3821 = vmatprep.subr.bf16.mxu0 0
    %3822 = vmatpush1.bf16.msra.mxu0 %v3802
    %3823 = vmatprep.subr.bf16.mxu0 0
    %3824 = vmatpush1.bf16.msra.mxu0 %v3803
    %3825 = vmatprep.subr.bf16.mxu0 0
    %3826 = vmatpush1.bf16.msra.mxu0 %v3804
    %3827 = vmatprep.subr.bf16.mxu0 0
    %3828 = vmatpush1.bf16.msra.mxu0 %v3805
    %3829 = vmatprep.subr.bf16.mxu0 0
    %3830 = vmatpush1.bf16.msra.mxu0 %v3806
    %3831 = vmatprep.subr.bf16.mxu0 0
    %3832 = vmatpush1.bf16.msra.mxu0 %v3807
    %3833 = vmatprep.subr.bf16.mxu0 0
    %3834 = vmatpush1.bf16.msra.mxu0 %v3808
    %3835 = vmatprep.subr.bf16.mxu0 0
    %3836 = vmatpush1.bf16.msra.mxu0 %v3809
    %3837 = vmatprep.subr.bf16.mxu0 0
    %3838 = vmatpush1.bf16.msra.mxu0 %v3810
    %3839 = vmatprep.subr.bf16.mxu0 0
    %3840 = vmatpush1.bf16.msra.mxu0 %v3811
    %3841 = vmatprep.subr.bf16.mxu0 0
    %3842 = vmatpush1.bf16.msra.mxu0 %v3812
    %3843 = vmatprep.subr.bf16.mxu0 0
    %3844 = vmatpush1.bf16.msra.mxu0 %v3813
    %3845 = vmatprep.subr.bf16.mxu0 0
    %3846 = vmatpush1.bf16.msra.mxu0 %v3814
    %3847 = vmatprep.mubr.bf16.mxu0 %v3768
    %3848 = vmatmul.mubr.bf16.gmra.mrb[0].mxu0 %v3767
    %v3849 = vpop.f32.mrb[0].mxu0
    %v3850 = vadd.f32 0.0, %v3849
    %v3851 = vpop.f32.mrb[0].mxu0
    %v3852 = vpop.f32.mrb[0].mxu0
    %v3853 = vadd.f32 0.0, %v3852
    %v3854 = vpop.f32.mrb[0].mxu0
    %3855 = vmatprep.mubr.bf16.mxu0 %v3770
    %3856 = vmatmul.mubr.bf16.gmra.mrb[0].mxu0 %v3769
    %v3857 = vpop.f32.mrb[0].mxu0
    %v3858 = vadd.f32 0.0, %v3857
    %v3859 = vpop.f32.mrb[0].mxu0
    %v3860 = vpop.f32.mrb[0].mxu0
    %v3861 = vadd.f32 0.0, %v3860
    %v3862 = vpop.f32.mrb[0].mxu0
    %3863 = vmatprep.mubr.bf16.mxu0 %v3772
    %3864 = vmatmul.mubr.bf16.gmra.mrb[0].mxu0 %v3771
    %v3865 = vpop.f32.mrb[0].mxu0
    %v3866 = vadd.f32 0.0, %v3865
    %v3867 = vpop.f32.mrb[0].mxu0
    %v3868 = vpop.f32.mrb[0].mxu0
    %v3869 = vadd.f32 0.0, %v3868
    %v3870 = vpop.f32.mrb[0].mxu0
    %3871 = vmatprep.mubr.bf16.mxu0 %v3774
    %3872 = vmatmul.mubr.bf16.gmra.mrb[0].mxu0 %v3773
    %v3873 = vpop.f32.mrb[0].mxu0
    %v3874 = vadd.f32 0.0, %v3873
    %v3875 = vpop.f32.mrb[0].mxu0
    %v3876 = vpop.f32.mrb[0].mxu0
    %v3877 = vadd.f32 0.0, %v3876
    %v3878 = vpop.f32.mrb[0].mxu0
    %3879 = vmatprep.mubr.bf16.mxu0 %v3776
    %3880 = vmatmul.mubr.bf16.gmra.mrb[0].mxu0 %v3775
    %v3881 = vpop.f32.mrb[0].mxu0
    %v3882 = vadd.f32 0.0, %v3881
    %v3883 = vpop.f32.mrb[0].mxu0
    %v3884 = vpop.f32.mrb[0].mxu0
    %v3885 = vadd.f32 0.0, %v3884
    %v3886 = vpop.f32.mrb[0].mxu0
    %3887 = vmatprep.mubr.bf16.mxu0 %v3778
    %3888 = vmatmul.mubr.bf16.gmra.mrb[0].mxu0 %v3777
    %v3889 = vpop.f32.mrb[0].mxu0
    %v3890 = vadd.f32 0.0, %v3889
    %v3891 = vpop.f32.mrb[0].mxu0
    %v3892 = vpop.f32.mrb[0].mxu0
    %v3893 = vadd.f32 0.0, %v3892
    %v3894 = vpop.f32.mrb[0].mxu0
    %3895 = vmatprep.mubr.bf16.mxu0 %v3780
    %3896 = vmatmul.mubr.bf16.gmra.mrb[0].mxu0 %v3779
    %v3897 = vpop.f32.mrb[0].mxu0
    %v3898 = vadd.f32 0.0, %v3897
    %v3899 = vpop.f32.mrb[0].mxu0
    %v3900 = vpop.f32.mrb[0].mxu0
    %v3901 = vadd.f32 0.0, %v3900
    %v3902 = vpop.f32.mrb[0].mxu0
    %3903 = vmatprep.mubr.bf16.mxu0 %v3782
    %3904 = vmatmul.mubr.bf16.gmra.mrb[0].mxu0 %v3781
    %v3905 = vpop.f32.mrb[0].mxu0
    %v3906 = vadd.f32 0.0, %v3905
    %v3907 = vpop.f32.mrb[0].mxu0
    %v3908 = vpop.f32.mrb[0].mxu0
    %v3909 = vadd.f32 0.0, %v3908
    %v3910 = vpop.f32.mrb[0].mxu0
    %3911 = vmatprep.mubr.bf16.mxu0 %v3784
    %3912 = vmatmul.mubr.bf16.gmra.mrb[0].mxu0 %v3783
    %v3913 = vpop.f32.mrb[0].mxu0
    %v3914 = vadd.f32 0.0, %v3913
    %v3915 = vpop.f32.mrb[0].mxu0
    %v3916 = vpop.f32.mrb[0].mxu0
    %v3917 = vadd.f32 0.0, %v3916
    %v3918 = vpop.f32.mrb[0].mxu0
    %3919 = vmatprep.mubr.bf16.mxu0 %v3786
    %3920 = vmatmul.mubr.bf16.gmra.mrb[0].mxu0 %v3785
    %v3921 = vpop.f32.mrb[0].mxu0
    %v3922 = vadd.f32 0.0, %v3921
    %v3923 = vpop.f32.mrb[0].mxu0
    %v3924 = vpop.f32.mrb[0].mxu0
    %v3925 = vadd.f32 0.0, %v3924
    %v3926 = vpop.f32.mrb[0].mxu0
    %3927 = vmatprep.mubr.bf16.mxu0 %v3788
    %3928 = vmatmul.mubr.bf16.gmra.mrb[0].mxu0 %v3787
    %v3929 = vpop.f32.mrb[0].mxu0
    %v3930 = vadd.f32 0.0, %v3929
    %v3931 = vpop.f32.mrb[0].mxu0
    %v3932 = vpop.f32.mrb[0].mxu0
    %v3933 = vadd.f32 0.0, %v3932
    %v3934 = vpop.f32.mrb[0].mxu0
    %3935 = vmatprep.mubr.bf16.mxu0 %v3790
    %3936 = vmatmul.mubr.bf16.gmra.mrb[0].mxu0 %v3789
    %v3937 = vpop.f32.mrb[0].mxu0
    %v3938 = vadd.f32 0.0, %v3937
    %v3939 = vpop.f32.mrb[0].mxu0
    %v3940 = vpop.f32.mrb[0].mxu0
    %v3941 = vadd.f32 0.0, %v3940
    %v3942 = vpop.f32.mrb[0].mxu0
    %3943 = vmatprep.mubr.bf16.mxu0 %v3792
    %3944 = vmatmul.mubr.bf16.gmra.mrb[0].mxu0 %v3791
    %v3945 = vpop.f32.mrb[0].mxu0
    %v3946 = vadd.f32 0.0, %v3945
    %v3947 = vpop.f32.mrb[0].mxu0
    %v3948 = vpop.f32.mrb[0].mxu0
    %v3949 = vadd.f32 0.0, %v3948
    %v3950 = vpop.f32.mrb[0].mxu0
    %3951 = vmatprep.mubr.bf16.mxu0 %v3794
    %3952 = vmatmul.mubr.bf16.gmra.mrb[0].mxu0 %v3793
    %v3953 = vpop.f32.mrb[0].mxu0
    %v3954 = vadd.f32 0.0, %v3953
    %v3955 = vpop.f32.mrb[0].mxu0
    %v3956 = vpop.f32.mrb[0].mxu0
    %v3957 = vadd.f32 0.0, %v3956
    %v3958 = vpop.f32.mrb[0].mxu0
    %3959 = vmatprep.mubr.bf16.mxu0 %v3796
    %3960 = vmatmul.mubr.bf16.gmra.mrb[0].mxu0 %v3795
    %v3961 = vpop.f32.mrb[0].mxu0
    %v3962 = vadd.f32 0.0, %v3961
    %v3963 = vpop.f32.mrb[0].mxu0
    %v3964 = vpop.f32.mrb[0].mxu0
    %v3965 = vadd.f32 0.0, %v3964
    %v3966 = vpop.f32.mrb[0].mxu0
    %3967 = vmatprep.mubr.bf16.mxu0 %v3798
    %3968 = vmatmul.mubr.bf16.gmra.mrb[0].mxu0 %v3797
    %v3969 = vpop.f32.mrb[0].mxu0
    %v3970 = vadd.f32 0.0, %v3969
    %v3971 = vpop.f32.mrb[0].mxu0
    %v3972 = vpop.f32.mrb[0].mxu0
    %v3973 = vadd.f32 0.0, %v3972
    %v3974 = vpop.f32.mrb[0].mxu0
    %3975 = vdwg.mxu0
    %v3977 = vlaneseq
    %v3978 = vshrl.u32 %v3977, 7
    %v3979 = vsub.s32 0, %v3978
    %v3980 = vrot.slane %v3663, %v3979
    %v3982 = vmul.f32 %v3850, %v3980
    %v3983 = vmul.f32 %v3853, %v3980
    %v3984 = vmul.f32 %v3858, %v3980
    %v3985 = vmul.f32 %v3861, %v3980
    %v3986 = vmul.f32 %v3866, %v3980
    %v3987 = vmul.f32 %v3869, %v3980
    %v3988 = vmul.f32 %v3874, %v3980
    %v3989 = vmul.f32 %v3877, %v3980
    %v3990 = vmul.f32 %v3882, %v3980
    %v3991 = vmul.f32 %v3885, %v3980
    %v3992 = vmul.f32 %v3890, %v3980
    %v3993 = vmul.f32 %v3893, %v3980
    %v3994 = vmul.f32 %v3898, %v3980
    %v3995 = vmul.f32 %v3901, %v3980
    %v3996 = vmul.f32 %v3906, %v3980
    %v3997 = vmul.f32 %v3909, %v3980
    %v3998 = vmul.f32 %v3914, %v3980
    %v3999 = vmul.f32 %v3917, %v3980
    %v4000 = vmul.f32 %v3922, %v3980
    %v4001 = vmul.f32 %v3925, %v3980
    %v4002 = vmul.f32 %v3930, %v3980
    %v4003 = vmul.f32 %v3933, %v3980
    %v4004 = vmul.f32 %v3938, %v3980
    %v4005 = vmul.f32 %v3941, %v3980
    %v4006 = vmul.f32 %v3946, %v3980
    %v4007 = vmul.f32 %v3949, %v3980
    %v4008 = vmul.f32 %v3954, %v3980
    %v4009 = vmul.f32 %v3957, %v3980
    %v4010 = vmul.f32 %v3962, %v3980
    %v4011 = vmul.f32 %v3965, %v3980
    %v4012 = vmul.f32 %v3970, %v3980
    %v4013 = vmul.f32 %v3973, %v3980
    %v4014 = vpack.c.bf16 %v3983, %v3982
    %v4015 = vpack.c.bf16 %v3985, %v3984
    %v4016 = vpack.c.bf16 %v3987, %v3986
    %v4017 = vpack.c.bf16 %v3989, %v3988
    %v4018 = vpack.c.bf16 %v3991, %v3990
    %v4019 = vpack.c.bf16 %v3993, %v3992
    %v4020 = vpack.c.bf16 %v3995, %v3994
    %v4021 = vpack.c.bf16 %v3997, %v3996
    %v4022 = vpack.c.bf16 %v3999, %v3998
    %v4023 = vpack.c.bf16 %v4001, %v4000
    %v4024 = vpack.c.bf16 %v4003, %v4002
    %v4025 = vpack.c.bf16 %v4005, %v4004
    %v4026 = vpack.c.bf16 %v4007, %v4006
    %v4027 = vpack.c.bf16 %v4009, %v4008
    %v4028 = vpack.c.bf16 %v4011, %v4010
    %v4029 = vpack.c.bf16 %v4013, %v4012
    %v4030 = vld [vmem:[%s2] sm:$0xff]
    %v4031 = vld [vmem:[%s2 + $0x8] sm:$0xff]
    %v4032 = vld [vmem:[%s2 + $0x10] sm:$0xff]
    %v4033 = vld [vmem:[%s2 + $0x18] sm:$0xff]
    %v4034 = vld [vmem:[%s2 + $0x20] sm:$0xff]
    %v4035 = vld [vmem:[%s2 + $0x28] sm:$0xff]
    %v4036 = vld [vmem:[%s2 + $0x30] sm:$0xff]
    %v4037 = vld [vmem:[%s2 + $0x38] sm:$0xff]
    %v4038 = vld [vmem:[%s2 + $0x40] sm:$0xff]
    %v4039 = vld [vmem:[%s2 + $0x48] sm:$0xff]
    %v4040 = vld [vmem:[%s2 + $0x50] sm:$0xff]
    %v4041 = vld [vmem:[%s2 + $0x58] sm:$0xff]
    %v4042 = vld [vmem:[%s2 + $0x60] sm:$0xff]
    %v4043 = vld [vmem:[%s2 + $0x68] sm:$0xff]
    %v4044 = vld [vmem:[%s2 + $0x70] sm:$0xff]
    %v4045 = vld [vmem:[%s2 + $0x78] sm:$0xff]
    %v4046 = vld [vmem:[%s2 + $0x80] sm:$0xff]
    %v4047 = vld [vmem:[%s2 + $0x88] sm:$0xff]
    %v4048 = vld [vmem:[%s2 + $0x90] sm:$0xff]
    %v4049 = vld [vmem:[%s2 + $0x98] sm:$0xff]
    %v4050 = vld [vmem:[%s2 + $0xa0] sm:$0xff]
    %v4051 = vld [vmem:[%s2 + $0xa8] sm:$0xff]
    %v4052 = vld [vmem:[%s2 + $0xb0] sm:$0xff]
    %v4053 = vld [vmem:[%s2 + $0xb8] sm:$0xff]
    %v4054 = vld [vmem:[%s2 + $0xc0] sm:$0xff]
    %v4055 = vld [vmem:[%s2 + $0xc8] sm:$0xff]
    %v4056 = vld [vmem:[%s2 + $0xd0] sm:$0xff]
    %v4057 = vld [vmem:[%s2 + $0xd8] sm:$0xff]
    %v4058 = vld [vmem:[%s2 + $0xe0] sm:$0xff]
    %v4059 = vld [vmem:[%s2 + $0xe8] sm:$0xff]
    %v4060 = vld [vmem:[%s2 + $0xf0] sm:$0xff]
    %v4061 = vld [vmem:[%s2 + $0xf8] sm:$0xff]
    %4063 = vset.pattern.permute.xlu0 0
    %4064 = vperm.xlu0 %4063, %v4030
    %v4065 = vpop.permute.xlu0 %4064
    %4068 = vset.pattern.permute.xlu0 0
    %4069 = vperm.xlu0 %4068, %v4031
    %v4070 = vpop.permute.xlu0 %4069
    %4073 = vset.pattern.permute.xlu0 0
    %4074 = vperm.xlu0 %4073, %v4032
    %v4075 = vpop.permute.xlu0 %4074
    %4078 = vset.pattern.permute.xlu0 0
    %4079 = vperm.xlu0 %4078, %v4033
    %v4080 = vpop.permute.xlu0 %4079
    %4083 = vset.pattern.permute.xlu0 0
    %4084 = vperm.xlu0 %4083, %v4034
    %v4085 = vpop.permute.xlu0 %4084
    %4088 = vset.pattern.permute.xlu0 0
    %4089 = vperm.xlu0 %4088, %v4035
    %v4090 = vpop.permute.xlu0 %4089
    %4093 = vset.pattern.permute.xlu0 0
    %4094 = vperm.xlu0 %4093, %v4036
    %v4095 = vpop.permute.xlu0 %4094
    %4098 = vset.pattern.permute.xlu0 0
    %4099 = vperm.xlu0 %4098, %v4037
    %v4100 = vpop.permute.xlu0 %4099
    %4103 = vset.pattern.permute.xlu0 0
    %4104 = vperm.xlu0 %4103, %v4038
    %v4105 = vpop.permute.xlu0 %4104
    %4108 = vset.pattern.permute.xlu0 0
    %4109 = vperm.xlu0 %4108, %v4039
    %v4110 = vpop.permute.xlu0 %4109
    %4113 = vset.pattern.permute.xlu0 0
    %4114 = vperm.xlu0 %4113, %v4040
    %v4115 = vpop.permute.xlu0 %4114
    %4118 = vset.pattern.permute.xlu0 0
    %4119 = vperm.xlu0 %4118, %v4041
    %v4120 = vpop.permute.xlu0 %4119
    %4123 = vset.pattern.permute.xlu0 0
    %4124 = vperm.xlu0 %4123, %v4042
    %v4125 = vpop.permute.xlu0 %4124
    %4128 = vset.pattern.permute.xlu0 0
    %4129 = vperm.xlu0 %4128, %v4043
    %v4130 = vpop.permute.xlu0 %4129
    %4133 = vset.pattern.permute.xlu0 0
    %4134 = vperm.xlu0 %4133, %v4044
    %v4135 = vpop.permute.xlu0 %4134
    %4138 = vset.pattern.permute.xlu0 0
    %4139 = vperm.xlu0 %4138, %v4045
    %v4140 = vpop.permute.xlu0 %4139
    %4143 = vset.pattern.permute.xlu0 0
    %4144 = vperm.xlu0 %4143, %v4046
    %v4145 = vpop.permute.xlu0 %4144
    %4148 = vset.pattern.permute.xlu0 0
    %4149 = vperm.xlu0 %4148, %v4047
    %v4150 = vpop.permute.xlu0 %4149
    %4153 = vset.pattern.permute.xlu0 0
    %4154 = vperm.xlu0 %4153, %v4048
    %v4155 = vpop.permute.xlu0 %4154
    %4158 = vset.pattern.permute.xlu0 0
    %4159 = vperm.xlu0 %4158, %v4049
    %v4160 = vpop.permute.xlu0 %4159
    %4163 = vset.pattern.permute.xlu0 0
    %4164 = vperm.xlu0 %4163, %v4050
    %v4165 = vpop.permute.xlu0 %4164
    %4168 = vset.pattern.permute.xlu0 0
    %4169 = vperm.xlu0 %4168, %v4051
    %v4170 = vpop.permute.xlu0 %4169
    %4173 = vset.pattern.permute.xlu0 0
    %4174 = vperm.xlu0 %4173, %v4052
    %v4175 = vpop.permute.xlu0 %4174
    %4178 = vset.pattern.permute.xlu0 0
    %4179 = vperm.xlu0 %4178, %v4053
    %v4180 = vpop.permute.xlu0 %4179
    %4183 = vset.pattern.permute.xlu0 0
    %4184 = vperm.xlu0 %4183, %v4054
    %v4185 = vpop.permute.xlu0 %4184
    %4188 = vset.pattern.permute.xlu0 0
    %4189 = vperm.xlu0 %4188, %v4055
    %v4190 = vpop.permute.xlu0 %4189
    %4193 = vset.pattern.permute.xlu0 0
    %4194 = vperm.xlu0 %4193, %v4056
    %v4195 = vpop.permute.xlu0 %4194
    %4198 = vset.pattern.permute.xlu0 0
    %4199 = vperm.xlu0 %4198, %v4057
    %v4200 = vpop.permute.xlu0 %4199
    %4203 = vset.pattern.permute.xlu0 0
    %4204 = vperm.xlu0 %4203, %v4058
    %v4205 = vpop.permute.xlu0 %4204
    %4208 = vset.pattern.permute.xlu0 0
    %4209 = vperm.xlu0 %4208, %v4059
    %v4210 = vpop.permute.xlu0 %4209
    %4213 = vset.pattern.permute.xlu0 0
    %4214 = vperm.xlu0 %4213, %v4060
    %v4215 = vpop.permute.xlu0 %4214
    %4218 = vset.pattern.permute.xlu0 0
    %4219 = vperm.xlu0 %4218, %v4061
    %v4220 = vpop.permute.xlu0 %4219
    %v4222 = vlaneseq
    %v4223 = vshrl.u32 %v4222, 7
    %v4224 = vsub.s32 0, %v4223
    %v4225 = vrot.slane %v3752, %v4224
    %v4226 = vmul.f32 %v4065, %v4225
    %v4227 = vmul.f32 %v4070, %v4225
    %v4228 = vmul.f32 %v4075, %v4225
    %v4229 = vmul.f32 %v4080, %v4225
    %v4230 = vmul.f32 %v4085, %v4225
    %v4231 = vmul.f32 %v4090, %v4225
    %v4232 = vmul.f32 %v4095, %v4225
    %v4233 = vmul.f32 %v4100, %v4225
    %v4234 = vmul.f32 %v4105, %v4225
    %v4235 = vmul.f32 %v4110, %v4225
    %v4236 = vmul.f32 %v4115, %v4225
    %v4237 = vmul.f32 %v4120, %v4225
    %v4238 = vmul.f32 %v4125, %v4225
    %v4239 = vmul.f32 %v4130, %v4225
    %v4240 = vmul.f32 %v4135, %v4225
    %v4241 = vmul.f32 %v4140, %v4225
    %v4242 = vmul.f32 %v4145, %v4225
    %v4243 = vmul.f32 %v4150, %v4225
    %v4244 = vmul.f32 %v4155, %v4225
    %v4245 = vmul.f32 %v4160, %v4225
    %v4246 = vmul.f32 %v4165, %v4225
    %v4247 = vmul.f32 %v4170, %v4225
    %v4248 = vmul.f32 %v4175, %v4225
    %v4249 = vmul.f32 %v4180, %v4225
    %v4250 = vmul.f32 %v4185, %v4225
    %v4251 = vmul.f32 %v4190, %v4225
    %v4252 = vmul.f32 %v4195, %v4225
    %v4253 = vmul.f32 %v4200, %v4225
    %v4254 = vmul.f32 %v4205, %v4225
    %v4255 = vmul.f32 %v4210, %v4225
    %v4256 = vmul.f32 %v4215, %v4225
    %v4257 = vmul.f32 %v4220, %v4225
    %4258 = vmatprep.subr.bf16.mxu0 0
    %4259 = vmatpush1.bf16.msra.mxu0 %v3757
    %4260 = vmatprep.subr.bf16.mxu0 0
    %4261 = vmatpush1.bf16.msra.mxu0 %v3758
    %4262 = vmatprep.subr.bf16.mxu0 0
    %4263 = vmatpush1.bf16.msra.mxu0 %v3759
    %4264 = vmatprep.subr.bf16.mxu0 0
    %4265 = vmatpush1.bf16.msra.mxu0 %v3760
    %4266 = vmatprep.subr.bf16.mxu0 0
    %4267 = vmatpush1.bf16.msra.mxu0 %v3761
    %4268 = vmatprep.subr.bf16.mxu0 0
    %4269 = vmatpush1.bf16.msra.mxu0 %v3762
    %4270 = vmatprep.subr.bf16.mxu0 0
    %4271 = vmatpush1.bf16.msra.mxu0 %v3763
    %4272 = vmatprep.subr.bf16.mxu0 0
    %4273 = vmatpush1.bf16.msra.mxu0 %v3764
    %4274 = vmatprep.subr.bf16.mxu0 0
    %4275 = vmatpush1.bf16.msra.mxu0 0
    %4276 = vmatprep.subr.bf16.mxu0 0
    %4277 = vmatpush1.bf16.msra.mxu0 0
    %4278 = vmatprep.subr.bf16.mxu0 0
    %4279 = vmatpush1.bf16.msra.mxu0 0
    %4280 = vmatprep.subr.bf16.mxu0 0
    %4281 = vmatpush1.bf16.msra.mxu0 0
    %4282 = vmatprep.subr.bf16.mxu0 0
    %4283 = vmatpush1.bf16.msra.mxu0 0
    %4284 = vmatprep.subr.bf16.mxu0 0
    %4285 = vmatpush1.bf16.msra.mxu0 0
    %4286 = vmatprep.subr.bf16.mxu0 0
    %4287 = vmatpush1.bf16.msra.mxu0 0
    %4288 = vmatprep.subr.bf16.mxu0 0
    %4289 = vmatpush1.bf16.msra.mxu0 0
    %4290 = vmatprep.mubr.bf16.mxu0 0
    %4291 = vmatmul.mubr.bf16.gmra.mrb[0].mxu0 %v4014
    %v4292 = vpop.f32.mrb[0].mxu0
    %v4293 = vadd.f32 %v4226, %v4292
    %v4294 = vpop.f32.mrb[0].mxu0
    %v4295 = vpop.f32.mrb[0].mxu0
    %v4296 = vadd.f32 %v4227, %v4295
    %v4297 = vpop.f32.mrb[0].mxu0
    %4298 = vmatprep.mubr.bf16.mxu0 0
    %4299 = vmatmul.mubr.bf16.gmra.mrb[0].mxu0 %v4015
    %v4300 = vpop.f32.mrb[0].mxu0
    %v4301 = vadd.f32 %v4228, %v4300
    %v4302 = vpop.f32.mrb[0].mxu0
    %v4303 = vpop.f32.mrb[0].mxu0
    %v4304 = vadd.f32 %v4229, %v4303
    %v4305 = vpop.f32.mrb[0].mxu0
    %4306 = vmatprep.mubr.bf16.mxu0 0
    %4307 = vmatmul.mubr.bf16.gmra.mrb[0].mxu0 %v4016
    %v4308 = vpop.f32.mrb[0].mxu0
    %v4309 = vadd.f32 %v4230, %v4308
    %v4310 = vpop.f32.mrb[0].mxu0
    %v4311 = vpop.f32.mrb[0].mxu0
    %v4312 = vadd.f32 %v4231, %v4311
    %v4313 = vpop.f32.mrb[0].mxu0
    %4314 = vmatprep.mubr.bf16.mxu0 0
    %4315 = vmatmul.mubr.bf16.gmra.mrb[0].mxu0 %v4017
    %v4316 = vpop.f32.mrb[0].mxu0
    %v4317 = vadd.f32 %v4232, %v4316
    %v4318 = vpop.f32.mrb[0].mxu0
    %v4319 = vpop.f32.mrb[0].mxu0
    %v4320 = vadd.f32 %v4233, %v4319
    %v4321 = vpop.f32.mrb[0].mxu0
    %4322 = vmatprep.mubr.bf16.mxu0 0
    %4323 = vmatmul.mubr.bf16.gmra.mrb[0].mxu0 %v4018
    %v4324 = vpop.f32.mrb[0].mxu0
    %v4325 = vadd.f32 %v4234, %v4324
    %v4326 = vpop.f32.mrb[0].mxu0
    %v4327 = vpop.f32.mrb[0].mxu0
    %v4328 = vadd.f32 %v4235, %v4327
    %v4329 = vpop.f32.mrb[0].mxu0
    %4330 = vmatprep.mubr.bf16.mxu0 0
    %4331 = vmatmul.mubr.bf16.gmra.mrb[0].mxu0 %v4019
    %v4332 = vpop.f32.mrb[0].mxu0
    %v4333 = vadd.f32 %v4236, %v4332
    %v4334 = vpop.f32.mrb[0].mxu0
    %v4335 = vpop.f32.mrb[0].mxu0
    %v4336 = vadd.f32 %v4237, %v4335
    %v4337 = vpop.f32.mrb[0].mxu0
    %4338 = vmatprep.mubr.bf16.mxu0 0
    %4339 = vmatmul.mubr.bf16.gmra.mrb[0].mxu0 %v4020
    %v4340 = vpop.f32.mrb[0].mxu0
    %v4341 = vadd.f32 %v4238, %v4340
    %v4342 = vpop.f32.mrb[0].mxu0
    %v4343 = vpop.f32.mrb[0].mxu0
    %v4344 = vadd.f32 %v4239, %v4343
    %v4345 = vpop.f32.mrb[0].mxu0
    %4346 = vmatprep.mubr.bf16.mxu0 0
    %4347 = vmatmul.mubr.bf16.gmra.mrb[0].mxu0 %v4021
    %v4348 = vpop.f32.mrb[0].mxu0
    %v4349 = vadd.f32 %v4240, %v4348
    %v4350 = vpop.f32.mrb[0].mxu0
    %v4351 = vpop.f32.mrb[0].mxu0
    %v4352 = vadd.f32 %v4241, %v4351
    %v4353 = vpop.f32.mrb[0].mxu0
    %4354 = vmatprep.mubr.bf16.mxu0 0
    %4355 = vmatmul.mubr.bf16.gmra.mrb[0].mxu0 %v4022
    %v4356 = vpop.f32.mrb[0].mxu0
    %v4357 = vadd.f32 %v4242, %v4356
    %v4358 = vpop.f32.mrb[0].mxu0
    %v4359 = vpop.f32.mrb[0].mxu0
    %v4360 = vadd.f32 %v4243, %v4359
    %v4361 = vpop.f32.mrb[0].mxu0
    %4362 = vmatprep.mubr.bf16.mxu0 0
    %4363 = vmatmul.mubr.bf16.gmra.mrb[0].mxu0 %v4023
    %v4364 = vpop.f32.mrb[0].mxu0
    %v4365 = vadd.f32 %v4244, %v4364
    %v4366 = vpop.f32.mrb[0].mxu0
    %v4367 = vpop.f32.mrb[0].mxu0
    %v4368 = vadd.f32 %v4245, %v4367
    %v4369 = vpop.f32.mrb[0].mxu0
    %4370 = vmatprep.mubr.bf16.mxu0 0
    %4371 = vmatmul.mubr.bf16.gmra.mrb[0].mxu0 %v4024
    %v4372 = vpop.f32.mrb[0].mxu0
    %v4373 = vadd.f32 %v4246, %v4372
    %v4374 = vpop.f32.mrb[0].mxu0
    %v4375 = vpop.f32.mrb[0].mxu0
    %v4376 = vadd.f32 %v4247, %v4375
    %v4377 = vpop.f32.mrb[0].mxu0
    %4378 = vmatprep.mubr.bf16.mxu0 0
    %4379 = vmatmul.mubr.bf16.gmra.mrb[0].mxu0 %v4025
    %v4380 = vpop.f32.mrb[0].mxu0
    %v4381 = vadd.f32 %v4248, %v4380
    %v4382 = vpop.f32.mrb[0].mxu0
    %v4383 = vpop.f32.mrb[0].mxu0
    %v4384 = vadd.f32 %v4249, %v4383
    %v4385 = vpop.f32.mrb[0].mxu0
    %4386 = vmatprep.mubr.bf16.mxu0 0
    %4387 = vmatmul.mubr.bf16.gmra.mrb[0].mxu0 %v4026
    %v4388 = vpop.f32.mrb[0].mxu0
    %v4389 = vadd.f32 %v4250, %v4388
    %v4390 = vpop.f32.mrb[0].mxu0
    %v4391 = vpop.f32.mrb[0].mxu0
    %v4392 = vadd.f32 %v4251, %v4391
    %v4393 = vpop.f32.mrb[0].mxu0
    %4394 = vmatprep.mubr.bf16.mxu0 0
    %4395 = vmatmul.mubr.bf16.gmra.mrb[0].mxu0 %v4027
    %v4396 = vpop.f32.mrb[0].mxu0
    %v4397 = vadd.f32 %v4252, %v4396
    %v4398 = vpop.f32.mrb[0].mxu0
    %v4399 = vpop.f32.mrb[0].mxu0
    %v4400 = vadd.f32 %v4253, %v4399
    %v4401 = vpop.f32.mrb[0].mxu0
    %4402 = vmatprep.mubr.bf16.mxu0 0
    %4403 = vmatmul.mubr.bf16.gmra.mrb[0].mxu0 %v4028
    %v4404 = vpop.f32.mrb[0].mxu0
    %v4405 = vadd.f32 %v4254, %v4404
    %v4406 = vpop.f32.mrb[0].mxu0
    %v4407 = vpop.f32.mrb[0].mxu0
    %v4408 = vadd.f32 %v4255, %v4407
    %v4409 = vpop.f32.mrb[0].mxu0
    %4410 = vmatprep.mubr.bf16.mxu0 0
    %4411 = vmatmul.mubr.bf16.gmra.mrb[0].mxu0 %v4029
    %v4412 = vpop.f32.mrb[0].mxu0
    %v4413 = vadd.f32 %v4256, %v4412
    %v4414 = vpop.f32.mrb[0].mxu0
    %v4415 = vpop.f32.mrb[0].mxu0
    %v4416 = vadd.f32 %v4257, %v4415
    %v4417 = vpop.f32.mrb[0].mxu0
    %4418 = vdwg.mxu0
    %v4420 = vlaneseq
    %v4421 = vshrl.u32 %v4420, 7
    %v4422 = vsub.s32 0, %v4421
    %v4423 = vrot.slane %v3756, %v4422
    %v4425 = vadd.f32 %v4293, %v4423
    %v4426 = vadd.f32 %v4296, %v4423
    %v4427 = vadd.f32 %v4301, %v4423
    %v4428 = vadd.f32 %v4304, %v4423
    %v4429 = vadd.f32 %v4309, %v4423
    %v4430 = vadd.f32 %v4312, %v4423
    %v4431 = vadd.f32 %v4317, %v4423
    %v4432 = vadd.f32 %v4320, %v4423
    %v4433 = vadd.f32 %v4325, %v4423
    %v4434 = vadd.f32 %v4328, %v4423
    %v4435 = vadd.f32 %v4333, %v4423
    %v4436 = vadd.f32 %v4336, %v4423
    %v4437 = vadd.f32 %v4341, %v4423
    %v4438 = vadd.f32 %v4344, %v4423
    %v4439 = vadd.f32 %v4349, %v4423
    %v4440 = vadd.f32 %v4352, %v4423
    %v4441 = vadd.f32 %v4357, %v4423
    %v4442 = vadd.f32 %v4360, %v4423
    %v4443 = vadd.f32 %v4365, %v4423
    %v4444 = vadd.f32 %v4368, %v4423
    %v4445 = vadd.f32 %v4373, %v4423
    %v4446 = vadd.f32 %v4376, %v4423
    %v4447 = vadd.f32 %v4381, %v4423
    %v4448 = vadd.f32 %v4384, %v4423
    %v4449 = vadd.f32 %v4389, %v4423
    %v4450 = vadd.f32 %v4392, %v4423
    %v4451 = vadd.f32 %v4397, %v4423
    %v4452 = vadd.f32 %v4400, %v4423
    %v4453 = vadd.f32 %v4405, %v4423
    %v4454 = vadd.f32 %v4408, %v4423
    %v4455 = vadd.f32 %v4413, %v4423
    %v4456 = vadd.f32 %v4416, %v4423
    %v4457 = vmax.f32 %v4425, 0.0
    %v4458 = vmax.f32 %v4426, 0.0
    %v4459 = vmax.f32 %v4427, 0.0
    %v4460 = vmax.f32 %v4428, 0.0
    %v4461 = vmax.f32 %v4429, 0.0
    %v4462 = vmax.f32 %v4430, 0.0
    %v4463 = vmax.f32 %v4431, 0.0
    %v4464 = vmax.f32 %v4432, 0.0
    %v4465 = vmax.f32 %v4433, 0.0
    %v4466 = vmax.f32 %v4434, 0.0
    %v4467 = vmax.f32 %v4435, 0.0
    %v4468 = vmax.f32 %v4436, 0.0
    %v4469 = vmax.f32 %v4437, 0.0
    %v4470 = vmax.f32 %v4438, 0.0
    %v4471 = vmax.f32 %v4439, 0.0
    %v4472 = vmax.f32 %v4440, 0.0
    %v4473 = vmax.f32 %v4441, 0.0
    %v4474 = vmax.f32 %v4442, 0.0
    %v4475 = vmax.f32 %v4443, 0.0
    %v4476 = vmax.f32 %v4444, 0.0
    %v4477 = vmax.f32 %v4445, 0.0
    %v4478 = vmax.f32 %v4446, 0.0
    %v4479 = vmax.f32 %v4447, 0.0
    %v4480 = vmax.f32 %v4448, 0.0
    %v4481 = vmax.f32 %v4449, 0.0
    %v4482 = vmax.f32 %v4450, 0.0
    %v4483 = vmax.f32 %v4451, 0.0
    %v4484 = vmax.f32 %v4452, 0.0
    %v4485 = vmax.f32 %v4453, 0.0
    %v4486 = vmax.f32 %v4454, 0.0
    %v4487 = vmax.f32 %v4455, 0.0
    %v4488 = vmax.f32 %v4456, 0.0
    %v4489 = vld [vmem:[%s3] sm:$0xff]
    %v4490 = vld [vmem:[%s3 + $0x8] sm:$0xff]
    %v4491 = vld [vmem:[%s3 + $0x10] sm:$0xff]
    %v4492 = vld [vmem:[%s3 + $0x18] sm:$0xff]
    %v4493 = vld [vmem:[%s3 + $0x20] sm:$0xff]
    %v4494 = vld [vmem:[%s3 + $0x28] sm:$0xff]
    %v4495 = vld [vmem:[%s3 + $0x30] sm:$0xff]
    %v4496 = vld [vmem:[%s3 + $0x38] sm:$0xff]
    %v4497 = vld [vmem:[%s3 + $0x40] sm:$0xff]
    %v4498 = vld [vmem:[%s3 + $0x48] sm:$0xff]
    %v4499 = vld [vmem:[%s3 + $0x50] sm:$0xff]
    %v4500 = vld [vmem:[%s3 + $0x58] sm:$0xff]
    %v4501 = vld [vmem:[%s3 + $0x60] sm:$0xff]
    %v4502 = vld [vmem:[%s3 + $0x68] sm:$0xff]
    %v4503 = vld [vmem:[%s3 + $0x70] sm:$0xff]
    %v4504 = vld [vmem:[%s3 + $0x78] sm:$0xff]
    %v4505 = vld [vmem:[%s3 + $0x80] sm:$0xff]
    %v4506 = vld [vmem:[%s3 + $0x88] sm:$0xff]
    %v4507 = vld [vmem:[%s3 + $0x90] sm:$0xff]
    %v4508 = vld [vmem:[%s3 + $0x98] sm:$0xff]
    %v4509 = vld [vmem:[%s3 + $0xa0] sm:$0xff]
    %v4510 = vld [vmem:[%s3 + $0xa8] sm:$0xff]
    %v4511 = vld [vmem:[%s3 + $0xb0] sm:$0xff]
    %v4512 = vld [vmem:[%s3 + $0xb8] sm:$0xff]
    %v4513 = vld [vmem:[%s3 + $0xc0] sm:$0xff]
    %v4514 = vld [vmem:[%s3 + $0xc8] sm:$0xff]
    %v4515 = vld [vmem:[%s3 + $0xd0] sm:$0xff]
    %v4516 = vld [vmem:[%s3 + $0xd8] sm:$0xff]
    %v4517 = vld [vmem:[%s3 + $0xe0] sm:$0xff]
    %v4518 = vld [vmem:[%s3 + $0xe8] sm:$0xff]
    %v4519 = vld [vmem:[%s3 + $0xf0] sm:$0xff]
    %v4520 = vld [vmem:[%s3 + $0xf8] sm:$0xff]
    %4522 = vset.pattern.permute.xlu0 0
    %4523 = vperm.xlu0 %4522, %v4489
    %v4524 = vpop.permute.xlu0 %4523
    %4527 = vset.pattern.permute.xlu0 0
    %4528 = vperm.xlu0 %4527, %v4490
    %v4529 = vpop.permute.xlu0 %4528
    %4532 = vset.pattern.permute.xlu0 0
    %4533 = vperm.xlu0 %4532, %v4491
    %v4534 = vpop.permute.xlu0 %4533
    %4537 = vset.pattern.permute.xlu0 0
    %4538 = vperm.xlu0 %4537, %v4492
    %v4539 = vpop.permute.xlu0 %4538
    %4542 = vset.pattern.permute.xlu0 0
    %4543 = vperm.xlu0 %4542, %v4493
    %v4544 = vpop.permute.xlu0 %4543
    %4547 = vset.pattern.permute.xlu0 0
    %4548 = vperm.xlu0 %4547, %v4494
    %v4549 = vpop.permute.xlu0 %4548
    %4552 = vset.pattern.permute.xlu0 0
    %4553 = vperm.xlu0 %4552, %v4495
    %v4554 = vpop.permute.xlu0 %4553
    %4557 = vset.pattern.permute.xlu0 0
    %4558 = vperm.xlu0 %4557, %v4496
    %v4559 = vpop.permute.xlu0 %4558
    %4562 = vset.pattern.permute.xlu0 0
    %4563 = vperm.xlu0 %4562, %v4497
    %v4564 = vpop.permute.xlu0 %4563
    %4567 = vset.pattern.permute.xlu0 0
    %4568 = vperm.xlu0 %4567, %v4498
    %v4569 = vpop.permute.xlu0 %4568
    %4572 = vset.pattern.permute.xlu0 0
    %4573 = vperm.xlu0 %4572, %v4499
    %v4574 = vpop.permute.xlu0 %4573
    %4577 = vset.pattern.permute.xlu0 0
    %4578 = vperm.xlu0 %4577, %v4500
    %v4579 = vpop.permute.xlu0 %4578
    %4582 = vset.pattern.permute.xlu0 0
    %4583 = vperm.xlu0 %4582, %v4501
    %v4584 = vpop.permute.xlu0 %4583
    %4587 = vset.pattern.permute.xlu0 0
    %4588 = vperm.xlu0 %4587, %v4502
    %v4589 = vpop.permute.xlu0 %4588
    %4592 = vset.pattern.permute.xlu0 0
    %4593 = vperm.xlu0 %4592, %v4503
    %v4594 = vpop.permute.xlu0 %4593
    %4597 = vset.pattern.permute.xlu0 0
    %4598 = vperm.xlu0 %4597, %v4504
    %v4599 = vpop.permute.xlu0 %4598
    %4602 = vset.pattern.permute.xlu0 0
    %4603 = vperm.xlu0 %4602, %v4505
    %v4604 = vpop.permute.xlu0 %4603
    %4607 = vset.pattern.permute.xlu0 0
    %4608 = vperm.xlu0 %4607, %v4506
    %v4609 = vpop.permute.xlu0 %4608
    %4612 = vset.pattern.permute.xlu0 0
    %4613 = vperm.xlu0 %4612, %v4507
    %v4614 = vpop.permute.xlu0 %4613
    %4617 = vset.pattern.permute.xlu0 0
    %4618 = vperm.xlu0 %4617, %v4508
    %v4619 = vpop.permute.xlu0 %4618
    %4622 = vset.pattern.permute.xlu0 0
    %4623 = vperm.xlu0 %4622, %v4509
    %v4624 = vpop.permute.xlu0 %4623
    %4627 = vset.pattern.permute.xlu0 0
    %4628 = vperm.xlu0 %4627, %v4510
    %v4629 = vpop.permute.xlu0 %4628
    %4632 = vset.pattern.permute.xlu0 0
    %4633 = vperm.xlu0 %4632, %v4511
    %v4634 = vpop.permute.xlu0 %4633
    %4637 = vset.pattern.permute.xlu0 0
    %4638 = vperm.xlu0 %4637, %v4512
    %v4639 = vpop.permute.xlu0 %4638
    %4642 = vset.pattern.permute.xlu0 0
    %4643 = vperm.xlu0 %4642, %v4513
    %v4644 = vpop.permute.xlu0 %4643
    %4647 = vset.pattern.permute.xlu0 0
    %4648 = vperm.xlu0 %4647, %v4514
    %v4649 = vpop.permute.xlu0 %4648
    %4652 = vset.pattern.permute.xlu0 0
    %4653 = vperm.xlu0 %4652, %v4515
    %v4654 = vpop.permute.xlu0 %4653
    %4657 = vset.pattern.permute.xlu0 0
    %4658 = vperm.xlu0 %4657, %v4516
    %v4659 = vpop.permute.xlu0 %4658
    %4662 = vset.pattern.permute.xlu0 0
    %4663 = vperm.xlu0 %4662, %v4517
    %v4664 = vpop.permute.xlu0 %4663
    %4667 = vset.pattern.permute.xlu0 0
    %4668 = vperm.xlu0 %4667, %v4518
    %v4669 = vpop.permute.xlu0 %4668
    %4672 = vset.pattern.permute.xlu0 0
    %4673 = vperm.xlu0 %4672, %v4519
    %v4674 = vpop.permute.xlu0 %4673
    %4677 = vset.pattern.permute.xlu0 0
    %4678 = vperm.xlu0 %4677, %v4520
    %v4679 = vpop.permute.xlu0 %4678
    %v4681 = vmul.f32 %v4457, %v4524
    %v4682 = vmul.f32 %v4458, %v4529
    %v4683 = vmul.f32 %v4459, %v4534
    %v4684 = vmul.f32 %v4460, %v4539
    %v4685 = vmul.f32 %v4461, %v4544
    %v4686 = vmul.f32 %v4462, %v4549
    %v4687 = vmul.f32 %v4463, %v4554
    %v4688 = vmul.f32 %v4464, %v4559
    %v4689 = vmul.f32 %v4465, %v4564
    %v4690 = vmul.f32 %v4466, %v4569
    %v4691 = vmul.f32 %v4467, %v4574
    %v4692 = vmul.f32 %v4468, %v4579
    %v4693 = vmul.f32 %v4469, %v4584
    %v4694 = vmul.f32 %v4470, %v4589
    %v4695 = vmul.f32 %v4471, %v4594
    %v4696 = vmul.f32 %v4472, %v4599
    %v4697 = vmul.f32 %v4473, %v4604
    %v4698 = vmul.f32 %v4474, %v4609
    %v4699 = vmul.f32 %v4475, %v4614
    %v4700 = vmul.f32 %v4476, %v4619
    %v4701 = vmul.f32 %v4477, %v4624
    %v4702 = vmul.f32 %v4478, %v4629
    %v4703 = vmul.f32 %v4479, %v4634
    %v4704 = vmul.f32 %v4480, %v4639
    %v4705 = vmul.f32 %v4481, %v4644
    %v4706 = vmul.f32 %v4482, %v4649
    %v4707 = vmul.f32 %v4483, %v4654
    %v4708 = vmul.f32 %v4484, %v4659
    %v4709 = vmul.f32 %v4485, %v4664
    %v4710 = vmul.f32 %v4486, %v4669
    %v4711 = vmul.f32 %v4487, %v4674
    %v4712 = vmul.f32 %v4488, %v4679
    %4713 = vst [vmem:[#allocation2] sm:$0xff] %v4681
    %4714 = vst [vmem:[#allocation2 + $0x8] sm:$0xff] %v4682
    %4715 = vst [vmem:[#allocation2 + $0x10] sm:$0xff] %v4683
    %4716 = vst [vmem:[#allocation2 + $0x18] sm:$0xff] %v4684
    %4717 = vst [vmem:[#allocation2 + $0x20] sm:$0xff] %v4685
    %4718 = vst [vmem:[#allocation2 + $0x28] sm:$0xff] %v4686
    %4719 = vst [vmem:[#allocation2 + $0x30] sm:$0xff] %v4687
    %4720 = vst [vmem:[#allocation2 + $0x38] sm:$0xff] %v4688
    %4721 = vst [vmem:[#allocation2 + $0x40] sm:$0xff] %v4689
    %4722 = vst [vmem:[#allocation2 + $0x48] sm:$0xff] %v4690
    %4723 = vst [vmem:[#allocation2 + $0x50] sm:$0xff] %v4691
    %4724 = vst [vmem:[#allocation2 + $0x58] sm:$0xff] %v4692
    %4725 = vst [vmem:[#allocation2 + $0x60] sm:$0xff] %v4693
    %4726 = vst [vmem:[#allocation2 + $0x68] sm:$0xff] %v4694
    %4727 = vst [vmem:[#allocation2 + $0x70] sm:$0xff] %v4695
    %4728 = vst [vmem:[#allocation2 + $0x78] sm:$0xff] %v4696
    %4729 = vst [vmem:[#allocation2 + $0x80] sm:$0xff] %v4697
    %4730 = vst [vmem:[#allocation2 + $0x88] sm:$0xff] %v4698
    %4731 = vst [vmem:[#allocation2 + $0x90] sm:$0xff] %v4699
    %4732 = vst [vmem:[#allocation2 + $0x98] sm:$0xff] %v4700
    %4733 = vst [vmem:[#allocation2 + $0xa0] sm:$0xff] %v4701
    %4734 = vst [vmem:[#allocation2 + $0xa8] sm:$0xff] %v4702
    %4735 = vst [vmem:[#allocation2 + $0xb0] sm:$0xff] %v4703
    %4736 = vst [vmem:[#allocation2 + $0xb8] sm:$0xff] %v4704
    %4737 = vst [vmem:[#allocation2 + $0xc0] sm:$0xff] %v4705
    %4738 = vst [vmem:[#allocation2 + $0xc8] sm:$0xff] %v4706
    %4739 = vst [vmem:[#allocation2 + $0xd0] sm:$0xff] %v4707
    %4740 = vst [vmem:[#allocation2 + $0xd8] sm:$0xff] %v4708
    %4741 = vst [vmem:[#allocation2 + $0xe0] sm:$0xff] %v4709
    %4742 = vst [vmem:[#allocation2 + $0xe8] sm:$0xff] %v4710
    %4743 = vst [vmem:[#allocation2 + $0xf0] sm:$0xff] %v4711
    %4744 = vst [vmem:[#allocation2 + $0xf8] sm:$0xff] %v4712
    %p4746 = scmp.lt.u32.totalorder 4, 8
    %p4747 = pneg %p4746
    // Predicated region
    $region169: #{resgcn_forward.1} parent=1 // pred_check
      _
    $region170: #{resgcn_forward.1} parent=1 // pred_check_branch
      %4749 = sbr.rel (%p4746) target = $region172
    $region171: #{resgcn_forward.1} parent=1 // pred_region
      %s4890 = sand.u32 4, 7
      %p4891 = scmp.eq.s32.totalorder %s4890, 0
      %p4892 = pneg %p4891
      // Predicated region
      $region184: #{resgcn_forward.1} parent=171 // pred_check
        _
      $region185: #{resgcn_forward.1} parent=171 // pred_check_branch
        %4894 = sbr.rel (%p4891) target = $region187
      $region186: #{resgcn_forward.1} parent=171 // pred_region
        %s4895 = sand.u32 4, 7
        %s4896 = ssub.s32 4, %s4895
        %s4897 = scalar_lea.vmem %s1, %s4896
        %s4898 = ssub.s32 4, %s4895
        %s4899 = scalar_lea.vmem [#allocation5], %s4898
        loop: start=0, step=1, limit=1
        $region188: #{resgcn_forward.1} parent=186 // loop_pre_header
          _
        $region189: #{resgcn_forward.1} parent=186 // loop_header
          %s4901 = sphi 0, %s4905
          %p4902 = scmp.ge.s32.totalorder %s4901, 1
          %s4906 = sphi %s1, %s1
          %s4907 = sphi [#allocation5], [#allocation5]
        $region190: #{resgcn_forward.1} parent=186 // loop_header_branch
          %4904 = sbr.rel (%p4902) target = $region194
        $region191: #{resgcn_forward.1} parent=186 // loop_body
          _
        $region192: #{resgcn_forward.1} parent=186 // loop_footer
          %s4905 = sadd.s32 1, %s4901
        $region193: #{resgcn_forward.1} parent=186 // loop_footer_branch
          %4900 = sbr.rel target = $region189
        $region194: #{resgcn_forward.1} parent=186 // loop_exit
          _
        %s4908 = sshllo.u32 0, %s4895
        loop: start=0, step=1, limit=1
        $region195: #{resgcn_forward.1} parent=186 // loop_pre_header
          _
        $region196: #{resgcn_forward.1} parent=186 // loop_header
          %s4910 = sphi 0, %s4914
          %p4911 = scmp.ge.s32.totalorder %s4910, 1
          %s4915 = sphi %s4897, %s4897
          %s4916 = sphi %s4899, %s4899
        $region197: #{resgcn_forward.1} parent=186 // loop_header_branch
          %4913 = sbr.rel (%p4911) target = $region201
        $region198: #{resgcn_forward.1} parent=186 // loop_body
          %v4917 = vld [vmem:[%s4915] sm:%s4908]
          %4918 = vst [vmem:[%s4916] sm:%s4908] %v4917
          %v4919 = vld [vmem:[%s4915 + $0x8] sm:%s4908]
          %4920 = vst [vmem:[%s4916 + $0x4] sm:%s4908] %v4919
          %v4921 = vld [vmem:[%s4915 + $0x4] sm:%s4908]
          %4922 = vst [vmem:[%s4916 + $0x8] sm:%s4908] %v4921
          %v4923 = vld [vmem:[%s4915 + $0xc] sm:%s4908]
          %4924 = vst [vmem:[%s4916 + $0xc] sm:%s4908] %v4923
          %v4925 = vld [vmem:[%s4915 + $0x10] sm:%s4908]
          %4926 = vst [vmem:[%s4916 + $0x10] sm:%s4908] %v4925
          %v4927 = vld [vmem:[%s4915 + $0x18] sm:%s4908]
          %4928 = vst [vmem:[%s4916 + $0x14] sm:%s4908] %v4927
          %v4929 = vld [vmem:[%s4915 + $0x14] sm:%s4908]
          %4930 = vst [vmem:[%s4916 + $0x18] sm:%s4908] %v4929
          %v4931 = vld [vmem:[%s4915 + $0x1c] sm:%s4908]
          %4932 = vst [vmem:[%s4916 + $0x1c] sm:%s4908] %v4931
          %v4933 = vld [vmem:[%s4915 + $0x20] sm:%s4908]
          %4934 = vst [vmem:[%s4916 + $0x20] sm:%s4908] %v4933
          %v4935 = vld [vmem:[%s4915 + $0x28] sm:%s4908]
          %4936 = vst [vmem:[%s4916 + $0x24] sm:%s4908] %v4935
          %v4937 = vld [vmem:[%s4915 + $0x24] sm:%s4908]
          %4938 = vst [vmem:[%s4916 + $0x28] sm:%s4908] %v4937
          %v4939 = vld [vmem:[%s4915 + $0x2c] sm:%s4908]
          %4940 = vst [vmem:[%s4916 + $0x2c] sm:%s4908] %v4939
          %v4941 = vld [vmem:[%s4915 + $0x30] sm:%s4908]
          %4942 = vst [vmem:[%s4916 + $0x30] sm:%s4908] %v4941
          %v4943 = vld [vmem:[%s4915 + $0x38] sm:%s4908]
          %4944 = vst [vmem:[%s4916 + $0x34] sm:%s4908] %v4943
          %v4945 = vld [vmem:[%s4915 + $0x34] sm:%s4908]
          %4946 = vst [vmem:[%s4916 + $0x38] sm:%s4908] %v4945
          %v4947 = vld [vmem:[%s4915 + $0x3c] sm:%s4908]
          %4948 = vst [vmem:[%s4916 + $0x3c] sm:%s4908] %v4947
          %v4949 = vld [vmem:[%s4915 + $0x40] sm:%s4908]
          %4950 = vst [vmem:[%s4916 + $0x40] sm:%s4908] %v4949
          %v4951 = vld [vmem:[%s4915 + $0x48] sm:%s4908]
          %4952 = vst [vmem:[%s4916 + $0x44] sm:%s4908] %v4951
          %v4953 = vld [vmem:[%s4915 + $0x44] sm:%s4908]
          %4954 = vst [vmem:[%s4916 + $0x48] sm:%s4908] %v4953
          %v4955 = vld [vmem:[%s4915 + $0x4c] sm:%s4908]
          %4956 = vst [vmem:[%s4916 + $0x4c] sm:%s4908] %v4955
          %v4957 = vld [vmem:[%s4915 + $0x50] sm:%s4908]
          %4958 = vst [vmem:[%s4916 + $0x50] sm:%s4908] %v4957
          %v4959 = vld [vmem:[%s4915 + $0x58] sm:%s4908]
          %4960 = vst [vmem:[%s4916 + $0x54] sm:%s4908] %v4959
          %v4961 = vld [vmem:[%s4915 + $0x54] sm:%s4908]
          %4962 = vst [vmem:[%s4916 + $0x58] sm:%s4908] %v4961
          %v4963 = vld [vmem:[%s4915 + $0x5c] sm:%s4908]
          %4964 = vst [vmem:[%s4916 + $0x5c] sm:%s4908] %v4963
          %v4965 = vld [vmem:[%s4915 + $0x60] sm:%s4908]
          %4966 = vst [vmem:[%s4916 + $0x60] sm:%s4908] %v4965
          %v4967 = vld [vmem:[%s4915 + $0x68] sm:%s4908]
          %4968 = vst [vmem:[%s4916 + $0x64] sm:%s4908] %v4967
          %v4969 = vld [vmem:[%s4915 + $0x64] sm:%s4908]
          %4970 = vst [vmem:[%s4916 + $0x68] sm:%s4908] %v4969
          %v4971 = vld [vmem:[%s4915 + $0x6c] sm:%s4908]
          %4972 = vst [vmem:[%s4916 + $0x6c] sm:%s4908] %v4971
          %v4973 = vld [vmem:[%s4915 + $0x70] sm:%s4908]
          %4974 = vst [vmem:[%s4916 + $0x70] sm:%s4908] %v4973
          %v4975 = vld [vmem:[%s4915 + $0x78] sm:%s4908]
          %4976 = vst [vmem:[%s4916 + $0x74] sm:%s4908] %v4975
          %v4977 = vld [vmem:[%s4915 + $0x74] sm:%s4908]
          %4978 = vst [vmem:[%s4916 + $0x78] sm:%s4908] %v4977
          %v4979 = vld [vmem:[%s4915 + $0x7c] sm:%s4908]
          %4980 = vst [vmem:[%s4916 + $0x7c] sm:%s4908] %v4979
          %v4981 = vld [vmem:[%s4915 + $0x80] sm:%s4908]
          %4982 = vst [vmem:[%s4916 + $0x80] sm:%s4908] %v4981
          %v4983 = vld [vmem:[%s4915 + $0x88] sm:%s4908]
          %4984 = vst [vmem:[%s4916 + $0x84] sm:%s4908] %v4983
          %v4985 = vld [vmem:[%s4915 + $0x84] sm:%s4908]
          %4986 = vst [vmem:[%s4916 + $0x88] sm:%s4908] %v4985
          %v4987 = vld [vmem:[%s4915 + $0x8c] sm:%s4908]
          %4988 = vst [vmem:[%s4916 + $0x8c] sm:%s4908] %v4987
          %v4989 = vld [vmem:[%s4915 + $0x90] sm:%s4908]
          %4990 = vst [vmem:[%s4916 + $0x90] sm:%s4908] %v4989
          %v4991 = vld [vmem:[%s4915 + $0x98] sm:%s4908]
          %4992 = vst [vmem:[%s4916 + $0x94] sm:%s4908] %v4991
          %v4993 = vld [vmem:[%s4915 + $0x94] sm:%s4908]
          %4994 = vst [vmem:[%s4916 + $0x98] sm:%s4908] %v4993
          %v4995 = vld [vmem:[%s4915 + $0x9c] sm:%s4908]
          %4996 = vst [vmem:[%s4916 + $0x9c] sm:%s4908] %v4995
          %v4997 = vld [vmem:[%s4915 + $0xa0] sm:%s4908]
          %4998 = vst [vmem:[%s4916 + $0xa0] sm:%s4908] %v4997
          %v4999 = vld [vmem:[%s4915 + $0xa8] sm:%s4908]
          %5000 = vst [vmem:[%s4916 + $0xa4] sm:%s4908] %v4999
          %v5001 = vld [vmem:[%s4915 + $0xa4] sm:%s4908]
          %5002 = vst [vmem:[%s4916 + $0xa8] sm:%s4908] %v5001
          %v5003 = vld [vmem:[%s4915 + $0xac] sm:%s4908]
          %5004 = vst [vmem:[%s4916 + $0xac] sm:%s4908] %v5003
          %v5005 = vld [vmem:[%s4915 + $0xb0] sm:%s4908]
          %5006 = vst [vmem:[%s4916 + $0xb0] sm:%s4908] %v5005
          %v5007 = vld [vmem:[%s4915 + $0xb8] sm:%s4908]
          %5008 = vst [vmem:[%s4916 + $0xb4] sm:%s4908] %v5007
          %v5009 = vld [vmem:[%s4915 + $0xb4] sm:%s4908]
          %5010 = vst [vmem:[%s4916 + $0xb8] sm:%s4908] %v5009
          %v5011 = vld [vmem:[%s4915 + $0xbc] sm:%s4908]
          %5012 = vst [vmem:[%s4916 + $0xbc] sm:%s4908] %v5011
          %v5013 = vld [vmem:[%s4915 + $0xc0] sm:%s4908]
          %5014 = vst [vmem:[%s4916 + $0xc0] sm:%s4908] %v5013
          %v5015 = vld [vmem:[%s4915 + $0xc8] sm:%s4908]
          %5016 = vst [vmem:[%s4916 + $0xc4] sm:%s4908] %v5015
          %v5017 = vld [vmem:[%s4915 + $0xc4] sm:%s4908]
          %5018 = vst [vmem:[%s4916 + $0xc8] sm:%s4908] %v5017
          %v5019 = vld [vmem:[%s4915 + $0xcc] sm:%s4908]
          %5020 = vst [vmem:[%s4916 + $0xcc] sm:%s4908] %v5019
          %v5021 = vld [vmem:[%s4915 + $0xd0] sm:%s4908]
          %5022 = vst [vmem:[%s4916 + $0xd0] sm:%s4908] %v5021
          %v5023 = vld [vmem:[%s4915 + $0xd8] sm:%s4908]
          %5024 = vst [vmem:[%s4916 + $0xd4] sm:%s4908] %v5023
          %v5025 = vld [vmem:[%s4915 + $0xd4] sm:%s4908]
          %5026 = vst [vmem:[%s4916 + $0xd8] sm:%s4908] %v5025
          %v5027 = vld [vmem:[%s4915 + $0xdc] sm:%s4908]
          %5028 = vst [vmem:[%s4916 + $0xdc] sm:%s4908] %v5027
          %v5029 = vld [vmem:[%s4915 + $0xe0] sm:%s4908]
          %5030 = vst [vmem:[%s4916 + $0xe0] sm:%s4908] %v5029
          %v5031 = vld [vmem:[%s4915 + $0xe8] sm:%s4908]
          %5032 = vst [vmem:[%s4916 + $0xe4] sm:%s4908] %v5031
          %v5033 = vld [vmem:[%s4915 + $0xe4] sm:%s4908]
          %5034 = vst [vmem:[%s4916 + $0xe8] sm:%s4908] %v5033
          %v5035 = vld [vmem:[%s4915 + $0xec] sm:%s4908]
          %5036 = vst [vmem:[%s4916 + $0xec] sm:%s4908] %v5035
          %v5037 = vld [vmem:[%s4915 + $0xf0] sm:%s4908]
          %5038 = vst [vmem:[%s4916 + $0xf0] sm:%s4908] %v5037
          %v5039 = vld [vmem:[%s4915 + $0xf8] sm:%s4908]
          %5040 = vst [vmem:[%s4916 + $0xf4] sm:%s4908] %v5039
          %v5041 = vld [vmem:[%s4915 + $0xf4] sm:%s4908]
          %5042 = vst [vmem:[%s4916 + $0xf8] sm:%s4908] %v5041
          %v5043 = vld [vmem:[%s4915 + $0xfc] sm:%s4908]
          %5044 = vst [vmem:[%s4916 + $0xfc] sm:%s4908] %v5043
        $region199: #{resgcn_forward.1} parent=186 // loop_footer
          %s4914 = sadd.s32 1, %s4910
        $region200: #{resgcn_forward.1} parent=186 // loop_footer_branch
          %4909 = sbr.rel target = $region196
        $region201: #{resgcn_forward.1} parent=186 // loop_exit
          _
      $region187: #{resgcn_forward.1} parent=171 // pred_fallthru
        _
    $region172: #{resgcn_forward.1} parent=1 // pred_fallthru
      _
    // Predicated region
    $region173: #{resgcn_forward.1} parent=1 // pred_check
      %p4750 = pneg %p4746
    $region174: #{resgcn_forward.1} parent=1 // pred_check_branch
      %4752 = sbr.rel (%p4750) target = $region176
    $region175: #{resgcn_forward.1} parent=1 // pred_region
      %s4753 = sshllo.u32 0, 4
      loop: start=0, step=1, limit=1
      $region177: #{resgcn_forward.1} parent=175 // loop_pre_header
        _
      $region178: #{resgcn_forward.1} parent=175 // loop_header
        %s4755 = sphi 0, %s4759
        %p4756 = scmp.ge.s32.totalorder %s4755, 1
        %s4760 = sphi %s1, %s1
        %s4761 = sphi [#allocation5], [#allocation5]
      $region179: #{resgcn_forward.1} parent=175 // loop_header_branch
        %4758 = sbr.rel (%p4756) target = $region183
      $region180: #{resgcn_forward.1} parent=175 // loop_body
        %v4762 = vld [vmem:[%s4760] sm:%s4753]
        %4763 = vst [vmem:[%s4761] sm:%s4753] %v4762
        %v4764 = vld [vmem:[%s4760 + $0x8] sm:%s4753]
        %4765 = vst [vmem:[%s4761 + $0x4] sm:%s4753] %v4764
        %v4766 = vld [vmem:[%s4760 + $0x4] sm:%s4753]
        %4767 = vst [vmem:[%s4761 + $0x8] sm:%s4753] %v4766
        %v4768 = vld [vmem:[%s4760 + $0xc] sm:%s4753]
        %4769 = vst [vmem:[%s4761 + $0xc] sm:%s4753] %v4768
        %v4770 = vld [vmem:[%s4760 + $0x10] sm:%s4753]
        %4771 = vst [vmem:[%s4761 + $0x10] sm:%s4753] %v4770
        %v4772 = vld [vmem:[%s4760 + $0x18] sm:%s4753]
        %4773 = vst [vmem:[%s4761 + $0x14] sm:%s4753] %v4772
        %v4774 = vld [vmem:[%s4760 + $0x14] sm:%s4753]
        %4775 = vst [vmem:[%s4761 + $0x18] sm:%s4753] %v4774
        %v4776 = vld [vmem:[%s4760 + $0x1c] sm:%s4753]
        %4777 = vst [vmem:[%s4761 + $0x1c] sm:%s4753] %v4776
        %v4778 = vld [vmem:[%s4760 + $0x20] sm:%s4753]
        %4779 = vst [vmem:[%s4761 + $0x20] sm:%s4753] %v4778
        %v4780 = vld [vmem:[%s4760 + $0x28] sm:%s4753]
        %4781 = vst [vmem:[%s4761 + $0x24] sm:%s4753] %v4780
        %v4782 = vld [vmem:[%s4760 + $0x24] sm:%s4753]
        %4783 = vst [vmem:[%s4761 + $0x28] sm:%s4753] %v4782
        %v4784 = vld [vmem:[%s4760 + $0x2c] sm:%s4753]
        %4785 = vst [vmem:[%s4761 + $0x2c] sm:%s4753] %v4784
        %v4786 = vld [vmem:[%s4760 + $0x30] sm:%s4753]
        %4787 = vst [vmem:[%s4761 + $0x30] sm:%s4753] %v4786
        %v4788 = vld [vmem:[%s4760 + $0x38] sm:%s4753]
        %4789 = vst [vmem:[%s4761 + $0x34] sm:%s4753] %v4788
        %v4790 = vld [vmem:[%s4760 + $0x34] sm:%s4753]
        %4791 = vst [vmem:[%s4761 + $0x38] sm:%s4753] %v4790
        %v4792 = vld [vmem:[%s4760 + $0x3c] sm:%s4753]
        %4793 = vst [vmem:[%s4761 + $0x3c] sm:%s4753] %v4792
        %v4794 = vld [vmem:[%s4760 + $0x40] sm:%s4753]
        %4795 = vst [vmem:[%s4761 + $0x40] sm:%s4753] %v4794
        %v4796 = vld [vmem:[%s4760 + $0x48] sm:%s4753]
        %4797 = vst [vmem:[%s4761 + $0x44] sm:%s4753] %v4796
        %v4798 = vld [vmem:[%s4760 + $0x44] sm:%s4753]
        %4799 = vst [vmem:[%s4761 + $0x48] sm:%s4753] %v4798
        %v4800 = vld [vmem:[%s4760 + $0x4c] sm:%s4753]
        %4801 = vst [vmem:[%s4761 + $0x4c] sm:%s4753] %v4800
        %v4802 = vld [vmem:[%s4760 + $0x50] sm:%s4753]
        %4803 = vst [vmem:[%s4761 + $0x50] sm:%s4753] %v4802
        %v4804 = vld [vmem:[%s4760 + $0x58] sm:%s4753]
        %4805 = vst [vmem:[%s4761 + $0x54] sm:%s4753] %v4804
        %v4806 = vld [vmem:[%s4760 + $0x54] sm:%s4753]
        %4807 = vst [vmem:[%s4761 + $0x58] sm:%s4753] %v4806
        %v4808 = vld [vmem:[%s4760 + $0x5c] sm:%s4753]
        %4809 = vst [vmem:[%s4761 + $0x5c] sm:%s4753] %v4808
        %v4810 = vld [vmem:[%s4760 + $0x60] sm:%s4753]
        %4811 = vst [vmem:[%s4761 + $0x60] sm:%s4753] %v4810
        %v4812 = vld [vmem:[%s4760 + $0x68] sm:%s4753]
        %4813 = vst [vmem:[%s4761 + $0x64] sm:%s4753] %v4812
        %v4814 = vld [vmem:[%s4760 + $0x64] sm:%s4753]
        %4815 = vst [vmem:[%s4761 + $0x68] sm:%s4753] %v4814
        %v4816 = vld [vmem:[%s4760 + $0x6c] sm:%s4753]
        %4817 = vst [vmem:[%s4761 + $0x6c] sm:%s4753] %v4816
        %v4818 = vld [vmem:[%s4760 + $0x70] sm:%s4753]
        %4819 = vst [vmem:[%s4761 + $0x70] sm:%s4753] %v4818
        %v4820 = vld [vmem:[%s4760 + $0x78] sm:%s4753]
        %4821 = vst [vmem:[%s4761 + $0x74] sm:%s4753] %v4820
        %v4822 = vld [vmem:[%s4760 + $0x74] sm:%s4753]
        %4823 = vst [vmem:[%s4761 + $0x78] sm:%s4753] %v4822
        %v4824 = vld [vmem:[%s4760 + $0x7c] sm:%s4753]
        %4825 = vst [vmem:[%s4761 + $0x7c] sm:%s4753] %v4824
        %v4826 = vld [vmem:[%s4760 + $0x80] sm:%s4753]
        %4827 = vst [vmem:[%s4761 + $0x80] sm:%s4753] %v4826
        %v4828 = vld [vmem:[%s4760 + $0x88] sm:%s4753]
        %4829 = vst [vmem:[%s4761 + $0x84] sm:%s4753] %v4828
        %v4830 = vld [vmem:[%s4760 + $0x84] sm:%s4753]
        %4831 = vst [vmem:[%s4761 + $0x88] sm:%s4753] %v4830
        %v4832 = vld [vmem:[%s4760 + $0x8c] sm:%s4753]
        %4833 = vst [vmem:[%s4761 + $0x8c] sm:%s4753] %v4832
        %v4834 = vld [vmem:[%s4760 + $0x90] sm:%s4753]
        %4835 = vst [vmem:[%s4761 + $0x90] sm:%s4753] %v4834
        %v4836 = vld [vmem:[%s4760 + $0x98] sm:%s4753]
        %4837 = vst [vmem:[%s4761 + $0x94] sm:%s4753] %v4836
        %v4838 = vld [vmem:[%s4760 + $0x94] sm:%s4753]
        %4839 = vst [vmem:[%s4761 + $0x98] sm:%s4753] %v4838
        %v4840 = vld [vmem:[%s4760 + $0x9c] sm:%s4753]
        %4841 = vst [vmem:[%s4761 + $0x9c] sm:%s4753] %v4840
        %v4842 = vld [vmem:[%s4760 + $0xa0] sm:%s4753]
        %4843 = vst [vmem:[%s4761 + $0xa0] sm:%s4753] %v4842
        %v4844 = vld [vmem:[%s4760 + $0xa8] sm:%s4753]
        %4845 = vst [vmem:[%s4761 + $0xa4] sm:%s4753] %v4844
        %v4846 = vld [vmem:[%s4760 + $0xa4] sm:%s4753]
        %4847 = vst [vmem:[%s4761 + $0xa8] sm:%s4753] %v4846
        %v4848 = vld [vmem:[%s4760 + $0xac] sm:%s4753]
        %4849 = vst [vmem:[%s4761 + $0xac] sm:%s4753] %v4848
        %v4850 = vld [vmem:[%s4760 + $0xb0] sm:%s4753]
        %4851 = vst [vmem:[%s4761 + $0xb0] sm:%s4753] %v4850
        %v4852 = vld [vmem:[%s4760 + $0xb8] sm:%s4753]
        %4853 = vst [vmem:[%s4761 + $0xb4] sm:%s4753] %v4852
        %v4854 = vld [vmem:[%s4760 + $0xb4] sm:%s4753]
        %4855 = vst [vmem:[%s4761 + $0xb8] sm:%s4753] %v4854
        %v4856 = vld [vmem:[%s4760 + $0xbc] sm:%s4753]
        %4857 = vst [vmem:[%s4761 + $0xbc] sm:%s4753] %v4856
        %v4858 = vld [vmem:[%s4760 + $0xc0] sm:%s4753]
        %4859 = vst [vmem:[%s4761 + $0xc0] sm:%s4753] %v4858
        %v4860 = vld [vmem:[%s4760 + $0xc8] sm:%s4753]
        %4861 = vst [vmem:[%s4761 + $0xc4] sm:%s4753] %v4860
        %v4862 = vld [vmem:[%s4760 + $0xc4] sm:%s4753]
        %4863 = vst [vmem:[%s4761 + $0xc8] sm:%s4753] %v4862
        %v4864 = vld [vmem:[%s4760 + $0xcc] sm:%s4753]
        %4865 = vst [vmem:[%s4761 + $0xcc] sm:%s4753] %v4864
        %v4866 = vld [vmem:[%s4760 + $0xd0] sm:%s4753]
        %4867 = vst [vmem:[%s4761 + $0xd0] sm:%s4753] %v4866
        %v4868 = vld [vmem:[%s4760 + $0xd8] sm:%s4753]
        %4869 = vst [vmem:[%s4761 + $0xd4] sm:%s4753] %v4868
        %v4870 = vld [vmem:[%s4760 + $0xd4] sm:%s4753]
        %4871 = vst [vmem:[%s4761 + $0xd8] sm:%s4753] %v4870
        %v4872 = vld [vmem:[%s4760 + $0xdc] sm:%s4753]
        %4873 = vst [vmem:[%s4761 + $0xdc] sm:%s4753] %v4872
        %v4874 = vld [vmem:[%s4760 + $0xe0] sm:%s4753]
        %4875 = vst [vmem:[%s4761 + $0xe0] sm:%s4753] %v4874
        %v4876 = vld [vmem:[%s4760 + $0xe8] sm:%s4753]
        %4877 = vst [vmem:[%s4761 + $0xe4] sm:%s4753] %v4876
        %v4878 = vld [vmem:[%s4760 + $0xe4] sm:%s4753]
        %4879 = vst [vmem:[%s4761 + $0xe8] sm:%s4753] %v4878
        %v4880 = vld [vmem:[%s4760 + $0xec] sm:%s4753]
        %4881 = vst [vmem:[%s4761 + $0xec] sm:%s4753] %v4880
        %v4882 = vld [vmem:[%s4760 + $0xf0] sm:%s4753]
        %4883 = vst [vmem:[%s4761 + $0xf0] sm:%s4753] %v4882
        %v4884 = vld [vmem:[%s4760 + $0xf8] sm:%s4753]
        %4885 = vst [vmem:[%s4761 + $0xf4] sm:%s4753] %v4884
        %v4886 = vld [vmem:[%s4760 + $0xf4] sm:%s4753]
        %4887 = vst [vmem:[%s4761 + $0xf8] sm:%s4753] %v4886
        %v4888 = vld [vmem:[%s4760 + $0xfc] sm:%s4753]
        %4889 = vst [vmem:[%s4761 + $0xfc] sm:%s4753] %v4888
      $region181: #{resgcn_forward.1} parent=175 // loop_footer
        %s4759 = sadd.s32 1, %s4755
      $region182: #{resgcn_forward.1} parent=175 // loop_footer_branch
        %4754 = sbr.rel target = $region178
      $region183: #{resgcn_forward.1} parent=175 // loop_exit
        _
    $region176: #{resgcn_forward.1} parent=1 // pred_fallthru
      _
    // Predicated region
    $region202: #{resgcn_forward.1} parent=1 // pred_check
      _
    $region203: #{resgcn_forward.1} parent=1 // pred_check_branch
      %5047 = sbr.rel (0) target = $region205
    $region204: #{resgcn_forward.1} parent=1 // pred_region
      %5048 = vsyncadd [#allocation6], 4096
    $region205: #{resgcn_forward.1} parent=1 // pred_fallthru
      _
    %v5049 = vld [vmem:[#allocation2] sm:$0xff]
    %v5050 = vld [vmem:[#allocation2 + $0x8] sm:$0xff]
    %v5051 = vld [vmem:[#allocation2 + $0x10] sm:$0xff]
    %v5052 = vld [vmem:[#allocation2 + $0x18] sm:$0xff]
    %v5053 = vld [vmem:[#allocation2 + $0x20] sm:$0xff]
    %v5054 = vld [vmem:[#allocation2 + $0x28] sm:$0xff]
    %v5055 = vld [vmem:[#allocation2 + $0x30] sm:$0xff]
    %v5056 = vld [vmem:[#allocation2 + $0x38] sm:$0xff]
    %v5057 = vld [vmem:[#allocation2 + $0x40] sm:$0xff]
    %v5058 = vld [vmem:[#allocation2 + $0x48] sm:$0xff]
    %v5059 = vld [vmem:[#allocation2 + $0x50] sm:$0xff]
    %v5060 = vld [vmem:[#allocation2 + $0x58] sm:$0xff]
    %v5061 = vld [vmem:[#allocation2 + $0x60] sm:$0xff]
    %v5062 = vld [vmem:[#allocation2 + $0x68] sm:$0xff]
    %v5063 = vld [vmem:[#allocation2 + $0x70] sm:$0xff]
    %v5064 = vld [vmem:[#allocation2 + $0x78] sm:$0xff]
    %v5065 = vld [vmem:[#allocation2 + $0x80] sm:$0xff]
    %v5066 = vld [vmem:[#allocation2 + $0x88] sm:$0xff]
    %v5067 = vld [vmem:[#allocation2 + $0x90] sm:$0xff]
    %v5068 = vld [vmem:[#allocation2 + $0x98] sm:$0xff]
    %v5069 = vld [vmem:[#allocation2 + $0xa0] sm:$0xff]
    %v5070 = vld [vmem:[#allocation2 + $0xa8] sm:$0xff]
    %v5071 = vld [vmem:[#allocation2 + $0xb0] sm:$0xff]
    %v5072 = vld [vmem:[#allocation2 + $0xb8] sm:$0xff]
    %v5073 = vld [vmem:[#allocation2 + $0xc0] sm:$0xff]
    %v5074 = vld [vmem:[#allocation2 + $0xc8] sm:$0xff]
    %v5075 = vld [vmem:[#allocation2 + $0xd0] sm:$0xff]
    %v5076 = vld [vmem:[#allocation2 + $0xd8] sm:$0xff]
    %v5077 = vld [vmem:[#allocation2 + $0xe0] sm:$0xff]
    %v5078 = vld [vmem:[#allocation2 + $0xe8] sm:$0xff]
    %v5079 = vld [vmem:[#allocation2 + $0xf0] sm:$0xff]
    %v5080 = vld [vmem:[#allocation2 + $0xf8] sm:$0xff]
    %v5081 = vpack.c.bf16 %v5050, %v5049
    %v5082 = vpack.c.bf16 %v5052, %v5051
    %v5083 = vpack.c.bf16 %v5054, %v5053
    %v5084 = vpack.c.bf16 %v5056, %v5055
    %v5085 = vpack.c.bf16 %v5058, %v5057
    %v5086 = vpack.c.bf16 %v5060, %v5059
    %v5087 = vpack.c.bf16 %v5062, %v5061
    %v5088 = vpack.c.bf16 %v5064, %v5063
    %v5089 = vpack.c.bf16 %v5066, %v5065
    %v5090 = vpack.c.bf16 %v5068, %v5067
    %v5091 = vpack.c.bf16 %v5070, %v5069
    %v5092 = vpack.c.bf16 %v5072, %v5071
    %v5093 = vpack.c.bf16 %v5074, %v5073
    %v5094 = vpack.c.bf16 %v5076, %v5075
    %v5095 = vpack.c.bf16 %v5078, %v5077
    %v5096 = vpack.c.bf16 %v5080, %v5079
    %5097 = vst [vmem:[#allocation4] sm:$0xff] %v5081
    %5098 = vst [vmem:[#allocation4 + $0x8] sm:$0xff] %v5082
    %5099 = vst [vmem:[#allocation4 + $0x10] sm:$0xff] %v5083
    %5100 = vst [vmem:[#allocation4 + $0x18] sm:$0xff] %v5084
    %5101 = vst [vmem:[#allocation4 + $0x20] sm:$0xff] %v5085
    %5102 = vst [vmem:[#allocation4 + $0x28] sm:$0xff] %v5086
    %5103 = vst [vmem:[#allocation4 + $0x30] sm:$0xff] %v5087
    %5104 = vst [vmem:[#allocation4 + $0x38] sm:$0xff] %v5088
    %5105 = vst [vmem:[#allocation4 + $0x40] sm:$0xff] %v5089
    %5106 = vst [vmem:[#allocation4 + $0x48] sm:$0xff] %v5090
    %5107 = vst [vmem:[#allocation4 + $0x50] sm:$0xff] %v5091
    %5108 = vst [vmem:[#allocation4 + $0x58] sm:$0xff] %v5092
    %5109 = vst [vmem:[#allocation4 + $0x60] sm:$0xff] %v5093
    %5110 = vst [vmem:[#allocation4 + $0x68] sm:$0xff] %v5094
    %5111 = vst [vmem:[#allocation4 + $0x70] sm:$0xff] %v5095
    %5112 = vst [vmem:[#allocation4 + $0x78] sm:$0xff] %v5096
    %v5113 = vadd.f32 %v5049, %v5050
    %v5114 = vadd.f32 %v5113, %v5051
    %v5115 = vadd.f32 %v5114, %v5052
    %v5116 = vadd.f32 %v5115, %v5053
    %v5117 = vadd.f32 %v5116, %v5054
    %v5118 = vadd.f32 %v5117, %v5055
    %v5119 = vadd.f32 %v5118, %v5056
    %v5120 = vadd.f32 %v5119, %v5057
    %v5121 = vadd.f32 %v5120, %v5058
    %v5122 = vadd.f32 %v5121, %v5059
    %v5123 = vadd.f32 %v5122, %v5060
    %v5124 = vadd.f32 %v5123, %v5061
    %v5125 = vadd.f32 %v5124, %v5062
    %v5126 = vadd.f32 %v5125, %v5063
    %v5127 = vadd.f32 %v5126, %v5064
    %v5128 = vadd.f32 %v5127, %v5065
    %v5129 = vadd.f32 %v5128, %v5066
    %v5130 = vadd.f32 %v5129, %v5067
    %v5131 = vadd.f32 %v5130, %v5068
    %v5132 = vadd.f32 %v5131, %v5069
    %v5133 = vadd.f32 %v5132, %v5070
    %v5134 = vadd.f32 %v5133, %v5071
    %v5135 = vadd.f32 %v5134, %v5072
    %v5136 = vadd.f32 %v5135, %v5073
    %v5137 = vadd.f32 %v5136, %v5074
    %v5138 = vadd.f32 %v5137, %v5075
    %v5139 = vadd.f32 %v5138, %v5076
    %v5140 = vadd.f32 %v5139, %v5077
    %v5141 = vadd.f32 %v5140, %v5078
    %v5142 = vadd.f32 %v5141, %v5079
    %v5143 = vadd.f32 %v5142, %v5080
    %v5144 = vrot.slane %v5143, 4
    %v5145 = vadd.f32 %v5143, %v5144
    %v5146 = vrot.slane %v5145, 2
    %v5147 = vadd.f32 %v5145, %v5146
    %v5148 = vrot.slane %v5147, 1
    %v5149 = vadd.f32 %v5147, %v5148
    %v5150 = vmul.f32 %v5049, %v5049
    %v5151 = vmul.f32 %v5050, %v5050
    %v5152 = vmul.f32 %v5051, %v5051
    %v5153 = vmul.f32 %v5052, %v5052
    %v5154 = vmul.f32 %v5053, %v5053
    %v5155 = vmul.f32 %v5054, %v5054
    %v5156 = vmul.f32 %v5055, %v5055
    %v5157 = vmul.f32 %v5056, %v5056
    %v5158 = vmul.f32 %v5057, %v5057
    %v5159 = vmul.f32 %v5058, %v5058
    %v5160 = vmul.f32 %v5059, %v5059
    %v5161 = vmul.f32 %v5060, %v5060
    %v5162 = vmul.f32 %v5061, %v5061
    %v5163 = vmul.f32 %v5062, %v5062
    %v5164 = vmul.f32 %v5063, %v5063
    %v5165 = vmul.f32 %v5064, %v5064
    %v5166 = vmul.f32 %v5065, %v5065
    %v5167 = vmul.f32 %v5066, %v5066
    %v5168 = vmul.f32 %v5067, %v5067
    %v5169 = vmul.f32 %v5068, %v5068
    %v5170 = vmul.f32 %v5069, %v5069
    %v5171 = vmul.f32 %v5070, %v5070
    %v5172 = vmul.f32 %v5071, %v5071
    %v5173 = vmul.f32 %v5072, %v5072
    %v5174 = vmul.f32 %v5073, %v5073
    %v5175 = vmul.f32 %v5074, %v5074
    %v5176 = vmul.f32 %v5075, %v5075
    %v5177 = vmul.f32 %v5076, %v5076
    %v5178 = vmul.f32 %v5077, %v5077
    %v5179 = vmul.f32 %v5078, %v5078
    %v5180 = vmul.f32 %v5079, %v5079
    %v5181 = vmul.f32 %v5080, %v5080
    %v5182 = vadd.f32 %v5150, %v5151
    %v5183 = vadd.f32 %v5182, %v5152
    %v5184 = vadd.f32 %v5183, %v5153
    %v5185 = vadd.f32 %v5184, %v5154
    %v5186 = vadd.f32 %v5185, %v5155
    %v5187 = vadd.f32 %v5186, %v5156
    %v5188 = vadd.f32 %v5187, %v5157
    %v5189 = vadd.f32 %v5188, %v5158
    %v5190 = vadd.f32 %v5189, %v5159
    %v5191 = vadd.f32 %v5190, %v5160
    %v5192 = vadd.f32 %v5191, %v5161
    %v5193 = vadd.f32 %v5192, %v5162
    %v5194 = vadd.f32 %v5193, %v5163
    %v5195 = vadd.f32 %v5194, %v5164
    %v5196 = vadd.f32 %v5195, %v5165
    %v5197 = vadd.f32 %v5196, %v5166
    %v5198 = vadd.f32 %v5197, %v5167
    %v5199 = vadd.f32 %v5198, %v5168
    %v5200 = vadd.f32 %v5199, %v5169
    %v5201 = vadd.f32 %v5200, %v5170
    %v5202 = vadd.f32 %v5201, %v5171
    %v5203 = vadd.f32 %v5202, %v5172
    %v5204 = vadd.f32 %v5203, %v5173
    %v5205 = vadd.f32 %v5204, %v5174
    %v5206 = vadd.f32 %v5205, %v5175
    %v5207 = vadd.f32 %v5206, %v5176
    %v5208 = vadd.f32 %v5207, %v5177
    %v5209 = vadd.f32 %v5208, %v5178
    %v5210 = vadd.f32 %v5209, %v5179
    %v5211 = vadd.f32 %v5210, %v5180
    %v5212 = vadd.f32 %v5211, %v5181
    %v5213 = vrot.slane %v5212, 4
    %v5214 = vadd.f32 %v5212, %v5213
    %v5215 = vrot.slane %v5214, 2
    %v5216 = vadd.f32 %v5214, %v5215
    %v5217 = vrot.slane %v5216, 1
    %v5218 = vadd.f32 %v5216, %v5217
    %v5219 = vmul.f32 %v5149, 0.0625
    %v5220 = vmul.f32 %v5218, 0.0625
    %v5221 = vmul.f32 %v5219, %v5219
    %v5222 = vsub.f32 %v5220, %v5221
    %v5223 = vmax.f32 %v5222, 0.0
    %s5224 = scalar_lea.vmem %s7, 3
    %v5225 = vld [vmem:[%s5224] sm:$0x1]
    %v5226 = vadd.f32 %v5223, 1e-05
    %v5227 = vrsqrt.pop %v5226
    %v5228 = vmul.f32 %v5225, %v5227
    %s5229 = scalar_lea.vmem %s8, 3
    %v5230 = vld [vmem:[%s5229] sm:$0x1]
    %v5231 = vmul.f32 %v5219, %v5228
    %v5232 = vsub.f32 %v5230, %v5231
    %s5233 = scalar_lea.vmem %s5, 384
    %v5234 = vld [vmem:[%s5233] sm:$0xff]
    %v5235 = vld [vmem:[%s5233 + $0x8] sm:$0xff]
    %v5236 = vld [vmem:[%s5233 + $0x10] sm:$0xff]
    %v5237 = vld [vmem:[%s5233 + $0x18] sm:$0xff]
    %v5238 = vld [vmem:[%s5233 + $0x20] sm:$0xff]
    %v5239 = vld [vmem:[%s5233 + $0x28] sm:$0xff]
    %v5240 = vld [vmem:[%s5233 + $0x30] sm:$0xff]
    %v5241 = vld [vmem:[%s5233 + $0x38] sm:$0xff]
    %v5242 = vld [vmem:[%s5233 + $0x40] sm:$0xff]
    %v5243 = vld [vmem:[%s5233 + $0x48] sm:$0xff]
    %v5244 = vld [vmem:[%s5233 + $0x50] sm:$0xff]
    %v5245 = vld [vmem:[%s5233 + $0x58] sm:$0xff]
    %v5246 = vld [vmem:[%s5233 + $0x60] sm:$0xff]
    %v5247 = vld [vmem:[%s5233 + $0x68] sm:$0xff]
    %v5248 = vld [vmem:[%s5233 + $0x70] sm:$0xff]
    %v5249 = vld [vmem:[%s5233 + $0x78] sm:$0xff]
    %5250 = vmatprep.subr.mxu0 0.0
    %5251 = vmatpush1.msra.mxu0 %v5234
    %5252 = vmatprep.subr.mxu0 0.0
    %5253 = vmatpush1.msra.mxu0 %v5235
    %5254 = vmatprep.subr.mxu0 0.0
    %5255 = vmatpush1.msra.mxu0 %v5236
    %5256 = vmatprep.subr.mxu0 0.0
    %5257 = vmatpush1.msra.mxu0 %v5237
    %5258 = vmatprep.subr.mxu0 0.0
    %5259 = vmatpush1.msra.mxu0 %v5238
    %5260 = vmatprep.subr.mxu0 0.0
    %5261 = vmatpush1.msra.mxu0 %v5239
    %5262 = vmatprep.subr.mxu0 0.0
    %5263 = vmatpush1.msra.mxu0 %v5240
    %5264 = vmatprep.subr.mxu0 0.0
    %5265 = vmatpush1.msra.mxu0 %v5241
    %5266 = vmatprep.subr.mxu0 0.0
    %5267 = vmatpush1.msra.mxu0 %v5242
    %5268 = vmatprep.subr.mxu0 0.0
    %5269 = vmatpush1.msra.mxu0 %v5243
    %5270 = vmatprep.subr.mxu0 0.0
    %5271 = vmatpush1.msra.mxu0 %v5244
    %5272 = vmatprep.subr.mxu0 0.0
    %5273 = vmatpush1.msra.mxu0 %v5245
    %5274 = vmatprep.subr.mxu0 0.0
    %5275 = vmatpush1.msra.mxu0 %v5246
    %5276 = vmatprep.subr.mxu0 0.0
    %5277 = vmatpush1.msra.mxu0 %v5247
    %5278 = vmatprep.subr.mxu0 0.0
    %5279 = vmatpush1.msra.mxu0 %v5248
    %5280 = vmatprep.subr.mxu0 0.0
    %5281 = vmatpush1.msra.mxu0 %v5249
    %5282 = vmatprep.subr.mxu0 0.0
    %5283 = vmatpush1.msra.mxu0 0.0
    %5284 = vmatprep.subr.mxu0 0.0
    %5285 = vmatpush1.msra.mxu0 0.0
    %5286 = vmatprep.subr.mxu0 0.0
    %5287 = vmatpush1.msra.mxu0 0.0
    %5288 = vmatprep.subr.mxu0 0.0
    %5289 = vmatpush1.msra.mxu0 0.0
    %5290 = vmatprep.subr.mxu0 0.0
    %5291 = vmatpush1.msra.mxu0 0.0
    %5292 = vmatprep.subr.mxu0 0.0
    %5293 = vmatpush1.msra.mxu0 0.0
    %5294 = vmatprep.subr.mxu0 0.0
    %5295 = vmatpush1.msra.mxu0 0.0
    %5296 = vmatprep.subr.mxu0 0.0
    %5297 = vmatpush1.msra.mxu0 0.0
    %5298 = vmatprep.subr.mxu0 0.0
    %5299 = vmatpush1.msra.mxu0 0.0
    %5300 = vmatprep.subr.mxu0 0.0
    %5301 = vmatpush1.msra.mxu0 0.0
    %5302 = vmatprep.subr.mxu0 0.0
    %5303 = vmatpush1.msra.mxu0 0.0
    %5304 = vmatprep.subr.mxu0 0.0
    %5305 = vmatpush1.msra.mxu0 0.0
    %5306 = vmatprep.subr.mxu0 0.0
    %5307 = vmatpush1.msra.mxu0 0.0
    %5308 = vmatprep.subr.mxu0 0.0
    %5309 = vmatpush1.msra.mxu0 0.0
    %5310 = vmatprep.subr.mxu0 0.0
    %5311 = vmatpush1.msra.mxu0 0.0
    %5312 = vmatprep.subr.mxu0 0.0
    %5313 = vmatpush1.msra.mxu0 0.0
    %5314 = vmatprep.mubr.f32.mxu0 0.0
    %5315 = vmatmul.mubr.f32.gmra.mrb[0].mxu0 %v5232
    %v5316 = vpop.f32.mrb[0].mxu0
    %v5317 = vadd.f32 0.0, %v5316
    %v5318 = vpop.f32.mrb[0].mxu0
    %5319 = vdwg.mxu0
    %s5320 = scalar_lea.vmem %s6, 3
    %v5321 = vld [vmem:[%s5320] sm:$0x1]
    %v5322 = vpack.c.bf16 %v5235, %v5234
    %v5323 = vpack.c.bf16 %v5237, %v5236
    %v5324 = vpack.c.bf16 %v5239, %v5238
    %v5325 = vpack.c.bf16 %v5241, %v5240
    %v5326 = vpack.c.bf16 %v5243, %v5242
    %v5327 = vpack.c.bf16 %v5245, %v5244
    %v5328 = vpack.c.bf16 %v5247, %v5246
    %v5329 = vpack.c.bf16 %v5249, %v5248
    %s5330 = sshll.u32 %s634, 4
    %5331 = dma.done [#allocation6], %s5330
    %v5332 = vld [vmem:[#allocation5] sm:$0xff]
    %v5333 = vld [vmem:[#allocation5 + $0x8] sm:$0xff]
    %v5334 = vld [vmem:[#allocation5 + $0x10] sm:$0xff]
    %v5335 = vld [vmem:[#allocation5 + $0x18] sm:$0xff]
    %v5336 = vld [vmem:[#allocation5 + $0x20] sm:$0xff]
    %v5337 = vld [vmem:[#allocation5 + $0x28] sm:$0xff]
    %v5338 = vld [vmem:[#allocation5 + $0x30] sm:$0xff]
    %v5339 = vld [vmem:[#allocation5 + $0x38] sm:$0xff]
    %v5340 = vld [vmem:[#allocation5 + $0x40] sm:$0xff]
    %v5341 = vld [vmem:[#allocation5 + $0x48] sm:$0xff]
    %v5342 = vld [vmem:[#allocation5 + $0x50] sm:$0xff]
    %v5343 = vld [vmem:[#allocation5 + $0x58] sm:$0xff]
    %v5344 = vld [vmem:[#allocation5 + $0x60] sm:$0xff]
    %v5345 = vld [vmem:[#allocation5 + $0x68] sm:$0xff]
    %v5346 = vld [vmem:[#allocation5 + $0x70] sm:$0xff]
    %v5347 = vld [vmem:[#allocation5 + $0x78] sm:$0xff]
    %v5348 = vld [vmem:[#allocation5 + $0x80] sm:$0xff]
    %v5349 = vld [vmem:[#allocation5 + $0x88] sm:$0xff]
    %v5350 = vld [vmem:[#allocation5 + $0x90] sm:$0xff]
    %v5351 = vld [vmem:[#allocation5 + $0x98] sm:$0xff]
    %v5352 = vld [vmem:[#allocation5 + $0xa0] sm:$0xff]
    %v5353 = vld [vmem:[#allocation5 + $0xa8] sm:$0xff]
    %v5354 = vld [vmem:[#allocation5 + $0xb0] sm:$0xff]
    %v5355 = vld [vmem:[#allocation5 + $0xb8] sm:$0xff]
    %v5356 = vld [vmem:[#allocation5 + $0xc0] sm:$0xff]
    %v5357 = vld [vmem:[#allocation5 + $0xc8] sm:$0xff]
    %v5358 = vld [vmem:[#allocation5 + $0xd0] sm:$0xff]
    %v5359 = vld [vmem:[#allocation5 + $0xd8] sm:$0xff]
    %v5360 = vld [vmem:[#allocation5 + $0xe0] sm:$0xff]
    %v5361 = vld [vmem:[#allocation5 + $0xe8] sm:$0xff]
    %v5362 = vld [vmem:[#allocation5 + $0xf0] sm:$0xff]
    %v5363 = vld [vmem:[#allocation5 + $0xf8] sm:$0xff]
    %v5364 = vld [vmem:[#allocation4] sm:$0xff]
    %v5365 = vld [vmem:[#allocation4 + $0x8] sm:$0xff]
    %v5366 = vld [vmem:[#allocation4 + $0x10] sm:$0xff]
    %v5367 = vld [vmem:[#allocation4 + $0x18] sm:$0xff]
    %v5368 = vld [vmem:[#allocation4 + $0x20] sm:$0xff]
    %v5369 = vld [vmem:[#allocation4 + $0x28] sm:$0xff]
    %v5370 = vld [vmem:[#allocation4 + $0x30] sm:$0xff]
    %v5371 = vld [vmem:[#allocation4 + $0x38] sm:$0xff]
    %v5372 = vld [vmem:[#allocation4 + $0x40] sm:$0xff]
    %v5373 = vld [vmem:[#allocation4 + $0x48] sm:$0xff]
    %v5374 = vld [vmem:[#allocation4 + $0x50] sm:$0xff]
    %v5375 = vld [vmem:[#allocation4 + $0x58] sm:$0xff]
    %v5376 = vld [vmem:[#allocation4 + $0x60] sm:$0xff]
    %v5377 = vld [vmem:[#allocation4 + $0x68] sm:$0xff]
    %v5378 = vld [vmem:[#allocation4 + $0x70] sm:$0xff]
    %v5379 = vld [vmem:[#allocation4 + $0x78] sm:$0xff]
    %5380 = vmatprep.subr.bf16.mxu0 0
    %5381 = vmatpush1.bf16.msra.mxu0 %v5364
    %5382 = vmatprep.subr.bf16.mxu0 0
    %5383 = vmatpush1.bf16.msra.mxu0 %v5365
    %5384 = vmatprep.subr.bf16.mxu0 0
    %5385 = vmatpush1.bf16.msra.mxu0 %v5366
    %5386 = vmatprep.subr.bf16.mxu0 0
    %5387 = vmatpush1.bf16.msra.mxu0 %v5367
    %5388 = vmatprep.subr.bf16.mxu0 0
    %5389 = vmatpush1.bf16.msra.mxu0 %v5368
    %5390 = vmatprep.subr.bf16.mxu0 0
    %5391 = vmatpush1.bf16.msra.mxu0 %v5369
    %5392 = vmatprep.subr.bf16.mxu0 0
    %5393 = vmatpush1.bf16.msra.mxu0 %v5370
    %5394 = vmatprep.subr.bf16.mxu0 0
    %5395 = vmatpush1.bf16.msra.mxu0 %v5371
    %5396 = vmatprep.subr.bf16.mxu0 0
    %5397 = vmatpush1.bf16.msra.mxu0 %v5372
    %5398 = vmatprep.subr.bf16.mxu0 0
    %5399 = vmatpush1.bf16.msra.mxu0 %v5373
    %5400 = vmatprep.subr.bf16.mxu0 0
    %5401 = vmatpush1.bf16.msra.mxu0 %v5374
    %5402 = vmatprep.subr.bf16.mxu0 0
    %5403 = vmatpush1.bf16.msra.mxu0 %v5375
    %5404 = vmatprep.subr.bf16.mxu0 0
    %5405 = vmatpush1.bf16.msra.mxu0 %v5376
    %5406 = vmatprep.subr.bf16.mxu0 0
    %5407 = vmatpush1.bf16.msra.mxu0 %v5377
    %5408 = vmatprep.subr.bf16.mxu0 0
    %5409 = vmatpush1.bf16.msra.mxu0 %v5378
    %5410 = vmatprep.subr.bf16.mxu0 0
    %5411 = vmatpush1.bf16.msra.mxu0 %v5379
    %5412 = vmatprep.mubr.bf16.mxu0 %v5333
    %5413 = vmatmul.mubr.bf16.gmra.mrb[0].mxu0 %v5332
    %v5414 = vpop.f32.mrb[0].mxu0
    %v5415 = vadd.f32 0.0, %v5414
    %v5416 = vpop.f32.mrb[0].mxu0
    %v5417 = vpop.f32.mrb[0].mxu0
    %v5418 = vadd.f32 0.0, %v5417
    %v5419 = vpop.f32.mrb[0].mxu0
    %5420 = vmatprep.mubr.bf16.mxu0 %v5335
    %5421 = vmatmul.mubr.bf16.gmra.mrb[0].mxu0 %v5334
    %v5422 = vpop.f32.mrb[0].mxu0
    %v5423 = vadd.f32 0.0, %v5422
    %v5424 = vpop.f32.mrb[0].mxu0
    %v5425 = vpop.f32.mrb[0].mxu0
    %v5426 = vadd.f32 0.0, %v5425
    %v5427 = vpop.f32.mrb[0].mxu0
    %5428 = vmatprep.mubr.bf16.mxu0 %v5337
    %5429 = vmatmul.mubr.bf16.gmra.mrb[0].mxu0 %v5336
    %v5430 = vpop.f32.mrb[0].mxu0
    %v5431 = vadd.f32 0.0, %v5430
    %v5432 = vpop.f32.mrb[0].mxu0
    %v5433 = vpop.f32.mrb[0].mxu0
    %v5434 = vadd.f32 0.0, %v5433
    %v5435 = vpop.f32.mrb[0].mxu0
    %5436 = vmatprep.mubr.bf16.mxu0 %v5339
    %5437 = vmatmul.mubr.bf16.gmra.mrb[0].mxu0 %v5338
    %v5438 = vpop.f32.mrb[0].mxu0
    %v5439 = vadd.f32 0.0, %v5438
    %v5440 = vpop.f32.mrb[0].mxu0
    %v5441 = vpop.f32.mrb[0].mxu0
    %v5442 = vadd.f32 0.0, %v5441
    %v5443 = vpop.f32.mrb[0].mxu0
    %5444 = vmatprep.mubr.bf16.mxu0 %v5341
    %5445 = vmatmul.mubr.bf16.gmra.mrb[0].mxu0 %v5340
    %v5446 = vpop.f32.mrb[0].mxu0
    %v5447 = vadd.f32 0.0, %v5446
    %v5448 = vpop.f32.mrb[0].mxu0
    %v5449 = vpop.f32.mrb[0].mxu0
    %v5450 = vadd.f32 0.0, %v5449
    %v5451 = vpop.f32.mrb[0].mxu0
    %5452 = vmatprep.mubr.bf16.mxu0 %v5343
    %5453 = vmatmul.mubr.bf16.gmra.mrb[0].mxu0 %v5342
    %v5454 = vpop.f32.mrb[0].mxu0
    %v5455 = vadd.f32 0.0, %v5454
    %v5456 = vpop.f32.mrb[0].mxu0
    %v5457 = vpop.f32.mrb[0].mxu0
    %v5458 = vadd.f32 0.0, %v5457
    %v5459 = vpop.f32.mrb[0].mxu0
    %5460 = vmatprep.mubr.bf16.mxu0 %v5345
    %5461 = vmatmul.mubr.bf16.gmra.mrb[0].mxu0 %v5344
    %v5462 = vpop.f32.mrb[0].mxu0
    %v5463 = vadd.f32 0.0, %v5462
    %v5464 = vpop.f32.mrb[0].mxu0
    %v5465 = vpop.f32.mrb[0].mxu0
    %v5466 = vadd.f32 0.0, %v5465
    %v5467 = vpop.f32.mrb[0].mxu0
    %5468 = vmatprep.mubr.bf16.mxu0 %v5347
    %5469 = vmatmul.mubr.bf16.gmra.mrb[0].mxu0 %v5346
    %v5470 = vpop.f32.mrb[0].mxu0
    %v5471 = vadd.f32 0.0, %v5470
    %v5472 = vpop.f32.mrb[0].mxu0
    %v5473 = vpop.f32.mrb[0].mxu0
    %v5474 = vadd.f32 0.0, %v5473
    %v5475 = vpop.f32.mrb[0].mxu0
    %5476 = vmatprep.mubr.bf16.mxu0 %v5349
    %5477 = vmatmul.mubr.bf16.gmra.mrb[0].mxu0 %v5348
    %v5478 = vpop.f32.mrb[0].mxu0
    %v5479 = vadd.f32 0.0, %v5478
    %v5480 = vpop.f32.mrb[0].mxu0
    %v5481 = vpop.f32.mrb[0].mxu0
    %v5482 = vadd.f32 0.0, %v5481
    %v5483 = vpop.f32.mrb[0].mxu0
    %5484 = vmatprep.mubr.bf16.mxu0 %v5351
    %5485 = vmatmul.mubr.bf16.gmra.mrb[0].mxu0 %v5350
    %v5486 = vpop.f32.mrb[0].mxu0
    %v5487 = vadd.f32 0.0, %v5486
    %v5488 = vpop.f32.mrb[0].mxu0
    %v5489 = vpop.f32.mrb[0].mxu0
    %v5490 = vadd.f32 0.0, %v5489
    %v5491 = vpop.f32.mrb[0].mxu0
    %5492 = vmatprep.mubr.bf16.mxu0 %v5353
    %5493 = vmatmul.mubr.bf16.gmra.mrb[0].mxu0 %v5352
    %v5494 = vpop.f32.mrb[0].mxu0
    %v5495 = vadd.f32 0.0, %v5494
    %v5496 = vpop.f32.mrb[0].mxu0
    %v5497 = vpop.f32.mrb[0].mxu0
    %v5498 = vadd.f32 0.0, %v5497
    %v5499 = vpop.f32.mrb[0].mxu0
    %5500 = vmatprep.mubr.bf16.mxu0 %v5355
    %5501 = vmatmul.mubr.bf16.gmra.mrb[0].mxu0 %v5354
    %v5502 = vpop.f32.mrb[0].mxu0
    %v5503 = vadd.f32 0.0, %v5502
    %v5504 = vpop.f32.mrb[0].mxu0
    %v5505 = vpop.f32.mrb[0].mxu0
    %v5506 = vadd.f32 0.0, %v5505
    %v5507 = vpop.f32.mrb[0].mxu0
    %5508 = vmatprep.mubr.bf16.mxu0 %v5357
    %5509 = vmatmul.mubr.bf16.gmra.mrb[0].mxu0 %v5356
    %v5510 = vpop.f32.mrb[0].mxu0
    %v5511 = vadd.f32 0.0, %v5510
    %v5512 = vpop.f32.mrb[0].mxu0
    %v5513 = vpop.f32.mrb[0].mxu0
    %v5514 = vadd.f32 0.0, %v5513
    %v5515 = vpop.f32.mrb[0].mxu0
    %5516 = vmatprep.mubr.bf16.mxu0 %v5359
    %5517 = vmatmul.mubr.bf16.gmra.mrb[0].mxu0 %v5358
    %v5518 = vpop.f32.mrb[0].mxu0
    %v5519 = vadd.f32 0.0, %v5518
    %v5520 = vpop.f32.mrb[0].mxu0
    %v5521 = vpop.f32.mrb[0].mxu0
    %v5522 = vadd.f32 0.0, %v5521
    %v5523 = vpop.f32.mrb[0].mxu0
    %5524 = vmatprep.mubr.bf16.mxu0 %v5361
    %5525 = vmatmul.mubr.bf16.gmra.mrb[0].mxu0 %v5360
    %v5526 = vpop.f32.mrb[0].mxu0
    %v5527 = vadd.f32 0.0, %v5526
    %v5528 = vpop.f32.mrb[0].mxu0
    %v5529 = vpop.f32.mrb[0].mxu0
    %v5530 = vadd.f32 0.0, %v5529
    %v5531 = vpop.f32.mrb[0].mxu0
    %5532 = vmatprep.mubr.bf16.mxu0 %v5363
    %5533 = vmatmul.mubr.bf16.gmra.mrb[0].mxu0 %v5362
    %v5534 = vpop.f32.mrb[0].mxu0
    %v5535 = vadd.f32 0.0, %v5534
    %v5536 = vpop.f32.mrb[0].mxu0
    %v5537 = vpop.f32.mrb[0].mxu0
    %v5538 = vadd.f32 0.0, %v5537
    %v5539 = vpop.f32.mrb[0].mxu0
    %5540 = vdwg.mxu0
    %v5542 = vlaneseq
    %v5543 = vshrl.u32 %v5542, 7
    %v5544 = vsub.s32 0, %v5543
    %v5545 = vrot.slane %v5228, %v5544
    %v5547 = vmul.f32 %v5415, %v5545
    %v5548 = vmul.f32 %v5418, %v5545
    %v5549 = vmul.f32 %v5423, %v5545
    %v5550 = vmul.f32 %v5426, %v5545
    %v5551 = vmul.f32 %v5431, %v5545
    %v5552 = vmul.f32 %v5434, %v5545
    %v5553 = vmul.f32 %v5439, %v5545
    %v5554 = vmul.f32 %v5442, %v5545
    %v5555 = vmul.f32 %v5447, %v5545
    %v5556 = vmul.f32 %v5450, %v5545
    %v5557 = vmul.f32 %v5455, %v5545
    %v5558 = vmul.f32 %v5458, %v5545
    %v5559 = vmul.f32 %v5463, %v5545
    %v5560 = vmul.f32 %v5466, %v5545
    %v5561 = vmul.f32 %v5471, %v5545
    %v5562 = vmul.f32 %v5474, %v5545
    %v5563 = vmul.f32 %v5479, %v5545
    %v5564 = vmul.f32 %v5482, %v5545
    %v5565 = vmul.f32 %v5487, %v5545
    %v5566 = vmul.f32 %v5490, %v5545
    %v5567 = vmul.f32 %v5495, %v5545
    %v5568 = vmul.f32 %v5498, %v5545
    %v5569 = vmul.f32 %v5503, %v5545
    %v5570 = vmul.f32 %v5506, %v5545
    %v5571 = vmul.f32 %v5511, %v5545
    %v5572 = vmul.f32 %v5514, %v5545
    %v5573 = vmul.f32 %v5519, %v5545
    %v5574 = vmul.f32 %v5522, %v5545
    %v5575 = vmul.f32 %v5527, %v5545
    %v5576 = vmul.f32 %v5530, %v5545
    %v5577 = vmul.f32 %v5535, %v5545
    %v5578 = vmul.f32 %v5538, %v5545
    %v5579 = vpack.c.bf16 %v5548, %v5547
    %v5580 = vpack.c.bf16 %v5550, %v5549
    %v5581 = vpack.c.bf16 %v5552, %v5551
    %v5582 = vpack.c.bf16 %v5554, %v5553
    %v5583 = vpack.c.bf16 %v5556, %v5555
    %v5584 = vpack.c.bf16 %v5558, %v5557
    %v5585 = vpack.c.bf16 %v5560, %v5559
    %v5586 = vpack.c.bf16 %v5562, %v5561
    %v5587 = vpack.c.bf16 %v5564, %v5563
    %v5588 = vpack.c.bf16 %v5566, %v5565
    %v5589 = vpack.c.bf16 %v5568, %v5567
    %v5590 = vpack.c.bf16 %v5570, %v5569
    %v5591 = vpack.c.bf16 %v5572, %v5571
    %v5592 = vpack.c.bf16 %v5574, %v5573
    %v5593 = vpack.c.bf16 %v5576, %v5575
    %v5594 = vpack.c.bf16 %v5578, %v5577
    %v5595 = vld [vmem:[%s2] sm:$0xff]
    %v5596 = vld [vmem:[%s2 + $0x8] sm:$0xff]
    %v5597 = vld [vmem:[%s2 + $0x10] sm:$0xff]
    %v5598 = vld [vmem:[%s2 + $0x18] sm:$0xff]
    %v5599 = vld [vmem:[%s2 + $0x20] sm:$0xff]
    %v5600 = vld [vmem:[%s2 + $0x28] sm:$0xff]
    %v5601 = vld [vmem:[%s2 + $0x30] sm:$0xff]
    %v5602 = vld [vmem:[%s2 + $0x38] sm:$0xff]
    %v5603 = vld [vmem:[%s2 + $0x40] sm:$0xff]
    %v5604 = vld [vmem:[%s2 + $0x48] sm:$0xff]
    %v5605 = vld [vmem:[%s2 + $0x50] sm:$0xff]
    %v5606 = vld [vmem:[%s2 + $0x58] sm:$0xff]
    %v5607 = vld [vmem:[%s2 + $0x60] sm:$0xff]
    %v5608 = vld [vmem:[%s2 + $0x68] sm:$0xff]
    %v5609 = vld [vmem:[%s2 + $0x70] sm:$0xff]
    %v5610 = vld [vmem:[%s2 + $0x78] sm:$0xff]
    %v5611 = vld [vmem:[%s2 + $0x80] sm:$0xff]
    %v5612 = vld [vmem:[%s2 + $0x88] sm:$0xff]
    %v5613 = vld [vmem:[%s2 + $0x90] sm:$0xff]
    %v5614 = vld [vmem:[%s2 + $0x98] sm:$0xff]
    %v5615 = vld [vmem:[%s2 + $0xa0] sm:$0xff]
    %v5616 = vld [vmem:[%s2 + $0xa8] sm:$0xff]
    %v5617 = vld [vmem:[%s2 + $0xb0] sm:$0xff]
    %v5618 = vld [vmem:[%s2 + $0xb8] sm:$0xff]
    %v5619 = vld [vmem:[%s2 + $0xc0] sm:$0xff]
    %v5620 = vld [vmem:[%s2 + $0xc8] sm:$0xff]
    %v5621 = vld [vmem:[%s2 + $0xd0] sm:$0xff]
    %v5622 = vld [vmem:[%s2 + $0xd8] sm:$0xff]
    %v5623 = vld [vmem:[%s2 + $0xe0] sm:$0xff]
    %v5624 = vld [vmem:[%s2 + $0xe8] sm:$0xff]
    %v5625 = vld [vmem:[%s2 + $0xf0] sm:$0xff]
    %v5626 = vld [vmem:[%s2 + $0xf8] sm:$0xff]
    %5628 = vset.pattern.permute.xlu0 0
    %5629 = vperm.xlu0 %5628, %v5595
    %v5630 = vpop.permute.xlu0 %5629
    %5633 = vset.pattern.permute.xlu0 0
    %5634 = vperm.xlu0 %5633, %v5596
    %v5635 = vpop.permute.xlu0 %5634
    %5638 = vset.pattern.permute.xlu0 0
    %5639 = vperm.xlu0 %5638, %v5597
    %v5640 = vpop.permute.xlu0 %5639
    %5643 = vset.pattern.permute.xlu0 0
    %5644 = vperm.xlu0 %5643, %v5598
    %v5645 = vpop.permute.xlu0 %5644
    %5648 = vset.pattern.permute.xlu0 0
    %5649 = vperm.xlu0 %5648, %v5599
    %v5650 = vpop.permute.xlu0 %5649
    %5653 = vset.pattern.permute.xlu0 0
    %5654 = vperm.xlu0 %5653, %v5600
    %v5655 = vpop.permute.xlu0 %5654
    %5658 = vset.pattern.permute.xlu0 0
    %5659 = vperm.xlu0 %5658, %v5601
    %v5660 = vpop.permute.xlu0 %5659
    %5663 = vset.pattern.permute.xlu0 0
    %5664 = vperm.xlu0 %5663, %v5602
    %v5665 = vpop.permute.xlu0 %5664
    %5668 = vset.pattern.permute.xlu0 0
    %5669 = vperm.xlu0 %5668, %v5603
    %v5670 = vpop.permute.xlu0 %5669
    %5673 = vset.pattern.permute.xlu0 0
    %5674 = vperm.xlu0 %5673, %v5604
    %v5675 = vpop.permute.xlu0 %5674
    %5678 = vset.pattern.permute.xlu0 0
    %5679 = vperm.xlu0 %5678, %v5605
    %v5680 = vpop.permute.xlu0 %5679
    %5683 = vset.pattern.permute.xlu0 0
    %5684 = vperm.xlu0 %5683, %v5606
    %v5685 = vpop.permute.xlu0 %5684
    %5688 = vset.pattern.permute.xlu0 0
    %5689 = vperm.xlu0 %5688, %v5607
    %v5690 = vpop.permute.xlu0 %5689
    %5693 = vset.pattern.permute.xlu0 0
    %5694 = vperm.xlu0 %5693, %v5608
    %v5695 = vpop.permute.xlu0 %5694
    %5698 = vset.pattern.permute.xlu0 0
    %5699 = vperm.xlu0 %5698, %v5609
    %v5700 = vpop.permute.xlu0 %5699
    %5703 = vset.pattern.permute.xlu0 0
    %5704 = vperm.xlu0 %5703, %v5610
    %v5705 = vpop.permute.xlu0 %5704
    %5708 = vset.pattern.permute.xlu0 0
    %5709 = vperm.xlu0 %5708, %v5611
    %v5710 = vpop.permute.xlu0 %5709
    %5713 = vset.pattern.permute.xlu0 0
    %5714 = vperm.xlu0 %5713, %v5612
    %v5715 = vpop.permute.xlu0 %5714
    %5718 = vset.pattern.permute.xlu0 0
    %5719 = vperm.xlu0 %5718, %v5613
    %v5720 = vpop.permute.xlu0 %5719
    %5723 = vset.pattern.permute.xlu0 0
    %5724 = vperm.xlu0 %5723, %v5614
    %v5725 = vpop.permute.xlu0 %5724
    %5728 = vset.pattern.permute.xlu0 0
    %5729 = vperm.xlu0 %5728, %v5615
    %v5730 = vpop.permute.xlu0 %5729
    %5733 = vset.pattern.permute.xlu0 0
    %5734 = vperm.xlu0 %5733, %v5616
    %v5735 = vpop.permute.xlu0 %5734
    %5738 = vset.pattern.permute.xlu0 0
    %5739 = vperm.xlu0 %5738, %v5617
    %v5740 = vpop.permute.xlu0 %5739
    %5743 = vset.pattern.permute.xlu0 0
    %5744 = vperm.xlu0 %5743, %v5618
    %v5745 = vpop.permute.xlu0 %5744
    %5748 = vset.pattern.permute.xlu0 0
    %5749 = vperm.xlu0 %5748, %v5619
    %v5750 = vpop.permute.xlu0 %5749
    %5753 = vset.pattern.permute.xlu0 0
    %5754 = vperm.xlu0 %5753, %v5620
    %v5755 = vpop.permute.xlu0 %5754
    %5758 = vset.pattern.permute.xlu0 0
    %5759 = vperm.xlu0 %5758, %v5621
    %v5760 = vpop.permute.xlu0 %5759
    %5763 = vset.pattern.permute.xlu0 0
    %5764 = vperm.xlu0 %5763, %v5622
    %v5765 = vpop.permute.xlu0 %5764
    %5768 = vset.pattern.permute.xlu0 0
    %5769 = vperm.xlu0 %5768, %v5623
    %v5770 = vpop.permute.xlu0 %5769
    %5773 = vset.pattern.permute.xlu0 0
    %5774 = vperm.xlu0 %5773, %v5624
    %v5775 = vpop.permute.xlu0 %5774
    %5778 = vset.pattern.permute.xlu0 0
    %5779 = vperm.xlu0 %5778, %v5625
    %v5780 = vpop.permute.xlu0 %5779
    %5783 = vset.pattern.permute.xlu0 0
    %5784 = vperm.xlu0 %5783, %v5626
    %v5785 = vpop.permute.xlu0 %5784
    %v5787 = vlaneseq
    %v5788 = vshrl.u32 %v5787, 7
    %v5789 = vsub.s32 0, %v5788
    %v5790 = vrot.slane %v5317, %v5789
    %v5791 = vmul.f32 %v5630, %v5790
    %v5792 = vmul.f32 %v5635, %v5790
    %v5793 = vmul.f32 %v5640, %v5790
    %v5794 = vmul.f32 %v5645, %v5790
    %v5795 = vmul.f32 %v5650, %v5790
    %v5796 = vmul.f32 %v5655, %v5790
    %v5797 = vmul.f32 %v5660, %v5790
    %v5798 = vmul.f32 %v5665, %v5790
    %v5799 = vmul.f32 %v5670, %v5790
    %v5800 = vmul.f32 %v5675, %v5790
    %v5801 = vmul.f32 %v5680, %v5790
    %v5802 = vmul.f32 %v5685, %v5790
    %v5803 = vmul.f32 %v5690, %v5790
    %v5804 = vmul.f32 %v5695, %v5790
    %v5805 = vmul.f32 %v5700, %v5790
    %v5806 = vmul.f32 %v5705, %v5790
    %v5807 = vmul.f32 %v5710, %v5790
    %v5808 = vmul.f32 %v5715, %v5790
    %v5809 = vmul.f32 %v5720, %v5790
    %v5810 = vmul.f32 %v5725, %v5790
    %v5811 = vmul.f32 %v5730, %v5790
    %v5812 = vmul.f32 %v5735, %v5790
    %v5813 = vmul.f32 %v5740, %v5790
    %v5814 = vmul.f32 %v5745, %v5790
    %v5815 = vmul.f32 %v5750, %v5790
    %v5816 = vmul.f32 %v5755, %v5790
    %v5817 = vmul.f32 %v5760, %v5790
    %v5818 = vmul.f32 %v5765, %v5790
    %v5819 = vmul.f32 %v5770, %v5790
    %v5820 = vmul.f32 %v5775, %v5790
    %v5821 = vmul.f32 %v5780, %v5790
    %v5822 = vmul.f32 %v5785, %v5790
    %5823 = vmatprep.subr.bf16.mxu0 0
    %5824 = vmatpush1.bf16.msra.mxu0 %v5322
    %5825 = vmatprep.subr.bf16.mxu0 0
    %5826 = vmatpush1.bf16.msra.mxu0 %v5323
    %5827 = vmatprep.subr.bf16.mxu0 0
    %5828 = vmatpush1.bf16.msra.mxu0 %v5324
    %5829 = vmatprep.subr.bf16.mxu0 0
    %5830 = vmatpush1.bf16.msra.mxu0 %v5325
    %5831 = vmatprep.subr.bf16.mxu0 0
    %5832 = vmatpush1.bf16.msra.mxu0 %v5326
    %5833 = vmatprep.subr.bf16.mxu0 0
    %5834 = vmatpush1.bf16.msra.mxu0 %v5327
    %5835 = vmatprep.subr.bf16.mxu0 0
    %5836 = vmatpush1.bf16.msra.mxu0 %v5328
    %5837 = vmatprep.subr.bf16.mxu0 0
    %5838 = vmatpush1.bf16.msra.mxu0 %v5329
    %5839 = vmatprep.subr.bf16.mxu0 0
    %5840 = vmatpush1.bf16.msra.mxu0 0
    %5841 = vmatprep.subr.bf16.mxu0 0
    %5842 = vmatpush1.bf16.msra.mxu0 0
    %5843 = vmatprep.subr.bf16.mxu0 0
    %5844 = vmatpush1.bf16.msra.mxu0 0
    %5845 = vmatprep.subr.bf16.mxu0 0
    %5846 = vmatpush1.bf16.msra.mxu0 0
    %5847 = vmatprep.subr.bf16.mxu0 0
    %5848 = vmatpush1.bf16.msra.mxu0 0
    %5849 = vmatprep.subr.bf16.mxu0 0
    %5850 = vmatpush1.bf16.msra.mxu0 0
    %5851 = vmatprep.subr.bf16.mxu0 0
    %5852 = vmatpush1.bf16.msra.mxu0 0
    %5853 = vmatprep.subr.bf16.mxu0 0
    %5854 = vmatpush1.bf16.msra.mxu0 0
    %5855 = vmatprep.mubr.bf16.mxu0 0
    %5856 = vmatmul.mubr.bf16.gmra.mrb[0].mxu0 %v5579
    %v5857 = vpop.f32.mrb[0].mxu0
    %v5858 = vadd.f32 %v5791, %v5857
    %v5859 = vpop.f32.mrb[0].mxu0
    %v5860 = vpop.f32.mrb[0].mxu0
    %v5861 = vadd.f32 %v5792, %v5860
    %v5862 = vpop.f32.mrb[0].mxu0
    %5863 = vmatprep.mubr.bf16.mxu0 0
    %5864 = vmatmul.mubr.bf16.gmra.mrb[0].mxu0 %v5580
    %v5865 = vpop.f32.mrb[0].mxu0
    %v5866 = vadd.f32 %v5793, %v5865
    %v5867 = vpop.f32.mrb[0].mxu0
    %v5868 = vpop.f32.mrb[0].mxu0
    %v5869 = vadd.f32 %v5794, %v5868
    %v5870 = vpop.f32.mrb[0].mxu0
    %5871 = vmatprep.mubr.bf16.mxu0 0
    %5872 = vmatmul.mubr.bf16.gmra.mrb[0].mxu0 %v5581
    %v5873 = vpop.f32.mrb[0].mxu0
    %v5874 = vadd.f32 %v5795, %v5873
    %v5875 = vpop.f32.mrb[0].mxu0
    %v5876 = vpop.f32.mrb[0].mxu0
    %v5877 = vadd.f32 %v5796, %v5876
    %v5878 = vpop.f32.mrb[0].mxu0
    %5879 = vmatprep.mubr.bf16.mxu0 0
    %5880 = vmatmul.mubr.bf16.gmra.mrb[0].mxu0 %v5582
    %v5881 = vpop.f32.mrb[0].mxu0
    %v5882 = vadd.f32 %v5797, %v5881
    %v5883 = vpop.f32.mrb[0].mxu0
    %v5884 = vpop.f32.mrb[0].mxu0
    %v5885 = vadd.f32 %v5798, %v5884
    %v5886 = vpop.f32.mrb[0].mxu0
    %5887 = vmatprep.mubr.bf16.mxu0 0
    %5888 = vmatmul.mubr.bf16.gmra.mrb[0].mxu0 %v5583
    %v5889 = vpop.f32.mrb[0].mxu0
    %v5890 = vadd.f32 %v5799, %v5889
    %v5891 = vpop.f32.mrb[0].mxu0
    %v5892 = vpop.f32.mrb[0].mxu0
    %v5893 = vadd.f32 %v5800, %v5892
    %v5894 = vpop.f32.mrb[0].mxu0
    %5895 = vmatprep.mubr.bf16.mxu0 0
    %5896 = vmatmul.mubr.bf16.gmra.mrb[0].mxu0 %v5584
    %v5897 = vpop.f32.mrb[0].mxu0
    %v5898 = vadd.f32 %v5801, %v5897
    %v5899 = vpop.f32.mrb[0].mxu0
    %v5900 = vpop.f32.mrb[0].mxu0
    %v5901 = vadd.f32 %v5802, %v5900
    %v5902 = vpop.f32.mrb[0].mxu0
    %5903 = vmatprep.mubr.bf16.mxu0 0
    %5904 = vmatmul.mubr.bf16.gmra.mrb[0].mxu0 %v5585
    %v5905 = vpop.f32.mrb[0].mxu0
    %v5906 = vadd.f32 %v5803, %v5905
    %v5907 = vpop.f32.mrb[0].mxu0
    %v5908 = vpop.f32.mrb[0].mxu0
    %v5909 = vadd.f32 %v5804, %v5908
    %v5910 = vpop.f32.mrb[0].mxu0
    %5911 = vmatprep.mubr.bf16.mxu0 0
    %5912 = vmatmul.mubr.bf16.gmra.mrb[0].mxu0 %v5586
    %v5913 = vpop.f32.mrb[0].mxu0
    %v5914 = vadd.f32 %v5805, %v5913
    %v5915 = vpop.f32.mrb[0].mxu0
    %v5916 = vpop.f32.mrb[0].mxu0
    %v5917 = vadd.f32 %v5806, %v5916
    %v5918 = vpop.f32.mrb[0].mxu0
    %5919 = vmatprep.mubr.bf16.mxu0 0
    %5920 = vmatmul.mubr.bf16.gmra.mrb[0].mxu0 %v5587
    %v5921 = vpop.f32.mrb[0].mxu0
    %v5922 = vadd.f32 %v5807, %v5921
    %v5923 = vpop.f32.mrb[0].mxu0
    %v5924 = vpop.f32.mrb[0].mxu0
    %v5925 = vadd.f32 %v5808, %v5924
    %v5926 = vpop.f32.mrb[0].mxu0
    %5927 = vmatprep.mubr.bf16.mxu0 0
    %5928 = vmatmul.mubr.bf16.gmra.mrb[0].mxu0 %v5588
    %v5929 = vpop.f32.mrb[0].mxu0
    %v5930 = vadd.f32 %v5809, %v5929
    %v5931 = vpop.f32.mrb[0].mxu0
    %v5932 = vpop.f32.mrb[0].mxu0
    %v5933 = vadd.f32 %v5810, %v5932
    %v5934 = vpop.f32.mrb[0].mxu0
    %5935 = vmatprep.mubr.bf16.mxu0 0
    %5936 = vmatmul.mubr.bf16.gmra.mrb[0].mxu0 %v5589
    %v5937 = vpop.f32.mrb[0].mxu0
    %v5938 = vadd.f32 %v5811, %v5937
    %v5939 = vpop.f32.mrb[0].mxu0
    %v5940 = vpop.f32.mrb[0].mxu0
    %v5941 = vadd.f32 %v5812, %v5940
    %v5942 = vpop.f32.mrb[0].mxu0
    %5943 = vmatprep.mubr.bf16.mxu0 0
    %5944 = vmatmul.mubr.bf16.gmra.mrb[0].mxu0 %v5590
    %v5945 = vpop.f32.mrb[0].mxu0
    %v5946 = vadd.f32 %v5813, %v5945
    %v5947 = vpop.f32.mrb[0].mxu0
    %v5948 = vpop.f32.mrb[0].mxu0
    %v5949 = vadd.f32 %v5814, %v5948
    %v5950 = vpop.f32.mrb[0].mxu0
    %5951 = vmatprep.mubr.bf16.mxu0 0
    %5952 = vmatmul.mubr.bf16.gmra.mrb[0].mxu0 %v5591
    %v5953 = vpop.f32.mrb[0].mxu0
    %v5954 = vadd.f32 %v5815, %v5953
    %v5955 = vpop.f32.mrb[0].mxu0
    %v5956 = vpop.f32.mrb[0].mxu0
    %v5957 = vadd.f32 %v5816, %v5956
    %v5958 = vpop.f32.mrb[0].mxu0
    %5959 = vmatprep.mubr.bf16.mxu0 0
    %5960 = vmatmul.mubr.bf16.gmra.mrb[0].mxu0 %v5592
    %v5961 = vpop.f32.mrb[0].mxu0
    %v5962 = vadd.f32 %v5817, %v5961
    %v5963 = vpop.f32.mrb[0].mxu0
    %v5964 = vpop.f32.mrb[0].mxu0
    %v5965 = vadd.f32 %v5818, %v5964
    %v5966 = vpop.f32.mrb[0].mxu0
    %5967 = vmatprep.mubr.bf16.mxu0 0
    %5968 = vmatmul.mubr.bf16.gmra.mrb[0].mxu0 %v5593
    %v5969 = vpop.f32.mrb[0].mxu0
    %v5970 = vadd.f32 %v5819, %v5969
    %v5971 = vpop.f32.mrb[0].mxu0
    %v5972 = vpop.f32.mrb[0].mxu0
    %v5973 = vadd.f32 %v5820, %v5972
    %v5974 = vpop.f32.mrb[0].mxu0
    %5975 = vmatprep.mubr.bf16.mxu0 0
    %5976 = vmatmul.mubr.bf16.gmra.mrb[0].mxu0 %v5594
    %v5977 = vpop.f32.mrb[0].mxu0
    %v5978 = vadd.f32 %v5821, %v5977
    %v5979 = vpop.f32.mrb[0].mxu0
    %v5980 = vpop.f32.mrb[0].mxu0
    %v5981 = vadd.f32 %v5822, %v5980
    %v5982 = vpop.f32.mrb[0].mxu0
    %5983 = vdwg.mxu0
    %v5985 = vlaneseq
    %v5986 = vshrl.u32 %v5985, 7
    %v5987 = vsub.s32 0, %v5986
    %v5988 = vrot.slane %v5321, %v5987
    %v5990 = vadd.f32 %v5858, %v5988
    %v5991 = vadd.f32 %v5861, %v5988
    %v5992 = vadd.f32 %v5866, %v5988
    %v5993 = vadd.f32 %v5869, %v5988
    %v5994 = vadd.f32 %v5874, %v5988
    %v5995 = vadd.f32 %v5877, %v5988
    %v5996 = vadd.f32 %v5882, %v5988
    %v5997 = vadd.f32 %v5885, %v5988
    %v5998 = vadd.f32 %v5890, %v5988
    %v5999 = vadd.f32 %v5893, %v5988
    %v6000 = vadd.f32 %v5898, %v5988
    %v6001 = vadd.f32 %v5901, %v5988
    %v6002 = vadd.f32 %v5906, %v5988
    %v6003 = vadd.f32 %v5909, %v5988
    %v6004 = vadd.f32 %v5914, %v5988
    %v6005 = vadd.f32 %v5917, %v5988
    %v6006 = vadd.f32 %v5922, %v5988
    %v6007 = vadd.f32 %v5925, %v5988
    %v6008 = vadd.f32 %v5930, %v5988
    %v6009 = vadd.f32 %v5933, %v5988
    %v6010 = vadd.f32 %v5938, %v5988
    %v6011 = vadd.f32 %v5941, %v5988
    %v6012 = vadd.f32 %v5946, %v5988
    %v6013 = vadd.f32 %v5949, %v5988
    %v6014 = vadd.f32 %v5954, %v5988
    %v6015 = vadd.f32 %v5957, %v5988
    %v6016 = vadd.f32 %v5962, %v5988
    %v6017 = vadd.f32 %v5965, %v5988
    %v6018 = vadd.f32 %v5970, %v5988
    %v6019 = vadd.f32 %v5973, %v5988
    %v6020 = vadd.f32 %v5978, %v5988
    %v6021 = vadd.f32 %v5981, %v5988
    %v6022 = vmax.f32 %v5990, 0.0
    %v6023 = vmax.f32 %v5991, 0.0
    %v6024 = vmax.f32 %v5992, 0.0
    %v6025 = vmax.f32 %v5993, 0.0
    %v6026 = vmax.f32 %v5994, 0.0
    %v6027 = vmax.f32 %v5995, 0.0
    %v6028 = vmax.f32 %v5996, 0.0
    %v6029 = vmax.f32 %v5997, 0.0
    %v6030 = vmax.f32 %v5998, 0.0
    %v6031 = vmax.f32 %v5999, 0.0
    %v6032 = vmax.f32 %v6000, 0.0
    %v6033 = vmax.f32 %v6001, 0.0
    %v6034 = vmax.f32 %v6002, 0.0
    %v6035 = vmax.f32 %v6003, 0.0
    %v6036 = vmax.f32 %v6004, 0.0
    %v6037 = vmax.f32 %v6005, 0.0
    %v6038 = vmax.f32 %v6006, 0.0
    %v6039 = vmax.f32 %v6007, 0.0
    %v6040 = vmax.f32 %v6008, 0.0
    %v6041 = vmax.f32 %v6009, 0.0
    %v6042 = vmax.f32 %v6010, 0.0
    %v6043 = vmax.f32 %v6011, 0.0
    %v6044 = vmax.f32 %v6012, 0.0
    %v6045 = vmax.f32 %v6013, 0.0
    %v6046 = vmax.f32 %v6014, 0.0
    %v6047 = vmax.f32 %v6015, 0.0
    %v6048 = vmax.f32 %v6016, 0.0
    %v6049 = vmax.f32 %v6017, 0.0
    %v6050 = vmax.f32 %v6018, 0.0
    %v6051 = vmax.f32 %v6019, 0.0
    %v6052 = vmax.f32 %v6020, 0.0
    %v6053 = vmax.f32 %v6021, 0.0
    %v6054 = vld [vmem:[%s3] sm:$0xff]
    %v6055 = vld [vmem:[%s3 + $0x8] sm:$0xff]
    %v6056 = vld [vmem:[%s3 + $0x10] sm:$0xff]
    %v6057 = vld [vmem:[%s3 + $0x18] sm:$0xff]
    %v6058 = vld [vmem:[%s3 + $0x20] sm:$0xff]
    %v6059 = vld [vmem:[%s3 + $0x28] sm:$0xff]
    %v6060 = vld [vmem:[%s3 + $0x30] sm:$0xff]
    %v6061 = vld [vmem:[%s3 + $0x38] sm:$0xff]
    %v6062 = vld [vmem:[%s3 + $0x40] sm:$0xff]
    %v6063 = vld [vmem:[%s3 + $0x48] sm:$0xff]
    %v6064 = vld [vmem:[%s3 + $0x50] sm:$0xff]
    %v6065 = vld [vmem:[%s3 + $0x58] sm:$0xff]
    %v6066 = vld [vmem:[%s3 + $0x60] sm:$0xff]
    %v6067 = vld [vmem:[%s3 + $0x68] sm:$0xff]
    %v6068 = vld [vmem:[%s3 + $0x70] sm:$0xff]
    %v6069 = vld [vmem:[%s3 + $0x78] sm:$0xff]
    %v6070 = vld [vmem:[%s3 + $0x80] sm:$0xff]
    %v6071 = vld [vmem:[%s3 + $0x88] sm:$0xff]
    %v6072 = vld [vmem:[%s3 + $0x90] sm:$0xff]
    %v6073 = vld [vmem:[%s3 + $0x98] sm:$0xff]
    %v6074 = vld [vmem:[%s3 + $0xa0] sm:$0xff]
    %v6075 = vld [vmem:[%s3 + $0xa8] sm:$0xff]
    %v6076 = vld [vmem:[%s3 + $0xb0] sm:$0xff]
    %v6077 = vld [vmem:[%s3 + $0xb8] sm:$0xff]
    %v6078 = vld [vmem:[%s3 + $0xc0] sm:$0xff]
    %v6079 = vld [vmem:[%s3 + $0xc8] sm:$0xff]
    %v6080 = vld [vmem:[%s3 + $0xd0] sm:$0xff]
    %v6081 = vld [vmem:[%s3 + $0xd8] sm:$0xff]
    %v6082 = vld [vmem:[%s3 + $0xe0] sm:$0xff]
    %v6083 = vld [vmem:[%s3 + $0xe8] sm:$0xff]
    %v6084 = vld [vmem:[%s3 + $0xf0] sm:$0xff]
    %v6085 = vld [vmem:[%s3 + $0xf8] sm:$0xff]
    %6087 = vset.pattern.permute.xlu0 0
    %6088 = vperm.xlu0 %6087, %v6054
    %v6089 = vpop.permute.xlu0 %6088
    %6092 = vset.pattern.permute.xlu0 0
    %6093 = vperm.xlu0 %6092, %v6055
    %v6094 = vpop.permute.xlu0 %6093
    %6097 = vset.pattern.permute.xlu0 0
    %6098 = vperm.xlu0 %6097, %v6056
    %v6099 = vpop.permute.xlu0 %6098
    %6102 = vset.pattern.permute.xlu0 0
    %6103 = vperm.xlu0 %6102, %v6057
    %v6104 = vpop.permute.xlu0 %6103
    %6107 = vset.pattern.permute.xlu0 0
    %6108 = vperm.xlu0 %6107, %v6058
    %v6109 = vpop.permute.xlu0 %6108
    %6112 = vset.pattern.permute.xlu0 0
    %6113 = vperm.xlu0 %6112, %v6059
    %v6114 = vpop.permute.xlu0 %6113
    %6117 = vset.pattern.permute.xlu0 0
    %6118 = vperm.xlu0 %6117, %v6060
    %v6119 = vpop.permute.xlu0 %6118
    %6122 = vset.pattern.permute.xlu0 0
    %6123 = vperm.xlu0 %6122, %v6061
    %v6124 = vpop.permute.xlu0 %6123
    %6127 = vset.pattern.permute.xlu0 0
    %6128 = vperm.xlu0 %6127, %v6062
    %v6129 = vpop.permute.xlu0 %6128
    %6132 = vset.pattern.permute.xlu0 0
    %6133 = vperm.xlu0 %6132, %v6063
    %v6134 = vpop.permute.xlu0 %6133
    %6137 = vset.pattern.permute.xlu0 0
    %6138 = vperm.xlu0 %6137, %v6064
    %v6139 = vpop.permute.xlu0 %6138
    %6142 = vset.pattern.permute.xlu0 0
    %6143 = vperm.xlu0 %6142, %v6065
    %v6144 = vpop.permute.xlu0 %6143
    %6147 = vset.pattern.permute.xlu0 0
    %6148 = vperm.xlu0 %6147, %v6066
    %v6149 = vpop.permute.xlu0 %6148
    %6152 = vset.pattern.permute.xlu0 0
    %6153 = vperm.xlu0 %6152, %v6067
    %v6154 = vpop.permute.xlu0 %6153
    %6157 = vset.pattern.permute.xlu0 0
    %6158 = vperm.xlu0 %6157, %v6068
    %v6159 = vpop.permute.xlu0 %6158
    %6162 = vset.pattern.permute.xlu0 0
    %6163 = vperm.xlu0 %6162, %v6069
    %v6164 = vpop.permute.xlu0 %6163
    %6167 = vset.pattern.permute.xlu0 0
    %6168 = vperm.xlu0 %6167, %v6070
    %v6169 = vpop.permute.xlu0 %6168
    %6172 = vset.pattern.permute.xlu0 0
    %6173 = vperm.xlu0 %6172, %v6071
    %v6174 = vpop.permute.xlu0 %6173
    %6177 = vset.pattern.permute.xlu0 0
    %6178 = vperm.xlu0 %6177, %v6072
    %v6179 = vpop.permute.xlu0 %6178
    %6182 = vset.pattern.permute.xlu0 0
    %6183 = vperm.xlu0 %6182, %v6073
    %v6184 = vpop.permute.xlu0 %6183
    %6187 = vset.pattern.permute.xlu0 0
    %6188 = vperm.xlu0 %6187, %v6074
    %v6189 = vpop.permute.xlu0 %6188
    %6192 = vset.pattern.permute.xlu0 0
    %6193 = vperm.xlu0 %6192, %v6075
    %v6194 = vpop.permute.xlu0 %6193
    %6197 = vset.pattern.permute.xlu0 0
    %6198 = vperm.xlu0 %6197, %v6076
    %v6199 = vpop.permute.xlu0 %6198
    %6202 = vset.pattern.permute.xlu0 0
    %6203 = vperm.xlu0 %6202, %v6077
    %v6204 = vpop.permute.xlu0 %6203
    %6207 = vset.pattern.permute.xlu0 0
    %6208 = vperm.xlu0 %6207, %v6078
    %v6209 = vpop.permute.xlu0 %6208
    %6212 = vset.pattern.permute.xlu0 0
    %6213 = vperm.xlu0 %6212, %v6079
    %v6214 = vpop.permute.xlu0 %6213
    %6217 = vset.pattern.permute.xlu0 0
    %6218 = vperm.xlu0 %6217, %v6080
    %v6219 = vpop.permute.xlu0 %6218
    %6222 = vset.pattern.permute.xlu0 0
    %6223 = vperm.xlu0 %6222, %v6081
    %v6224 = vpop.permute.xlu0 %6223
    %6227 = vset.pattern.permute.xlu0 0
    %6228 = vperm.xlu0 %6227, %v6082
    %v6229 = vpop.permute.xlu0 %6228
    %6232 = vset.pattern.permute.xlu0 0
    %6233 = vperm.xlu0 %6232, %v6083
    %v6234 = vpop.permute.xlu0 %6233
    %6237 = vset.pattern.permute.xlu0 0
    %6238 = vperm.xlu0 %6237, %v6084
    %v6239 = vpop.permute.xlu0 %6238
    %6242 = vset.pattern.permute.xlu0 0
    %6243 = vperm.xlu0 %6242, %v6085
    %v6244 = vpop.permute.xlu0 %6243
    %v6246 = vmul.f32 %v6022, %v6089
    %v6247 = vmul.f32 %v6023, %v6094
    %v6248 = vmul.f32 %v6024, %v6099
    %v6249 = vmul.f32 %v6025, %v6104
    %v6250 = vmul.f32 %v6026, %v6109
    %v6251 = vmul.f32 %v6027, %v6114
    %v6252 = vmul.f32 %v6028, %v6119
    %v6253 = vmul.f32 %v6029, %v6124
    %v6254 = vmul.f32 %v6030, %v6129
    %v6255 = vmul.f32 %v6031, %v6134
    %v6256 = vmul.f32 %v6032, %v6139
    %v6257 = vmul.f32 %v6033, %v6144
    %v6258 = vmul.f32 %v6034, %v6149
    %v6259 = vmul.f32 %v6035, %v6154
    %v6260 = vmul.f32 %v6036, %v6159
    %v6261 = vmul.f32 %v6037, %v6164
    %v6262 = vmul.f32 %v6038, %v6169
    %v6263 = vmul.f32 %v6039, %v6174
    %v6264 = vmul.f32 %v6040, %v6179
    %v6265 = vmul.f32 %v6041, %v6184
    %v6266 = vmul.f32 %v6042, %v6189
    %v6267 = vmul.f32 %v6043, %v6194
    %v6268 = vmul.f32 %v6044, %v6199
    %v6269 = vmul.f32 %v6045, %v6204
    %v6270 = vmul.f32 %v6046, %v6209
    %v6271 = vmul.f32 %v6047, %v6214
    %v6272 = vmul.f32 %v6048, %v6219
    %v6273 = vmul.f32 %v6049, %v6224
    %v6274 = vmul.f32 %v6050, %v6229
    %v6275 = vmul.f32 %v6051, %v6234
    %v6276 = vmul.f32 %v6052, %v6239
    %v6277 = vmul.f32 %v6053, %v6244
    %6278 = vst [vmem:[#allocation3] sm:$0xff] %v6246
    %6279 = vst [vmem:[#allocation3 + $0x8] sm:$0xff] %v6247
    %6280 = vst [vmem:[#allocation3 + $0x10] sm:$0xff] %v6248
    %6281 = vst [vmem:[#allocation3 + $0x18] sm:$0xff] %v6249
    %6282 = vst [vmem:[#allocation3 + $0x20] sm:$0xff] %v6250
    %6283 = vst [vmem:[#allocation3 + $0x28] sm:$0xff] %v6251
    %6284 = vst [vmem:[#allocation3 + $0x30] sm:$0xff] %v6252
    %6285 = vst [vmem:[#allocation3 + $0x38] sm:$0xff] %v6253
    %6286 = vst [vmem:[#allocation3 + $0x40] sm:$0xff] %v6254
    %6287 = vst [vmem:[#allocation3 + $0x48] sm:$0xff] %v6255
    %6288 = vst [vmem:[#allocation3 + $0x50] sm:$0xff] %v6256
    %6289 = vst [vmem:[#allocation3 + $0x58] sm:$0xff] %v6257
    %6290 = vst [vmem:[#allocation3 + $0x60] sm:$0xff] %v6258
    %6291 = vst [vmem:[#allocation3 + $0x68] sm:$0xff] %v6259
    %6292 = vst [vmem:[#allocation3 + $0x70] sm:$0xff] %v6260
    %6293 = vst [vmem:[#allocation3 + $0x78] sm:$0xff] %v6261
    %6294 = vst [vmem:[#allocation3 + $0x80] sm:$0xff] %v6262
    %6295 = vst [vmem:[#allocation3 + $0x88] sm:$0xff] %v6263
    %6296 = vst [vmem:[#allocation3 + $0x90] sm:$0xff] %v6264
    %6297 = vst [vmem:[#allocation3 + $0x98] sm:$0xff] %v6265
    %6298 = vst [vmem:[#allocation3 + $0xa0] sm:$0xff] %v6266
    %6299 = vst [vmem:[#allocation3 + $0xa8] sm:$0xff] %v6267
    %6300 = vst [vmem:[#allocation3 + $0xb0] sm:$0xff] %v6268
    %6301 = vst [vmem:[#allocation3 + $0xb8] sm:$0xff] %v6269
    %6302 = vst [vmem:[#allocation3 + $0xc0] sm:$0xff] %v6270
    %6303 = vst [vmem:[#allocation3 + $0xc8] sm:$0xff] %v6271
    %6304 = vst [vmem:[#allocation3 + $0xd0] sm:$0xff] %v6272
    %6305 = vst [vmem:[#allocation3 + $0xd8] sm:$0xff] %v6273
    %6306 = vst [vmem:[#allocation3 + $0xe0] sm:$0xff] %v6274
    %6307 = vst [vmem:[#allocation3 + $0xe8] sm:$0xff] %v6275
    %6308 = vst [vmem:[#allocation3 + $0xf0] sm:$0xff] %v6276
    %6309 = vst [vmem:[#allocation3 + $0xf8] sm:$0xff] %v6277
    %v6310 = vld [vmem:[#allocation3] sm:$0xff]
    %v6311 = vld [vmem:[#allocation3 + $0x8] sm:$0xff]
    %v6312 = vld [vmem:[#allocation3 + $0x10] sm:$0xff]
    %v6313 = vld [vmem:[#allocation3 + $0x18] sm:$0xff]
    %v6314 = vld [vmem:[#allocation3 + $0x20] sm:$0xff]
    %v6315 = vld [vmem:[#allocation3 + $0x28] sm:$0xff]
    %v6316 = vld [vmem:[#allocation3 + $0x30] sm:$0xff]
    %v6317 = vld [vmem:[#allocation3 + $0x38] sm:$0xff]
    %v6318 = vld [vmem:[#allocation3 + $0x40] sm:$0xff]
    %v6319 = vld [vmem:[#allocation3 + $0x48] sm:$0xff]
    %v6320 = vld [vmem:[#allocation3 + $0x50] sm:$0xff]
    %v6321 = vld [vmem:[#allocation3 + $0x58] sm:$0xff]
    %v6322 = vld [vmem:[#allocation3 + $0x60] sm:$0xff]
    %v6323 = vld [vmem:[#allocation3 + $0x68] sm:$0xff]
    %v6324 = vld [vmem:[#allocation3 + $0x70] sm:$0xff]
    %v6325 = vld [vmem:[#allocation3 + $0x78] sm:$0xff]
    %v6326 = vld [vmem:[#allocation3 + $0x80] sm:$0xff]
    %v6327 = vld [vmem:[#allocation3 + $0x88] sm:$0xff]
    %v6328 = vld [vmem:[#allocation3 + $0x90] sm:$0xff]
    %v6329 = vld [vmem:[#allocation3 + $0x98] sm:$0xff]
    %v6330 = vld [vmem:[#allocation3 + $0xa0] sm:$0xff]
    %v6331 = vld [vmem:[#allocation3 + $0xa8] sm:$0xff]
    %v6332 = vld [vmem:[#allocation3 + $0xb0] sm:$0xff]
    %v6333 = vld [vmem:[#allocation3 + $0xb8] sm:$0xff]
    %v6334 = vld [vmem:[#allocation3 + $0xc0] sm:$0xff]
    %v6335 = vld [vmem:[#allocation3 + $0xc8] sm:$0xff]
    %v6336 = vld [vmem:[#allocation3 + $0xd0] sm:$0xff]
    %v6337 = vld [vmem:[#allocation3 + $0xd8] sm:$0xff]
    %v6338 = vld [vmem:[#allocation3 + $0xe0] sm:$0xff]
    %v6339 = vld [vmem:[#allocation3 + $0xe8] sm:$0xff]
    %v6340 = vld [vmem:[#allocation3 + $0xf0] sm:$0xff]
    %v6341 = vld [vmem:[#allocation3 + $0xf8] sm:$0xff]
    %6342 = vst [vmem:[%s15] sm:$0xff] %v6310
    %6343 = vst [vmem:[%s15 + $0x8] sm:$0xff] %v6311
    %6344 = vst [vmem:[%s15 + $0x10] sm:$0xff] %v6312
    %6345 = vst [vmem:[%s15 + $0x18] sm:$0xff] %v6313
    %6346 = vst [vmem:[%s15 + $0x20] sm:$0xff] %v6314
    %6347 = vst [vmem:[%s15 + $0x28] sm:$0xff] %v6315
    %6348 = vst [vmem:[%s15 + $0x30] sm:$0xff] %v6316
    %6349 = vst [vmem:[%s15 + $0x38] sm:$0xff] %v6317
    %6350 = vst [vmem:[%s15 + $0x40] sm:$0xff] %v6318
    %6351 = vst [vmem:[%s15 + $0x48] sm:$0xff] %v6319
    %6352 = vst [vmem:[%s15 + $0x50] sm:$0xff] %v6320
    %6353 = vst [vmem:[%s15 + $0x58] sm:$0xff] %v6321
    %6354 = vst [vmem:[%s15 + $0x60] sm:$0xff] %v6322
    %6355 = vst [vmem:[%s15 + $0x68] sm:$0xff] %v6323
    %6356 = vst [vmem:[%s15 + $0x70] sm:$0xff] %v6324
    %6357 = vst [vmem:[%s15 + $0x78] sm:$0xff] %v6325
    %6358 = vst [vmem:[%s15 + $0x80] sm:$0xff] %v6326
    %6359 = vst [vmem:[%s15 + $0x88] sm:$0xff] %v6327
    %6360 = vst [vmem:[%s15 + $0x90] sm:$0xff] %v6328
    %6361 = vst [vmem:[%s15 + $0x98] sm:$0xff] %v6329
    %6362 = vst [vmem:[%s15 + $0xa0] sm:$0xff] %v6330
    %6363 = vst [vmem:[%s15 + $0xa8] sm:$0xff] %v6331
    %6364 = vst [vmem:[%s15 + $0xb0] sm:$0xff] %v6332
    %6365 = vst [vmem:[%s15 + $0xb8] sm:$0xff] %v6333
    %6366 = vst [vmem:[%s15 + $0xc0] sm:$0xff] %v6334
    %6367 = vst [vmem:[%s15 + $0xc8] sm:$0xff] %v6335
    %6368 = vst [vmem:[%s15 + $0xd0] sm:$0xff] %v6336
    %6369 = vst [vmem:[%s15 + $0xd8] sm:$0xff] %v6337
    %6370 = vst [vmem:[%s15 + $0xe0] sm:$0xff] %v6338
    %6371 = vst [vmem:[%s15 + $0xe8] sm:$0xff] %v6339
    %6372 = vst [vmem:[%s15 + $0xf0] sm:$0xff] %v6340
    %6373 = vst [vmem:[%s15 + $0xf8] sm:$0xff] %v6341
    %v6374 = vld [vmem:[%s4] sm:$0x3]
    %v6375 = vld [vmem:[#allocation3] sm:$0xff]
    %v6376 = vld [vmem:[#allocation3 + $0x8] sm:$0xff]
    %v6377 = vld [vmem:[#allocation3 + $0x10] sm:$0xff]
    %v6378 = vld [vmem:[#allocation3 + $0x18] sm:$0xff]
    %v6379 = vld [vmem:[#allocation3 + $0x20] sm:$0xff]
    %v6380 = vld [vmem:[#allocation3 + $0x28] sm:$0xff]
    %v6381 = vld [vmem:[#allocation3 + $0x30] sm:$0xff]
    %v6382 = vld [vmem:[#allocation3 + $0x38] sm:$0xff]
    %v6383 = vld [vmem:[#allocation3 + $0x40] sm:$0xff]
    %v6384 = vld [vmem:[#allocation3 + $0x48] sm:$0xff]
    %v6385 = vld [vmem:[#allocation3 + $0x50] sm:$0xff]
    %v6386 = vld [vmem:[#allocation3 + $0x58] sm:$0xff]
    %v6387 = vld [vmem:[#allocation3 + $0x60] sm:$0xff]
    %v6388 = vld [vmem:[#allocation3 + $0x68] sm:$0xff]
    %v6389 = vld [vmem:[#allocation3 + $0x70] sm:$0xff]
    %v6390 = vld [vmem:[#allocation3 + $0x78] sm:$0xff]
    %v6391 = vld [vmem:[#allocation3 + $0x80] sm:$0xff]
    %v6392 = vld [vmem:[#allocation3 + $0x88] sm:$0xff]
    %v6393 = vld [vmem:[#allocation3 + $0x90] sm:$0xff]
    %v6394 = vld [vmem:[#allocation3 + $0x98] sm:$0xff]
    %v6395 = vld [vmem:[#allocation3 + $0xa0] sm:$0xff]
    %v6396 = vld [vmem:[#allocation3 + $0xa8] sm:$0xff]
    %v6397 = vld [vmem:[#allocation3 + $0xb0] sm:$0xff]
    %v6398 = vld [vmem:[#allocation3 + $0xb8] sm:$0xff]
    %v6399 = vld [vmem:[#allocation3 + $0xc0] sm:$0xff]
    %v6400 = vld [vmem:[#allocation3 + $0xc8] sm:$0xff]
    %v6401 = vld [vmem:[#allocation3 + $0xd0] sm:$0xff]
    %v6402 = vld [vmem:[#allocation3 + $0xd8] sm:$0xff]
    %v6403 = vld [vmem:[#allocation3 + $0xe0] sm:$0xff]
    %v6404 = vld [vmem:[#allocation3 + $0xe8] sm:$0xff]
    %v6405 = vld [vmem:[#allocation3 + $0xf0] sm:$0xff]
    %v6406 = vld [vmem:[#allocation3 + $0xf8] sm:$0xff]
    %v6407 = vpack.c.bf16 %v6376, %v6375
    %v6408 = vpack.c.bf16 %v6378, %v6377
    %v6409 = vpack.c.bf16 %v6380, %v6379
    %v6410 = vpack.c.bf16 %v6382, %v6381
    %v6411 = vpack.c.bf16 %v6384, %v6383
    %v6412 = vpack.c.bf16 %v6386, %v6385
    %v6413 = vpack.c.bf16 %v6388, %v6387
    %v6414 = vpack.c.bf16 %v6390, %v6389
    %v6415 = vpack.c.bf16 %v6392, %v6391
    %v6416 = vpack.c.bf16 %v6394, %v6393
    %v6417 = vpack.c.bf16 %v6396, %v6395
    %v6418 = vpack.c.bf16 %v6398, %v6397
    %v6419 = vpack.c.bf16 %v6400, %v6399
    %v6420 = vpack.c.bf16 %v6402, %v6401
    %v6421 = vpack.c.bf16 %v6404, %v6403
    %v6422 = vpack.c.bf16 %v6406, %v6405
    %v6425 = vunpack.c.l.s4 1966171168
    %v6426 = vunpack.c.0.s8 %v6425
    %v6427 = vlaneseq
    %v6428 = vshrl.u32 %v6427, 7
    %v6429 = vsub.s32 %v6426, %v6428
    %v6430 = vrot.slane %v6374, %v6429
    %v6431 = vcombine.high %v6430, %v6430
    %v6433 = vunpack.c.l.s4 1966171168
    %v6434 = vunpack.c.0.s8 %v6433
    %v6435 = vlaneseq
    %v6436 = vshrl.u32 %v6435, 7
    %v6437 = vsub.s32 %v6434, %v6436
    %v6438 = vrot.slane %v6430, %v6437
    %v6440 = vunpack.c.l.s4 1966171168
    %v6441 = vunpack.c.0.s8 %v6440
    %v6442 = vlaneseq
    %v6443 = vshrl.u32 %v6442, 7
    %v6444 = vsub.s32 %v6441, %v6443
    %v6445 = vrot.slane %v6431, %v6444
    %6448 = vmatprep.subr.bf16.mxu0 0
    %6449 = vmatpush1.bf16.msra.mxu0 %v6407
    %6450 = vmatprep.subr.bf16.mxu0 0
    %6451 = vmatpush1.bf16.msra.mxu0 %v6408
    %6452 = vmatprep.subr.bf16.mxu0 0
    %6453 = vmatpush1.bf16.msra.mxu0 %v6409
    %6454 = vmatprep.subr.bf16.mxu0 0
    %6455 = vmatpush1.bf16.msra.mxu0 %v6410
    %6456 = vmatprep.subr.bf16.mxu0 0
    %6457 = vmatpush1.bf16.msra.mxu0 %v6411
    %6458 = vmatprep.subr.bf16.mxu0 0
    %6459 = vmatpush1.bf16.msra.mxu0 %v6412
    %6460 = vmatprep.subr.bf16.mxu0 0
    %6461 = vmatpush1.bf16.msra.mxu0 %v6413
    %6462 = vmatprep.subr.bf16.mxu0 0
    %6463 = vmatpush1.bf16.msra.mxu0 %v6414
    %6464 = vmatprep.subr.bf16.mxu0 0
    %6465 = vmatpush1.bf16.msra.mxu0 %v6415
    %6466 = vmatprep.subr.bf16.mxu0 0
    %6467 = vmatpush1.bf16.msra.mxu0 %v6416
    %6468 = vmatprep.subr.bf16.mxu0 0
    %6469 = vmatpush1.bf16.msra.mxu0 %v6417
    %6470 = vmatprep.subr.bf16.mxu0 0
    %6471 = vmatpush1.bf16.msra.mxu0 %v6418
    %6472 = vmatprep.subr.bf16.mxu0 0
    %6473 = vmatpush1.bf16.msra.mxu0 %v6419
    %6474 = vmatprep.subr.bf16.mxu0 0
    %6475 = vmatpush1.bf16.msra.mxu0 %v6420
    %6476 = vmatprep.subr.bf16.mxu0 0
    %6477 = vmatpush1.bf16.msra.mxu0 %v6421
    %6478 = vmatprep.subr.bf16.mxu0 0
    %6479 = vmatpush1.bf16.msra.mxu0 %v6422
    %6480 = vmatprep.mubr.bf16.mxu0 %v6445
    %6481 = vmatmul.mubr.bf16.gmra.mrb[0].mxu0 %v6438
    %v6482 = vpop.f32.mrb[0].mxu0
    %v6483 = vadd.f32 0.0, %v6482
    %v6484 = vpop.f32.mrb[0].mxu0
    %v6485 = vpop.f32.mrb[0].mxu0
    %v6486 = vpop.f32.mrb[0].mxu0
    %6487 = vdwg.mxu0
    %vm6488 = vcmask 1041408
    %v6489 = vsel %vm6488, %v6483, 0.0
    %v6490 = vrot.slane %v6489, 4
    %v6491 = vadd.f32 %v6489, %v6490
    %v6492 = vrot.slane %v6491, 2
    %v6493 = vadd.f32 %v6491, %v6492
    %v6494 = vrot.slane %v6493, 1
    %v6495 = vadd.f32 %v6493, %v6494
    %v6496 = vmul.f32 %v6483, %v6483
    %v6497 = vsel %vm6488, %v6496, 0.0
    %v6498 = vrot.slane %v6497, 4
    %v6499 = vadd.f32 %v6497, %v6498
    %v6500 = vrot.slane %v6499, 2
    %v6501 = vadd.f32 %v6499, %v6500
    %v6502 = vrot.slane %v6501, 1
    %v6503 = vadd.f32 %v6501, %v6502
    %v6504 = vmul.f32 %v6495, 0.5
    %v6505 = vmul.f32 %v6503, 0.5
    %v6506 = vmul.f32 %v6504, %v6504
    %v6507 = vsub.f32 %v6505, %v6506
    %v6508 = vmax.f32 %v6507, 0.0
    %v6509 = vsub.f32 %v6483, %v6504
    %v6510 = vadd.f32 %v6508, 1e-05
    %v6511 = vrsqrt.pop %v6510
    %v6512 = vmul.f32 %v6509, %v6511
    %v6513 = vld [vmem:[%s11] sm:$0x1]
    %v6515 = vlaneseq
    %v6516 = vshrl.u32 %v6515, 7
    %v6517 = vsub.s32 0, %v6516
    %v6518 = vrot.slane %v6513, %v6517
    %v6520 = vmul.f32 %v6512, %v6518
    %v6521 = vld [vmem:[%s12] sm:$0x1]
    %v6523 = vlaneseq
    %v6524 = vshrl.u32 %v6523, 7
    %v6525 = vsub.s32 0, %v6524
    %v6526 = vrot.slane %v6521, %v6525
    %v6528 = vadd.f32 %v6520, %v6526
    %v6529 = vpack.c.bf16 %v6528, %v6528
    %v6530 = vld [vmem:[%s9] sm:$0xff]
    %v6531 = vld [vmem:[%s9 + $0x8] sm:$0xff]
    %v6532 = vld [vmem:[%s9 + $0x10] sm:$0xff]
    %v6533 = vld [vmem:[%s9 + $0x18] sm:$0xff]
    %v6534 = vld [vmem:[%s9 + $0x20] sm:$0xff]
    %v6535 = vld [vmem:[%s9 + $0x28] sm:$0xff]
    %v6536 = vld [vmem:[%s9 + $0x30] sm:$0xff]
    %v6537 = vld [vmem:[%s9 + $0x38] sm:$0xff]
    %v6538 = vld [vmem:[%s9 + $0x40] sm:$0xff]
    %v6539 = vld [vmem:[%s9 + $0x48] sm:$0xff]
    %v6540 = vld [vmem:[%s9 + $0x50] sm:$0xff]
    %v6541 = vld [vmem:[%s9 + $0x58] sm:$0xff]
    %v6542 = vld [vmem:[%s9 + $0x60] sm:$0xff]
    %v6543 = vld [vmem:[%s9 + $0x68] sm:$0xff]
    %v6544 = vld [vmem:[%s9 + $0x70] sm:$0xff]
    %v6545 = vld [vmem:[%s9 + $0x78] sm:$0xff]
    %v6546 = vpack.c.bf16 %v6531, %v6530
    %v6547 = vpack.c.bf16 %v6533, %v6532
    %v6548 = vpack.c.bf16 %v6535, %v6534
    %v6549 = vpack.c.bf16 %v6537, %v6536
    %v6550 = vpack.c.bf16 %v6539, %v6538
    %v6551 = vpack.c.bf16 %v6541, %v6540
    %v6552 = vpack.c.bf16 %v6543, %v6542
    %v6553 = vpack.c.bf16 %v6545, %v6544
    %v6554 = vld [vmem:[%s10] sm:$0x1]
    %v6556 = vlaneseq
    %v6557 = vshrl.u32 %v6556, 7
    %v6558 = vsub.s32 0, %v6557
    %v6559 = vrot.slane %v6554, %v6558
    %6561 = vmatprep.subr.bf16.mxu0 0
    %6562 = vmatpush1.bf16.msra.mxu0 %v6546
    %6563 = vmatprep.subr.bf16.mxu0 0
    %6564 = vmatpush1.bf16.msra.mxu0 %v6547
    %6565 = vmatprep.subr.bf16.mxu0 0
    %6566 = vmatpush1.bf16.msra.mxu0 %v6548
    %6567 = vmatprep.subr.bf16.mxu0 0
    %6568 = vmatpush1.bf16.msra.mxu0 %v6549
    %6569 = vmatprep.subr.bf16.mxu0 0
    %6570 = vmatpush1.bf16.msra.mxu0 %v6550
    %6571 = vmatprep.subr.bf16.mxu0 0
    %6572 = vmatpush1.bf16.msra.mxu0 %v6551
    %6573 = vmatprep.subr.bf16.mxu0 0
    %6574 = vmatpush1.bf16.msra.mxu0 %v6552
    %6575 = vmatprep.subr.bf16.mxu0 0
    %6576 = vmatpush1.bf16.msra.mxu0 %v6553
    %6577 = vmatprep.subr.bf16.mxu0 0
    %6578 = vmatpush1.bf16.msra.mxu0 0
    %6579 = vmatprep.subr.bf16.mxu0 0
    %6580 = vmatpush1.bf16.msra.mxu0 0
    %6581 = vmatprep.subr.bf16.mxu0 0
    %6582 = vmatpush1.bf16.msra.mxu0 0
    %6583 = vmatprep.subr.bf16.mxu0 0
    %6584 = vmatpush1.bf16.msra.mxu0 0
    %6585 = vmatprep.subr.bf16.mxu0 0
    %6586 = vmatpush1.bf16.msra.mxu0 0
    %6587 = vmatprep.subr.bf16.mxu0 0
    %6588 = vmatpush1.bf16.msra.mxu0 0
    %6589 = vmatprep.subr.bf16.mxu0 0
    %6590 = vmatpush1.bf16.msra.mxu0 0
    %6591 = vmatprep.subr.bf16.mxu0 0
    %6592 = vmatpush1.bf16.msra.mxu0 0
    %6593 = vmatprep.mubr.bf16.mxu0 0
    %6594 = vmatmul.mubr.bf16.gmra.mrb[0].mxu0 %v6529
    %v6595 = vpop.f32.mrb[0].mxu0
    %v6596 = vadd.f32 %v6559, %v6595
    %v6597 = vpop.f32.mrb[0].mxu0
    %v6598 = vpop.f32.mrb[0].mxu0
    %v6599 = vpop.f32.mrb[0].mxu0
    %6600 = vdwg.mxu0
    %v6601 = vmax.f32 %v6596, 0.0
    %v6602 = vsel %vm6488, %v6601, 0.0
    %v6603 = vrot.slane %v6602, 4
    %v6604 = vadd.f32 %v6602, %v6603
    %v6605 = vrot.slane %v6604, 2
    %v6606 = vadd.f32 %v6604, %v6605
    %v6607 = vrot.slane %v6606, 1
    %v6608 = vadd.f32 %v6606, %v6607
    %v6609 = vmul.f32 %v6601, %v6601
    %v6610 = vsel %vm6488, %v6609, 0.0
    %v6611 = vrot.slane %v6610, 4
    %v6612 = vadd.f32 %v6610, %v6611
    %v6613 = vrot.slane %v6612, 2
    %v6614 = vadd.f32 %v6612, %v6613
    %v6615 = vrot.slane %v6614, 1
    %v6616 = vadd.f32 %v6614, %v6615
    %v6617 = vmul.f32 %v6608, 0.5
    %v6618 = vmul.f32 %v6616, 0.5
    %v6619 = vmul.f32 %v6617, %v6617
    %v6620 = vsub.f32 %v6618, %v6619
    %v6621 = vmax.f32 %v6620, 0.0
    %v6622 = vsub.f32 %v6601, %v6617
    %v6623 = vadd.f32 %v6621, 1e-05
    %v6624 = vrsqrt.pop %v6623
    %v6625 = vmul.f32 %v6622, %v6624
    %v6626 = vld [vmem:[%s13] sm:$0x1]
    %v6628 = vlaneseq
    %v6629 = vshrl.u32 %v6628, 7
    %v6630 = vsub.s32 0, %v6629
    %v6631 = vrot.slane %v6626, %v6630
    %v6633 = vmul.f32 %v6625, %v6631
    %v6634 = vld [vmem:[%s14] sm:$0x1]
    %v6636 = vlaneseq
    %v6637 = vshrl.u32 %v6636, 7
    %v6638 = vsub.s32 0, %v6637
    %v6639 = vrot.slane %v6634, %v6638
    %v6641 = vadd.f32 %v6633, %v6639
    %6642 = vst [vmem:[#allocation7] sm:$0x3] %v6641
    // Predicated region
    $region206: #{resgcn_forward.1} parent=1 // pred_check
      _
    $region207: #{resgcn_forward.1} parent=1 // pred_check_branch
      %6644 = sbr.rel (0) target = $region209
    $region208: #{resgcn_forward.1} parent=1 // pred_region
      _
    $region209: #{resgcn_forward.1} parent=1 // pred_fallthru
      _
    // Predicated region
    $region210: #{resgcn_forward.1} parent=1 // pred_check
      _
    $region211: #{resgcn_forward.1} parent=1 // pred_check_branch
      %6646 = sbr.rel (0) target = $region213
    $region212: #{resgcn_forward.1} parent=1 // pred_region
      %s6648 = ssub.s32 32, 32
      %6649 = vsyncadd [#allocation8], %s6648
      %s6651 = sshll.u32 [#allocation7], 4
      %s6652 = int_to_ptr.vmem [resolvable:$true] %s6651
      %6654 = dma.vmem_to_hbm [thread:$0]  %s6652, 32, %s16, [#allocation8]
    $region213: #{resgcn_forward.1} parent=1 // pred_fallthru
      _
    // Predicated region
    $region214: #{resgcn_forward.1} parent=1 // pred_check
      _
    $region215: #{resgcn_forward.1} parent=1 // pred_check_branch
      %6656 = sbr.rel (0) target = $region217
    $region216: #{resgcn_forward.1} parent=1 // pred_region
      _
    $region217: #{resgcn_forward.1} parent=1 // pred_fallthru
      _
    // Predicated region
    $region218: #{resgcn_forward.1} parent=1 // pred_check
      _
    $region219: #{resgcn_forward.1} parent=1 // pred_check_branch
      %6658 = sbr.rel (0) target = $region221
    $region220: #{resgcn_forward.1} parent=1 // pred_region
      %6659 = dma.done [#allocation8], 32
    $region221: #{resgcn_forward.1} parent=1 // pred_fallthru
      _
    %6660 = vsyncpa [#allocation8], 1
  %6661 = vsyncmov [#allocation6]
  %s6662 = vpop.sfrf %6661
  %p6663 = scmp.eq.s32.totalorder %s6662, 0
  %p6664 = pneg %p6663
  %6666 = shalt.err (%p6664)
  %s6667 = scalar_lea.sflag [#allocation6], 1
  %6668 = vsyncmov %s6667
  %s6669 = vpop.sfrf %6668
  %p6670 = scmp.eq.s32.totalorder %s6669, 0
  %p6671 = pneg %p6670
  %6673 = shalt.err (%p6671)

</llo_original>
